<compile_context>
chip_gen: v5e
topology: v5e:2x2
jax: 0.10.0
libtpu: 0.0.40
codegen_flags: <defaults>
</compile_context>

<pallas_src>
import jax
import jax.numpy as jnp
from jax import lax
from jax.experimental import pallas as pl
from jax.experimental.pallas import tpu as pltpu

IN_DIM = 28 * 28                 # 784
IN_PAD = 896                     # 7 * 128 lane-dense padding of IN_DIM (done inside the kernel)
H1, H2, H3, OUT = 1024, 512, 256, 1


def _round_up(x, m):
    return (x + m - 1) // m * m


def _leaky_relu(x, slope=0.2):
    # max(x, slope*x): 2 VALU ops/elem (vs cmp+select+mul).
    return jnp.maximum(x, slope * x)


def discriminator_kernel(x_ref,
                         w1_ref, b1_ref,
                         w2_ref, b2_ref,
                         w3_ref, b3_ref,
                         w4_ref, b4_ref,
                         o_ref):
    tb = x_ref.shape[0]

    # Fold the f32->bf16 cast and 784->896 zero-pad into the kernel (no wrapper pass over x).
    x = x_ref[...].astype(jnp.bfloat16)
    x = jnp.concatenate(
        [x, jnp.zeros((tb, IN_PAD - IN_DIM), jnp.bfloat16)], axis=-1)

    # Layer 1: 896(pad of 784) -> 1024, bf16 MXU matmul, f32 accumulate, LeakyReLU in f32.
    h = jnp.dot(x, w1_ref[...], preferred_element_type=jnp.float32) + b1_ref[...]
    h = _leaky_relu(h)
    # TODO(synk): on v5e, if the bundle dump shows the single vst slot saturating on this
    # spilled [tb,1024] f32 intermediate, chunk H1 into 256-lane pieces (fori_loop, unroll=True).

    # Layer 2: 1024 -> 512
    h = jnp.dot(h.astype(jnp.bfloat16), w2_ref[...],
                preferred_element_type=jnp.float32) + b2_ref[...]
    h = _leaky_relu(h)

    # Layer 3: 512 -> 256
    h = jnp.dot(h.astype(jnp.bfloat16), w3_ref[...],
                preferred_element_type=jnp.float32) + b3_ref[...]
    h = _leaky_relu(h)

    # Layer 4: 256 -> 1 as w4[1,256] contracted against h[tb,256] on the last dim
    # (q@k^T-style dot_general) -> lane-dense [1, tb] logits row, no masked N=1 stores.
    logits = lax.dot_general(
        w4_ref[...], h.astype(jnp.bfloat16),
        dimension_numbers=(((1,), (1,)), ((), ())),
        preferred_element_type=jnp.float32) + b4_ref[...]

    # Sigmoid: exp on the EUP, approximate reciprocal on the EUP -> keeps VALU free.
    e = jnp.exp(-logits)
    o_ref[...] = pl.reciprocal(1.0 + e, approx=True).astype(o_ref.dtype)


def prepare_params(params):
    """One-time device-layout conversion of f32 params (do NOT redo this per batch)."""
    return dict(
        w1=jnp.pad(params["w1"], ((0, IN_PAD - IN_DIM), (0, 0))).astype(jnp.bfloat16),
        b1=params["b1"].astype(jnp.float32),
        w2=params["w2"].astype(jnp.bfloat16),
        b2=params["b2"].astype(jnp.float32),
        w3=params["w3"].astype(jnp.bfloat16),
        b3=params["b3"].astype(jnp.float32),
        w4=params["w4"].T.astype(jnp.bfloat16),   # (1, 256)
        b4=params["b4"].astype(jnp.float32),      # (1, 1)
    )


def discriminator_forward(x, prep, *, tb=None):
    """x: [B, 784] float32. prep: output of prepare_params(). Returns [B, 1] float32."""
    B = x.shape[0]
    if tb is None:
        # tb=256 amortizes the ~0.35us/grid-step overhead for big batches; tb=128 keeps
        # >=2 grid steps for small batches so v7x's two TensorCores both get work.
        tb = 256 if B >= 512 else 128
    b_pad = _round_up(max(B, 1), tb)

    # Only ragged-batch rows are padded (zeros); x itself is passed f32, cast happens in-kernel.
    x_p = x if b_pad == B else jnp.pad(x, ((0, b_pad - B), (0, 0)))
    n_tiles = b_pad // tb

    def const(shape):
        # Grid-constant weight/bias blocks: single-buffered (no point double-buffering them).
        return pl.BlockSpec(shape, lambda i: (0, 0), pipeline_mode=pl.Buffered(1))

    out = pl.pallas_call(
        discriminator_kernel,
        out_shape=jax.ShapeDtypeStruct((1, b_pad), jnp.float32),
        grid_spec=pltpu.PrefetchScalarGridSpec(
            num_scalar_prefetch=0,
            grid=(n_tiles,),
            in_specs=[
                pl.BlockSpec((tb, IN_DIM), lambda i: (i, 0)),   # x tile (double-buffered)
                const((IN_PAD, H1)), const((1, H1)),
                const((H1, H2)),     const((1, H2)),
                const((H2, H3)),     const((1, H3)),
                const((1, H3)),      const((1, OUT)),
            ],
            out_specs=pl.BlockSpec((1, tb), lambda i: (0, i)),  # lane-dense logits row per tile
        ),
        compiler_params=pltpu.CompilerParams(
            dimension_semantics=("parallel",),
        ),
    )(x_p, prep["w1"], prep["b1"], prep["w2"], prep["b2"],
      prep["w3"], prep["b3"], prep["w4"], prep["b4"])

    # (1, b_pad) row -> column, drop padded rows (keep this slice!).
    return out.reshape(b_pad, 1)[:B]


def init_params(key):
    """Deterministic init mimicking PyTorch nn.Linear defaults (uniform(+-1/sqrt(fan_in)))."""
    dims = [(IN_DIM, H1), (H1, H2), (H2, H3), (H3, OUT)]
    params = {}
    for idx, (fan_in, fan_out) in enumerate(dims, start=1):
        key, kw, kb = jax.random.split(key, 3)
        bound = 1.0 / jnp.sqrt(float(fan_in))
        # stored as [in, out] (transposed vs PyTorch's [out, in])
        params[f"w{idx}"] = jax.random.uniform(
            kw, (fan_in, fan_out), jnp.float32, -bound, bound)
        params[f"b{idx}"] = jax.random.uniform(
            kb, (1, fan_out), jnp.float32, -bound, bound)
    return params


def reference_forward(x, params):
    """Pure-JAX f32 reference (matches the PyTorch module's math)."""
    h = x
    for idx in range(1, 4):
        h = h @ params[f"w{idx}"] + params[f"b{idx}"]
        h = jnp.where(h > 0, h, 0.2 * h)
    logits = h @ params["w4"] + params["b4"]
    return jax.nn.sigmoid(logits)


if __name__ == "__main__":
    key = jax.random.PRNGKey(0)
    key, kx = jax.random.split(key)
    B = 8
    x = jax.random.normal(kx, (B, IN_DIM), jnp.float32)

    params = init_params(jax.random.PRNGKey(0))
    prep = prepare_params(params)

    out = jax.block_until_ready(discriminator_forward(x, prep))
    ref = reference_forward(x, params)

    assert out.shape == (B, 1), out.shape
    max_err = float(jnp.max(jnp.abs(out - ref)))
    # bf16 weights/activations + approx reciprocal vs f32 reference -> loosened tolerance.
    assert max_err < 2e-2, f"max err {max_err}"

    print("KERNEL_OK")
</pallas_src>

<mosaic_0001>
module attributes {stable_mosaic.version = 11 : i64} {
  func.func @discriminator_kernel(%arg0: i32, %arg1: memref<128x784xf32, #tpu.memory_space<vmem>>, %arg2: memref<896x1024xbf16, #tpu.memory_space<vmem>>, %arg3: memref<1x1024xf32, #tpu.memory_space<vmem>>, %arg4: memref<1024x512xbf16, #tpu.memory_space<vmem>>, %arg5: memref<1x512xf32, #tpu.memory_space<vmem>>, %arg6: memref<512x256xbf16, #tpu.memory_space<vmem>>, %arg7: memref<1x256xf32, #tpu.memory_space<vmem>>, %arg8: memref<1x256xbf16, #tpu.memory_space<vmem>>, %arg9: memref<1x1xf32, #tpu.memory_space<vmem>>, %arg10: memref<1x128xf32, #tpu.memory_space<vmem>>) attributes {dimension_semantics = [#tpu.dimension_semantics<parallel>], iteration_bounds = array<i64: 1>, scalar_prefetch = 0 : i64, scratch_operands = 0 : i64, tpu.core_type = #tpu.core_type<tc>, window_params = [{transform_indices = @transform_0, window_bounds = array<i64: 128, 784>}, {pipeline_mode = #tpu.pipeline_mode<synchronous>, transform_indices = @transform_1, window_bounds = array<i64: 896, 1024>}, {pipeline_mode = #tpu.pipeline_mode<synchronous>, transform_indices = @transform_2, window_bounds = array<i64: 1, 1024>}, {pipeline_mode = #tpu.pipeline_mode<synchronous>, transform_indices = @transform_3, window_bounds = array<i64: 1024, 512>}, {pipeline_mode = #tpu.pipeline_mode<synchronous>, transform_indices = @transform_4, window_bounds = array<i64: 1, 512>}, {pipeline_mode = #tpu.pipeline_mode<synchronous>, transform_indices = @transform_5, window_bounds = array<i64: 512, 256>}, {pipeline_mode = #tpu.pipeline_mode<synchronous>, transform_indices = @transform_6, window_bounds = array<i64: 1, 256>}, {pipeline_mode = #tpu.pipeline_mode<synchronous>, transform_indices = @transform_7, window_bounds = array<i64: 1, 256>}, {pipeline_mode = #tpu.pipeline_mode<synchronous>, transform_indices = @transform_8, window_bounds = array<i64: 1, 1>}, {transform_indices = @transform_9, window_bounds = array<i64: 1, 128>}]} {
    %c0 = arith.constant 0 : index
    %c0_0 = arith.constant 0 : index
    %0 = vector.load %arg1[%c0, %c0_0] : memref<128x784xf32, #tpu.memory_space<vmem>>, vector<128x784xf32>
    %1 = arith.truncf %0 : vector<128x784xf32> to vector<128x784xbf16>
    %cst = arith.constant 0.000000e+00 : bf16
    %2 = vector.broadcast %cst : bf16 to vector<128x112xbf16>
    %3 = tpu.concatenate %1, %2 in 1 : vector<128x784xbf16>, vector<128x112xbf16> -> vector<128x896xbf16>
    %c0_1 = arith.constant 0 : index
    %c0_2 = arith.constant 0 : index
    %4 = vector.load %arg2[%c0_1, %c0_2] : memref<896x1024xbf16, #tpu.memory_space<vmem>>, vector<896x1024xbf16>
    %cst_3 = arith.constant dense<0.000000e+00> : vector<128x1024xf32>
    %5 = tpu.matmul %3, %4, %cst_3 {dimension_numbers = #tpu.dot_dimension_numbers<[1], [0], [0], [1], [0, 0, 1, 1], [], []>} : vector<128x896xbf16>, vector<896x1024xbf16>, vector<128x1024xf32> -> vector<128x1024xf32>
    %c0_4 = arith.constant 0 : index
    %c0_5 = arith.constant 0 : index
    %6 = vector.load %arg3[%c0_4, %c0_5] : memref<1x1024xf32, #tpu.memory_space<vmem>>, vector<1x1024xf32>
    %7 = vector.broadcast %6 : vector<1x1024xf32> to vector<128x1024xf32>
    %8 = arith.addf %5, %7 : vector<128x1024xf32>
    %cst_6 = arith.constant 2.000000e-01 : f32
    %9 = vector.broadcast %cst_6 : f32 to vector<128x1024xf32>
    %10 = arith.mulf %9, %8 : vector<128x1024xf32>
    %11 = arith.maximumf %8, %10 : vector<128x1024xf32>
    %12 = arith.truncf %11 : vector<128x1024xf32> to vector<128x1024xbf16>
    %c0_7 = arith.constant 0 : index
    %c0_8 = arith.constant 0 : index
    %13 = vector.load %arg4[%c0_7, %c0_8] : memref<1024x512xbf16, #tpu.memory_space<vmem>>, vector<1024x512xbf16>
    %cst_9 = arith.constant dense<0.000000e+00> : vector<128x512xf32>
    %14 = tpu.matmul %12, %13, %cst_9 {dimension_numbers = #tpu.dot_dimension_numbers<[1], [0], [0], [1], [0, 0, 1, 1], [], []>} : vector<128x1024xbf16>, vector<1024x512xbf16>, vector<128x512xf32> -> vector<128x512xf32>
    %c0_10 = arith.constant 0 : index
    %c0_11 = arith.constant 0 : index
    %15 = vector.load %arg5[%c0_10, %c0_11] : memref<1x512xf32, #tpu.memory_space<vmem>>, vector<1x512xf32>
    %16 = vector.broadcast %15 : vector<1x512xf32> to vector<128x512xf32>
    %17 = arith.addf %14, %16 : vector<128x512xf32>
    %cst_12 = arith.constant 2.000000e-01 : f32
    %18 = vector.broadcast %cst_12 : f32 to vector<128x512xf32>
    %19 = arith.mulf %18, %17 : vector<128x512xf32>
    %20 = arith.maximumf %17, %19 : vector<128x512xf32>
    %21 = arith.truncf %20 : vector<128x512xf32> to vector<128x512xbf16>
    %c0_13 = arith.constant 0 : index
    %c0_14 = arith.constant 0 : index
    %22 = vector.load %arg6[%c0_13, %c0_14] : memref<512x256xbf16, #tpu.memory_space<vmem>>, vector<512x256xbf16>
    %cst_15 = arith.constant dense<0.000000e+00> : vector<128x256xf32>
    %23 = tpu.matmul %21, %22, %cst_15 {dimension_numbers = #tpu.dot_dimension_numbers<[1], [0], [0], [1], [0, 0, 1, 1], [], []>} : vector<128x512xbf16>, vector<512x256xbf16>, vector<128x256xf32> -> vector<128x256xf32>
    %c0_16 = arith.constant 0 : index
    %c0_17 = arith.constant 0 : index
    %24 = vector.load %arg7[%c0_16, %c0_17] : memref<1x256xf32, #tpu.memory_space<vmem>>, vector<1x256xf32>
    %25 = vector.broadcast %24 : vector<1x256xf32> to vector<128x256xf32>
    %26 = arith.addf %23, %25 : vector<128x256xf32>
    %cst_18 = arith.constant 2.000000e-01 : f32
    %27 = vector.broadcast %cst_18 : f32 to vector<128x256xf32>
    %28 = arith.mulf %27, %26 : vector<128x256xf32>
    %29 = arith.maximumf %26, %28 : vector<128x256xf32>
    %c0_19 = arith.constant 0 : index
    %c0_20 = arith.constant 0 : index
    %30 = vector.load %arg8[%c0_19, %c0_20] : memref<1x256xbf16, #tpu.memory_space<vmem>>, vector<1x256xbf16>
    %31 = arith.truncf %29 : vector<128x256xf32> to vector<128x256xbf16>
    %cst_21 = arith.constant dense<0.000000e+00> : vector<1x128xf32>
    %32 = tpu.matmul %30, %31, %cst_21 {dimension_numbers = #tpu.dot_dimension_numbers<[1], [1], [0], [0], [0, 0, 1, 0], [], []>} : vector<1x256xbf16>, vector<128x256xbf16>, vector<1x128xf32> -> vector<1x128xf32>
    %c0_22 = arith.constant 0 : index
    %c0_23 = arith.constant 0 : index
    %33 = vector.load %arg9[%c0_22, %c0_23] : memref<1x1xf32, #tpu.memory_space<vmem>>, vector<1x1xf32>
    %34 = vector.broadcast %33 : vector<1x1xf32> to vector<1x128xf32>
    %35 = arith.addf %32, %34 : vector<1x128xf32>
    %cst_24 = arith.constant 0.000000e+00 : f32
    %36 = vector.broadcast %cst_24 : f32 to vector<1x128xf32>
    %37 = arith.subf %36, %35 : vector<1x128xf32>
    %38 = math.exp %37 : vector<1x128xf32>
    %cst_25 = arith.constant 1.000000e+00 : f32
    %39 = vector.broadcast %cst_25 : f32 to vector<1x128xf32>
    %40 = arith.addf %39, %38 : vector<1x128xf32>
    %41 = tpu.reciprocal %40 {approx = true} : vector<1x128xf32> -> vector<1x128xf32>
    %c0_26 = arith.constant 0 : index
    %c0_27 = arith.constant 0 : index
    %42 = vector.load %arg10[%c0_26, %c0_27] : memref<1x128xf32, #tpu.memory_space<vmem>>, vector<1x128xf32>
    tpu.vector_store %arg10[%c0_26, %c0_27], %41 {strides = array<i32>} : memref<1x128xf32, #tpu.memory_space<vmem>>, vector<1x128xf32>,
    return
  }
  func.func @transform_0(%arg0: i32) -> (i32, i32) {
    %c0_i32 = arith.constant 0 : i32
    %c0_i32_0 = arith.constant 0 : i32
    return %arg0, %c0_i32 : i32, i32
  }
  func.func @transform_1(%arg0: i32) -> (i32, i32) {
    %c0_i32 = arith.constant 0 : i32
    %c0_i32_0 = arith.constant 0 : i32
    %c0_i32_1 = arith.constant 0 : i32
    return %c0_i32, %c0_i32_0 : i32, i32
  }
  func.func @transform_2(%arg0: i32) -> (i32, i32) {
    %c0_i32 = arith.constant 0 : i32
    %c0_i32_0 = arith.constant 0 : i32
    %c0_i32_1 = arith.constant 0 : i32
    return %c0_i32, %c0_i32_0 : i32, i32
  }
  func.func @transform_3(%arg0: i32) -> (i32, i32) {
    %c0_i32 = arith.constant 0 : i32
    %c0_i32_0 = arith.constant 0 : i32
    %c0_i32_1 = arith.constant 0 : i32
    return %c0_i32, %c0_i32_0 : i32, i32
  }
  func.func @transform_4(%arg0: i32) -> (i32, i32) {
    %c0_i32 = arith.constant 0 : i32
    %c0_i32_0 = arith.constant 0 : i32
    %c0_i32_1 = arith.constant 0 : i32
    return %c0_i32, %c0_i32_0 : i32, i32
  }
  func.func @transform_5(%arg0: i32) -> (i32, i32) {
    %c0_i32 = arith.constant 0 : i32
    %c0_i32_0 = arith.constant 0 : i32
    %c0_i32_1 = arith.constant 0 : i32
    return %c0_i32, %c0_i32_0 : i32, i32
  }
  func.func @transform_6(%arg0: i32) -> (i32, i32) {
    %c0_i32 = arith.constant 0 : i32
    %c0_i32_0 = arith.constant 0 : i32
    %c0_i32_1 = arith.constant 0 : i32
    return %c0_i32, %c0_i32_0 : i32, i32
  }
  func.func @transform_7(%arg0: i32) -> (i32, i32) {
    %c0_i32 = arith.constant 0 : i32
    %c0_i32_0 = arith.constant 0 : i32
    %c0_i32_1 = arith.constant 0 : i32
    return %c0_i32, %c0_i32_0 : i32, i32
  }
  func.func @transform_8(%arg0: i32) -> (i32, i32) {
    %c0_i32 = arith.constant 0 : i32
    %c0_i32_0 = arith.constant 0 : i32
    %c0_i32_1 = arith.constant 0 : i32
    return %c0_i32, %c0_i32_0 : i32, i32
  }
  func.func @transform_9(%arg0: i32) -> (i32, i32) {
    %c0_i32 = arith.constant 0 : i32
    %c0_i32_0 = arith.constant 0 : i32
    return %c0_i32, %arg0 : i32, i32
  }
}

</mosaic_0001>

<llo_original>
// kernel: tpu_custom_call.1
$region0: #{tpu_custom_call.1}
  #allocation0 [shape = 'u32[]', space=smem, size = 0x4, offset = 0x4, fixed_abs, tag = 'smem constant byte address 0x4 - core index']
  #allocation1 [shape = 'u32[72,128]{1,0:T(1,128)}', space=vmem, size = 0x9000, scoped, tag = 'internal scratch']
  #allocation2 [shape = 'f32[1,1]{1,0:T(1,128)S(1)}', space=vmem, size = 0x200, scoped, tag = 'scoped memory for tpu_custom_call.1']
  %s0 = inlined_call_operand.vmem [shape: f32[128,784], index: 0, kind: input, shape index: {}]
  %s1 = inlined_call_operand.hbm [shape: bf16[896,1024], index: 1, kind: input, shape index: {}]
  %s2 = inlined_call_operand.hbm [shape: f32[1,1024], index: 2, kind: input, shape index: {}]
  %s3 = inlined_call_operand.hbm [shape: bf16[1024,512], index: 3, kind: input, shape index: {}]
  %s4 = inlined_call_operand.hbm [shape: f32[1,512], index: 4, kind: input, shape index: {}]
  %s5 = inlined_call_operand.hbm [shape: bf16[512,256], index: 5, kind: input, shape index: {}]
  %s6 = inlined_call_operand.hbm [shape: f32[1,256], index: 6, kind: input, shape index: {}]
  %s7 = inlined_call_operand.hbm [shape: bf16[1,256], index: 7, kind: input, shape index: {}]
  %s8 = inlined_call_operand.<no memory space> [shape: f32[1,1], index: 8, kind: input, shape index: {}]
  %s9 = inlined_call_operand.hbm [shape: f32[1,128], index: 9, kind: output, shape index: {}]
  %s10 = sld [smem:[#allocation0]]
  $region74: #{tpu_custom_call.1} parent=0
    _
  %s12 = ssub.s32 1, %s10
  %s13 = scalar_select 0, %s12, %s10
  %v14 = vstv %s8
  %15 = vst [vmem:[#allocation2] sm:$0x1] %v14
  $region1: #{tpu_custom_call.1} parent=0
    #allocation3 [shape = 'u8[1835008]{0}', space=vmem, size = 0x1c0000, scoped, tag = 'input window, operand 1, single buffered']
    #allocation4 [shape = 's32[1]{0}', space=sflag, size = 0x4, scoped, tag = 'scoped memory for tpu_custom_call.1']
    #allocation5 [shape = 's32[1]{0}', space=sflag, size = 0x4, scoped, tag = 'scoped memory for tpu_custom_call.1']
    #allocation6 [shape = 'u8[4096]{0}', space=vmem, size = 0x1000, scoped, tag = 'input window, operand 2, single buffered']
    #allocation7 [shape = 's32[1]{0}', space=sflag, size = 0x4, scoped, tag = 'scoped memory for tpu_custom_call.1']
    #allocation8 [shape = 'u8[1048576]{0}', space=vmem, size = 0x100000, scoped, tag = 'input window, operand 3, single buffered']
    #allocation9 [shape = 'u8[2048]{0}', space=vmem, size = 0x800, scoped, tag = 'input window, operand 4, single buffered']
    #allocation10 [shape = 's32[1]{0}', space=sflag, size = 0x4, scoped, tag = 'scoped memory for tpu_custom_call.1']
    #allocation11 [shape = 'u8[262144]{0}', space=vmem, size = 0x40000, scoped, tag = 'input window, operand 5, single buffered']
    #allocation12 [shape = 'u8[1024]{0}', space=vmem, size = 0x400, scoped, tag = 'input window, operand 6, single buffered']
    #allocation13 [shape = 's32[1]{0}', space=sflag, size = 0x4, scoped, tag = 'scoped memory for tpu_custom_call.1']
    #allocation14 [shape = 'u8[1024]{0}', space=vmem, size = 0x400, scoped, tag = 'input window, operand 7, single buffered']
    #allocation15 [shape = 'u8[512]{0}', space=vmem, size = 0x400, scoped, tag = 'output window, operand 0, single buffered']
    %16 = vsyncpa [#allocation4], 0
    %17 = vsyncpa [#allocation7], 0
    %18 = vsyncpa [#allocation10], 0
    %19 = vsyncpa [#allocation13], 0
    %20 = vsyncpa [#allocation5], 0
    // Predicated region
    $region2: #{tpu_custom_call.1} parent=1 // pred_check
      _
    $region3: #{tpu_custom_call.1} parent=1 // pred_check_branch
      %22 = sbr.rel (0) target = $region5
    $region4: #{tpu_custom_call.1} parent=1 // pred_region
      _
    $region5: #{tpu_custom_call.1} parent=1 // pred_fallthru
      _
    // Predicated region
    $region6: #{tpu_custom_call.1} parent=1 // pred_check
      _
    $region7: #{tpu_custom_call.1} parent=1 // pred_check_branch
      %24 = sbr.rel (0) target = $region9
    $region8: #{tpu_custom_call.1} parent=1 // pred_region
      %26 = vsyncadd [#allocation4], 0
      %s27 = sshll.u32 %s1, 4
      %s28 = int_to_ptr.hbm [resolvable:$true] %s27
      %s29 = sshll.u32 [#allocation3], 4
      %s30 = int_to_ptr.vmem [resolvable:$true] %s29
      %35 = dma.hbm_to_vmem [thread:$0]  %s28, 57344, %s30, [#allocation4], 512, 512, 32
    $region9: #{tpu_custom_call.1} parent=1 // pred_fallthru
      _
    // Predicated region
    $region10: #{tpu_custom_call.1} parent=1 // pred_check
      _
    $region11: #{tpu_custom_call.1} parent=1 // pred_check_branch
      %37 = sbr.rel (0) target = $region13
    $region12: #{tpu_custom_call.1} parent=1 // pred_region
      %39 = vsyncadd [#allocation7], 0
      %s41 = sshll.u32 %s2, 4
      %s42 = int_to_ptr.hbm [resolvable:$true] %s41
      %s43 = sshll.u32 [#allocation6], 4
      %s44 = int_to_ptr.vmem [resolvable:$true] %s43
      %46 = dma.hbm_to_vmem [thread:$0]  %s42, 128, %s44, [#allocation7]
    $region13: #{tpu_custom_call.1} parent=1 // pred_fallthru
      _
    // Predicated region
    $region14: #{tpu_custom_call.1} parent=1 // pred_check
      _
    $region15: #{tpu_custom_call.1} parent=1 // pred_check_branch
      %48 = sbr.rel (0) target = $region17
    $region16: #{tpu_custom_call.1} parent=1 // pred_region
      %50 = vsyncadd [#allocation7], 0
      %s51 = sshll.u32 %s3, 4
      %s52 = int_to_ptr.hbm [resolvable:$true] %s51
      %s53 = sshll.u32 [#allocation8], 4
      %s54 = int_to_ptr.vmem [resolvable:$true] %s53
      %59 = dma.hbm_to_vmem [thread:$0]  %s52, 32768, %s54, [#allocation7], 256, 256, 16
    $region17: #{tpu_custom_call.1} parent=1 // pred_fallthru
      _
    // Predicated region
    $region18: #{tpu_custom_call.1} parent=1 // pred_check
      _
    $region19: #{tpu_custom_call.1} parent=1 // pred_check_branch
      %61 = sbr.rel (0) target = $region21
    $region20: #{tpu_custom_call.1} parent=1 // pred_region
      %63 = vsyncadd [#allocation10], 0
      %s65 = sshll.u32 %s4, 4
      %s66 = int_to_ptr.hbm [resolvable:$true] %s65
      %s67 = sshll.u32 [#allocation9], 4
      %s68 = int_to_ptr.vmem [resolvable:$true] %s67
      %70 = dma.hbm_to_vmem [thread:$0]  %s66, 64, %s68, [#allocation10]
    $region21: #{tpu_custom_call.1} parent=1 // pred_fallthru
      _
    // Predicated region
    $region22: #{tpu_custom_call.1} parent=1 // pred_check
      _
    $region23: #{tpu_custom_call.1} parent=1 // pred_check_branch
      %72 = sbr.rel (0) target = $region25
    $region24: #{tpu_custom_call.1} parent=1 // pred_region
      %74 = vsyncadd [#allocation10], 0
      %s75 = sshll.u32 %s5, 4
      %s76 = int_to_ptr.hbm [resolvable:$true] %s75
      %s77 = sshll.u32 [#allocation11], 4
      %s78 = int_to_ptr.vmem [resolvable:$true] %s77
      %83 = dma.hbm_to_vmem [thread:$0]  %s76, 8192, %s78, [#allocation10], 128, 128, 8
    $region25: #{tpu_custom_call.1} parent=1 // pred_fallthru
      _
    // Predicated region
    $region26: #{tpu_custom_call.1} parent=1 // pred_check
      _
    $region27: #{tpu_custom_call.1} parent=1 // pred_check_branch
      %85 = sbr.rel (0) target = $region29
    $region28: #{tpu_custom_call.1} parent=1 // pred_region
      %87 = vsyncadd [#allocation13], 0
      %s89 = sshll.u32 %s6, 4
      %s90 = int_to_ptr.hbm [resolvable:$true] %s89
      %s91 = sshll.u32 [#allocation12], 4
      %s92 = int_to_ptr.vmem [resolvable:$true] %s91
      %94 = dma.hbm_to_vmem [thread:$0]  %s90, 32, %s92, [#allocation13]
    $region29: #{tpu_custom_call.1} parent=1 // pred_fallthru
      _
    // Predicated region
    $region30: #{tpu_custom_call.1} parent=1 // pred_check
      _
    $region31: #{tpu_custom_call.1} parent=1 // pred_check_branch
      %96 = sbr.rel (0) target = $region33
    $region32: #{tpu_custom_call.1} parent=1 // pred_region
      %98 = vsyncadd [#allocation13], 0
      %s100 = sshll.u32 %s7, 4
      %s101 = int_to_ptr.hbm [resolvable:$true] %s100
      %s102 = sshll.u32 [#allocation14], 4
      %s103 = int_to_ptr.vmem [resolvable:$true] %s102
      %105 = dma.hbm_to_vmem [thread:$0]  %s101, 32, %s103, [#allocation13]
    $region33: #{tpu_custom_call.1} parent=1 // pred_fallthru
      _
    // Predicated region
    $region34: #{tpu_custom_call.1} parent=1 // pred_check
      _
    $region35: #{tpu_custom_call.1} parent=1 // pred_check_branch
      %107 = sbr.rel (0) target = $region37
    $region36: #{tpu_custom_call.1} parent=1 // pred_region
      _
    $region37: #{tpu_custom_call.1} parent=1 // pred_fallthru
      _
    // Predicated region
    $region38: #{tpu_custom_call.1} parent=1 // pred_check
      _
    $region39: #{tpu_custom_call.1} parent=1 // pred_check_branch
      %109 = sbr.rel (0) target = $region41
    $region40: #{tpu_custom_call.1} parent=1 // pred_region
      %111 = dma.done [#allocation4], 57344
    $region41: #{tpu_custom_call.1} parent=1 // pred_fallthru
      _
    // Predicated region
    $region42: #{tpu_custom_call.1} parent=1 // pred_check
      _
    $region43: #{tpu_custom_call.1} parent=1 // pred_check_branch
      %113 = sbr.rel (0) target = $region45
    $region44: #{tpu_custom_call.1} parent=1 // pred_region
      %115 = dma.done [#allocation7], 128
    $region45: #{tpu_custom_call.1} parent=1 // pred_fallthru
      _
    // Predicated region
    $region46: #{tpu_custom_call.1} parent=1 // pred_check
      _
    $region47: #{tpu_custom_call.1} parent=1 // pred_check_branch
      %117 = sbr.rel (0) target = $region49
    $region48: #{tpu_custom_call.1} parent=1 // pred_region
      %119 = dma.done [#allocation7], 32768
    $region49: #{tpu_custom_call.1} parent=1 // pred_fallthru
      _
    // Predicated region
    $region50: #{tpu_custom_call.1} parent=1 // pred_check
      _
    $region51: #{tpu_custom_call.1} parent=1 // pred_check_branch
      %121 = sbr.rel (0) target = $region53
    $region52: #{tpu_custom_call.1} parent=1 // pred_region
      %123 = dma.done [#allocation10], 64
    $region53: #{tpu_custom_call.1} parent=1 // pred_fallthru
      _
    // Predicated region
    $region54: #{tpu_custom_call.1} parent=1 // pred_check
      _
    $region55: #{tpu_custom_call.1} parent=1 // pred_check_branch
      %125 = sbr.rel (0) target = $region57
    $region56: #{tpu_custom_call.1} parent=1 // pred_region
      %127 = dma.done [#allocation10], 8192
    $region57: #{tpu_custom_call.1} parent=1 // pred_fallthru
      _
    // Predicated region
    $region58: #{tpu_custom_call.1} parent=1 // pred_check
      _
    $region59: #{tpu_custom_call.1} parent=1 // pred_check_branch
      %129 = sbr.rel (0) target = $region61
    $region60: #{tpu_custom_call.1} parent=1 // pred_region
      %131 = dma.done [#allocation13], 32
    $region61: #{tpu_custom_call.1} parent=1 // pred_fallthru
      _
    // Predicated region
    $region62: #{tpu_custom_call.1} parent=1 // pred_check
      _
    $region63: #{tpu_custom_call.1} parent=1 // pred_check_branch
      %133 = sbr.rel (0) target = $region65
    $region64: #{tpu_custom_call.1} parent=1 // pred_region
      %135 = dma.done [#allocation13], 32
    $region65: #{tpu_custom_call.1} parent=1 // pred_fallthru
      _
    %v137 = vld [vmem:[%s0] sm:$0xff]
    %v138 = vld [vmem:[%s0 + $0x8] sm:$0xff]
    %v139 = vld [vmem:[%s0 + $0x10] sm:$0xff]
    %v140 = vld [vmem:[%s0 + $0x18] sm:$0xff]
    %v141 = vld [vmem:[%s0 + $0x20] sm:$0xff]
    %v142 = vld [vmem:[%s0 + $0x28] sm:$0xff]
    %v143 = vld [vmem:[%s0 + $0x30] sm:$0xff]
    %v144 = vld [vmem:[%s0 + $0x38] sm:$0xff]
    %v145 = vld [vmem:[%s0 + $0x40] sm:$0xff]
    %v146 = vld [vmem:[%s0 + $0x48] sm:$0xff]
    %v147 = vld [vmem:[%s0 + $0x50] sm:$0xff]
    %v148 = vld [vmem:[%s0 + $0x58] sm:$0xff]
    %v149 = vld [vmem:[%s0 + $0x60] sm:$0xff]
    %v150 = vld [vmem:[%s0 + $0x68] sm:$0xff]
    %v151 = vld [vmem:[%s0 + $0x70] sm:$0xff]
    %v152 = vld [vmem:[%s0 + $0x78] sm:$0xff]
    %v153 = vld [vmem:[%s0 + $0x80] sm:$0xff]
    %v154 = vld [vmem:[%s0 + $0x88] sm:$0xff]
    %v155 = vld [vmem:[%s0 + $0x90] sm:$0xff]
    %v156 = vld [vmem:[%s0 + $0x98] sm:$0xff]
    %v157 = vld [vmem:[%s0 + $0xa0] sm:$0xff]
    %v158 = vld [vmem:[%s0 + $0xa8] sm:$0xff]
    %v159 = vld [vmem:[%s0 + $0xb0] sm:$0xff]
    %v160 = vld [vmem:[%s0 + $0xb8] sm:$0xff]
    %v161 = vld [vmem:[%s0 + $0xc0] sm:$0xff]
    %v162 = vld [vmem:[%s0 + $0xc8] sm:$0xff]
    %v163 = vld [vmem:[%s0 + $0xd0] sm:$0xff]
    %v164 = vld [vmem:[%s0 + $0xd8] sm:$0xff]
    %v165 = vld [vmem:[%s0 + $0xe0] sm:$0xff]
    %v166 = vld [vmem:[%s0 + $0xe8] sm:$0xff]
    %v167 = vld [vmem:[%s0 + $0xf0] sm:$0xff]
    %v168 = vld [vmem:[%s0 + $0xf8] sm:$0xff]
    %v169 = vld [vmem:[%s0 + $0x100] sm:$0xff]
    %v170 = vld [vmem:[%s0 + $0x108] sm:$0xff]
    %v171 = vld [vmem:[%s0 + $0x110] sm:$0xff]
    %v172 = vld [vmem:[%s0 + $0x118] sm:$0xff]
    %v173 = vld [vmem:[%s0 + $0x120] sm:$0xff]
    %v174 = vld [vmem:[%s0 + $0x128] sm:$0xff]
    %v175 = vld [vmem:[%s0 + $0x130] sm:$0xff]
    %v176 = vld [vmem:[%s0 + $0x138] sm:$0xff]
    %v177 = vld [vmem:[%s0 + $0x140] sm:$0xff]
    %v178 = vld [vmem:[%s0 + $0x148] sm:$0xff]
    %v179 = vld [vmem:[%s0 + $0x150] sm:$0xff]
    %v180 = vld [vmem:[%s0 + $0x158] sm:$0xff]
    %v181 = vld [vmem:[%s0 + $0x160] sm:$0xff]
    %v182 = vld [vmem:[%s0 + $0x168] sm:$0xff]
    %v183 = vld [vmem:[%s0 + $0x170] sm:$0xff]
    %v184 = vld [vmem:[%s0 + $0x178] sm:$0xff]
    %v185 = vld [vmem:[%s0 + $0x180] sm:$0xff]
    %v186 = vld [vmem:[%s0 + $0x188] sm:$0xff]
    %v187 = vld [vmem:[%s0 + $0x190] sm:$0xff]
    %v188 = vld [vmem:[%s0 + $0x198] sm:$0xff]
    %v189 = vld [vmem:[%s0 + $0x1a0] sm:$0xff]
    %v190 = vld [vmem:[%s0 + $0x1a8] sm:$0xff]
    %v191 = vld [vmem:[%s0 + $0x1b0] sm:$0xff]
    %v192 = vld [vmem:[%s0 + $0x1b8] sm:$0xff]
    %v193 = vld [vmem:[%s0 + $0x1c0] sm:$0xff]
    %v194 = vld [vmem:[%s0 + $0x1c8] sm:$0xff]
    %v195 = vld [vmem:[%s0 + $0x1d0] sm:$0xff]
    %v196 = vld [vmem:[%s0 + $0x1d8] sm:$0xff]
    %v197 = vld [vmem:[%s0 + $0x1e0] sm:$0xff]
    %v198 = vld [vmem:[%s0 + $0x1e8] sm:$0xff]
    %v199 = vld [vmem:[%s0 + $0x1f0] sm:$0xff]
    %v200 = vld [vmem:[%s0 + $0x1f8] sm:$0xff]
    %v201 = vld [vmem:[%s0 + $0x200] sm:$0xff]
    %v202 = vld [vmem:[%s0 + $0x208] sm:$0xff]
    %v203 = vld [vmem:[%s0 + $0x210] sm:$0xff]
    %v204 = vld [vmem:[%s0 + $0x218] sm:$0xff]
    %v205 = vld [vmem:[%s0 + $0x220] sm:$0xff]
    %v206 = vld [vmem:[%s0 + $0x228] sm:$0xff]
    %v207 = vld [vmem:[%s0 + $0x230] sm:$0xff]
    %v208 = vld [vmem:[%s0 + $0x238] sm:$0xff]
    %v209 = vld [vmem:[%s0 + $0x240] sm:$0xff]
    %v210 = vld [vmem:[%s0 + $0x248] sm:$0xff]
    %v211 = vld [vmem:[%s0 + $0x250] sm:$0xff]
    %v212 = vld [vmem:[%s0 + $0x258] sm:$0xff]
    %v213 = vld [vmem:[%s0 + $0x260] sm:$0xff]
    %v214 = vld [vmem:[%s0 + $0x268] sm:$0xff]
    %v215 = vld [vmem:[%s0 + $0x270] sm:$0xff]
    %v216 = vld [vmem:[%s0 + $0x278] sm:$0xff]
    %v217 = vld [vmem:[%s0 + $0x280] sm:$0xff]
    %v218 = vld [vmem:[%s0 + $0x288] sm:$0xff]
    %v219 = vld [vmem:[%s0 + $0x290] sm:$0xff]
    %v220 = vld [vmem:[%s0 + $0x298] sm:$0xff]
    %v221 = vld [vmem:[%s0 + $0x2a0] sm:$0xff]
    %v222 = vld [vmem:[%s0 + $0x2a8] sm:$0xff]
    %v223 = vld [vmem:[%s0 + $0x2b0] sm:$0xff]
    %v224 = vld [vmem:[%s0 + $0x2b8] sm:$0xff]
    %v225 = vld [vmem:[%s0 + $0x2c0] sm:$0xff]
    %v226 = vld [vmem:[%s0 + $0x2c8] sm:$0xff]
    %v227 = vld [vmem:[%s0 + $0x2d0] sm:$0xff]
    %v228 = vld [vmem:[%s0 + $0x2d8] sm:$0xff]
    %v229 = vld [vmem:[%s0 + $0x2e0] sm:$0xff]
    %v230 = vld [vmem:[%s0 + $0x2e8] sm:$0xff]
    %v231 = vld [vmem:[%s0 + $0x2f0] sm:$0xff]
    %v232 = vld [vmem:[%s0 + $0x2f8] sm:$0xff]
    %v233 = vld [vmem:[%s0 + $0x300] sm:$0xff]
    %v234 = vld [vmem:[%s0 + $0x308] sm:$0xff]
    %v235 = vld [vmem:[%s0 + $0x310] sm:$0xff]
    %v236 = vld [vmem:[%s0 + $0x318] sm:$0xff]
    %v237 = vld [vmem:[%s0 + $0x320] sm:$0xff]
    %v238 = vld [vmem:[%s0 + $0x328] sm:$0xff]
    %v239 = vld [vmem:[%s0 + $0x330] sm:$0xff]
    %v240 = vld [vmem:[%s0 + $0x338] sm:$0xff]
    %v241 = vld [vmem:[%s0 + $0x340] sm:$0xff]
    %v242 = vld [vmem:[%s0 + $0x348] sm:$0xff]
    %v243 = vld [vmem:[%s0 + $0x350] sm:$0xff]
    %v244 = vld [vmem:[%s0 + $0x358] sm:$0xff]
    %v245 = vld [vmem:[%s0 + $0x360] sm:$0xff]
    %v246 = vld [vmem:[%s0 + $0x368] sm:$0xff]
    %v247 = vld [vmem:[%s0 + $0x370] sm:$0xff]
    %v248 = vld [vmem:[%s0 + $0x378] sm:$0xff]
    %v249 = vpack.c.bf16 %v138, %v137
    %v250 = vpack.c.bf16 %v140, %v139
    %v251 = vpack.c.bf16 %v142, %v141
    %v252 = vpack.c.bf16 %v143, %v143
    %v253 = vpack.c.bf16 %v145, %v144
    %v254 = vpack.c.bf16 %v147, %v146
    %v255 = vpack.c.bf16 %v149, %v148
    %v256 = vpack.c.bf16 %v150, %v150
    %v257 = vpack.c.bf16 %v152, %v151
    %v258 = vpack.c.bf16 %v154, %v153
    %v259 = vpack.c.bf16 %v156, %v155
    %v260 = vpack.c.bf16 %v157, %v157
    %v261 = vpack.c.bf16 %v159, %v158
    %v262 = vpack.c.bf16 %v161, %v160
    %v263 = vpack.c.bf16 %v163, %v162
    %v264 = vpack.c.bf16 %v164, %v164
    %v265 = vpack.c.bf16 %v166, %v165
    %v266 = vpack.c.bf16 %v168, %v167
    %v267 = vpack.c.bf16 %v170, %v169
    %v268 = vpack.c.bf16 %v171, %v171
    %v269 = vpack.c.bf16 %v173, %v172
    %v270 = vpack.c.bf16 %v175, %v174
    %v271 = vpack.c.bf16 %v177, %v176
    %v272 = vpack.c.bf16 %v178, %v178
    %v273 = vpack.c.bf16 %v180, %v179
    %v274 = vpack.c.bf16 %v182, %v181
    %v275 = vpack.c.bf16 %v184, %v183
    %v276 = vpack.c.bf16 %v185, %v185
    %v277 = vpack.c.bf16 %v187, %v186
    %v278 = vpack.c.bf16 %v189, %v188
    %v279 = vpack.c.bf16 %v191, %v190
    %v280 = vpack.c.bf16 %v192, %v192
    %v281 = vpack.c.bf16 %v194, %v193
    %v282 = vpack.c.bf16 %v196, %v195
    %v283 = vpack.c.bf16 %v198, %v197
    %v284 = vpack.c.bf16 %v199, %v199
    %v285 = vpack.c.bf16 %v201, %v200
    %v286 = vpack.c.bf16 %v203, %v202
    %v287 = vpack.c.bf16 %v205, %v204
    %v288 = vpack.c.bf16 %v206, %v206
    %v289 = vpack.c.bf16 %v208, %v207
    %v290 = vpack.c.bf16 %v210, %v209
    %v291 = vpack.c.bf16 %v212, %v211
    %v292 = vpack.c.bf16 %v213, %v213
    %v293 = vpack.c.bf16 %v215, %v214
    %v294 = vpack.c.bf16 %v217, %v216
    %v295 = vpack.c.bf16 %v219, %v218
    %v296 = vpack.c.bf16 %v220, %v220
    %v297 = vpack.c.bf16 %v222, %v221
    %v298 = vpack.c.bf16 %v224, %v223
    %v299 = vpack.c.bf16 %v226, %v225
    %v300 = vpack.c.bf16 %v227, %v227
    %v301 = vpack.c.bf16 %v229, %v228
    %v302 = vpack.c.bf16 %v231, %v230
    %v303 = vpack.c.bf16 %v233, %v232
    %v304 = vpack.c.bf16 %v234, %v234
    %v305 = vpack.c.bf16 %v236, %v235
    %v306 = vpack.c.bf16 %v238, %v237
    %v307 = vpack.c.bf16 %v240, %v239
    %v308 = vpack.c.bf16 %v241, %v241
    %v309 = vpack.c.bf16 %v243, %v242
    %v310 = vpack.c.bf16 %v245, %v244
    %v311 = vpack.c.bf16 %v247, %v246
    %v312 = vpack.c.bf16 %v248, %v248
    %v377 = vunpack.c.l.b16 %v249
    %v378 = vunpack.c.h.b16 %v249
    %v379 = vunpack.c.l.b16 %v250
    %v380 = vunpack.c.h.b16 %v250
    %v381 = vunpack.c.l.b16 %v251
    %v382 = vunpack.c.h.b16 %v251
    %v383 = vunpack.c.l.b16 %v252
    %v384 = vunpack.c.l.b16 %v253
    %v385 = vunpack.c.h.b16 %v253
    %v386 = vunpack.c.l.b16 %v254
    %v387 = vunpack.c.h.b16 %v254
    %v388 = vunpack.c.l.b16 %v255
    %v389 = vunpack.c.h.b16 %v255
    %v390 = vunpack.c.l.b16 %v256
    %v391 = vunpack.c.l.b16 %v257
    %v392 = vunpack.c.h.b16 %v257
    %v393 = vunpack.c.l.b16 %v258
    %v394 = vunpack.c.h.b16 %v258
    %v395 = vunpack.c.l.b16 %v259
    %v396 = vunpack.c.h.b16 %v259
    %v397 = vunpack.c.l.b16 %v260
    %v398 = vunpack.c.l.b16 %v261
    %v399 = vunpack.c.h.b16 %v261
    %v400 = vunpack.c.l.b16 %v262
    %v401 = vunpack.c.h.b16 %v262
    %v402 = vunpack.c.l.b16 %v263
    %v403 = vunpack.c.h.b16 %v263
    %v404 = vunpack.c.l.b16 %v264
    %v405 = vunpack.c.l.b16 %v265
    %v406 = vunpack.c.h.b16 %v265
    %v407 = vunpack.c.l.b16 %v266
    %v408 = vunpack.c.h.b16 %v266
    %v409 = vunpack.c.l.b16 %v267
    %v410 = vunpack.c.h.b16 %v267
    %v411 = vunpack.c.l.b16 %v268
    %v412 = vunpack.c.l.b16 %v269
    %v413 = vunpack.c.h.b16 %v269
    %v414 = vunpack.c.l.b16 %v270
    %v415 = vunpack.c.h.b16 %v270
    %v416 = vunpack.c.l.b16 %v271
    %v417 = vunpack.c.h.b16 %v271
    %v418 = vunpack.c.l.b16 %v272
    %v419 = vunpack.c.l.b16 %v273
    %v420 = vunpack.c.h.b16 %v273
    %v421 = vunpack.c.l.b16 %v274
    %v422 = vunpack.c.h.b16 %v274
    %v423 = vunpack.c.l.b16 %v275
    %v424 = vunpack.c.h.b16 %v275
    %v425 = vunpack.c.l.b16 %v276
    %v426 = vunpack.c.l.b16 %v277
    %v427 = vunpack.c.h.b16 %v277
    %v428 = vunpack.c.l.b16 %v278
    %v429 = vunpack.c.h.b16 %v278
    %v430 = vunpack.c.l.b16 %v279
    %v431 = vunpack.c.h.b16 %v279
    %v432 = vunpack.c.l.b16 %v280
    %v433 = vunpack.c.l.b16 %v281
    %v434 = vunpack.c.h.b16 %v281
    %v435 = vunpack.c.l.b16 %v282
    %v436 = vunpack.c.h.b16 %v282
    %v437 = vunpack.c.l.b16 %v283
    %v438 = vunpack.c.h.b16 %v283
    %v439 = vunpack.c.l.b16 %v284
    %v440 = vunpack.c.l.b16 %v285
    %v441 = vunpack.c.h.b16 %v285
    %v442 = vunpack.c.l.b16 %v286
    %v443 = vunpack.c.h.b16 %v286
    %v444 = vunpack.c.l.b16 %v287
    %v445 = vunpack.c.h.b16 %v287
    %v446 = vunpack.c.l.b16 %v288
    %v447 = vunpack.c.l.b16 %v289
    %v448 = vunpack.c.h.b16 %v289
    %v449 = vunpack.c.l.b16 %v290
    %v450 = vunpack.c.h.b16 %v290
    %v451 = vunpack.c.l.b16 %v291
    %v452 = vunpack.c.h.b16 %v291
    %v453 = vunpack.c.l.b16 %v292
    %v454 = vunpack.c.l.b16 %v293
    %v455 = vunpack.c.h.b16 %v293
    %v456 = vunpack.c.l.b16 %v294
    %v457 = vunpack.c.h.b16 %v294
    %v458 = vunpack.c.l.b16 %v295
    %v459 = vunpack.c.h.b16 %v295
    %v460 = vunpack.c.l.b16 %v296
    %v461 = vunpack.c.l.b16 %v297
    %v462 = vunpack.c.h.b16 %v297
    %v463 = vunpack.c.l.b16 %v298
    %v464 = vunpack.c.h.b16 %v298
    %v465 = vunpack.c.l.b16 %v299
    %v466 = vunpack.c.h.b16 %v299
    %v467 = vunpack.c.l.b16 %v300
    %v468 = vunpack.c.l.b16 %v301
    %v469 = vunpack.c.h.b16 %v301
    %v470 = vunpack.c.l.b16 %v302
    %v471 = vunpack.c.h.b16 %v302
    %v472 = vunpack.c.l.b16 %v303
    %v473 = vunpack.c.h.b16 %v303
    %v474 = vunpack.c.l.b16 %v304
    %v475 = vunpack.c.l.b16 %v305
    %v476 = vunpack.c.h.b16 %v305
    %v477 = vunpack.c.l.b16 %v306
    %v478 = vunpack.c.h.b16 %v306
    %v479 = vunpack.c.l.b16 %v307
    %v480 = vunpack.c.h.b16 %v307
    %v481 = vunpack.c.l.b16 %v308
    %v482 = vunpack.c.l.b16 %v309
    %v483 = vunpack.c.h.b16 %v309
    %v484 = vunpack.c.l.b16 %v310
    %v485 = vunpack.c.h.b16 %v310
    %v486 = vunpack.c.l.b16 %v311
    %v487 = vunpack.c.h.b16 %v311
    %v488 = vunpack.c.l.b16 %v312
    %v489 = vpack.c.b16 %v384, %v377
    %v490 = vpack.c.b16 %v385, %v378
    %v491 = vpack.c.b16 %v386, %v379
    %v492 = vpack.c.b16 %v387, %v380
    %v493 = vpack.c.b16 %v388, %v381
    %v494 = vpack.c.b16 %v389, %v382
    %v495 = vpack.c.b16 %v390, %v383
    %v496 = vpack.c.b16 %v398, %v391
    %v497 = vpack.c.b16 %v399, %v392
    %v498 = vpack.c.b16 %v400, %v393
    %v499 = vpack.c.b16 %v401, %v394
    %v500 = vpack.c.b16 %v402, %v395
    %v501 = vpack.c.b16 %v403, %v396
    %v502 = vpack.c.b16 %v404, %v397
    %v503 = vpack.c.b16 %v412, %v405
    %v504 = vpack.c.b16 %v413, %v406
    %v505 = vpack.c.b16 %v414, %v407
    %v506 = vpack.c.b16 %v415, %v408
    %v507 = vpack.c.b16 %v416, %v409
    %v508 = vpack.c.b16 %v417, %v410
    %v509 = vpack.c.b16 %v418, %v411
    %v510 = vpack.c.b16 %v426, %v419
    %v511 = vpack.c.b16 %v427, %v420
    %v512 = vpack.c.b16 %v428, %v421
    %v513 = vpack.c.b16 %v429, %v422
    %v514 = vpack.c.b16 %v430, %v423
    %v515 = vpack.c.b16 %v431, %v424
    %v516 = vpack.c.b16 %v432, %v425
    %v517 = vpack.c.b16 %v440, %v433
    %v518 = vpack.c.b16 %v441, %v434
    %v519 = vpack.c.b16 %v442, %v435
    %v520 = vpack.c.b16 %v443, %v436
    %v521 = vpack.c.b16 %v444, %v437
    %v522 = vpack.c.b16 %v445, %v438
    %v523 = vpack.c.b16 %v446, %v439
    %v524 = vpack.c.b16 %v454, %v447
    %v525 = vpack.c.b16 %v455, %v448
    %v526 = vpack.c.b16 %v456, %v449
    %v527 = vpack.c.b16 %v457, %v450
    %v528 = vpack.c.b16 %v458, %v451
    %v529 = vpack.c.b16 %v459, %v452
    %v530 = vpack.c.b16 %v460, %v453
    %v531 = vpack.c.b16 %v468, %v461
    %v532 = vpack.c.b16 %v469, %v462
    %v533 = vpack.c.b16 %v470, %v463
    %v534 = vpack.c.b16 %v471, %v464
    %v535 = vpack.c.b16 %v472, %v465
    %v536 = vpack.c.b16 %v473, %v466
    %v537 = vpack.c.b16 %v474, %v467
    %v538 = vpack.c.b16 %v482, %v475
    %v539 = vpack.c.b16 %v483, %v476
    %v540 = vpack.c.b16 %v484, %v477
    %v541 = vpack.c.b16 %v485, %v478
    %v542 = vpack.c.b16 %v486, %v479
    %v543 = vpack.c.b16 %v487, %v480
    %v544 = vpack.c.b16 %v488, %v481
    %vm593 = vcmask 130048
    %v596 = vsel %vm593, %v495, 0
    %v599 = vsel %vm593, %v502, 0
    %v602 = vsel %vm593, %v509, 0
    %v605 = vsel %vm593, %v516, 0
    %v608 = vsel %vm593, %v523, 0
    %v611 = vsel %vm593, %v530, 0
    %v614 = vsel %vm593, %v537, 0
    %v617 = vsel %vm593, %v544, 0
    %v619 = vld [vmem:[#allocation3] sm:$0xff]
    %v620 = vld [vmem:[#allocation3 + $0x8] sm:$0xff]
    %v621 = vld [vmem:[#allocation3 + $0x10] sm:$0xff]
    %v622 = vld [vmem:[#allocation3 + $0x18] sm:$0xff]
    %v623 = vld [vmem:[#allocation3 + $0x20] sm:$0xff]
    %v624 = vld [vmem:[#allocation3 + $0x28] sm:$0xff]
    %v625 = vld [vmem:[#allocation3 + $0x30] sm:$0xff]
    %v626 = vld [vmem:[#allocation3 + $0x38] sm:$0xff]
    %v627 = vld [vmem:[#allocation3 + $0x40] sm:$0xff]
    %v628 = vld [vmem:[#allocation3 + $0x48] sm:$0xff]
    %v629 = vld [vmem:[#allocation3 + $0x50] sm:$0xff]
    %v630 = vld [vmem:[#allocation3 + $0x58] sm:$0xff]
    %v631 = vld [vmem:[#allocation3 + $0x60] sm:$0xff]
    %v632 = vld [vmem:[#allocation3 + $0x68] sm:$0xff]
    %v633 = vld [vmem:[#allocation3 + $0x70] sm:$0xff]
    %v634 = vld [vmem:[#allocation3 + $0x78] sm:$0xff]
    %v635 = vld [vmem:[#allocation3 + $0x80] sm:$0xff]
    %v636 = vld [vmem:[#allocation3 + $0x88] sm:$0xff]
    %v637 = vld [vmem:[#allocation3 + $0x90] sm:$0xff]
    %v638 = vld [vmem:[#allocation3 + $0x98] sm:$0xff]
    %v639 = vld [vmem:[#allocation3 + $0xa0] sm:$0xff]
    %v640 = vld [vmem:[#allocation3 + $0xa8] sm:$0xff]
    %v641 = vld [vmem:[#allocation3 + $0xb0] sm:$0xff]
    %v642 = vld [vmem:[#allocation3 + $0xb8] sm:$0xff]
    %v643 = vld [vmem:[#allocation3 + $0xc0] sm:$0xff]
    %v644 = vld [vmem:[#allocation3 + $0xc8] sm:$0xff]
    %v645 = vld [vmem:[#allocation3 + $0xd0] sm:$0xff]
    %v646 = vld [vmem:[#allocation3 + $0xd8] sm:$0xff]
    %v647 = vld [vmem:[#allocation3 + $0xe0] sm:$0xff]
    %v648 = vld [vmem:[#allocation3 + $0xe8] sm:$0xff]
    %v649 = vld [vmem:[#allocation3 + $0xf0] sm:$0xff]
    %v650 = vld [vmem:[#allocation3 + $0xf8] sm:$0xff]
    %v651 = vld [vmem:[#allocation3 + $0x100] sm:$0xff]
    %v652 = vld [vmem:[#allocation3 + $0x108] sm:$0xff]
    %v653 = vld [vmem:[#allocation3 + $0x110] sm:$0xff]
    %v654 = vld [vmem:[#allocation3 + $0x118] sm:$0xff]
    %v655 = vld [vmem:[#allocation3 + $0x120] sm:$0xff]
    %v656 = vld [vmem:[#allocation3 + $0x128] sm:$0xff]
    %v657 = vld [vmem:[#allocation3 + $0x130] sm:$0xff]
    %v658 = vld [vmem:[#allocation3 + $0x138] sm:$0xff]
    %v659 = vld [vmem:[#allocation3 + $0x140] sm:$0xff]
    %v660 = vld [vmem:[#allocation3 + $0x148] sm:$0xff]
    %v661 = vld [vmem:[#allocation3 + $0x150] sm:$0xff]
    %v662 = vld [vmem:[#allocation3 + $0x158] sm:$0xff]
    %v663 = vld [vmem:[#allocation3 + $0x160] sm:$0xff]
    %v664 = vld [vmem:[#allocation3 + $0x168] sm:$0xff]
    %v665 = vld [vmem:[#allocation3 + $0x170] sm:$0xff]
    %v666 = vld [vmem:[#allocation3 + $0x178] sm:$0xff]
    %v667 = vld [vmem:[#allocation3 + $0x180] sm:$0xff]
    %v668 = vld [vmem:[#allocation3 + $0x188] sm:$0xff]
    %v669 = vld [vmem:[#allocation3 + $0x190] sm:$0xff]
    %v670 = vld [vmem:[#allocation3 + $0x198] sm:$0xff]
    %v671 = vld [vmem:[#allocation3 + $0x1a0] sm:$0xff]
    %v672 = vld [vmem:[#allocation3 + $0x1a8] sm:$0xff]
    %v673 = vld [vmem:[#allocation3 + $0x1b0] sm:$0xff]
    %v674 = vld [vmem:[#allocation3 + $0x1b8] sm:$0xff]
    %v675 = vld [vmem:[#allocation3 + $0x1c0] sm:$0xff]
    %v676 = vld [vmem:[#allocation3 + $0x1c8] sm:$0xff]
    %v677 = vld [vmem:[#allocation3 + $0x1d0] sm:$0xff]
    %v678 = vld [vmem:[#allocation3 + $0x1d8] sm:$0xff]
    %v679 = vld [vmem:[#allocation3 + $0x1e0] sm:$0xff]
    %v680 = vld [vmem:[#allocation3 + $0x1e8] sm:$0xff]
    %v681 = vld [vmem:[#allocation3 + $0x1f0] sm:$0xff]
    %v682 = vld [vmem:[#allocation3 + $0x1f8] sm:$0xff]
    %v683 = vld [vmem:[#allocation3 + $0x200] sm:$0xff]
    %v684 = vld [vmem:[#allocation3 + $0x208] sm:$0xff]
    %v685 = vld [vmem:[#allocation3 + $0x210] sm:$0xff]
    %v686 = vld [vmem:[#allocation3 + $0x218] sm:$0xff]
    %v687 = vld [vmem:[#allocation3 + $0x220] sm:$0xff]
    %v688 = vld [vmem:[#allocation3 + $0x228] sm:$0xff]
    %v689 = vld [vmem:[#allocation3 + $0x230] sm:$0xff]
    %v690 = vld [vmem:[#allocation3 + $0x238] sm:$0xff]
    %v691 = vld [vmem:[#allocation3 + $0x240] sm:$0xff]
    %v692 = vld [vmem:[#allocation3 + $0x248] sm:$0xff]
    %v693 = vld [vmem:[#allocation3 + $0x250] sm:$0xff]
    %v694 = vld [vmem:[#allocation3 + $0x258] sm:$0xff]
    %v695 = vld [vmem:[#allocation3 + $0x260] sm:$0xff]
    %v696 = vld [vmem:[#allocation3 + $0x268] sm:$0xff]
    %v697 = vld [vmem:[#allocation3 + $0x270] sm:$0xff]
    %v698 = vld [vmem:[#allocation3 + $0x278] sm:$0xff]
    %v699 = vld [vmem:[#allocation3 + $0x280] sm:$0xff]
    %v700 = vld [vmem:[#allocation3 + $0x288] sm:$0xff]
    %v701 = vld [vmem:[#allocation3 + $0x290] sm:$0xff]
    %v702 = vld [vmem:[#allocation3 + $0x298] sm:$0xff]
    %v703 = vld [vmem:[#allocation3 + $0x2a0] sm:$0xff]
    %v704 = vld [vmem:[#allocation3 + $0x2a8] sm:$0xff]
    %v705 = vld [vmem:[#allocation3 + $0x2b0] sm:$0xff]
    %v706 = vld [vmem:[#allocation3 + $0x2b8] sm:$0xff]
    %v707 = vld [vmem:[#allocation3 + $0x2c0] sm:$0xff]
    %v708 = vld [vmem:[#allocation3 + $0x2c8] sm:$0xff]
    %v709 = vld [vmem:[#allocation3 + $0x2d0] sm:$0xff]
    %v710 = vld [vmem:[#allocation3 + $0x2d8] sm:$0xff]
    %v711 = vld [vmem:[#allocation3 + $0x2e0] sm:$0xff]
    %v712 = vld [vmem:[#allocation3 + $0x2e8] sm:$0xff]
    %v713 = vld [vmem:[#allocation3 + $0x2f0] sm:$0xff]
    %v714 = vld [vmem:[#allocation3 + $0x2f8] sm:$0xff]
    %v715 = vld [vmem:[#allocation3 + $0x300] sm:$0xff]
    %v716 = vld [vmem:[#allocation3 + $0x308] sm:$0xff]
    %v717 = vld [vmem:[#allocation3 + $0x310] sm:$0xff]
    %v718 = vld [vmem:[#allocation3 + $0x318] sm:$0xff]
    %v719 = vld [vmem:[#allocation3 + $0x320] sm:$0xff]
    %v720 = vld [vmem:[#allocation3 + $0x328] sm:$0xff]
    %v721 = vld [vmem:[#allocation3 + $0x330] sm:$0xff]
    %v722 = vld [vmem:[#allocation3 + $0x338] sm:$0xff]
    %v723 = vld [vmem:[#allocation3 + $0x340] sm:$0xff]
    %v724 = vld [vmem:[#allocation3 + $0x348] sm:$0xff]
    %v725 = vld [vmem:[#allocation3 + $0x350] sm:$0xff]
    %v726 = vld [vmem:[#allocation3 + $0x358] sm:$0xff]
    %v727 = vld [vmem:[#allocation3 + $0x360] sm:$0xff]
    %v728 = vld [vmem:[#allocation3 + $0x368] sm:$0xff]
    %v729 = vld [vmem:[#allocation3 + $0x370] sm:$0xff]
    %v730 = vld [vmem:[#allocation3 + $0x378] sm:$0xff]
    %v731 = vld [vmem:[#allocation3 + $0x380] sm:$0xff]
    %v732 = vld [vmem:[#allocation3 + $0x388] sm:$0xff]
    %v733 = vld [vmem:[#allocation3 + $0x390] sm:$0xff]
    %v734 = vld [vmem:[#allocation3 + $0x398] sm:$0xff]
    %v735 = vld [vmem:[#allocation3 + $0x3a0] sm:$0xff]
    %v736 = vld [vmem:[#allocation3 + $0x3a8] sm:$0xff]
    %v737 = vld [vmem:[#allocation3 + $0x3b0] sm:$0xff]
    %v738 = vld [vmem:[#allocation3 + $0x3b8] sm:$0xff]
    %v739 = vld [vmem:[#allocation3 + $0x3c0] sm:$0xff]
    %v740 = vld [vmem:[#allocation3 + $0x3c8] sm:$0xff]
    %v741 = vld [vmem:[#allocation3 + $0x3d0] sm:$0xff]
    %v742 = vld [vmem:[#allocation3 + $0x3d8] sm:$0xff]
    %v743 = vld [vmem:[#allocation3 + $0x3e0] sm:$0xff]
    %v744 = vld [vmem:[#allocation3 + $0x3e8] sm:$0xff]
    %v745 = vld [vmem:[#allocation3 + $0x3f0] sm:$0xff]
    %v746 = vld [vmem:[#allocation3 + $0x3f8] sm:$0xff]
    %v747 = vld [vmem:[#allocation3 + $0x400] sm:$0xff]
    %v748 = vld [vmem:[#allocation3 + $0x408] sm:$0xff]
    %v749 = vld [vmem:[#allocation3 + $0x410] sm:$0xff]
    %v750 = vld [vmem:[#allocation3 + $0x418] sm:$0xff]
    %v751 = vld [vmem:[#allocation3 + $0x420] sm:$0xff]
    %v752 = vld [vmem:[#allocation3 + $0x428] sm:$0xff]
    %v753 = vld [vmem:[#allocation3 + $0x430] sm:$0xff]
    %v754 = vld [vmem:[#allocation3 + $0x438] sm:$0xff]
    %v755 = vld [vmem:[#allocation3 + $0x440] sm:$0xff]
    %v756 = vld [vmem:[#allocation3 + $0x448] sm:$0xff]
    %v757 = vld [vmem:[#allocation3 + $0x450] sm:$0xff]
    %v758 = vld [vmem:[#allocation3 + $0x458] sm:$0xff]
    %v759 = vld [vmem:[#allocation3 + $0x460] sm:$0xff]
    %v760 = vld [vmem:[#allocation3 + $0x468] sm:$0xff]
    %v761 = vld [vmem:[#allocation3 + $0x470] sm:$0xff]
    %v762 = vld [vmem:[#allocation3 + $0x478] sm:$0xff]
    %v763 = vld [vmem:[#allocation3 + $0x480] sm:$0xff]
    %v764 = vld [vmem:[#allocation3 + $0x488] sm:$0xff]
    %v765 = vld [vmem:[#allocation3 + $0x490] sm:$0xff]
    %v766 = vld [vmem:[#allocation3 + $0x498] sm:$0xff]
    %v767 = vld [vmem:[#allocation3 + $0x4a0] sm:$0xff]
    %v768 = vld [vmem:[#allocation3 + $0x4a8] sm:$0xff]
    %v769 = vld [vmem:[#allocation3 + $0x4b0] sm:$0xff]
    %v770 = vld [vmem:[#allocation3 + $0x4b8] sm:$0xff]
    %v771 = vld [vmem:[#allocation3 + $0x4c0] sm:$0xff]
    %v772 = vld [vmem:[#allocation3 + $0x4c8] sm:$0xff]
    %v773 = vld [vmem:[#allocation3 + $0x4d0] sm:$0xff]
    %v774 = vld [vmem:[#allocation3 + $0x4d8] sm:$0xff]
    %v775 = vld [vmem:[#allocation3 + $0x4e0] sm:$0xff]
    %v776 = vld [vmem:[#allocation3 + $0x4e8] sm:$0xff]
    %v777 = vld [vmem:[#allocation3 + $0x4f0] sm:$0xff]
    %v778 = vld [vmem:[#allocation3 + $0x4f8] sm:$0xff]
    %v779 = vld [vmem:[#allocation3 + $0x500] sm:$0xff]
    %v780 = vld [vmem:[#allocation3 + $0x508] sm:$0xff]
    %v781 = vld [vmem:[#allocation3 + $0x510] sm:$0xff]
    %v782 = vld [vmem:[#allocation3 + $0x518] sm:$0xff]
    %v783 = vld [vmem:[#allocation3 + $0x520] sm:$0xff]
    %v784 = vld [vmem:[#allocation3 + $0x528] sm:$0xff]
    %v785 = vld [vmem:[#allocation3 + $0x530] sm:$0xff]
    %v786 = vld [vmem:[#allocation3 + $0x538] sm:$0xff]
    %v787 = vld [vmem:[#allocation3 + $0x540] sm:$0xff]
    %v788 = vld [vmem:[#allocation3 + $0x548] sm:$0xff]
    %v789 = vld [vmem:[#allocation3 + $0x550] sm:$0xff]
    %v790 = vld [vmem:[#allocation3 + $0x558] sm:$0xff]
    %v791 = vld [vmem:[#allocation3 + $0x560] sm:$0xff]
    %v792 = vld [vmem:[#allocation3 + $0x568] sm:$0xff]
    %v793 = vld [vmem:[#allocation3 + $0x570] sm:$0xff]
    %v794 = vld [vmem:[#allocation3 + $0x578] sm:$0xff]
    %v795 = vld [vmem:[#allocation3 + $0x580] sm:$0xff]
    %v796 = vld [vmem:[#allocation3 + $0x588] sm:$0xff]
    %v797 = vld [vmem:[#allocation3 + $0x590] sm:$0xff]
    %v798 = vld [vmem:[#allocation3 + $0x598] sm:$0xff]
    %v799 = vld [vmem:[#allocation3 + $0x5a0] sm:$0xff]
    %v800 = vld [vmem:[#allocation3 + $0x5a8] sm:$0xff]
    %v801 = vld [vmem:[#allocation3 + $0x5b0] sm:$0xff]
    %v802 = vld [vmem:[#allocation3 + $0x5b8] sm:$0xff]
    %v803 = vld [vmem:[#allocation3 + $0x5c0] sm:$0xff]
    %v804 = vld [vmem:[#allocation3 + $0x5c8] sm:$0xff]
    %v805 = vld [vmem:[#allocation3 + $0x5d0] sm:$0xff]
    %v806 = vld [vmem:[#allocation3 + $0x5d8] sm:$0xff]
    %v807 = vld [vmem:[#allocation3 + $0x5e0] sm:$0xff]
    %v808 = vld [vmem:[#allocation3 + $0x5e8] sm:$0xff]
    %v809 = vld [vmem:[#allocation3 + $0x5f0] sm:$0xff]
    %v810 = vld [vmem:[#allocation3 + $0x5f8] sm:$0xff]
    %v811 = vld [vmem:[#allocation3 + $0x600] sm:$0xff]
    %v812 = vld [vmem:[#allocation3 + $0x608] sm:$0xff]
    %v813 = vld [vmem:[#allocation3 + $0x610] sm:$0xff]
    %v814 = vld [vmem:[#allocation3 + $0x618] sm:$0xff]
    %v815 = vld [vmem:[#allocation3 + $0x620] sm:$0xff]
    %v816 = vld [vmem:[#allocation3 + $0x628] sm:$0xff]
    %v817 = vld [vmem:[#allocation3 + $0x630] sm:$0xff]
    %v818 = vld [vmem:[#allocation3 + $0x638] sm:$0xff]
    %v819 = vld [vmem:[#allocation3 + $0x640] sm:$0xff]
    %v820 = vld [vmem:[#allocation3 + $0x648] sm:$0xff]
    %v821 = vld [vmem:[#allocation3 + $0x650] sm:$0xff]
    %v822 = vld [vmem:[#allocation3 + $0x658] sm:$0xff]
    %v823 = vld [vmem:[#allocation3 + $0x660] sm:$0xff]
    %v824 = vld [vmem:[#allocation3 + $0x668] sm:$0xff]
    %v825 = vld [vmem:[#allocation3 + $0x670] sm:$0xff]
    %v826 = vld [vmem:[#allocation3 + $0x678] sm:$0xff]
    %v827 = vld [vmem:[#allocation3 + $0x680] sm:$0xff]
    %v828 = vld [vmem:[#allocation3 + $0x688] sm:$0xff]
    %v829 = vld [vmem:[#allocation3 + $0x690] sm:$0xff]
    %v830 = vld [vmem:[#allocation3 + $0x698] sm:$0xff]
    %v831 = vld [vmem:[#allocation3 + $0x6a0] sm:$0xff]
    %v832 = vld [vmem:[#allocation3 + $0x6a8] sm:$0xff]
    %v833 = vld [vmem:[#allocation3 + $0x6b0] sm:$0xff]
    %v834 = vld [vmem:[#allocation3 + $0x6b8] sm:$0xff]
    %v835 = vld [vmem:[#allocation3 + $0x6c0] sm:$0xff]
    %v836 = vld [vmem:[#allocation3 + $0x6c8] sm:$0xff]
    %v837 = vld [vmem:[#allocation3 + $0x6d0] sm:$0xff]
    %v838 = vld [vmem:[#allocation3 + $0x6d8] sm:$0xff]
    %v839 = vld [vmem:[#allocation3 + $0x6e0] sm:$0xff]
    %v840 = vld [vmem:[#allocation3 + $0x6e8] sm:$0xff]
    %v841 = vld [vmem:[#allocation3 + $0x6f0] sm:$0xff]
    %v842 = vld [vmem:[#allocation3 + $0x6f8] sm:$0xff]
    %v843 = vld [vmem:[#allocation3 + $0x700] sm:$0xff]
    %v844 = vld [vmem:[#allocation3 + $0x708] sm:$0xff]
    %v845 = vld [vmem:[#allocation3 + $0x710] sm:$0xff]
    %v846 = vld [vmem:[#allocation3 + $0x718] sm:$0xff]
    %v847 = vld [vmem:[#allocation3 + $0x720] sm:$0xff]
    %v848 = vld [vmem:[#allocation3 + $0x728] sm:$0xff]
    %v849 = vld [vmem:[#allocation3 + $0x730] sm:$0xff]
    %v850 = vld [vmem:[#allocation3 + $0x738] sm:$0xff]
    %v851 = vld [vmem:[#allocation3 + $0x740] sm:$0xff]
    %v852 = vld [vmem:[#allocation3 + $0x748] sm:$0xff]
    %v853 = vld [vmem:[#allocation3 + $0x750] sm:$0xff]
    %v854 = vld [vmem:[#allocation3 + $0x758] sm:$0xff]
    %v855 = vld [vmem:[#allocation3 + $0x760] sm:$0xff]
    %v856 = vld [vmem:[#allocation3 + $0x768] sm:$0xff]
    %v857 = vld [vmem:[#allocation3 + $0x770] sm:$0xff]
    %v858 = vld [vmem:[#allocation3 + $0x778] sm:$0xff]
    %v859 = vld [vmem:[#allocation3 + $0x780] sm:$0xff]
    %v860 = vld [vmem:[#allocation3 + $0x788] sm:$0xff]
    %v861 = vld [vmem:[#allocation3 + $0x790] sm:$0xff]
    %v862 = vld [vmem:[#allocation3 + $0x798] sm:$0xff]
    %v863 = vld [vmem:[#allocation3 + $0x7a0] sm:$0xff]
    %v864 = vld [vmem:[#allocation3 + $0x7a8] sm:$0xff]
    %v865 = vld [vmem:[#allocation3 + $0x7b0] sm:$0xff]
    %v866 = vld [vmem:[#allocation3 + $0x7b8] sm:$0xff]
    %v867 = vld [vmem:[#allocation3 + $0x7c0] sm:$0xff]
    %v868 = vld [vmem:[#allocation3 + $0x7c8] sm:$0xff]
    %v869 = vld [vmem:[#allocation3 + $0x7d0] sm:$0xff]
    %v870 = vld [vmem:[#allocation3 + $0x7d8] sm:$0xff]
    %v871 = vld [vmem:[#allocation3 + $0x7e0] sm:$0xff]
    %v872 = vld [vmem:[#allocation3 + $0x7e8] sm:$0xff]
    %v873 = vld [vmem:[#allocation3 + $0x7f0] sm:$0xff]
    %v874 = vld [vmem:[#allocation3 + $0x7f8] sm:$0xff]
    %v875 = vld [vmem:[#allocation3 + $0x800] sm:$0xff]
    %v876 = vld [vmem:[#allocation3 + $0x808] sm:$0xff]
    %v877 = vld [vmem:[#allocation3 + $0x810] sm:$0xff]
    %v878 = vld [vmem:[#allocation3 + $0x818] sm:$0xff]
    %v879 = vld [vmem:[#allocation3 + $0x820] sm:$0xff]
    %v880 = vld [vmem:[#allocation3 + $0x828] sm:$0xff]
    %v881 = vld [vmem:[#allocation3 + $0x830] sm:$0xff]
    %v882 = vld [vmem:[#allocation3 + $0x838] sm:$0xff]
    %v883 = vld [vmem:[#allocation3 + $0x840] sm:$0xff]
    %v884 = vld [vmem:[#allocation3 + $0x848] sm:$0xff]
    %v885 = vld [vmem:[#allocation3 + $0x850] sm:$0xff]
    %v886 = vld [vmem:[#allocation3 + $0x858] sm:$0xff]
    %v887 = vld [vmem:[#allocation3 + $0x860] sm:$0xff]
    %v888 = vld [vmem:[#allocation3 + $0x868] sm:$0xff]
    %v889 = vld [vmem:[#allocation3 + $0x870] sm:$0xff]
    %v890 = vld [vmem:[#allocation3 + $0x878] sm:$0xff]
    %v891 = vld [vmem:[#allocation3 + $0x880] sm:$0xff]
    %v892 = vld [vmem:[#allocation3 + $0x888] sm:$0xff]
    %v893 = vld [vmem:[#allocation3 + $0x890] sm:$0xff]
    %v894 = vld [vmem:[#allocation3 + $0x898] sm:$0xff]
    %v895 = vld [vmem:[#allocation3 + $0x8a0] sm:$0xff]
    %v896 = vld [vmem:[#allocation3 + $0x8a8] sm:$0xff]
    %v897 = vld [vmem:[#allocation3 + $0x8b0] sm:$0xff]
    %v898 = vld [vmem:[#allocation3 + $0x8b8] sm:$0xff]
    %v899 = vld [vmem:[#allocation3 + $0x8c0] sm:$0xff]
    %v900 = vld [vmem:[#allocation3 + $0x8c8] sm:$0xff]
    %v901 = vld [vmem:[#allocation3 + $0x8d0] sm:$0xff]
    %v902 = vld [vmem:[#allocation3 + $0x8d8] sm:$0xff]
    %v903 = vld [vmem:[#allocation3 + $0x8e0] sm:$0xff]
    %v904 = vld [vmem:[#allocation3 + $0x8e8] sm:$0xff]
    %v905 = vld [vmem:[#allocation3 + $0x8f0] sm:$0xff]
    %v906 = vld [vmem:[#allocation3 + $0x8f8] sm:$0xff]
    %v907 = vld [vmem:[#allocation3 + $0x900] sm:$0xff]
    %v908 = vld [vmem:[#allocation3 + $0x908] sm:$0xff]
    %v909 = vld [vmem:[#allocation3 + $0x910] sm:$0xff]
    %v910 = vld [vmem:[#allocation3 + $0x918] sm:$0xff]
    %v911 = vld [vmem:[#allocation3 + $0x920] sm:$0xff]
    %v912 = vld [vmem:[#allocation3 + $0x928] sm:$0xff]
    %v913 = vld [vmem:[#allocation3 + $0x930] sm:$0xff]
    %v914 = vld [vmem:[#allocation3 + $0x938] sm:$0xff]
    %v915 = vld [vmem:[#allocation3 + $0x940] sm:$0xff]
    %v916 = vld [vmem:[#allocation3 + $0x948] sm:$0xff]
    %v917 = vld [vmem:[#allocation3 + $0x950] sm:$0xff]
    %v918 = vld [vmem:[#allocation3 + $0x958] sm:$0xff]
    %v919 = vld [vmem:[#allocation3 + $0x960] sm:$0xff]
    %v920 = vld [vmem:[#allocation3 + $0x968] sm:$0xff]
    %v921 = vld [vmem:[#allocation3 + $0x970] sm:$0xff]
    %v922 = vld [vmem:[#allocation3 + $0x978] sm:$0xff]
    %v923 = vld [vmem:[#allocation3 + $0x980] sm:$0xff]
    %v924 = vld [vmem:[#allocation3 + $0x988] sm:$0xff]
    %v925 = vld [vmem:[#allocation3 + $0x990] sm:$0xff]
    %v926 = vld [vmem:[#allocation3 + $0x998] sm:$0xff]
    %v927 = vld [vmem:[#allocation3 + $0x9a0] sm:$0xff]
    %v928 = vld [vmem:[#allocation3 + $0x9a8] sm:$0xff]
    %v929 = vld [vmem:[#allocation3 + $0x9b0] sm:$0xff]
    %v930 = vld [vmem:[#allocation3 + $0x9b8] sm:$0xff]
    %v931 = vld [vmem:[#allocation3 + $0x9c0] sm:$0xff]
    %v932 = vld [vmem:[#allocation3 + $0x9c8] sm:$0xff]
    %v933 = vld [vmem:[#allocation3 + $0x9d0] sm:$0xff]
    %v934 = vld [vmem:[#allocation3 + $0x9d8] sm:$0xff]
    %v935 = vld [vmem:[#allocation3 + $0x9e0] sm:$0xff]
    %v936 = vld [vmem:[#allocation3 + $0x9e8] sm:$0xff]
    %v937 = vld [vmem:[#allocation3 + $0x9f0] sm:$0xff]
    %v938 = vld [vmem:[#allocation3 + $0x9f8] sm:$0xff]
    %v939 = vld [vmem:[#allocation3 + $0xa00] sm:$0xff]
    %v940 = vld [vmem:[#allocation3 + $0xa08] sm:$0xff]
    %v941 = vld [vmem:[#allocation3 + $0xa10] sm:$0xff]
    %v942 = vld [vmem:[#allocation3 + $0xa18] sm:$0xff]
    %v943 = vld [vmem:[#allocation3 + $0xa20] sm:$0xff]
    %v944 = vld [vmem:[#allocation3 + $0xa28] sm:$0xff]
    %v945 = vld [vmem:[#allocation3 + $0xa30] sm:$0xff]
    %v946 = vld [vmem:[#allocation3 + $0xa38] sm:$0xff]
    %v947 = vld [vmem:[#allocation3 + $0xa40] sm:$0xff]
    %v948 = vld [vmem:[#allocation3 + $0xa48] sm:$0xff]
    %v949 = vld [vmem:[#allocation3 + $0xa50] sm:$0xff]
    %v950 = vld [vmem:[#allocation3 + $0xa58] sm:$0xff]
    %v951 = vld [vmem:[#allocation3 + $0xa60] sm:$0xff]
    %v952 = vld [vmem:[#allocation3 + $0xa68] sm:$0xff]
    %v953 = vld [vmem:[#allocation3 + $0xa70] sm:$0xff]
    %v954 = vld [vmem:[#allocation3 + $0xa78] sm:$0xff]
    %v955 = vld [vmem:[#allocation3 + $0xa80] sm:$0xff]
    %v956 = vld [vmem:[#allocation3 + $0xa88] sm:$0xff]
    %v957 = vld [vmem:[#allocation3 + $0xa90] sm:$0xff]
    %v958 = vld [vmem:[#allocation3 + $0xa98] sm:$0xff]
    %v959 = vld [vmem:[#allocation3 + $0xaa0] sm:$0xff]
    %v960 = vld [vmem:[#allocation3 + $0xaa8] sm:$0xff]
    %v961 = vld [vmem:[#allocation3 + $0xab0] sm:$0xff]
    %v962 = vld [vmem:[#allocation3 + $0xab8] sm:$0xff]
    %v963 = vld [vmem:[#allocation3 + $0xac0] sm:$0xff]
    %v964 = vld [vmem:[#allocation3 + $0xac8] sm:$0xff]
    %v965 = vld [vmem:[#allocation3 + $0xad0] sm:$0xff]
    %v966 = vld [vmem:[#allocation3 + $0xad8] sm:$0xff]
    %v967 = vld [vmem:[#allocation3 + $0xae0] sm:$0xff]
    %v968 = vld [vmem:[#allocation3 + $0xae8] sm:$0xff]
    %v969 = vld [vmem:[#allocation3 + $0xaf0] sm:$0xff]
    %v970 = vld [vmem:[#allocation3 + $0xaf8] sm:$0xff]
    %v971 = vld [vmem:[#allocation3 + $0xb00] sm:$0xff]
    %v972 = vld [vmem:[#allocation3 + $0xb08] sm:$0xff]
    %v973 = vld [vmem:[#allocation3 + $0xb10] sm:$0xff]
    %v974 = vld [vmem:[#allocation3 + $0xb18] sm:$0xff]
    %v975 = vld [vmem:[#allocation3 + $0xb20] sm:$0xff]
    %v976 = vld [vmem:[#allocation3 + $0xb28] sm:$0xff]
    %v977 = vld [vmem:[#allocation3 + $0xb30] sm:$0xff]
    %v978 = vld [vmem:[#allocation3 + $0xb38] sm:$0xff]
    %v979 = vld [vmem:[#allocation3 + $0xb40] sm:$0xff]
    %v980 = vld [vmem:[#allocation3 + $0xb48] sm:$0xff]
    %v981 = vld [vmem:[#allocation3 + $0xb50] sm:$0xff]
    %v982 = vld [vmem:[#allocation3 + $0xb58] sm:$0xff]
    %v983 = vld [vmem:[#allocation3 + $0xb60] sm:$0xff]
    %v984 = vld [vmem:[#allocation3 + $0xb68] sm:$0xff]
    %v985 = vld [vmem:[#allocation3 + $0xb70] sm:$0xff]
    %v986 = vld [vmem:[#allocation3 + $0xb78] sm:$0xff]
    %v987 = vld [vmem:[#allocation3 + $0xb80] sm:$0xff]
    %v988 = vld [vmem:[#allocation3 + $0xb88] sm:$0xff]
    %v989 = vld [vmem:[#allocation3 + $0xb90] sm:$0xff]
    %v990 = vld [vmem:[#allocation3 + $0xb98] sm:$0xff]
    %v991 = vld [vmem:[#allocation3 + $0xba0] sm:$0xff]
    %v992 = vld [vmem:[#allocation3 + $0xba8] sm:$0xff]
    %v993 = vld [vmem:[#allocation3 + $0xbb0] sm:$0xff]
    %v994 = vld [vmem:[#allocation3 + $0xbb8] sm:$0xff]
    %v995 = vld [vmem:[#allocation3 + $0xbc0] sm:$0xff]
    %v996 = vld [vmem:[#allocation3 + $0xbc8] sm:$0xff]
    %v997 = vld [vmem:[#allocation3 + $0xbd0] sm:$0xff]
    %v998 = vld [vmem:[#allocation3 + $0xbd8] sm:$0xff]
    %v999 = vld [vmem:[#allocation3 + $0xbe0] sm:$0xff]
    %v1000 = vld [vmem:[#allocation3 + $0xbe8] sm:$0xff]
    %v1001 = vld [vmem:[#allocation3 + $0xbf0] sm:$0xff]
    %v1002 = vld [vmem:[#allocation3 + $0xbf8] sm:$0xff]
    %v1003 = vld [vmem:[#allocation3 + $0xc00] sm:$0xff]
    %v1004 = vld [vmem:[#allocation3 + $0xc08] sm:$0xff]
    %v1005 = vld [vmem:[#allocation3 + $0xc10] sm:$0xff]
    %v1006 = vld [vmem:[#allocation3 + $0xc18] sm:$0xff]
    %v1007 = vld [vmem:[#allocation3 + $0xc20] sm:$0xff]
    %v1008 = vld [vmem:[#allocation3 + $0xc28] sm:$0xff]
    %v1009 = vld [vmem:[#allocation3 + $0xc30] sm:$0xff]
    %v1010 = vld [vmem:[#allocation3 + $0xc38] sm:$0xff]
    %v1011 = vld [vmem:[#allocation3 + $0xc40] sm:$0xff]
    %v1012 = vld [vmem:[#allocation3 + $0xc48] sm:$0xff]
    %v1013 = vld [vmem:[#allocation3 + $0xc50] sm:$0xff]
    %v1014 = vld [vmem:[#allocation3 + $0xc58] sm:$0xff]
    %v1015 = vld [vmem:[#allocation3 + $0xc60] sm:$0xff]
    %v1016 = vld [vmem:[#allocation3 + $0xc68] sm:$0xff]
    %v1017 = vld [vmem:[#allocation3 + $0xc70] sm:$0xff]
    %v1018 = vld [vmem:[#allocation3 + $0xc78] sm:$0xff]
    %v1019 = vld [vmem:[#allocation3 + $0xc80] sm:$0xff]
    %v1020 = vld [vmem:[#allocation3 + $0xc88] sm:$0xff]
    %v1021 = vld [vmem:[#allocation3 + $0xc90] sm:$0xff]
    %v1022 = vld [vmem:[#allocation3 + $0xc98] sm:$0xff]
    %v1023 = vld [vmem:[#allocation3 + $0xca0] sm:$0xff]
    %v1024 = vld [vmem:[#allocation3 + $0xca8] sm:$0xff]
    %v1025 = vld [vmem:[#allocation3 + $0xcb0] sm:$0xff]
    %v1026 = vld [vmem:[#allocation3 + $0xcb8] sm:$0xff]
    %v1027 = vld [vmem:[#allocation3 + $0xcc0] sm:$0xff]
    %v1028 = vld [vmem:[#allocation3 + $0xcc8] sm:$0xff]
    %v1029 = vld [vmem:[#allocation3 + $0xcd0] sm:$0xff]
    %v1030 = vld [vmem:[#allocation3 + $0xcd8] sm:$0xff]
    %v1031 = vld [vmem:[#allocation3 + $0xce0] sm:$0xff]
    %v1032 = vld [vmem:[#allocation3 + $0xce8] sm:$0xff]
    %v1033 = vld [vmem:[#allocation3 + $0xcf0] sm:$0xff]
    %v1034 = vld [vmem:[#allocation3 + $0xcf8] sm:$0xff]
    %v1035 = vld [vmem:[#allocation3 + $0xd00] sm:$0xff]
    %v1036 = vld [vmem:[#allocation3 + $0xd08] sm:$0xff]
    %v1037 = vld [vmem:[#allocation3 + $0xd10] sm:$0xff]
    %v1038 = vld [vmem:[#allocation3 + $0xd18] sm:$0xff]
    %v1039 = vld [vmem:[#allocation3 + $0xd20] sm:$0xff]
    %v1040 = vld [vmem:[#allocation3 + $0xd28] sm:$0xff]
    %v1041 = vld [vmem:[#allocation3 + $0xd30] sm:$0xff]
    %v1042 = vld [vmem:[#allocation3 + $0xd38] sm:$0xff]
    %v1043 = vld [vmem:[#allocation3 + $0xd40] sm:$0xff]
    %v1044 = vld [vmem:[#allocation3 + $0xd48] sm:$0xff]
    %v1045 = vld [vmem:[#allocation3 + $0xd50] sm:$0xff]
    %v1046 = vld [vmem:[#allocation3 + $0xd58] sm:$0xff]
    %v1047 = vld [vmem:[#allocation3 + $0xd60] sm:$0xff]
    %v1048 = vld [vmem:[#allocation3 + $0xd68] sm:$0xff]
    %v1049 = vld [vmem:[#allocation3 + $0xd70] sm:$0xff]
    %v1050 = vld [vmem:[#allocation3 + $0xd78] sm:$0xff]
    %v1051 = vld [vmem:[#allocation3 + $0xd80] sm:$0xff]
    %v1052 = vld [vmem:[#allocation3 + $0xd88] sm:$0xff]
    %v1053 = vld [vmem:[#allocation3 + $0xd90] sm:$0xff]
    %v1054 = vld [vmem:[#allocation3 + $0xd98] sm:$0xff]
    %v1055 = vld [vmem:[#allocation3 + $0xda0] sm:$0xff]
    %v1056 = vld [vmem:[#allocation3 + $0xda8] sm:$0xff]
    %v1057 = vld [vmem:[#allocation3 + $0xdb0] sm:$0xff]
    %v1058 = vld [vmem:[#allocation3 + $0xdb8] sm:$0xff]
    %v1059 = vld [vmem:[#allocation3 + $0xdc0] sm:$0xff]
    %v1060 = vld [vmem:[#allocation3 + $0xdc8] sm:$0xff]
    %v1061 = vld [vmem:[#allocation3 + $0xdd0] sm:$0xff]
    %v1062 = vld [vmem:[#allocation3 + $0xdd8] sm:$0xff]
    %v1063 = vld [vmem:[#allocation3 + $0xde0] sm:$0xff]
    %v1064 = vld [vmem:[#allocation3 + $0xde8] sm:$0xff]
    %v1065 = vld [vmem:[#allocation3 + $0xdf0] sm:$0xff]
    %v1066 = vld [vmem:[#allocation3 + $0xdf8] sm:$0xff]
    %v1067 = vld [vmem:[#allocation6] sm:$0xff]
    %v1069 = vperm.slane %v1067, 0
    %v1070 = vperm.slane %v1067, 1
    %v1071 = vperm.slane %v1067, 2
    %v1072 = vperm.slane %v1067, 3
    %v1073 = vperm.slane %v1067, 4
    %v1074 = vperm.slane %v1067, 5
    %v1075 = vperm.slane %v1067, 6
    %v1076 = vperm.slane %v1067, 7
    %v1533 = vunpack.c.l.b16 %v619
    %v1534 = vunpack.c.h.b16 %v619
    %v1535 = vunpack.c.l.b16 %v620
    %v1536 = vunpack.c.h.b16 %v620
    %v1537 = vunpack.c.l.b16 %v621
    %v1538 = vunpack.c.h.b16 %v621
    %v1539 = vunpack.c.l.b16 %v622
    %v1540 = vunpack.c.h.b16 %v622
    %v1541 = vunpack.c.l.b16 %v623
    %v1542 = vunpack.c.h.b16 %v623
    %v1543 = vunpack.c.l.b16 %v624
    %v1544 = vunpack.c.h.b16 %v624
    %v1545 = vunpack.c.l.b16 %v625
    %v1546 = vunpack.c.h.b16 %v625
    %v1547 = vunpack.c.l.b16 %v626
    %v1548 = vunpack.c.h.b16 %v626
    %v1549 = vunpack.c.l.b16 %v627
    %v1550 = vunpack.c.h.b16 %v627
    %v1551 = vunpack.c.l.b16 %v628
    %v1552 = vunpack.c.h.b16 %v628
    %v1553 = vunpack.c.l.b16 %v629
    %v1554 = vunpack.c.h.b16 %v629
    %v1555 = vunpack.c.l.b16 %v630
    %v1556 = vunpack.c.h.b16 %v630
    %v1557 = vunpack.c.l.b16 %v631
    %v1558 = vunpack.c.h.b16 %v631
    %v1559 = vunpack.c.l.b16 %v632
    %v1560 = vunpack.c.h.b16 %v632
    %v1561 = vunpack.c.l.b16 %v633
    %v1562 = vunpack.c.h.b16 %v633
    %v1563 = vunpack.c.l.b16 %v634
    %v1564 = vunpack.c.h.b16 %v634
    %v1565 = vunpack.c.l.b16 %v635
    %v1566 = vunpack.c.h.b16 %v635
    %v1567 = vunpack.c.l.b16 %v636
    %v1568 = vunpack.c.h.b16 %v636
    %v1569 = vunpack.c.l.b16 %v637
    %v1570 = vunpack.c.h.b16 %v637
    %v1571 = vunpack.c.l.b16 %v638
    %v1572 = vunpack.c.h.b16 %v638
    %v1573 = vunpack.c.l.b16 %v639
    %v1574 = vunpack.c.h.b16 %v639
    %v1575 = vunpack.c.l.b16 %v640
    %v1576 = vunpack.c.h.b16 %v640
    %v1577 = vunpack.c.l.b16 %v641
    %v1578 = vunpack.c.h.b16 %v641
    %v1579 = vunpack.c.l.b16 %v642
    %v1580 = vunpack.c.h.b16 %v642
    %v1581 = vunpack.c.l.b16 %v643
    %v1582 = vunpack.c.h.b16 %v643
    %v1583 = vunpack.c.l.b16 %v644
    %v1584 = vunpack.c.h.b16 %v644
    %v1585 = vunpack.c.l.b16 %v645
    %v1586 = vunpack.c.h.b16 %v645
    %v1587 = vunpack.c.l.b16 %v646
    %v1588 = vunpack.c.h.b16 %v646
    %v1589 = vunpack.c.l.b16 %v647
    %v1590 = vunpack.c.h.b16 %v647
    %v1591 = vunpack.c.l.b16 %v648
    %v1592 = vunpack.c.h.b16 %v648
    %v1593 = vunpack.c.l.b16 %v649
    %v1594 = vunpack.c.h.b16 %v649
    %v1595 = vunpack.c.l.b16 %v650
    %v1596 = vunpack.c.h.b16 %v650
    %v1597 = vunpack.c.l.b16 %v651
    %v1598 = vunpack.c.h.b16 %v651
    %v1599 = vunpack.c.l.b16 %v652
    %v1600 = vunpack.c.h.b16 %v652
    %v1601 = vunpack.c.l.b16 %v653
    %v1602 = vunpack.c.h.b16 %v653
    %v1603 = vunpack.c.l.b16 %v654
    %v1604 = vunpack.c.h.b16 %v654
    %v1605 = vunpack.c.l.b16 %v655
    %v1606 = vunpack.c.h.b16 %v655
    %v1607 = vunpack.c.l.b16 %v656
    %v1608 = vunpack.c.h.b16 %v656
    %v1609 = vunpack.c.l.b16 %v657
    %v1610 = vunpack.c.h.b16 %v657
    %v1611 = vunpack.c.l.b16 %v658
    %v1612 = vunpack.c.h.b16 %v658
    %v1613 = vunpack.c.l.b16 %v659
    %v1614 = vunpack.c.h.b16 %v659
    %v1615 = vunpack.c.l.b16 %v660
    %v1616 = vunpack.c.h.b16 %v660
    %v1617 = vunpack.c.l.b16 %v661
    %v1618 = vunpack.c.h.b16 %v661
    %v1619 = vunpack.c.l.b16 %v662
    %v1620 = vunpack.c.h.b16 %v662
    %v1621 = vunpack.c.l.b16 %v663
    %v1622 = vunpack.c.h.b16 %v663
    %v1623 = vunpack.c.l.b16 %v664
    %v1624 = vunpack.c.h.b16 %v664
    %v1625 = vunpack.c.l.b16 %v665
    %v1626 = vunpack.c.h.b16 %v665
    %v1627 = vunpack.c.l.b16 %v666
    %v1628 = vunpack.c.h.b16 %v666
    %v1629 = vunpack.c.l.b16 %v667
    %v1630 = vunpack.c.h.b16 %v667
    %v1631 = vunpack.c.l.b16 %v668
    %v1632 = vunpack.c.h.b16 %v668
    %v1633 = vunpack.c.l.b16 %v669
    %v1634 = vunpack.c.h.b16 %v669
    %v1635 = vunpack.c.l.b16 %v670
    %v1636 = vunpack.c.h.b16 %v670
    %v1637 = vunpack.c.l.b16 %v671
    %v1638 = vunpack.c.h.b16 %v671
    %v1639 = vunpack.c.l.b16 %v672
    %v1640 = vunpack.c.h.b16 %v672
    %v1641 = vunpack.c.l.b16 %v673
    %v1642 = vunpack.c.h.b16 %v673
    %v1643 = vunpack.c.l.b16 %v674
    %v1644 = vunpack.c.h.b16 %v674
    %v1645 = vunpack.c.l.b16 %v675
    %v1646 = vunpack.c.h.b16 %v675
    %v1647 = vunpack.c.l.b16 %v676
    %v1648 = vunpack.c.h.b16 %v676
    %v1649 = vunpack.c.l.b16 %v677
    %v1650 = vunpack.c.h.b16 %v677
    %v1651 = vunpack.c.l.b16 %v678
    %v1652 = vunpack.c.h.b16 %v678
    %v1653 = vunpack.c.l.b16 %v679
    %v1654 = vunpack.c.h.b16 %v679
    %v1655 = vunpack.c.l.b16 %v680
    %v1656 = vunpack.c.h.b16 %v680
    %v1657 = vunpack.c.l.b16 %v681
    %v1658 = vunpack.c.h.b16 %v681
    %v1659 = vunpack.c.l.b16 %v682
    %v1660 = vunpack.c.h.b16 %v682
    %v1661 = vunpack.c.l.b16 %v683
    %v1662 = vunpack.c.h.b16 %v683
    %v1663 = vunpack.c.l.b16 %v684
    %v1664 = vunpack.c.h.b16 %v684
    %v1665 = vunpack.c.l.b16 %v685
    %v1666 = vunpack.c.h.b16 %v685
    %v1667 = vunpack.c.l.b16 %v686
    %v1668 = vunpack.c.h.b16 %v686
    %v1669 = vunpack.c.l.b16 %v687
    %v1670 = vunpack.c.h.b16 %v687
    %v1671 = vunpack.c.l.b16 %v688
    %v1672 = vunpack.c.h.b16 %v688
    %v1673 = vunpack.c.l.b16 %v689
    %v1674 = vunpack.c.h.b16 %v689
    %v1675 = vunpack.c.l.b16 %v690
    %v1676 = vunpack.c.h.b16 %v690
    %v1677 = vunpack.c.l.b16 %v691
    %v1678 = vunpack.c.h.b16 %v691
    %v1679 = vunpack.c.l.b16 %v692
    %v1680 = vunpack.c.h.b16 %v692
    %v1681 = vunpack.c.l.b16 %v693
    %v1682 = vunpack.c.h.b16 %v693
    %v1683 = vunpack.c.l.b16 %v694
    %v1684 = vunpack.c.h.b16 %v694
    %v1685 = vunpack.c.l.b16 %v695
    %v1686 = vunpack.c.h.b16 %v695
    %v1687 = vunpack.c.l.b16 %v696
    %v1688 = vunpack.c.h.b16 %v696
    %v1689 = vunpack.c.l.b16 %v697
    %v1690 = vunpack.c.h.b16 %v697
    %v1691 = vunpack.c.l.b16 %v698
    %v1692 = vunpack.c.h.b16 %v698
    %v1693 = vunpack.c.l.b16 %v699
    %v1694 = vunpack.c.h.b16 %v699
    %v1695 = vunpack.c.l.b16 %v700
    %v1696 = vunpack.c.h.b16 %v700
    %v1697 = vunpack.c.l.b16 %v701
    %v1698 = vunpack.c.h.b16 %v701
    %v1699 = vunpack.c.l.b16 %v702
    %v1700 = vunpack.c.h.b16 %v702
    %v1701 = vunpack.c.l.b16 %v703
    %v1702 = vunpack.c.h.b16 %v703
    %v1703 = vunpack.c.l.b16 %v704
    %v1704 = vunpack.c.h.b16 %v704
    %v1705 = vunpack.c.l.b16 %v705
    %v1706 = vunpack.c.h.b16 %v705
    %v1707 = vunpack.c.l.b16 %v706
    %v1708 = vunpack.c.h.b16 %v706
    %v1709 = vunpack.c.l.b16 %v707
    %v1710 = vunpack.c.h.b16 %v707
    %v1711 = vunpack.c.l.b16 %v708
    %v1712 = vunpack.c.h.b16 %v708
    %v1713 = vunpack.c.l.b16 %v709
    %v1714 = vunpack.c.h.b16 %v709
    %v1715 = vunpack.c.l.b16 %v710
    %v1716 = vunpack.c.h.b16 %v710
    %v1717 = vunpack.c.l.b16 %v711
    %v1718 = vunpack.c.h.b16 %v711
    %v1719 = vunpack.c.l.b16 %v712
    %v1720 = vunpack.c.h.b16 %v712
    %v1721 = vunpack.c.l.b16 %v713
    %v1722 = vunpack.c.h.b16 %v713
    %v1723 = vunpack.c.l.b16 %v714
    %v1724 = vunpack.c.h.b16 %v714
    %v1725 = vunpack.c.l.b16 %v715
    %v1726 = vunpack.c.h.b16 %v715
    %v1727 = vunpack.c.l.b16 %v716
    %v1728 = vunpack.c.h.b16 %v716
    %v1729 = vunpack.c.l.b16 %v717
    %v1730 = vunpack.c.h.b16 %v717
    %v1731 = vunpack.c.l.b16 %v718
    %v1732 = vunpack.c.h.b16 %v718
    %v1733 = vunpack.c.l.b16 %v719
    %v1734 = vunpack.c.h.b16 %v719
    %v1735 = vunpack.c.l.b16 %v720
    %v1736 = vunpack.c.h.b16 %v720
    %v1737 = vunpack.c.l.b16 %v721
    %v1738 = vunpack.c.h.b16 %v721
    %v1739 = vunpack.c.l.b16 %v722
    %v1740 = vunpack.c.h.b16 %v722
    %v1741 = vunpack.c.l.b16 %v723
    %v1742 = vunpack.c.h.b16 %v723
    %v1743 = vunpack.c.l.b16 %v724
    %v1744 = vunpack.c.h.b16 %v724
    %v1745 = vunpack.c.l.b16 %v725
    %v1746 = vunpack.c.h.b16 %v725
    %v1747 = vunpack.c.l.b16 %v726
    %v1748 = vunpack.c.h.b16 %v726
    %v1749 = vunpack.c.l.b16 %v727
    %v1750 = vunpack.c.h.b16 %v727
    %v1751 = vunpack.c.l.b16 %v728
    %v1752 = vunpack.c.h.b16 %v728
    %v1753 = vunpack.c.l.b16 %v729
    %v1754 = vunpack.c.h.b16 %v729
    %v1755 = vunpack.c.l.b16 %v730
    %v1756 = vunpack.c.h.b16 %v730
    %v1757 = vunpack.c.l.b16 %v731
    %v1758 = vunpack.c.h.b16 %v731
    %v1759 = vunpack.c.l.b16 %v732
    %v1760 = vunpack.c.h.b16 %v732
    %v1761 = vunpack.c.l.b16 %v733
    %v1762 = vunpack.c.h.b16 %v733
    %v1763 = vunpack.c.l.b16 %v734
    %v1764 = vunpack.c.h.b16 %v734
    %v1765 = vunpack.c.l.b16 %v735
    %v1766 = vunpack.c.h.b16 %v735
    %v1767 = vunpack.c.l.b16 %v736
    %v1768 = vunpack.c.h.b16 %v736
    %v1769 = vunpack.c.l.b16 %v737
    %v1770 = vunpack.c.h.b16 %v737
    %v1771 = vunpack.c.l.b16 %v738
    %v1772 = vunpack.c.h.b16 %v738
    %v1773 = vunpack.c.l.b16 %v739
    %v1774 = vunpack.c.h.b16 %v739
    %v1775 = vunpack.c.l.b16 %v740
    %v1776 = vunpack.c.h.b16 %v740
    %v1777 = vunpack.c.l.b16 %v741
    %v1778 = vunpack.c.h.b16 %v741
    %v1779 = vunpack.c.l.b16 %v742
    %v1780 = vunpack.c.h.b16 %v742
    %v1781 = vunpack.c.l.b16 %v743
    %v1782 = vunpack.c.h.b16 %v743
    %v1783 = vunpack.c.l.b16 %v744
    %v1784 = vunpack.c.h.b16 %v744
    %v1785 = vunpack.c.l.b16 %v745
    %v1786 = vunpack.c.h.b16 %v745
    %v1787 = vunpack.c.l.b16 %v746
    %v1788 = vunpack.c.h.b16 %v746
    %v1789 = vunpack.c.l.b16 %v747
    %v1790 = vunpack.c.h.b16 %v747
    %v1791 = vunpack.c.l.b16 %v748
    %v1792 = vunpack.c.h.b16 %v748
    %v1793 = vunpack.c.l.b16 %v749
    %v1794 = vunpack.c.h.b16 %v749
    %v1795 = vunpack.c.l.b16 %v750
    %v1796 = vunpack.c.h.b16 %v750
    %v1797 = vunpack.c.l.b16 %v751
    %v1798 = vunpack.c.h.b16 %v751
    %v1799 = vunpack.c.l.b16 %v752
    %v1800 = vunpack.c.h.b16 %v752
    %v1801 = vunpack.c.l.b16 %v753
    %v1802 = vunpack.c.h.b16 %v753
    %v1803 = vunpack.c.l.b16 %v754
    %v1804 = vunpack.c.h.b16 %v754
    %v1805 = vunpack.c.l.b16 %v755
    %v1806 = vunpack.c.h.b16 %v755
    %v1807 = vunpack.c.l.b16 %v756
    %v1808 = vunpack.c.h.b16 %v756
    %v1809 = vunpack.c.l.b16 %v757
    %v1810 = vunpack.c.h.b16 %v757
    %v1811 = vunpack.c.l.b16 %v758
    %v1812 = vunpack.c.h.b16 %v758
    %v1813 = vunpack.c.l.b16 %v759
    %v1814 = vunpack.c.h.b16 %v759
    %v1815 = vunpack.c.l.b16 %v760
    %v1816 = vunpack.c.h.b16 %v760
    %v1817 = vunpack.c.l.b16 %v761
    %v1818 = vunpack.c.h.b16 %v761
    %v1819 = vunpack.c.l.b16 %v762
    %v1820 = vunpack.c.h.b16 %v762
    %v1821 = vunpack.c.l.b16 %v763
    %v1822 = vunpack.c.h.b16 %v763
    %v1823 = vunpack.c.l.b16 %v764
    %v1824 = vunpack.c.h.b16 %v764
    %v1825 = vunpack.c.l.b16 %v765
    %v1826 = vunpack.c.h.b16 %v765
    %v1827 = vunpack.c.l.b16 %v766
    %v1828 = vunpack.c.h.b16 %v766
    %v1829 = vunpack.c.l.b16 %v767
    %v1830 = vunpack.c.h.b16 %v767
    %v1831 = vunpack.c.l.b16 %v768
    %v1832 = vunpack.c.h.b16 %v768
    %v1833 = vunpack.c.l.b16 %v769
    %v1834 = vunpack.c.h.b16 %v769
    %v1835 = vunpack.c.l.b16 %v770
    %v1836 = vunpack.c.h.b16 %v770
    %v1837 = vunpack.c.l.b16 %v771
    %v1838 = vunpack.c.h.b16 %v771
    %v1839 = vunpack.c.l.b16 %v772
    %v1840 = vunpack.c.h.b16 %v772
    %v1841 = vunpack.c.l.b16 %v773
    %v1842 = vunpack.c.h.b16 %v773
    %v1843 = vunpack.c.l.b16 %v774
    %v1844 = vunpack.c.h.b16 %v774
    %v1845 = vunpack.c.l.b16 %v775
    %v1846 = vunpack.c.h.b16 %v775
    %v1847 = vunpack.c.l.b16 %v776
    %v1848 = vunpack.c.h.b16 %v776
    %v1849 = vunpack.c.l.b16 %v777
    %v1850 = vunpack.c.h.b16 %v777
    %v1851 = vunpack.c.l.b16 %v778
    %v1852 = vunpack.c.h.b16 %v778
    %v1853 = vunpack.c.l.b16 %v779
    %v1854 = vunpack.c.h.b16 %v779
    %v1855 = vunpack.c.l.b16 %v780
    %v1856 = vunpack.c.h.b16 %v780
    %v1857 = vunpack.c.l.b16 %v781
    %v1858 = vunpack.c.h.b16 %v781
    %v1859 = vunpack.c.l.b16 %v782
    %v1860 = vunpack.c.h.b16 %v782
    %v1861 = vunpack.c.l.b16 %v783
    %v1862 = vunpack.c.h.b16 %v783
    %v1863 = vunpack.c.l.b16 %v784
    %v1864 = vunpack.c.h.b16 %v784
    %v1865 = vunpack.c.l.b16 %v785
    %v1866 = vunpack.c.h.b16 %v785
    %v1867 = vunpack.c.l.b16 %v786
    %v1868 = vunpack.c.h.b16 %v786
    %v1869 = vunpack.c.l.b16 %v787
    %v1870 = vunpack.c.h.b16 %v787
    %v1871 = vunpack.c.l.b16 %v788
    %v1872 = vunpack.c.h.b16 %v788
    %v1873 = vunpack.c.l.b16 %v789
    %v1874 = vunpack.c.h.b16 %v789
    %v1875 = vunpack.c.l.b16 %v790
    %v1876 = vunpack.c.h.b16 %v790
    %v1877 = vunpack.c.l.b16 %v791
    %v1878 = vunpack.c.h.b16 %v791
    %v1879 = vunpack.c.l.b16 %v792
    %v1880 = vunpack.c.h.b16 %v792
    %v1881 = vunpack.c.l.b16 %v793
    %v1882 = vunpack.c.h.b16 %v793
    %v1883 = vunpack.c.l.b16 %v794
    %v1884 = vunpack.c.h.b16 %v794
    %v1885 = vunpack.c.l.b16 %v795
    %v1886 = vunpack.c.h.b16 %v795
    %v1887 = vunpack.c.l.b16 %v796
    %v1888 = vunpack.c.h.b16 %v796
    %v1889 = vunpack.c.l.b16 %v797
    %v1890 = vunpack.c.h.b16 %v797
    %v1891 = vunpack.c.l.b16 %v798
    %v1892 = vunpack.c.h.b16 %v798
    %v1893 = vunpack.c.l.b16 %v799
    %v1894 = vunpack.c.h.b16 %v799
    %v1895 = vunpack.c.l.b16 %v800
    %v1896 = vunpack.c.h.b16 %v800
    %v1897 = vunpack.c.l.b16 %v801
    %v1898 = vunpack.c.h.b16 %v801
    %v1899 = vunpack.c.l.b16 %v802
    %v1900 = vunpack.c.h.b16 %v802
    %v1901 = vunpack.c.l.b16 %v803
    %v1902 = vunpack.c.h.b16 %v803
    %v1903 = vunpack.c.l.b16 %v804
    %v1904 = vunpack.c.h.b16 %v804
    %v1905 = vunpack.c.l.b16 %v805
    %v1906 = vunpack.c.h.b16 %v805
    %v1907 = vunpack.c.l.b16 %v806
    %v1908 = vunpack.c.h.b16 %v806
    %v1909 = vunpack.c.l.b16 %v807
    %v1910 = vunpack.c.h.b16 %v807
    %v1911 = vunpack.c.l.b16 %v808
    %v1912 = vunpack.c.h.b16 %v808
    %v1913 = vunpack.c.l.b16 %v809
    %v1914 = vunpack.c.h.b16 %v809
    %v1915 = vunpack.c.l.b16 %v810
    %v1916 = vunpack.c.h.b16 %v810
    %v1917 = vunpack.c.l.b16 %v811
    %v1918 = vunpack.c.h.b16 %v811
    %v1919 = vunpack.c.l.b16 %v812
    %v1920 = vunpack.c.h.b16 %v812
    %v1921 = vunpack.c.l.b16 %v813
    %v1922 = vunpack.c.h.b16 %v813
    %v1923 = vunpack.c.l.b16 %v814
    %v1924 = vunpack.c.h.b16 %v814
    %v1925 = vunpack.c.l.b16 %v815
    %v1926 = vunpack.c.h.b16 %v815
    %v1927 = vunpack.c.l.b16 %v816
    %v1928 = vunpack.c.h.b16 %v816
    %v1929 = vunpack.c.l.b16 %v817
    %v1930 = vunpack.c.h.b16 %v817
    %v1931 = vunpack.c.l.b16 %v818
    %v1932 = vunpack.c.h.b16 %v818
    %v1933 = vunpack.c.l.b16 %v819
    %v1934 = vunpack.c.h.b16 %v819
    %v1935 = vunpack.c.l.b16 %v820
    %v1936 = vunpack.c.h.b16 %v820
    %v1937 = vunpack.c.l.b16 %v821
    %v1938 = vunpack.c.h.b16 %v821
    %v1939 = vunpack.c.l.b16 %v822
    %v1940 = vunpack.c.h.b16 %v822
    %v1941 = vunpack.c.l.b16 %v823
    %v1942 = vunpack.c.h.b16 %v823
    %v1943 = vunpack.c.l.b16 %v824
    %v1944 = vunpack.c.h.b16 %v824
    %v1945 = vunpack.c.l.b16 %v825
    %v1946 = vunpack.c.h.b16 %v825
    %v1947 = vunpack.c.l.b16 %v826
    %v1948 = vunpack.c.h.b16 %v826
    %v1949 = vunpack.c.l.b16 %v827
    %v1950 = vunpack.c.h.b16 %v827
    %v1951 = vunpack.c.l.b16 %v828
    %v1952 = vunpack.c.h.b16 %v828
    %v1953 = vunpack.c.l.b16 %v829
    %v1954 = vunpack.c.h.b16 %v829
    %v1955 = vunpack.c.l.b16 %v830
    %v1956 = vunpack.c.h.b16 %v830
    %v1957 = vunpack.c.l.b16 %v831
    %v1958 = vunpack.c.h.b16 %v831
    %v1959 = vunpack.c.l.b16 %v832
    %v1960 = vunpack.c.h.b16 %v832
    %v1961 = vunpack.c.l.b16 %v833
    %v1962 = vunpack.c.h.b16 %v833
    %v1963 = vunpack.c.l.b16 %v834
    %v1964 = vunpack.c.h.b16 %v834
    %v1965 = vunpack.c.l.b16 %v835
    %v1966 = vunpack.c.h.b16 %v835
    %v1967 = vunpack.c.l.b16 %v836
    %v1968 = vunpack.c.h.b16 %v836
    %v1969 = vunpack.c.l.b16 %v837
    %v1970 = vunpack.c.h.b16 %v837
    %v1971 = vunpack.c.l.b16 %v838
    %v1972 = vunpack.c.h.b16 %v838
    %v1973 = vunpack.c.l.b16 %v839
    %v1974 = vunpack.c.h.b16 %v839
    %v1975 = vunpack.c.l.b16 %v840
    %v1976 = vunpack.c.h.b16 %v840
    %v1977 = vunpack.c.l.b16 %v841
    %v1978 = vunpack.c.h.b16 %v841
    %v1979 = vunpack.c.l.b16 %v842
    %v1980 = vunpack.c.h.b16 %v842
    %v1981 = vunpack.c.l.b16 %v843
    %v1982 = vunpack.c.h.b16 %v843
    %v1983 = vunpack.c.l.b16 %v844
    %v1984 = vunpack.c.h.b16 %v844
    %v1985 = vunpack.c.l.b16 %v845
    %v1986 = vunpack.c.h.b16 %v845
    %v1987 = vunpack.c.l.b16 %v846
    %v1988 = vunpack.c.h.b16 %v846
    %v1989 = vunpack.c.l.b16 %v847
    %v1990 = vunpack.c.h.b16 %v847
    %v1991 = vunpack.c.l.b16 %v848
    %v1992 = vunpack.c.h.b16 %v848
    %v1993 = vunpack.c.l.b16 %v849
    %v1994 = vunpack.c.h.b16 %v849
    %v1995 = vunpack.c.l.b16 %v850
    %v1996 = vunpack.c.h.b16 %v850
    %v1997 = vunpack.c.l.b16 %v851
    %v1998 = vunpack.c.h.b16 %v851
    %v1999 = vunpack.c.l.b16 %v852
    %v2000 = vunpack.c.h.b16 %v852
    %v2001 = vunpack.c.l.b16 %v853
    %v2002 = vunpack.c.h.b16 %v853
    %v2003 = vunpack.c.l.b16 %v854
    %v2004 = vunpack.c.h.b16 %v854
    %v2005 = vunpack.c.l.b16 %v855
    %v2006 = vunpack.c.h.b16 %v855
    %v2007 = vunpack.c.l.b16 %v856
    %v2008 = vunpack.c.h.b16 %v856
    %v2009 = vunpack.c.l.b16 %v857
    %v2010 = vunpack.c.h.b16 %v857
    %v2011 = vunpack.c.l.b16 %v858
    %v2012 = vunpack.c.h.b16 %v858
    %v2013 = vunpack.c.l.b16 %v859
    %v2014 = vunpack.c.h.b16 %v859
    %v2015 = vunpack.c.l.b16 %v860
    %v2016 = vunpack.c.h.b16 %v860
    %v2017 = vunpack.c.l.b16 %v861
    %v2018 = vunpack.c.h.b16 %v861
    %v2019 = vunpack.c.l.b16 %v862
    %v2020 = vunpack.c.h.b16 %v862
    %v2021 = vunpack.c.l.b16 %v863
    %v2022 = vunpack.c.h.b16 %v863
    %v2023 = vunpack.c.l.b16 %v864
    %v2024 = vunpack.c.h.b16 %v864
    %v2025 = vunpack.c.l.b16 %v865
    %v2026 = vunpack.c.h.b16 %v865
    %v2027 = vunpack.c.l.b16 %v866
    %v2028 = vunpack.c.h.b16 %v866
    %v2029 = vunpack.c.l.b16 %v867
    %v2030 = vunpack.c.h.b16 %v867
    %v2031 = vunpack.c.l.b16 %v868
    %v2032 = vunpack.c.h.b16 %v868
    %v2033 = vunpack.c.l.b16 %v869
    %v2034 = vunpack.c.h.b16 %v869
    %v2035 = vunpack.c.l.b16 %v870
    %v2036 = vunpack.c.h.b16 %v870
    %v2037 = vunpack.c.l.b16 %v871
    %v2038 = vunpack.c.h.b16 %v871
    %v2039 = vunpack.c.l.b16 %v872
    %v2040 = vunpack.c.h.b16 %v872
    %v2041 = vunpack.c.l.b16 %v873
    %v2042 = vunpack.c.h.b16 %v873
    %v2043 = vunpack.c.l.b16 %v874
    %v2044 = vunpack.c.h.b16 %v874
    %v2045 = vunpack.c.l.b16 %v875
    %v2046 = vunpack.c.h.b16 %v875
    %v2047 = vunpack.c.l.b16 %v876
    %v2048 = vunpack.c.h.b16 %v876
    %v2049 = vunpack.c.l.b16 %v877
    %v2050 = vunpack.c.h.b16 %v877
    %v2051 = vunpack.c.l.b16 %v878
    %v2052 = vunpack.c.h.b16 %v878
    %v2053 = vunpack.c.l.b16 %v879
    %v2054 = vunpack.c.h.b16 %v879
    %v2055 = vunpack.c.l.b16 %v880
    %v2056 = vunpack.c.h.b16 %v880
    %v2057 = vunpack.c.l.b16 %v881
    %v2058 = vunpack.c.h.b16 %v881
    %v2059 = vunpack.c.l.b16 %v882
    %v2060 = vunpack.c.h.b16 %v882
    %v2061 = vunpack.c.l.b16 %v883
    %v2062 = vunpack.c.h.b16 %v883
    %v2063 = vunpack.c.l.b16 %v884
    %v2064 = vunpack.c.h.b16 %v884
    %v2065 = vunpack.c.l.b16 %v885
    %v2066 = vunpack.c.h.b16 %v885
    %v2067 = vunpack.c.l.b16 %v886
    %v2068 = vunpack.c.h.b16 %v886
    %v2069 = vunpack.c.l.b16 %v887
    %v2070 = vunpack.c.h.b16 %v887
    %v2071 = vunpack.c.l.b16 %v888
    %v2072 = vunpack.c.h.b16 %v888
    %v2073 = vunpack.c.l.b16 %v889
    %v2074 = vunpack.c.h.b16 %v889
    %v2075 = vunpack.c.l.b16 %v890
    %v2076 = vunpack.c.h.b16 %v890
    %v2077 = vunpack.c.l.b16 %v891
    %v2078 = vunpack.c.h.b16 %v891
    %v2079 = vunpack.c.l.b16 %v892
    %v2080 = vunpack.c.h.b16 %v892
    %v2081 = vunpack.c.l.b16 %v893
    %v2082 = vunpack.c.h.b16 %v893
    %v2083 = vunpack.c.l.b16 %v894
    %v2084 = vunpack.c.h.b16 %v894
    %v2085 = vunpack.c.l.b16 %v895
    %v2086 = vunpack.c.h.b16 %v895
    %v2087 = vunpack.c.l.b16 %v896
    %v2088 = vunpack.c.h.b16 %v896
    %v2089 = vunpack.c.l.b16 %v897
    %v2090 = vunpack.c.h.b16 %v897
    %v2091 = vunpack.c.l.b16 %v898
    %v2092 = vunpack.c.h.b16 %v898
    %v2093 = vunpack.c.l.b16 %v899
    %v2094 = vunpack.c.h.b16 %v899
    %v2095 = vunpack.c.l.b16 %v900
    %v2096 = vunpack.c.h.b16 %v900
    %v2097 = vunpack.c.l.b16 %v901
    %v2098 = vunpack.c.h.b16 %v901
    %v2099 = vunpack.c.l.b16 %v902
    %v2100 = vunpack.c.h.b16 %v902
    %v2101 = vunpack.c.l.b16 %v903
    %v2102 = vunpack.c.h.b16 %v903
    %v2103 = vunpack.c.l.b16 %v904
    %v2104 = vunpack.c.h.b16 %v904
    %v2105 = vunpack.c.l.b16 %v905
    %v2106 = vunpack.c.h.b16 %v905
    %v2107 = vunpack.c.l.b16 %v906
    %v2108 = vunpack.c.h.b16 %v906
    %v2109 = vunpack.c.l.b16 %v907
    %v2110 = vunpack.c.h.b16 %v907
    %v2111 = vunpack.c.l.b16 %v908
    %v2112 = vunpack.c.h.b16 %v908
    %v2113 = vunpack.c.l.b16 %v909
    %v2114 = vunpack.c.h.b16 %v909
    %v2115 = vunpack.c.l.b16 %v910
    %v2116 = vunpack.c.h.b16 %v910
    %v2117 = vunpack.c.l.b16 %v911
    %v2118 = vunpack.c.h.b16 %v911
    %v2119 = vunpack.c.l.b16 %v912
    %v2120 = vunpack.c.h.b16 %v912
    %v2121 = vunpack.c.l.b16 %v913
    %v2122 = vunpack.c.h.b16 %v913
    %v2123 = vunpack.c.l.b16 %v914
    %v2124 = vunpack.c.h.b16 %v914
    %v2125 = vunpack.c.l.b16 %v915
    %v2126 = vunpack.c.h.b16 %v915
    %v2127 = vunpack.c.l.b16 %v916
    %v2128 = vunpack.c.h.b16 %v916
    %v2129 = vunpack.c.l.b16 %v917
    %v2130 = vunpack.c.h.b16 %v917
    %v2131 = vunpack.c.l.b16 %v918
    %v2132 = vunpack.c.h.b16 %v918
    %v2133 = vunpack.c.l.b16 %v919
    %v2134 = vunpack.c.h.b16 %v919
    %v2135 = vunpack.c.l.b16 %v920
    %v2136 = vunpack.c.h.b16 %v920
    %v2137 = vunpack.c.l.b16 %v921
    %v2138 = vunpack.c.h.b16 %v921
    %v2139 = vunpack.c.l.b16 %v922
    %v2140 = vunpack.c.h.b16 %v922
    %v2141 = vunpack.c.l.b16 %v923
    %v2142 = vunpack.c.h.b16 %v923
    %v2143 = vunpack.c.l.b16 %v924
    %v2144 = vunpack.c.h.b16 %v924
    %v2145 = vunpack.c.l.b16 %v925
    %v2146 = vunpack.c.h.b16 %v925
    %v2147 = vunpack.c.l.b16 %v926
    %v2148 = vunpack.c.h.b16 %v926
    %v2149 = vunpack.c.l.b16 %v927
    %v2150 = vunpack.c.h.b16 %v927
    %v2151 = vunpack.c.l.b16 %v928
    %v2152 = vunpack.c.h.b16 %v928
    %v2153 = vunpack.c.l.b16 %v929
    %v2154 = vunpack.c.h.b16 %v929
    %v2155 = vunpack.c.l.b16 %v930
    %v2156 = vunpack.c.h.b16 %v930
    %v2157 = vunpack.c.l.b16 %v931
    %v2158 = vunpack.c.h.b16 %v931
    %v2159 = vunpack.c.l.b16 %v932
    %v2160 = vunpack.c.h.b16 %v932
    %v2161 = vunpack.c.l.b16 %v933
    %v2162 = vunpack.c.h.b16 %v933
    %v2163 = vunpack.c.l.b16 %v934
    %v2164 = vunpack.c.h.b16 %v934
    %v2165 = vunpack.c.l.b16 %v935
    %v2166 = vunpack.c.h.b16 %v935
    %v2167 = vunpack.c.l.b16 %v936
    %v2168 = vunpack.c.h.b16 %v936
    %v2169 = vunpack.c.l.b16 %v937
    %v2170 = vunpack.c.h.b16 %v937
    %v2171 = vunpack.c.l.b16 %v938
    %v2172 = vunpack.c.h.b16 %v938
    %v2173 = vunpack.c.l.b16 %v939
    %v2174 = vunpack.c.h.b16 %v939
    %v2175 = vunpack.c.l.b16 %v940
    %v2176 = vunpack.c.h.b16 %v940
    %v2177 = vunpack.c.l.b16 %v941
    %v2178 = vunpack.c.h.b16 %v941
    %v2179 = vunpack.c.l.b16 %v942
    %v2180 = vunpack.c.h.b16 %v942
    %v2181 = vunpack.c.l.b16 %v943
    %v2182 = vunpack.c.h.b16 %v943
    %v2183 = vunpack.c.l.b16 %v944
    %v2184 = vunpack.c.h.b16 %v944
    %v2185 = vunpack.c.l.b16 %v945
    %v2186 = vunpack.c.h.b16 %v945
    %v2187 = vunpack.c.l.b16 %v946
    %v2188 = vunpack.c.h.b16 %v946
    %v2189 = vunpack.c.l.b16 %v947
    %v2190 = vunpack.c.h.b16 %v947
    %v2191 = vunpack.c.l.b16 %v948
    %v2192 = vunpack.c.h.b16 %v948
    %v2193 = vunpack.c.l.b16 %v949
    %v2194 = vunpack.c.h.b16 %v949
    %v2195 = vunpack.c.l.b16 %v950
    %v2196 = vunpack.c.h.b16 %v950
    %v2197 = vunpack.c.l.b16 %v951
    %v2198 = vunpack.c.h.b16 %v951
    %v2199 = vunpack.c.l.b16 %v952
    %v2200 = vunpack.c.h.b16 %v952
    %v2201 = vunpack.c.l.b16 %v953
    %v2202 = vunpack.c.h.b16 %v953
    %v2203 = vunpack.c.l.b16 %v954
    %v2204 = vunpack.c.h.b16 %v954
    %v2205 = vunpack.c.l.b16 %v955
    %v2206 = vunpack.c.h.b16 %v955
    %v2207 = vunpack.c.l.b16 %v956
    %v2208 = vunpack.c.h.b16 %v956
    %v2209 = vunpack.c.l.b16 %v957
    %v2210 = vunpack.c.h.b16 %v957
    %v2211 = vunpack.c.l.b16 %v958
    %v2212 = vunpack.c.h.b16 %v958
    %v2213 = vunpack.c.l.b16 %v959
    %v2214 = vunpack.c.h.b16 %v959
    %v2215 = vunpack.c.l.b16 %v960
    %v2216 = vunpack.c.h.b16 %v960
    %v2217 = vunpack.c.l.b16 %v961
    %v2218 = vunpack.c.h.b16 %v961
    %v2219 = vunpack.c.l.b16 %v962
    %v2220 = vunpack.c.h.b16 %v962
    %v2221 = vunpack.c.l.b16 %v963
    %v2222 = vunpack.c.h.b16 %v963
    %v2223 = vunpack.c.l.b16 %v964
    %v2224 = vunpack.c.h.b16 %v964
    %v2225 = vunpack.c.l.b16 %v965
    %v2226 = vunpack.c.h.b16 %v965
    %v2227 = vunpack.c.l.b16 %v966
    %v2228 = vunpack.c.h.b16 %v966
    %v2229 = vunpack.c.l.b16 %v967
    %v2230 = vunpack.c.h.b16 %v967
    %v2231 = vunpack.c.l.b16 %v968
    %v2232 = vunpack.c.h.b16 %v968
    %v2233 = vunpack.c.l.b16 %v969
    %v2234 = vunpack.c.h.b16 %v969
    %v2235 = vunpack.c.l.b16 %v970
    %v2236 = vunpack.c.h.b16 %v970
    %v2237 = vunpack.c.l.b16 %v971
    %v2238 = vunpack.c.h.b16 %v971
    %v2239 = vunpack.c.l.b16 %v972
    %v2240 = vunpack.c.h.b16 %v972
    %v2241 = vunpack.c.l.b16 %v973
    %v2242 = vunpack.c.h.b16 %v973
    %v2243 = vunpack.c.l.b16 %v974
    %v2244 = vunpack.c.h.b16 %v974
    %v2245 = vunpack.c.l.b16 %v975
    %v2246 = vunpack.c.h.b16 %v975
    %v2247 = vunpack.c.l.b16 %v976
    %v2248 = vunpack.c.h.b16 %v976
    %v2249 = vunpack.c.l.b16 %v977
    %v2250 = vunpack.c.h.b16 %v977
    %v2251 = vunpack.c.l.b16 %v978
    %v2252 = vunpack.c.h.b16 %v978
    %v2253 = vunpack.c.l.b16 %v979
    %v2254 = vunpack.c.h.b16 %v979
    %v2255 = vunpack.c.l.b16 %v980
    %v2256 = vunpack.c.h.b16 %v980
    %v2257 = vunpack.c.l.b16 %v981
    %v2258 = vunpack.c.h.b16 %v981
    %v2259 = vunpack.c.l.b16 %v982
    %v2260 = vunpack.c.h.b16 %v982
    %v2261 = vunpack.c.l.b16 %v983
    %v2262 = vunpack.c.h.b16 %v983
    %v2263 = vunpack.c.l.b16 %v984
    %v2264 = vunpack.c.h.b16 %v984
    %v2265 = vunpack.c.l.b16 %v985
    %v2266 = vunpack.c.h.b16 %v985
    %v2267 = vunpack.c.l.b16 %v986
    %v2268 = vunpack.c.h.b16 %v986
    %v2269 = vunpack.c.l.b16 %v987
    %v2270 = vunpack.c.h.b16 %v987
    %v2271 = vunpack.c.l.b16 %v988
    %v2272 = vunpack.c.h.b16 %v988
    %v2273 = vunpack.c.l.b16 %v989
    %v2274 = vunpack.c.h.b16 %v989
    %v2275 = vunpack.c.l.b16 %v990
    %v2276 = vunpack.c.h.b16 %v990
    %v2277 = vunpack.c.l.b16 %v991
    %v2278 = vunpack.c.h.b16 %v991
    %v2279 = vunpack.c.l.b16 %v992
    %v2280 = vunpack.c.h.b16 %v992
    %v2281 = vunpack.c.l.b16 %v993
    %v2282 = vunpack.c.h.b16 %v993
    %v2283 = vunpack.c.l.b16 %v994
    %v2284 = vunpack.c.h.b16 %v994
    %v2285 = vunpack.c.l.b16 %v995
    %v2286 = vunpack.c.h.b16 %v995
    %v2287 = vunpack.c.l.b16 %v996
    %v2288 = vunpack.c.h.b16 %v996
    %v2289 = vunpack.c.l.b16 %v997
    %v2290 = vunpack.c.h.b16 %v997
    %v2291 = vunpack.c.l.b16 %v998
    %v2292 = vunpack.c.h.b16 %v998
    %v2293 = vunpack.c.l.b16 %v999
    %v2294 = vunpack.c.h.b16 %v999
    %v2295 = vunpack.c.l.b16 %v1000
    %v2296 = vunpack.c.h.b16 %v1000
    %v2297 = vunpack.c.l.b16 %v1001
    %v2298 = vunpack.c.h.b16 %v1001
    %v2299 = vunpack.c.l.b16 %v1002
    %v2300 = vunpack.c.h.b16 %v1002
    %v2301 = vunpack.c.l.b16 %v1003
    %v2302 = vunpack.c.h.b16 %v1003
    %v2303 = vunpack.c.l.b16 %v1004
    %v2304 = vunpack.c.h.b16 %v1004
    %v2305 = vunpack.c.l.b16 %v1005
    %v2306 = vunpack.c.h.b16 %v1005
    %v2307 = vunpack.c.l.b16 %v1006
    %v2308 = vunpack.c.h.b16 %v1006
    %v2309 = vunpack.c.l.b16 %v1007
    %v2310 = vunpack.c.h.b16 %v1007
    %v2311 = vunpack.c.l.b16 %v1008
    %v2312 = vunpack.c.h.b16 %v1008
    %v2313 = vunpack.c.l.b16 %v1009
    %v2314 = vunpack.c.h.b16 %v1009
    %v2315 = vunpack.c.l.b16 %v1010
    %v2316 = vunpack.c.h.b16 %v1010
    %v2317 = vunpack.c.l.b16 %v1011
    %v2318 = vunpack.c.h.b16 %v1011
    %v2319 = vunpack.c.l.b16 %v1012
    %v2320 = vunpack.c.h.b16 %v1012
    %v2321 = vunpack.c.l.b16 %v1013
    %v2322 = vunpack.c.h.b16 %v1013
    %v2323 = vunpack.c.l.b16 %v1014
    %v2324 = vunpack.c.h.b16 %v1014
    %v2325 = vunpack.c.l.b16 %v1015
    %v2326 = vunpack.c.h.b16 %v1015
    %v2327 = vunpack.c.l.b16 %v1016
    %v2328 = vunpack.c.h.b16 %v1016
    %v2329 = vunpack.c.l.b16 %v1017
    %v2330 = vunpack.c.h.b16 %v1017
    %v2331 = vunpack.c.l.b16 %v1018
    %v2332 = vunpack.c.h.b16 %v1018
    %v2333 = vunpack.c.l.b16 %v1019
    %v2334 = vunpack.c.h.b16 %v1019
    %v2335 = vunpack.c.l.b16 %v1020
    %v2336 = vunpack.c.h.b16 %v1020
    %v2337 = vunpack.c.l.b16 %v1021
    %v2338 = vunpack.c.h.b16 %v1021
    %v2339 = vunpack.c.l.b16 %v1022
    %v2340 = vunpack.c.h.b16 %v1022
    %v2341 = vunpack.c.l.b16 %v1023
    %v2342 = vunpack.c.h.b16 %v1023
    %v2343 = vunpack.c.l.b16 %v1024
    %v2344 = vunpack.c.h.b16 %v1024
    %v2345 = vunpack.c.l.b16 %v1025
    %v2346 = vunpack.c.h.b16 %v1025
    %v2347 = vunpack.c.l.b16 %v1026
    %v2348 = vunpack.c.h.b16 %v1026
    %v2349 = vunpack.c.l.b16 %v1027
    %v2350 = vunpack.c.h.b16 %v1027
    %v2351 = vunpack.c.l.b16 %v1028
    %v2352 = vunpack.c.h.b16 %v1028
    %v2353 = vunpack.c.l.b16 %v1029
    %v2354 = vunpack.c.h.b16 %v1029
    %v2355 = vunpack.c.l.b16 %v1030
    %v2356 = vunpack.c.h.b16 %v1030
    %v2357 = vunpack.c.l.b16 %v1031
    %v2358 = vunpack.c.h.b16 %v1031
    %v2359 = vunpack.c.l.b16 %v1032
    %v2360 = vunpack.c.h.b16 %v1032
    %v2361 = vunpack.c.l.b16 %v1033
    %v2362 = vunpack.c.h.b16 %v1033
    %v2363 = vunpack.c.l.b16 %v1034
    %v2364 = vunpack.c.h.b16 %v1034
    %v2365 = vunpack.c.l.b16 %v1035
    %v2366 = vunpack.c.h.b16 %v1035
    %v2367 = vunpack.c.l.b16 %v1036
    %v2368 = vunpack.c.h.b16 %v1036
    %v2369 = vunpack.c.l.b16 %v1037
    %v2370 = vunpack.c.h.b16 %v1037
    %v2371 = vunpack.c.l.b16 %v1038
    %v2372 = vunpack.c.h.b16 %v1038
    %v2373 = vunpack.c.l.b16 %v1039
    %v2374 = vunpack.c.h.b16 %v1039
    %v2375 = vunpack.c.l.b16 %v1040
    %v2376 = vunpack.c.h.b16 %v1040
    %v2377 = vunpack.c.l.b16 %v1041
    %v2378 = vunpack.c.h.b16 %v1041
    %v2379 = vunpack.c.l.b16 %v1042
    %v2380 = vunpack.c.h.b16 %v1042
    %v2381 = vunpack.c.l.b16 %v1043
    %v2382 = vunpack.c.h.b16 %v1043
    %v2383 = vunpack.c.l.b16 %v1044
    %v2384 = vunpack.c.h.b16 %v1044
    %v2385 = vunpack.c.l.b16 %v1045
    %v2386 = vunpack.c.h.b16 %v1045
    %v2387 = vunpack.c.l.b16 %v1046
    %v2388 = vunpack.c.h.b16 %v1046
    %v2389 = vunpack.c.l.b16 %v1047
    %v2390 = vunpack.c.h.b16 %v1047
    %v2391 = vunpack.c.l.b16 %v1048
    %v2392 = vunpack.c.h.b16 %v1048
    %v2393 = vunpack.c.l.b16 %v1049
    %v2394 = vunpack.c.h.b16 %v1049
    %v2395 = vunpack.c.l.b16 %v1050
    %v2396 = vunpack.c.h.b16 %v1050
    %v2397 = vunpack.c.l.b16 %v1051
    %v2398 = vunpack.c.h.b16 %v1051
    %v2399 = vunpack.c.l.b16 %v1052
    %v2400 = vunpack.c.h.b16 %v1052
    %v2401 = vunpack.c.l.b16 %v1053
    %v2402 = vunpack.c.h.b16 %v1053
    %v2403 = vunpack.c.l.b16 %v1054
    %v2404 = vunpack.c.h.b16 %v1054
    %v2405 = vunpack.c.l.b16 %v1055
    %v2406 = vunpack.c.h.b16 %v1055
    %v2407 = vunpack.c.l.b16 %v1056
    %v2408 = vunpack.c.h.b16 %v1056
    %v2409 = vunpack.c.l.b16 %v1057
    %v2410 = vunpack.c.h.b16 %v1057
    %v2411 = vunpack.c.l.b16 %v1058
    %v2412 = vunpack.c.h.b16 %v1058
    %v2413 = vunpack.c.l.b16 %v1059
    %v2414 = vunpack.c.h.b16 %v1059
    %v2415 = vunpack.c.l.b16 %v1060
    %v2416 = vunpack.c.h.b16 %v1060
    %v2417 = vunpack.c.l.b16 %v1061
    %v2418 = vunpack.c.h.b16 %v1061
    %v2419 = vunpack.c.l.b16 %v1062
    %v2420 = vunpack.c.h.b16 %v1062
    %v2421 = vunpack.c.l.b16 %v1063
    %v2422 = vunpack.c.h.b16 %v1063
    %v2423 = vunpack.c.l.b16 %v1064
    %v2424 = vunpack.c.h.b16 %v1064
    %v2425 = vunpack.c.l.b16 %v1065
    %v2426 = vunpack.c.h.b16 %v1065
    %v2427 = vunpack.c.l.b16 %v1066
    %v2428 = vunpack.c.h.b16 %v1066
    %v2429 = vpack.c.b16 %v1541, %v1533
    %v2430 = vpack.c.b16 %v1542, %v1534
    %v2431 = vpack.c.b16 %v1543, %v1535
    %v2432 = vpack.c.b16 %v1544, %v1536
    %v2433 = vpack.c.b16 %v1545, %v1537
    %v2434 = vpack.c.b16 %v1546, %v1538
    %v2435 = vpack.c.b16 %v1547, %v1539
    %v2436 = vpack.c.b16 %v1548, %v1540
    %v2437 = vpack.c.b16 %v1557, %v1549
    %v2438 = vpack.c.b16 %v1558, %v1550
    %v2439 = vpack.c.b16 %v1559, %v1551
    %v2440 = vpack.c.b16 %v1560, %v1552
    %v2441 = vpack.c.b16 %v1561, %v1553
    %v2442 = vpack.c.b16 %v1562, %v1554
    %v2443 = vpack.c.b16 %v1563, %v1555
    %v2444 = vpack.c.b16 %v1564, %v1556
    %v2445 = vpack.c.b16 %v1573, %v1565
    %v2446 = vpack.c.b16 %v1574, %v1566
    %v2447 = vpack.c.b16 %v1575, %v1567
    %v2448 = vpack.c.b16 %v1576, %v1568
    %v2449 = vpack.c.b16 %v1577, %v1569
    %v2450 = vpack.c.b16 %v1578, %v1570
    %v2451 = vpack.c.b16 %v1579, %v1571
    %v2452 = vpack.c.b16 %v1580, %v1572
    %v2453 = vpack.c.b16 %v1589, %v1581
    %v2454 = vpack.c.b16 %v1590, %v1582
    %v2455 = vpack.c.b16 %v1591, %v1583
    %v2456 = vpack.c.b16 %v1592, %v1584
    %v2457 = vpack.c.b16 %v1593, %v1585
    %v2458 = vpack.c.b16 %v1594, %v1586
    %v2459 = vpack.c.b16 %v1595, %v1587
    %v2460 = vpack.c.b16 %v1596, %v1588
    %v2461 = vpack.c.b16 %v1605, %v1597
    %v2462 = vpack.c.b16 %v1606, %v1598
    %v2463 = vpack.c.b16 %v1607, %v1599
    %v2464 = vpack.c.b16 %v1608, %v1600
    %v2465 = vpack.c.b16 %v1609, %v1601
    %v2466 = vpack.c.b16 %v1610, %v1602
    %v2467 = vpack.c.b16 %v1611, %v1603
    %v2468 = vpack.c.b16 %v1612, %v1604
    %v2469 = vpack.c.b16 %v1621, %v1613
    %v2470 = vpack.c.b16 %v1622, %v1614
    %v2471 = vpack.c.b16 %v1623, %v1615
    %v2472 = vpack.c.b16 %v1624, %v1616
    %v2473 = vpack.c.b16 %v1625, %v1617
    %v2474 = vpack.c.b16 %v1626, %v1618
    %v2475 = vpack.c.b16 %v1627, %v1619
    %v2476 = vpack.c.b16 %v1628, %v1620
    %v2477 = vpack.c.b16 %v1637, %v1629
    %v2478 = vpack.c.b16 %v1638, %v1630
    %v2479 = vpack.c.b16 %v1639, %v1631
    %v2480 = vpack.c.b16 %v1640, %v1632
    %v2481 = vpack.c.b16 %v1641, %v1633
    %v2482 = vpack.c.b16 %v1642, %v1634
    %v2483 = vpack.c.b16 %v1643, %v1635
    %v2484 = vpack.c.b16 %v1644, %v1636
    %v2485 = vpack.c.b16 %v1653, %v1645
    %v2486 = vpack.c.b16 %v1654, %v1646
    %v2487 = vpack.c.b16 %v1655, %v1647
    %v2488 = vpack.c.b16 %v1656, %v1648
    %v2489 = vpack.c.b16 %v1657, %v1649
    %v2490 = vpack.c.b16 %v1658, %v1650
    %v2491 = vpack.c.b16 %v1659, %v1651
    %v2492 = vpack.c.b16 %v1660, %v1652
    %v2493 = vpack.c.b16 %v1669, %v1661
    %v2494 = vpack.c.b16 %v1670, %v1662
    %v2495 = vpack.c.b16 %v1671, %v1663
    %v2496 = vpack.c.b16 %v1672, %v1664
    %v2497 = vpack.c.b16 %v1673, %v1665
    %v2498 = vpack.c.b16 %v1674, %v1666
    %v2499 = vpack.c.b16 %v1675, %v1667
    %v2500 = vpack.c.b16 %v1676, %v1668
    %v2501 = vpack.c.b16 %v1685, %v1677
    %v2502 = vpack.c.b16 %v1686, %v1678
    %v2503 = vpack.c.b16 %v1687, %v1679
    %v2504 = vpack.c.b16 %v1688, %v1680
    %v2505 = vpack.c.b16 %v1689, %v1681
    %v2506 = vpack.c.b16 %v1690, %v1682
    %v2507 = vpack.c.b16 %v1691, %v1683
    %v2508 = vpack.c.b16 %v1692, %v1684
    %v2509 = vpack.c.b16 %v1701, %v1693
    %v2510 = vpack.c.b16 %v1702, %v1694
    %v2511 = vpack.c.b16 %v1703, %v1695
    %v2512 = vpack.c.b16 %v1704, %v1696
    %v2513 = vpack.c.b16 %v1705, %v1697
    %v2514 = vpack.c.b16 %v1706, %v1698
    %v2515 = vpack.c.b16 %v1707, %v1699
    %v2516 = vpack.c.b16 %v1708, %v1700
    %v2517 = vpack.c.b16 %v1717, %v1709
    %v2518 = vpack.c.b16 %v1718, %v1710
    %v2519 = vpack.c.b16 %v1719, %v1711
    %v2520 = vpack.c.b16 %v1720, %v1712
    %v2521 = vpack.c.b16 %v1721, %v1713
    %v2522 = vpack.c.b16 %v1722, %v1714
    %v2523 = vpack.c.b16 %v1723, %v1715
    %v2524 = vpack.c.b16 %v1724, %v1716
    %v2525 = vpack.c.b16 %v1733, %v1725
    %v2526 = vpack.c.b16 %v1734, %v1726
    %v2527 = vpack.c.b16 %v1735, %v1727
    %v2528 = vpack.c.b16 %v1736, %v1728
    %v2529 = vpack.c.b16 %v1737, %v1729
    %v2530 = vpack.c.b16 %v1738, %v1730
    %v2531 = vpack.c.b16 %v1739, %v1731
    %v2532 = vpack.c.b16 %v1740, %v1732
    %v2533 = vpack.c.b16 %v1749, %v1741
    %v2534 = vpack.c.b16 %v1750, %v1742
    %v2535 = vpack.c.b16 %v1751, %v1743
    %v2536 = vpack.c.b16 %v1752, %v1744
    %v2537 = vpack.c.b16 %v1753, %v1745
    %v2538 = vpack.c.b16 %v1754, %v1746
    %v2539 = vpack.c.b16 %v1755, %v1747
    %v2540 = vpack.c.b16 %v1756, %v1748
    %v2541 = vpack.c.b16 %v1765, %v1757
    %v2542 = vpack.c.b16 %v1766, %v1758
    %v2543 = vpack.c.b16 %v1767, %v1759
    %v2544 = vpack.c.b16 %v1768, %v1760
    %v2545 = vpack.c.b16 %v1769, %v1761
    %v2546 = vpack.c.b16 %v1770, %v1762
    %v2547 = vpack.c.b16 %v1771, %v1763
    %v2548 = vpack.c.b16 %v1772, %v1764
    %v2549 = vpack.c.b16 %v1781, %v1773
    %v2550 = vpack.c.b16 %v1782, %v1774
    %v2551 = vpack.c.b16 %v1783, %v1775
    %v2552 = vpack.c.b16 %v1784, %v1776
    %v2553 = vpack.c.b16 %v1785, %v1777
    %v2554 = vpack.c.b16 %v1786, %v1778
    %v2555 = vpack.c.b16 %v1787, %v1779
    %v2556 = vpack.c.b16 %v1788, %v1780
    %v2557 = vpack.c.b16 %v1797, %v1789
    %v2558 = vpack.c.b16 %v1798, %v1790
    %v2559 = vpack.c.b16 %v1799, %v1791
    %v2560 = vpack.c.b16 %v1800, %v1792
    %v2561 = vpack.c.b16 %v1801, %v1793
    %v2562 = vpack.c.b16 %v1802, %v1794
    %v2563 = vpack.c.b16 %v1803, %v1795
    %v2564 = vpack.c.b16 %v1804, %v1796
    %v2565 = vpack.c.b16 %v1813, %v1805
    %v2566 = vpack.c.b16 %v1814, %v1806
    %v2567 = vpack.c.b16 %v1815, %v1807
    %v2568 = vpack.c.b16 %v1816, %v1808
    %v2569 = vpack.c.b16 %v1817, %v1809
    %v2570 = vpack.c.b16 %v1818, %v1810
    %v2571 = vpack.c.b16 %v1819, %v1811
    %v2572 = vpack.c.b16 %v1820, %v1812
    %v2573 = vpack.c.b16 %v1829, %v1821
    %v2574 = vpack.c.b16 %v1830, %v1822
    %v2575 = vpack.c.b16 %v1831, %v1823
    %v2576 = vpack.c.b16 %v1832, %v1824
    %v2577 = vpack.c.b16 %v1833, %v1825
    %v2578 = vpack.c.b16 %v1834, %v1826
    %v2579 = vpack.c.b16 %v1835, %v1827
    %v2580 = vpack.c.b16 %v1836, %v1828
    %v2581 = vpack.c.b16 %v1845, %v1837
    %v2582 = vpack.c.b16 %v1846, %v1838
    %v2583 = vpack.c.b16 %v1847, %v1839
    %v2584 = vpack.c.b16 %v1848, %v1840
    %v2585 = vpack.c.b16 %v1849, %v1841
    %v2586 = vpack.c.b16 %v1850, %v1842
    %v2587 = vpack.c.b16 %v1851, %v1843
    %v2588 = vpack.c.b16 %v1852, %v1844
    %v2589 = vpack.c.b16 %v1861, %v1853
    %v2590 = vpack.c.b16 %v1862, %v1854
    %v2591 = vpack.c.b16 %v1863, %v1855
    %v2592 = vpack.c.b16 %v1864, %v1856
    %v2593 = vpack.c.b16 %v1865, %v1857
    %v2594 = vpack.c.b16 %v1866, %v1858
    %v2595 = vpack.c.b16 %v1867, %v1859
    %v2596 = vpack.c.b16 %v1868, %v1860
    %v2597 = vpack.c.b16 %v1877, %v1869
    %v2598 = vpack.c.b16 %v1878, %v1870
    %v2599 = vpack.c.b16 %v1879, %v1871
    %v2600 = vpack.c.b16 %v1880, %v1872
    %v2601 = vpack.c.b16 %v1881, %v1873
    %v2602 = vpack.c.b16 %v1882, %v1874
    %v2603 = vpack.c.b16 %v1883, %v1875
    %v2604 = vpack.c.b16 %v1884, %v1876
    %v2605 = vpack.c.b16 %v1893, %v1885
    %v2606 = vpack.c.b16 %v1894, %v1886
    %v2607 = vpack.c.b16 %v1895, %v1887
    %v2608 = vpack.c.b16 %v1896, %v1888
    %v2609 = vpack.c.b16 %v1897, %v1889
    %v2610 = vpack.c.b16 %v1898, %v1890
    %v2611 = vpack.c.b16 %v1899, %v1891
    %v2612 = vpack.c.b16 %v1900, %v1892
    %v2613 = vpack.c.b16 %v1909, %v1901
    %v2614 = vpack.c.b16 %v1910, %v1902
    %v2615 = vpack.c.b16 %v1911, %v1903
    %v2616 = vpack.c.b16 %v1912, %v1904
    %v2617 = vpack.c.b16 %v1913, %v1905
    %v2618 = vpack.c.b16 %v1914, %v1906
    %v2619 = vpack.c.b16 %v1915, %v1907
    %v2620 = vpack.c.b16 %v1916, %v1908
    %v2621 = vpack.c.b16 %v1925, %v1917
    %v2622 = vpack.c.b16 %v1926, %v1918
    %v2623 = vpack.c.b16 %v1927, %v1919
    %v2624 = vpack.c.b16 %v1928, %v1920
    %v2625 = vpack.c.b16 %v1929, %v1921
    %v2626 = vpack.c.b16 %v1930, %v1922
    %v2627 = vpack.c.b16 %v1931, %v1923
    %v2628 = vpack.c.b16 %v1932, %v1924
    %v2629 = vpack.c.b16 %v1941, %v1933
    %v2630 = vpack.c.b16 %v1942, %v1934
    %v2631 = vpack.c.b16 %v1943, %v1935
    %v2632 = vpack.c.b16 %v1944, %v1936
    %v2633 = vpack.c.b16 %v1945, %v1937
    %v2634 = vpack.c.b16 %v1946, %v1938
    %v2635 = vpack.c.b16 %v1947, %v1939
    %v2636 = vpack.c.b16 %v1948, %v1940
    %v2637 = vpack.c.b16 %v1957, %v1949
    %v2638 = vpack.c.b16 %v1958, %v1950
    %v2639 = vpack.c.b16 %v1959, %v1951
    %v2640 = vpack.c.b16 %v1960, %v1952
    %v2641 = vpack.c.b16 %v1961, %v1953
    %v2642 = vpack.c.b16 %v1962, %v1954
    %v2643 = vpack.c.b16 %v1963, %v1955
    %v2644 = vpack.c.b16 %v1964, %v1956
    %v2645 = vpack.c.b16 %v1973, %v1965
    %v2646 = vpack.c.b16 %v1974, %v1966
    %v2647 = vpack.c.b16 %v1975, %v1967
    %v2648 = vpack.c.b16 %v1976, %v1968
    %v2649 = vpack.c.b16 %v1977, %v1969
    %v2650 = vpack.c.b16 %v1978, %v1970
    %v2651 = vpack.c.b16 %v1979, %v1971
    %v2652 = vpack.c.b16 %v1980, %v1972
    %v2653 = vpack.c.b16 %v1989, %v1981
    %v2654 = vpack.c.b16 %v1990, %v1982
    %v2655 = vpack.c.b16 %v1991, %v1983
    %v2656 = vpack.c.b16 %v1992, %v1984
    %v2657 = vpack.c.b16 %v1993, %v1985
    %v2658 = vpack.c.b16 %v1994, %v1986
    %v2659 = vpack.c.b16 %v1995, %v1987
    %v2660 = vpack.c.b16 %v1996, %v1988
    %v2661 = vpack.c.b16 %v2005, %v1997
    %v2662 = vpack.c.b16 %v2006, %v1998
    %v2663 = vpack.c.b16 %v2007, %v1999
    %v2664 = vpack.c.b16 %v2008, %v2000
    %v2665 = vpack.c.b16 %v2009, %v2001
    %v2666 = vpack.c.b16 %v2010, %v2002
    %v2667 = vpack.c.b16 %v2011, %v2003
    %v2668 = vpack.c.b16 %v2012, %v2004
    %v2669 = vpack.c.b16 %v2021, %v2013
    %v2670 = vpack.c.b16 %v2022, %v2014
    %v2671 = vpack.c.b16 %v2023, %v2015
    %v2672 = vpack.c.b16 %v2024, %v2016
    %v2673 = vpack.c.b16 %v2025, %v2017
    %v2674 = vpack.c.b16 %v2026, %v2018
    %v2675 = vpack.c.b16 %v2027, %v2019
    %v2676 = vpack.c.b16 %v2028, %v2020
    %v2677 = vpack.c.b16 %v2037, %v2029
    %v2678 = vpack.c.b16 %v2038, %v2030
    %v2679 = vpack.c.b16 %v2039, %v2031
    %v2680 = vpack.c.b16 %v2040, %v2032
    %v2681 = vpack.c.b16 %v2041, %v2033
    %v2682 = vpack.c.b16 %v2042, %v2034
    %v2683 = vpack.c.b16 %v2043, %v2035
    %v2684 = vpack.c.b16 %v2044, %v2036
    %v2685 = vpack.c.b16 %v2053, %v2045
    %v2686 = vpack.c.b16 %v2054, %v2046
    %v2687 = vpack.c.b16 %v2055, %v2047
    %v2688 = vpack.c.b16 %v2056, %v2048
    %v2689 = vpack.c.b16 %v2057, %v2049
    %v2690 = vpack.c.b16 %v2058, %v2050
    %v2691 = vpack.c.b16 %v2059, %v2051
    %v2692 = vpack.c.b16 %v2060, %v2052
    %v2693 = vpack.c.b16 %v2069, %v2061
    %v2694 = vpack.c.b16 %v2070, %v2062
    %v2695 = vpack.c.b16 %v2071, %v2063
    %v2696 = vpack.c.b16 %v2072, %v2064
    %v2697 = vpack.c.b16 %v2073, %v2065
    %v2698 = vpack.c.b16 %v2074, %v2066
    %v2699 = vpack.c.b16 %v2075, %v2067
    %v2700 = vpack.c.b16 %v2076, %v2068
    %v2701 = vpack.c.b16 %v2085, %v2077
    %v2702 = vpack.c.b16 %v2086, %v2078
    %v2703 = vpack.c.b16 %v2087, %v2079
    %v2704 = vpack.c.b16 %v2088, %v2080
    %v2705 = vpack.c.b16 %v2089, %v2081
    %v2706 = vpack.c.b16 %v2090, %v2082
    %v2707 = vpack.c.b16 %v2091, %v2083
    %v2708 = vpack.c.b16 %v2092, %v2084
    %v2709 = vpack.c.b16 %v2101, %v2093
    %v2710 = vpack.c.b16 %v2102, %v2094
    %v2711 = vpack.c.b16 %v2103, %v2095
    %v2712 = vpack.c.b16 %v2104, %v2096
    %v2713 = vpack.c.b16 %v2105, %v2097
    %v2714 = vpack.c.b16 %v2106, %v2098
    %v2715 = vpack.c.b16 %v2107, %v2099
    %v2716 = vpack.c.b16 %v2108, %v2100
    %v2717 = vpack.c.b16 %v2117, %v2109
    %v2718 = vpack.c.b16 %v2118, %v2110
    %v2719 = vpack.c.b16 %v2119, %v2111
    %v2720 = vpack.c.b16 %v2120, %v2112
    %v2721 = vpack.c.b16 %v2121, %v2113
    %v2722 = vpack.c.b16 %v2122, %v2114
    %v2723 = vpack.c.b16 %v2123, %v2115
    %v2724 = vpack.c.b16 %v2124, %v2116
    %v2725 = vpack.c.b16 %v2133, %v2125
    %v2726 = vpack.c.b16 %v2134, %v2126
    %v2727 = vpack.c.b16 %v2135, %v2127
    %v2728 = vpack.c.b16 %v2136, %v2128
    %v2729 = vpack.c.b16 %v2137, %v2129
    %v2730 = vpack.c.b16 %v2138, %v2130
    %v2731 = vpack.c.b16 %v2139, %v2131
    %v2732 = vpack.c.b16 %v2140, %v2132
    %v2733 = vpack.c.b16 %v2149, %v2141
    %v2734 = vpack.c.b16 %v2150, %v2142
    %v2735 = vpack.c.b16 %v2151, %v2143
    %v2736 = vpack.c.b16 %v2152, %v2144
    %v2737 = vpack.c.b16 %v2153, %v2145
    %v2738 = vpack.c.b16 %v2154, %v2146
    %v2739 = vpack.c.b16 %v2155, %v2147
    %v2740 = vpack.c.b16 %v2156, %v2148
    %v2741 = vpack.c.b16 %v2165, %v2157
    %v2742 = vpack.c.b16 %v2166, %v2158
    %v2743 = vpack.c.b16 %v2167, %v2159
    %v2744 = vpack.c.b16 %v2168, %v2160
    %v2745 = vpack.c.b16 %v2169, %v2161
    %v2746 = vpack.c.b16 %v2170, %v2162
    %v2747 = vpack.c.b16 %v2171, %v2163
    %v2748 = vpack.c.b16 %v2172, %v2164
    %v2749 = vpack.c.b16 %v2181, %v2173
    %v2750 = vpack.c.b16 %v2182, %v2174
    %v2751 = vpack.c.b16 %v2183, %v2175
    %v2752 = vpack.c.b16 %v2184, %v2176
    %v2753 = vpack.c.b16 %v2185, %v2177
    %v2754 = vpack.c.b16 %v2186, %v2178
    %v2755 = vpack.c.b16 %v2187, %v2179
    %v2756 = vpack.c.b16 %v2188, %v2180
    %v2757 = vpack.c.b16 %v2197, %v2189
    %v2758 = vpack.c.b16 %v2198, %v2190
    %v2759 = vpack.c.b16 %v2199, %v2191
    %v2760 = vpack.c.b16 %v2200, %v2192
    %v2761 = vpack.c.b16 %v2201, %v2193
    %v2762 = vpack.c.b16 %v2202, %v2194
    %v2763 = vpack.c.b16 %v2203, %v2195
    %v2764 = vpack.c.b16 %v2204, %v2196
    %v2765 = vpack.c.b16 %v2213, %v2205
    %v2766 = vpack.c.b16 %v2214, %v2206
    %v2767 = vpack.c.b16 %v2215, %v2207
    %v2768 = vpack.c.b16 %v2216, %v2208
    %v2769 = vpack.c.b16 %v2217, %v2209
    %v2770 = vpack.c.b16 %v2218, %v2210
    %v2771 = vpack.c.b16 %v2219, %v2211
    %v2772 = vpack.c.b16 %v2220, %v2212
    %v2773 = vpack.c.b16 %v2229, %v2221
    %v2774 = vpack.c.b16 %v2230, %v2222
    %v2775 = vpack.c.b16 %v2231, %v2223
    %v2776 = vpack.c.b16 %v2232, %v2224
    %v2777 = vpack.c.b16 %v2233, %v2225
    %v2778 = vpack.c.b16 %v2234, %v2226
    %v2779 = vpack.c.b16 %v2235, %v2227
    %v2780 = vpack.c.b16 %v2236, %v2228
    %v2781 = vpack.c.b16 %v2245, %v2237
    %v2782 = vpack.c.b16 %v2246, %v2238
    %v2783 = vpack.c.b16 %v2247, %v2239
    %v2784 = vpack.c.b16 %v2248, %v2240
    %v2785 = vpack.c.b16 %v2249, %v2241
    %v2786 = vpack.c.b16 %v2250, %v2242
    %v2787 = vpack.c.b16 %v2251, %v2243
    %v2788 = vpack.c.b16 %v2252, %v2244
    %v2789 = vpack.c.b16 %v2261, %v2253
    %v2790 = vpack.c.b16 %v2262, %v2254
    %v2791 = vpack.c.b16 %v2263, %v2255
    %v2792 = vpack.c.b16 %v2264, %v2256
    %v2793 = vpack.c.b16 %v2265, %v2257
    %v2794 = vpack.c.b16 %v2266, %v2258
    %v2795 = vpack.c.b16 %v2267, %v2259
    %v2796 = vpack.c.b16 %v2268, %v2260
    %v2797 = vpack.c.b16 %v2277, %v2269
    %v2798 = vpack.c.b16 %v2278, %v2270
    %v2799 = vpack.c.b16 %v2279, %v2271
    %v2800 = vpack.c.b16 %v2280, %v2272
    %v2801 = vpack.c.b16 %v2281, %v2273
    %v2802 = vpack.c.b16 %v2282, %v2274
    %v2803 = vpack.c.b16 %v2283, %v2275
    %v2804 = vpack.c.b16 %v2284, %v2276
    %v2805 = vpack.c.b16 %v2293, %v2285
    %v2806 = vpack.c.b16 %v2294, %v2286
    %v2807 = vpack.c.b16 %v2295, %v2287
    %v2808 = vpack.c.b16 %v2296, %v2288
    %v2809 = vpack.c.b16 %v2297, %v2289
    %v2810 = vpack.c.b16 %v2298, %v2290
    %v2811 = vpack.c.b16 %v2299, %v2291
    %v2812 = vpack.c.b16 %v2300, %v2292
    %v2813 = vpack.c.b16 %v2309, %v2301
    %v2814 = vpack.c.b16 %v2310, %v2302
    %v2815 = vpack.c.b16 %v2311, %v2303
    %v2816 = vpack.c.b16 %v2312, %v2304
    %v2817 = vpack.c.b16 %v2313, %v2305
    %v2818 = vpack.c.b16 %v2314, %v2306
    %v2819 = vpack.c.b16 %v2315, %v2307
    %v2820 = vpack.c.b16 %v2316, %v2308
    %v2821 = vpack.c.b16 %v2325, %v2317
    %v2822 = vpack.c.b16 %v2326, %v2318
    %v2823 = vpack.c.b16 %v2327, %v2319
    %v2824 = vpack.c.b16 %v2328, %v2320
    %v2825 = vpack.c.b16 %v2329, %v2321
    %v2826 = vpack.c.b16 %v2330, %v2322
    %v2827 = vpack.c.b16 %v2331, %v2323
    %v2828 = vpack.c.b16 %v2332, %v2324
    %v2829 = vpack.c.b16 %v2341, %v2333
    %v2830 = vpack.c.b16 %v2342, %v2334
    %v2831 = vpack.c.b16 %v2343, %v2335
    %v2832 = vpack.c.b16 %v2344, %v2336
    %v2833 = vpack.c.b16 %v2345, %v2337
    %v2834 = vpack.c.b16 %v2346, %v2338
    %v2835 = vpack.c.b16 %v2347, %v2339
    %v2836 = vpack.c.b16 %v2348, %v2340
    %v2837 = vpack.c.b16 %v2357, %v2349
    %v2838 = vpack.c.b16 %v2358, %v2350
    %v2839 = vpack.c.b16 %v2359, %v2351
    %v2840 = vpack.c.b16 %v2360, %v2352
    %v2841 = vpack.c.b16 %v2361, %v2353
    %v2842 = vpack.c.b16 %v2362, %v2354
    %v2843 = vpack.c.b16 %v2363, %v2355
    %v2844 = vpack.c.b16 %v2364, %v2356
    %v2845 = vpack.c.b16 %v2373, %v2365
    %v2846 = vpack.c.b16 %v2374, %v2366
    %v2847 = vpack.c.b16 %v2375, %v2367
    %v2848 = vpack.c.b16 %v2376, %v2368
    %v2849 = vpack.c.b16 %v2377, %v2369
    %v2850 = vpack.c.b16 %v2378, %v2370
    %v2851 = vpack.c.b16 %v2379, %v2371
    %v2852 = vpack.c.b16 %v2380, %v2372
    %v2853 = vpack.c.b16 %v2389, %v2381
    %v2854 = vpack.c.b16 %v2390, %v2382
    %v2855 = vpack.c.b16 %v2391, %v2383
    %v2856 = vpack.c.b16 %v2392, %v2384
    %v2857 = vpack.c.b16 %v2393, %v2385
    %v2858 = vpack.c.b16 %v2394, %v2386
    %v2859 = vpack.c.b16 %v2395, %v2387
    %v2860 = vpack.c.b16 %v2396, %v2388
    %v2861 = vpack.c.b16 %v2405, %v2397
    %v2862 = vpack.c.b16 %v2406, %v2398
    %v2863 = vpack.c.b16 %v2407, %v2399
    %v2864 = vpack.c.b16 %v2408, %v2400
    %v2865 = vpack.c.b16 %v2409, %v2401
    %v2866 = vpack.c.b16 %v2410, %v2402
    %v2867 = vpack.c.b16 %v2411, %v2403
    %v2868 = vpack.c.b16 %v2412, %v2404
    %v2869 = vpack.c.b16 %v2421, %v2413
    %v2870 = vpack.c.b16 %v2422, %v2414
    %v2871 = vpack.c.b16 %v2423, %v2415
    %v2872 = vpack.c.b16 %v2424, %v2416
    %v2873 = vpack.c.b16 %v2425, %v2417
    %v2874 = vpack.c.b16 %v2426, %v2418
    %v2875 = vpack.c.b16 %v2427, %v2419
    %v2876 = vpack.c.b16 %v2428, %v2420
    %3325 = vmatpush.bf16.msra.mxu0 %v2485
    %3326 = vmatpush.bf16.msra.mxu0 %v2477
    %3327 = vmatpush.bf16.msra.mxu0 %v2469
    %3328 = vmatpush.bf16.msra.mxu0 %v2461
    %3329 = vmatpush.bf16.msra.mxu0 %v2453
    %3330 = vmatpush.bf16.msra.mxu0 %v2445
    %3331 = vmatpush.bf16.msra.mxu0 %v2437
    %3332 = vmatpush.bf16.msra.mxu0 %v2429
    %3333 = vmatmul.bf16.gmra.mxu0 %v489
    %v3334 = vpop.f32.mrf.mxu0
    %v3335 = vadd.f32 %v1069, %v3334
    %v3336 = vpop.f32.mrf.mxu0
    %v3337 = vadd.f32 %v1069, %v3336
    %3338 = vmatmul.bf16.gmra.mxu0 %v496
    %v3339 = vpop.f32.mrf.mxu0
    %v3340 = vadd.f32 %v1069, %v3339
    %v3341 = vpop.f32.mrf.mxu0
    %v3342 = vadd.f32 %v1069, %v3341
    %3343 = vmatmul.bf16.gmra.mxu0 %v503
    %v3344 = vpop.f32.mrf.mxu0
    %v3345 = vadd.f32 %v1069, %v3344
    %v3346 = vpop.f32.mrf.mxu0
    %v3347 = vadd.f32 %v1069, %v3346
    %3348 = vmatmul.bf16.gmra.mxu0 %v510
    %v3349 = vpop.f32.mrf.mxu0
    %v3350 = vadd.f32 %v1069, %v3349
    %v3351 = vpop.f32.mrf.mxu0
    %v3352 = vadd.f32 %v1069, %v3351
    %3353 = vmatmul.bf16.gmra.mxu0 %v517
    %v3354 = vpop.f32.mrf.mxu0
    %v3355 = vadd.f32 %v1069, %v3354
    %v3356 = vpop.f32.mrf.mxu0
    %v3357 = vadd.f32 %v1069, %v3356
    %3358 = vmatmul.bf16.gmra.mxu0 %v524
    %v3359 = vpop.f32.mrf.mxu0
    %v3360 = vadd.f32 %v1069, %v3359
    %v3361 = vpop.f32.mrf.mxu0
    %v3362 = vadd.f32 %v1069, %v3361
    %3363 = vmatmul.bf16.gmra.mxu0 %v531
    %v3364 = vpop.f32.mrf.mxu0
    %v3365 = vadd.f32 %v1069, %v3364
    %v3366 = vpop.f32.mrf.mxu0
    %v3367 = vadd.f32 %v1069, %v3366
    %3368 = vmatmul.bf16.gmra.mxu0 %v538
    %v3369 = vpop.f32.mrf.mxu0
    %v3370 = vadd.f32 %v1069, %v3369
    %v3371 = vpop.f32.mrf.mxu0
    %v3372 = vadd.f32 %v1069, %v3371
    %3373 = vdwg.mxu0
    %3374 = vmatpush.bf16.msra.mxu0 %v2549
    %3375 = vmatpush.bf16.msra.mxu0 %v2541
    %3376 = vmatpush.bf16.msra.mxu0 %v2533
    %3377 = vmatpush.bf16.msra.mxu0 %v2525
    %3378 = vmatpush.bf16.msra.mxu0 %v2517
    %3379 = vmatpush.bf16.msra.mxu0 %v2509
    %3380 = vmatpush.bf16.msra.mxu0 %v2501
    %3381 = vmatpush.bf16.msra.mxu0 %v2493
    %3382 = vmatmul.bf16.gmra.mxu0 %v490
    %v3383 = vpop.f32.mrf.mxu0
    %v3384 = vadd.f32 %v3335, %v3383
    %v3385 = vpop.f32.mrf.mxu0
    %v3386 = vadd.f32 %v3337, %v3385
    %3387 = vmatmul.bf16.gmra.mxu0 %v497
    %v3388 = vpop.f32.mrf.mxu0
    %v3389 = vadd.f32 %v3340, %v3388
    %v3390 = vpop.f32.mrf.mxu0
    %v3391 = vadd.f32 %v3342, %v3390
    %3392 = vmatmul.bf16.gmra.mxu0 %v504
    %v3393 = vpop.f32.mrf.mxu0
    %v3394 = vadd.f32 %v3345, %v3393
    %v3395 = vpop.f32.mrf.mxu0
    %v3396 = vadd.f32 %v3347, %v3395
    %3397 = vmatmul.bf16.gmra.mxu0 %v511
    %v3398 = vpop.f32.mrf.mxu0
    %v3399 = vadd.f32 %v3350, %v3398
    %v3400 = vpop.f32.mrf.mxu0
    %v3401 = vadd.f32 %v3352, %v3400
    %3402 = vmatmul.bf16.gmra.mxu0 %v518
    %v3403 = vpop.f32.mrf.mxu0
    %v3404 = vadd.f32 %v3355, %v3403
    %v3405 = vpop.f32.mrf.mxu0
    %v3406 = vadd.f32 %v3357, %v3405
    %3407 = vmatmul.bf16.gmra.mxu0 %v525
    %v3408 = vpop.f32.mrf.mxu0
    %v3409 = vadd.f32 %v3360, %v3408
    %v3410 = vpop.f32.mrf.mxu0
    %v3411 = vadd.f32 %v3362, %v3410
    %3412 = vmatmul.bf16.gmra.mxu0 %v532
    %v3413 = vpop.f32.mrf.mxu0
    %v3414 = vadd.f32 %v3365, %v3413
    %v3415 = vpop.f32.mrf.mxu0
    %v3416 = vadd.f32 %v3367, %v3415
    %3417 = vmatmul.bf16.gmra.mxu0 %v539
    %v3418 = vpop.f32.mrf.mxu0
    %v3419 = vadd.f32 %v3370, %v3418
    %v3420 = vpop.f32.mrf.mxu0
    %v3421 = vadd.f32 %v3372, %v3420
    %3422 = vdwg.mxu0
    %3423 = vmatpush.bf16.msra.mxu0 %v2613
    %3424 = vmatpush.bf16.msra.mxu0 %v2605
    %3425 = vmatpush.bf16.msra.mxu0 %v2597
    %3426 = vmatpush.bf16.msra.mxu0 %v2589
    %3427 = vmatpush.bf16.msra.mxu0 %v2581
    %3428 = vmatpush.bf16.msra.mxu0 %v2573
    %3429 = vmatpush.bf16.msra.mxu0 %v2565
    %3430 = vmatpush.bf16.msra.mxu0 %v2557
    %3431 = vmatmul.bf16.gmra.mxu0 %v491
    %v3432 = vpop.f32.mrf.mxu0
    %v3433 = vadd.f32 %v3384, %v3432
    %v3434 = vpop.f32.mrf.mxu0
    %v3435 = vadd.f32 %v3386, %v3434
    %3436 = vmatmul.bf16.gmra.mxu0 %v498
    %v3437 = vpop.f32.mrf.mxu0
    %v3438 = vadd.f32 %v3389, %v3437
    %v3439 = vpop.f32.mrf.mxu0
    %v3440 = vadd.f32 %v3391, %v3439
    %3441 = vmatmul.bf16.gmra.mxu0 %v505
    %v3442 = vpop.f32.mrf.mxu0
    %v3443 = vadd.f32 %v3394, %v3442
    %v3444 = vpop.f32.mrf.mxu0
    %v3445 = vadd.f32 %v3396, %v3444
    %3446 = vmatmul.bf16.gmra.mxu0 %v512
    %v3447 = vpop.f32.mrf.mxu0
    %v3448 = vadd.f32 %v3399, %v3447
    %v3449 = vpop.f32.mrf.mxu0
    %v3450 = vadd.f32 %v3401, %v3449
    %3451 = vmatmul.bf16.gmra.mxu0 %v519
    %v3452 = vpop.f32.mrf.mxu0
    %v3453 = vadd.f32 %v3404, %v3452
    %v3454 = vpop.f32.mrf.mxu0
    %v3455 = vadd.f32 %v3406, %v3454
    %3456 = vmatmul.bf16.gmra.mxu0 %v526
    %v3457 = vpop.f32.mrf.mxu0
    %v3458 = vadd.f32 %v3409, %v3457
    %v3459 = vpop.f32.mrf.mxu0
    %v3460 = vadd.f32 %v3411, %v3459
    %3461 = vmatmul.bf16.gmra.mxu0 %v533
    %v3462 = vpop.f32.mrf.mxu0
    %v3463 = vadd.f32 %v3414, %v3462
    %v3464 = vpop.f32.mrf.mxu0
    %v3465 = vadd.f32 %v3416, %v3464
    %3466 = vmatmul.bf16.gmra.mxu0 %v540
    %v3467 = vpop.f32.mrf.mxu0
    %v3468 = vadd.f32 %v3419, %v3467
    %v3469 = vpop.f32.mrf.mxu0
    %v3470 = vadd.f32 %v3421, %v3469
    %3471 = vdwg.mxu0
    %3472 = vmatpush.bf16.msra.mxu0 %v2677
    %3473 = vmatpush.bf16.msra.mxu0 %v2669
    %3474 = vmatpush.bf16.msra.mxu0 %v2661
    %3475 = vmatpush.bf16.msra.mxu0 %v2653
    %3476 = vmatpush.bf16.msra.mxu0 %v2645
    %3477 = vmatpush.bf16.msra.mxu0 %v2637
    %3478 = vmatpush.bf16.msra.mxu0 %v2629
    %3479 = vmatpush.bf16.msra.mxu0 %v2621
    %3480 = vmatmul.bf16.gmra.mxu0 %v492
    %v3481 = vpop.f32.mrf.mxu0
    %v3482 = vadd.f32 %v3433, %v3481
    %v3483 = vpop.f32.mrf.mxu0
    %v3484 = vadd.f32 %v3435, %v3483
    %3485 = vmatmul.bf16.gmra.mxu0 %v499
    %v3486 = vpop.f32.mrf.mxu0
    %v3487 = vadd.f32 %v3438, %v3486
    %v3488 = vpop.f32.mrf.mxu0
    %v3489 = vadd.f32 %v3440, %v3488
    %3490 = vmatmul.bf16.gmra.mxu0 %v506
    %v3491 = vpop.f32.mrf.mxu0
    %v3492 = vadd.f32 %v3443, %v3491
    %v3493 = vpop.f32.mrf.mxu0
    %v3494 = vadd.f32 %v3445, %v3493
    %3495 = vmatmul.bf16.gmra.mxu0 %v513
    %v3496 = vpop.f32.mrf.mxu0
    %v3497 = vadd.f32 %v3448, %v3496
    %v3498 = vpop.f32.mrf.mxu0
    %v3499 = vadd.f32 %v3450, %v3498
    %3500 = vmatmul.bf16.gmra.mxu0 %v520
    %v3501 = vpop.f32.mrf.mxu0
    %v3502 = vadd.f32 %v3453, %v3501
    %v3503 = vpop.f32.mrf.mxu0
    %v3504 = vadd.f32 %v3455, %v3503
    %3505 = vmatmul.bf16.gmra.mxu0 %v527
    %v3506 = vpop.f32.mrf.mxu0
    %v3507 = vadd.f32 %v3458, %v3506
    %v3508 = vpop.f32.mrf.mxu0
    %v3509 = vadd.f32 %v3460, %v3508
    %3510 = vmatmul.bf16.gmra.mxu0 %v534
    %v3511 = vpop.f32.mrf.mxu0
    %v3512 = vadd.f32 %v3463, %v3511
    %v3513 = vpop.f32.mrf.mxu0
    %v3514 = vadd.f32 %v3465, %v3513
    %3515 = vmatmul.bf16.gmra.mxu0 %v541
    %v3516 = vpop.f32.mrf.mxu0
    %v3517 = vadd.f32 %v3468, %v3516
    %v3518 = vpop.f32.mrf.mxu0
    %v3519 = vadd.f32 %v3470, %v3518
    %3520 = vdwg.mxu0
    %3521 = vmatpush.bf16.msra.mxu0 %v2741
    %3522 = vmatpush.bf16.msra.mxu0 %v2733
    %3523 = vmatpush.bf16.msra.mxu0 %v2725
    %3524 = vmatpush.bf16.msra.mxu0 %v2717
    %3525 = vmatpush.bf16.msra.mxu0 %v2709
    %3526 = vmatpush.bf16.msra.mxu0 %v2701
    %3527 = vmatpush.bf16.msra.mxu0 %v2693
    %3528 = vmatpush.bf16.msra.mxu0 %v2685
    %3529 = vmatmul.bf16.gmra.mxu0 %v493
    %v3530 = vpop.f32.mrf.mxu0
    %v3531 = vadd.f32 %v3482, %v3530
    %v3532 = vpop.f32.mrf.mxu0
    %v3533 = vadd.f32 %v3484, %v3532
    %3534 = vmatmul.bf16.gmra.mxu0 %v500
    %v3535 = vpop.f32.mrf.mxu0
    %v3536 = vadd.f32 %v3487, %v3535
    %v3537 = vpop.f32.mrf.mxu0
    %v3538 = vadd.f32 %v3489, %v3537
    %3539 = vmatmul.bf16.gmra.mxu0 %v507
    %v3540 = vpop.f32.mrf.mxu0
    %v3541 = vadd.f32 %v3492, %v3540
    %v3542 = vpop.f32.mrf.mxu0
    %v3543 = vadd.f32 %v3494, %v3542
    %3544 = vmatmul.bf16.gmra.mxu0 %v514
    %v3545 = vpop.f32.mrf.mxu0
    %v3546 = vadd.f32 %v3497, %v3545
    %v3547 = vpop.f32.mrf.mxu0
    %v3548 = vadd.f32 %v3499, %v3547
    %3549 = vmatmul.bf16.gmra.mxu0 %v521
    %v3550 = vpop.f32.mrf.mxu0
    %v3551 = vadd.f32 %v3502, %v3550
    %v3552 = vpop.f32.mrf.mxu0
    %v3553 = vadd.f32 %v3504, %v3552
    %3554 = vmatmul.bf16.gmra.mxu0 %v528
    %v3555 = vpop.f32.mrf.mxu0
    %v3556 = vadd.f32 %v3507, %v3555
    %v3557 = vpop.f32.mrf.mxu0
    %v3558 = vadd.f32 %v3509, %v3557
    %3559 = vmatmul.bf16.gmra.mxu0 %v535
    %v3560 = vpop.f32.mrf.mxu0
    %v3561 = vadd.f32 %v3512, %v3560
    %v3562 = vpop.f32.mrf.mxu0
    %v3563 = vadd.f32 %v3514, %v3562
    %3564 = vmatmul.bf16.gmra.mxu0 %v542
    %v3565 = vpop.f32.mrf.mxu0
    %v3566 = vadd.f32 %v3517, %v3565
    %v3567 = vpop.f32.mrf.mxu0
    %v3568 = vadd.f32 %v3519, %v3567
    %3569 = vdwg.mxu0
    %3570 = vmatpush.bf16.msra.mxu0 %v2805
    %3571 = vmatpush.bf16.msra.mxu0 %v2797
    %3572 = vmatpush.bf16.msra.mxu0 %v2789
    %3573 = vmatpush.bf16.msra.mxu0 %v2781
    %3574 = vmatpush.bf16.msra.mxu0 %v2773
    %3575 = vmatpush.bf16.msra.mxu0 %v2765
    %3576 = vmatpush.bf16.msra.mxu0 %v2757
    %3577 = vmatpush.bf16.msra.mxu0 %v2749
    %3578 = vmatmul.bf16.gmra.mxu0 %v494
    %v3579 = vpop.f32.mrf.mxu0
    %v3580 = vadd.f32 %v3531, %v3579
    %v3581 = vpop.f32.mrf.mxu0
    %v3582 = vadd.f32 %v3533, %v3581
    %3583 = vmatmul.bf16.gmra.mxu0 %v501
    %v3584 = vpop.f32.mrf.mxu0
    %v3585 = vadd.f32 %v3536, %v3584
    %v3586 = vpop.f32.mrf.mxu0
    %v3587 = vadd.f32 %v3538, %v3586
    %3588 = vmatmul.bf16.gmra.mxu0 %v508
    %v3589 = vpop.f32.mrf.mxu0
    %v3590 = vadd.f32 %v3541, %v3589
    %v3591 = vpop.f32.mrf.mxu0
    %v3592 = vadd.f32 %v3543, %v3591
    %3593 = vmatmul.bf16.gmra.mxu0 %v515
    %v3594 = vpop.f32.mrf.mxu0
    %v3595 = vadd.f32 %v3546, %v3594
    %v3596 = vpop.f32.mrf.mxu0
    %v3597 = vadd.f32 %v3548, %v3596
    %3598 = vmatmul.bf16.gmra.mxu0 %v522
    %v3599 = vpop.f32.mrf.mxu0
    %v3600 = vadd.f32 %v3551, %v3599
    %v3601 = vpop.f32.mrf.mxu0
    %v3602 = vadd.f32 %v3553, %v3601
    %3603 = vmatmul.bf16.gmra.mxu0 %v529
    %v3604 = vpop.f32.mrf.mxu0
    %v3605 = vadd.f32 %v3556, %v3604
    %v3606 = vpop.f32.mrf.mxu0
    %v3607 = vadd.f32 %v3558, %v3606
    %3608 = vmatmul.bf16.gmra.mxu0 %v536
    %v3609 = vpop.f32.mrf.mxu0
    %v3610 = vadd.f32 %v3561, %v3609
    %v3611 = vpop.f32.mrf.mxu0
    %v3612 = vadd.f32 %v3563, %v3611
    %3613 = vmatmul.bf16.gmra.mxu0 %v543
    %v3614 = vpop.f32.mrf.mxu0
    %v3615 = vadd.f32 %v3566, %v3614
    %v3616 = vpop.f32.mrf.mxu0
    %v3617 = vadd.f32 %v3568, %v3616
    %3618 = vdwg.mxu0
    %3619 = vmatpush.bf16.msra.mxu0 %v2869
    %3620 = vmatpush.bf16.msra.mxu0 %v2861
    %3621 = vmatpush.bf16.msra.mxu0 %v2853
    %3622 = vmatpush.bf16.msra.mxu0 %v2845
    %3623 = vmatpush.bf16.msra.mxu0 %v2837
    %3624 = vmatpush.bf16.msra.mxu0 %v2829
    %3625 = vmatpush.bf16.msra.mxu0 %v2821
    %3626 = vmatpush.bf16.msra.mxu0 %v2813
    %3627 = vmatmul.bf16.gmra.mxu0 %v596
    %v3628 = vpop.f32.mrf.mxu0
    %v3629 = vadd.f32 %v3580, %v3628
    %v3630 = vpop.f32.mrf.mxu0
    %v3631 = vadd.f32 %v3582, %v3630
    %3632 = vmatmul.bf16.gmra.mxu0 %v599
    %v3633 = vpop.f32.mrf.mxu0
    %v3634 = vadd.f32 %v3585, %v3633
    %v3635 = vpop.f32.mrf.mxu0
    %v3636 = vadd.f32 %v3587, %v3635
    %3637 = vmatmul.bf16.gmra.mxu0 %v602
    %v3638 = vpop.f32.mrf.mxu0
    %v3639 = vadd.f32 %v3590, %v3638
    %v3640 = vpop.f32.mrf.mxu0
    %v3641 = vadd.f32 %v3592, %v3640
    %3642 = vmatmul.bf16.gmra.mxu0 %v605
    %v3643 = vpop.f32.mrf.mxu0
    %v3644 = vadd.f32 %v3595, %v3643
    %v3645 = vpop.f32.mrf.mxu0
    %v3646 = vadd.f32 %v3597, %v3645
    %3647 = vmatmul.bf16.gmra.mxu0 %v608
    %v3648 = vpop.f32.mrf.mxu0
    %v3649 = vadd.f32 %v3600, %v3648
    %v3650 = vpop.f32.mrf.mxu0
    %v3651 = vadd.f32 %v3602, %v3650
    %3652 = vmatmul.bf16.gmra.mxu0 %v611
    %v3653 = vpop.f32.mrf.mxu0
    %v3654 = vadd.f32 %v3605, %v3653
    %v3655 = vpop.f32.mrf.mxu0
    %v3656 = vadd.f32 %v3607, %v3655
    %3657 = vmatmul.bf16.gmra.mxu0 %v614
    %v3658 = vpop.f32.mrf.mxu0
    %v3659 = vadd.f32 %v3610, %v3658
    %v3660 = vpop.f32.mrf.mxu0
    %v3661 = vadd.f32 %v3612, %v3660
    %3662 = vmatmul.bf16.gmra.mxu0 %v617
    %v3663 = vpop.f32.mrf.mxu0
    %v3664 = vadd.f32 %v3615, %v3663
    %v3665 = vpop.f32.mrf.mxu0
    %v3666 = vadd.f32 %v3617, %v3665
    %3667 = vdwg.mxu0
    %3668 = vmatpush.bf16.msra.mxu0 %v2486
    %3669 = vmatpush.bf16.msra.mxu0 %v2478
    %3670 = vmatpush.bf16.msra.mxu0 %v2470
    %3671 = vmatpush.bf16.msra.mxu0 %v2462
    %3672 = vmatpush.bf16.msra.mxu0 %v2454
    %3673 = vmatpush.bf16.msra.mxu0 %v2446
    %3674 = vmatpush.bf16.msra.mxu0 %v2438
    %3675 = vmatpush.bf16.msra.mxu0 %v2430
    %3676 = vmatmul.bf16.gmra.mxu0 %v489
    %v3677 = vpop.f32.mrf.mxu0
    %v3678 = vadd.f32 %v1070, %v3677
    %v3679 = vpop.f32.mrf.mxu0
    %v3680 = vadd.f32 %v1070, %v3679
    %3681 = vmatmul.bf16.gmra.mxu0 %v496
    %v3682 = vpop.f32.mrf.mxu0
    %v3683 = vadd.f32 %v1070, %v3682
    %v3684 = vpop.f32.mrf.mxu0
    %v3685 = vadd.f32 %v1070, %v3684
    %3686 = vmatmul.bf16.gmra.mxu0 %v503
    %v3687 = vpop.f32.mrf.mxu0
    %v3688 = vadd.f32 %v1070, %v3687
    %v3689 = vpop.f32.mrf.mxu0
    %v3690 = vadd.f32 %v1070, %v3689
    %3691 = vmatmul.bf16.gmra.mxu0 %v510
    %v3692 = vpop.f32.mrf.mxu0
    %v3693 = vadd.f32 %v1070, %v3692
    %v3694 = vpop.f32.mrf.mxu0
    %v3695 = vadd.f32 %v1070, %v3694
    %3696 = vmatmul.bf16.gmra.mxu0 %v517
    %v3697 = vpop.f32.mrf.mxu0
    %v3698 = vadd.f32 %v1070, %v3697
    %v3699 = vpop.f32.mrf.mxu0
    %v3700 = vadd.f32 %v1070, %v3699
    %3701 = vmatmul.bf16.gmra.mxu0 %v524
    %v3702 = vpop.f32.mrf.mxu0
    %v3703 = vadd.f32 %v1070, %v3702
    %v3704 = vpop.f32.mrf.mxu0
    %v3705 = vadd.f32 %v1070, %v3704
    %3706 = vmatmul.bf16.gmra.mxu0 %v531
    %v3707 = vpop.f32.mrf.mxu0
    %v3708 = vadd.f32 %v1070, %v3707
    %v3709 = vpop.f32.mrf.mxu0
    %v3710 = vadd.f32 %v1070, %v3709
    %3711 = vmatmul.bf16.gmra.mxu0 %v538
    %v3712 = vpop.f32.mrf.mxu0
    %v3713 = vadd.f32 %v1070, %v3712
    %v3714 = vpop.f32.mrf.mxu0
    %v3715 = vadd.f32 %v1070, %v3714
    %3716 = vdwg.mxu0
    %3717 = vmatpush.bf16.msra.mxu0 %v2550
    %3718 = vmatpush.bf16.msra.mxu0 %v2542
    %3719 = vmatpush.bf16.msra.mxu0 %v2534
    %3720 = vmatpush.bf16.msra.mxu0 %v2526
    %3721 = vmatpush.bf16.msra.mxu0 %v2518
    %3722 = vmatpush.bf16.msra.mxu0 %v2510
    %3723 = vmatpush.bf16.msra.mxu0 %v2502
    %3724 = vmatpush.bf16.msra.mxu0 %v2494
    %3725 = vmatmul.bf16.gmra.mxu0 %v490
    %v3726 = vpop.f32.mrf.mxu0
    %v3727 = vadd.f32 %v3678, %v3726
    %v3728 = vpop.f32.mrf.mxu0
    %v3729 = vadd.f32 %v3680, %v3728
    %3730 = vmatmul.bf16.gmra.mxu0 %v497
    %v3731 = vpop.f32.mrf.mxu0
    %v3732 = vadd.f32 %v3683, %v3731
    %v3733 = vpop.f32.mrf.mxu0
    %v3734 = vadd.f32 %v3685, %v3733
    %3735 = vmatmul.bf16.gmra.mxu0 %v504
    %v3736 = vpop.f32.mrf.mxu0
    %v3737 = vadd.f32 %v3688, %v3736
    %v3738 = vpop.f32.mrf.mxu0
    %v3739 = vadd.f32 %v3690, %v3738
    %3740 = vmatmul.bf16.gmra.mxu0 %v511
    %v3741 = vpop.f32.mrf.mxu0
    %v3742 = vadd.f32 %v3693, %v3741
    %v3743 = vpop.f32.mrf.mxu0
    %v3744 = vadd.f32 %v3695, %v3743
    %3745 = vmatmul.bf16.gmra.mxu0 %v518
    %v3746 = vpop.f32.mrf.mxu0
    %v3747 = vadd.f32 %v3698, %v3746
    %v3748 = vpop.f32.mrf.mxu0
    %v3749 = vadd.f32 %v3700, %v3748
    %3750 = vmatmul.bf16.gmra.mxu0 %v525
    %v3751 = vpop.f32.mrf.mxu0
    %v3752 = vadd.f32 %v3703, %v3751
    %v3753 = vpop.f32.mrf.mxu0
    %v3754 = vadd.f32 %v3705, %v3753
    %3755 = vmatmul.bf16.gmra.mxu0 %v532
    %v3756 = vpop.f32.mrf.mxu0
    %v3757 = vadd.f32 %v3708, %v3756
    %v3758 = vpop.f32.mrf.mxu0
    %v3759 = vadd.f32 %v3710, %v3758
    %3760 = vmatmul.bf16.gmra.mxu0 %v539
    %v3761 = vpop.f32.mrf.mxu0
    %v3762 = vadd.f32 %v3713, %v3761
    %v3763 = vpop.f32.mrf.mxu0
    %v3764 = vadd.f32 %v3715, %v3763
    %3765 = vdwg.mxu0
    %3766 = vmatpush.bf16.msra.mxu0 %v2614
    %3767 = vmatpush.bf16.msra.mxu0 %v2606
    %3768 = vmatpush.bf16.msra.mxu0 %v2598
    %3769 = vmatpush.bf16.msra.mxu0 %v2590
    %3770 = vmatpush.bf16.msra.mxu0 %v2582
    %3771 = vmatpush.bf16.msra.mxu0 %v2574
    %3772 = vmatpush.bf16.msra.mxu0 %v2566
    %3773 = vmatpush.bf16.msra.mxu0 %v2558
    %3774 = vmatmul.bf16.gmra.mxu0 %v491
    %v3775 = vpop.f32.mrf.mxu0
    %v3776 = vadd.f32 %v3727, %v3775
    %v3777 = vpop.f32.mrf.mxu0
    %v3778 = vadd.f32 %v3729, %v3777
    %3779 = vmatmul.bf16.gmra.mxu0 %v498
    %v3780 = vpop.f32.mrf.mxu0
    %v3781 = vadd.f32 %v3732, %v3780
    %v3782 = vpop.f32.mrf.mxu0
    %v3783 = vadd.f32 %v3734, %v3782
    %3784 = vmatmul.bf16.gmra.mxu0 %v505
    %v3785 = vpop.f32.mrf.mxu0
    %v3786 = vadd.f32 %v3737, %v3785
    %v3787 = vpop.f32.mrf.mxu0
    %v3788 = vadd.f32 %v3739, %v3787
    %3789 = vmatmul.bf16.gmra.mxu0 %v512
    %v3790 = vpop.f32.mrf.mxu0
    %v3791 = vadd.f32 %v3742, %v3790
    %v3792 = vpop.f32.mrf.mxu0
    %v3793 = vadd.f32 %v3744, %v3792
    %3794 = vmatmul.bf16.gmra.mxu0 %v519
    %v3795 = vpop.f32.mrf.mxu0
    %v3796 = vadd.f32 %v3747, %v3795
    %v3797 = vpop.f32.mrf.mxu0
    %v3798 = vadd.f32 %v3749, %v3797
    %3799 = vmatmul.bf16.gmra.mxu0 %v526
    %v3800 = vpop.f32.mrf.mxu0
    %v3801 = vadd.f32 %v3752, %v3800
    %v3802 = vpop.f32.mrf.mxu0
    %v3803 = vadd.f32 %v3754, %v3802
    %3804 = vmatmul.bf16.gmra.mxu0 %v533
    %v3805 = vpop.f32.mrf.mxu0
    %v3806 = vadd.f32 %v3757, %v3805
    %v3807 = vpop.f32.mrf.mxu0
    %v3808 = vadd.f32 %v3759, %v3807
    %3809 = vmatmul.bf16.gmra.mxu0 %v540
    %v3810 = vpop.f32.mrf.mxu0
    %v3811 = vadd.f32 %v3762, %v3810
    %v3812 = vpop.f32.mrf.mxu0
    %v3813 = vadd.f32 %v3764, %v3812
    %3814 = vdwg.mxu0
    %3815 = vmatpush.bf16.msra.mxu0 %v2678
    %3816 = vmatpush.bf16.msra.mxu0 %v2670
    %3817 = vmatpush.bf16.msra.mxu0 %v2662
    %3818 = vmatpush.bf16.msra.mxu0 %v2654
    %3819 = vmatpush.bf16.msra.mxu0 %v2646
    %3820 = vmatpush.bf16.msra.mxu0 %v2638
    %3821 = vmatpush.bf16.msra.mxu0 %v2630
    %3822 = vmatpush.bf16.msra.mxu0 %v2622
    %3823 = vmatmul.bf16.gmra.mxu0 %v492
    %v3824 = vpop.f32.mrf.mxu0
    %v3825 = vadd.f32 %v3776, %v3824
    %v3826 = vpop.f32.mrf.mxu0
    %v3827 = vadd.f32 %v3778, %v3826
    %3828 = vmatmul.bf16.gmra.mxu0 %v499
    %v3829 = vpop.f32.mrf.mxu0
    %v3830 = vadd.f32 %v3781, %v3829
    %v3831 = vpop.f32.mrf.mxu0
    %v3832 = vadd.f32 %v3783, %v3831
    %3833 = vmatmul.bf16.gmra.mxu0 %v506
    %v3834 = vpop.f32.mrf.mxu0
    %v3835 = vadd.f32 %v3786, %v3834
    %v3836 = vpop.f32.mrf.mxu0
    %v3837 = vadd.f32 %v3788, %v3836
    %3838 = vmatmul.bf16.gmra.mxu0 %v513
    %v3839 = vpop.f32.mrf.mxu0
    %v3840 = vadd.f32 %v3791, %v3839
    %v3841 = vpop.f32.mrf.mxu0
    %v3842 = vadd.f32 %v3793, %v3841
    %3843 = vmatmul.bf16.gmra.mxu0 %v520
    %v3844 = vpop.f32.mrf.mxu0
    %v3845 = vadd.f32 %v3796, %v3844
    %v3846 = vpop.f32.mrf.mxu0
    %v3847 = vadd.f32 %v3798, %v3846
    %3848 = vmatmul.bf16.gmra.mxu0 %v527
    %v3849 = vpop.f32.mrf.mxu0
    %v3850 = vadd.f32 %v3801, %v3849
    %v3851 = vpop.f32.mrf.mxu0
    %v3852 = vadd.f32 %v3803, %v3851
    %3853 = vmatmul.bf16.gmra.mxu0 %v534
    %v3854 = vpop.f32.mrf.mxu0
    %v3855 = vadd.f32 %v3806, %v3854
    %v3856 = vpop.f32.mrf.mxu0
    %v3857 = vadd.f32 %v3808, %v3856
    %3858 = vmatmul.bf16.gmra.mxu0 %v541
    %v3859 = vpop.f32.mrf.mxu0
    %v3860 = vadd.f32 %v3811, %v3859
    %v3861 = vpop.f32.mrf.mxu0
    %v3862 = vadd.f32 %v3813, %v3861
    %3863 = vdwg.mxu0
    %3864 = vmatpush.bf16.msra.mxu0 %v2742
    %3865 = vmatpush.bf16.msra.mxu0 %v2734
    %3866 = vmatpush.bf16.msra.mxu0 %v2726
    %3867 = vmatpush.bf16.msra.mxu0 %v2718
    %3868 = vmatpush.bf16.msra.mxu0 %v2710
    %3869 = vmatpush.bf16.msra.mxu0 %v2702
    %3870 = vmatpush.bf16.msra.mxu0 %v2694
    %3871 = vmatpush.bf16.msra.mxu0 %v2686
    %3872 = vmatmul.bf16.gmra.mxu0 %v493
    %v3873 = vpop.f32.mrf.mxu0
    %v3874 = vadd.f32 %v3825, %v3873
    %v3875 = vpop.f32.mrf.mxu0
    %v3876 = vadd.f32 %v3827, %v3875
    %3877 = vmatmul.bf16.gmra.mxu0 %v500
    %v3878 = vpop.f32.mrf.mxu0
    %v3879 = vadd.f32 %v3830, %v3878
    %v3880 = vpop.f32.mrf.mxu0
    %v3881 = vadd.f32 %v3832, %v3880
    %3882 = vmatmul.bf16.gmra.mxu0 %v507
    %v3883 = vpop.f32.mrf.mxu0
    %v3884 = vadd.f32 %v3835, %v3883
    %v3885 = vpop.f32.mrf.mxu0
    %v3886 = vadd.f32 %v3837, %v3885
    %3887 = vmatmul.bf16.gmra.mxu0 %v514
    %v3888 = vpop.f32.mrf.mxu0
    %v3889 = vadd.f32 %v3840, %v3888
    %v3890 = vpop.f32.mrf.mxu0
    %v3891 = vadd.f32 %v3842, %v3890
    %3892 = vmatmul.bf16.gmra.mxu0 %v521
    %v3893 = vpop.f32.mrf.mxu0
    %v3894 = vadd.f32 %v3845, %v3893
    %v3895 = vpop.f32.mrf.mxu0
    %v3896 = vadd.f32 %v3847, %v3895
    %3897 = vmatmul.bf16.gmra.mxu0 %v528
    %v3898 = vpop.f32.mrf.mxu0
    %v3899 = vadd.f32 %v3850, %v3898
    %v3900 = vpop.f32.mrf.mxu0
    %v3901 = vadd.f32 %v3852, %v3900
    %3902 = vmatmul.bf16.gmra.mxu0 %v535
    %v3903 = vpop.f32.mrf.mxu0
    %v3904 = vadd.f32 %v3855, %v3903
    %v3905 = vpop.f32.mrf.mxu0
    %v3906 = vadd.f32 %v3857, %v3905
    %3907 = vmatmul.bf16.gmra.mxu0 %v542
    %v3908 = vpop.f32.mrf.mxu0
    %v3909 = vadd.f32 %v3860, %v3908
    %v3910 = vpop.f32.mrf.mxu0
    %v3911 = vadd.f32 %v3862, %v3910
    %3912 = vdwg.mxu0
    %3913 = vmatpush.bf16.msra.mxu0 %v2806
    %3914 = vmatpush.bf16.msra.mxu0 %v2798
    %3915 = vmatpush.bf16.msra.mxu0 %v2790
    %3916 = vmatpush.bf16.msra.mxu0 %v2782
    %3917 = vmatpush.bf16.msra.mxu0 %v2774
    %3918 = vmatpush.bf16.msra.mxu0 %v2766
    %3919 = vmatpush.bf16.msra.mxu0 %v2758
    %3920 = vmatpush.bf16.msra.mxu0 %v2750
    %3921 = vmatmul.bf16.gmra.mxu0 %v494
    %v3922 = vpop.f32.mrf.mxu0
    %v3923 = vadd.f32 %v3874, %v3922
    %v3924 = vpop.f32.mrf.mxu0
    %v3925 = vadd.f32 %v3876, %v3924
    %3926 = vmatmul.bf16.gmra.mxu0 %v501
    %v3927 = vpop.f32.mrf.mxu0
    %v3928 = vadd.f32 %v3879, %v3927
    %v3929 = vpop.f32.mrf.mxu0
    %v3930 = vadd.f32 %v3881, %v3929
    %3931 = vmatmul.bf16.gmra.mxu0 %v508
    %v3932 = vpop.f32.mrf.mxu0
    %v3933 = vadd.f32 %v3884, %v3932
    %v3934 = vpop.f32.mrf.mxu0
    %v3935 = vadd.f32 %v3886, %v3934
    %3936 = vmatmul.bf16.gmra.mxu0 %v515
    %v3937 = vpop.f32.mrf.mxu0
    %v3938 = vadd.f32 %v3889, %v3937
    %v3939 = vpop.f32.mrf.mxu0
    %v3940 = vadd.f32 %v3891, %v3939
    %3941 = vmatmul.bf16.gmra.mxu0 %v522
    %v3942 = vpop.f32.mrf.mxu0
    %v3943 = vadd.f32 %v3894, %v3942
    %v3944 = vpop.f32.mrf.mxu0
    %v3945 = vadd.f32 %v3896, %v3944
    %3946 = vmatmul.bf16.gmra.mxu0 %v529
    %v3947 = vpop.f32.mrf.mxu0
    %v3948 = vadd.f32 %v3899, %v3947
    %v3949 = vpop.f32.mrf.mxu0
    %v3950 = vadd.f32 %v3901, %v3949
    %3951 = vmatmul.bf16.gmra.mxu0 %v536
    %v3952 = vpop.f32.mrf.mxu0
    %v3953 = vadd.f32 %v3904, %v3952
    %v3954 = vpop.f32.mrf.mxu0
    %v3955 = vadd.f32 %v3906, %v3954
    %3956 = vmatmul.bf16.gmra.mxu0 %v543
    %v3957 = vpop.f32.mrf.mxu0
    %v3958 = vadd.f32 %v3909, %v3957
    %v3959 = vpop.f32.mrf.mxu0
    %v3960 = vadd.f32 %v3911, %v3959
    %3961 = vdwg.mxu0
    %3962 = vmatpush.bf16.msra.mxu0 %v2870
    %3963 = vmatpush.bf16.msra.mxu0 %v2862
    %3964 = vmatpush.bf16.msra.mxu0 %v2854
    %3965 = vmatpush.bf16.msra.mxu0 %v2846
    %3966 = vmatpush.bf16.msra.mxu0 %v2838
    %3967 = vmatpush.bf16.msra.mxu0 %v2830
    %3968 = vmatpush.bf16.msra.mxu0 %v2822
    %3969 = vmatpush.bf16.msra.mxu0 %v2814
    %3970 = vmatmul.bf16.gmra.mxu0 %v596
    %v3971 = vpop.f32.mrf.mxu0
    %v3972 = vadd.f32 %v3923, %v3971
    %v3973 = vpop.f32.mrf.mxu0
    %v3974 = vadd.f32 %v3925, %v3973
    %3975 = vmatmul.bf16.gmra.mxu0 %v599
    %v3976 = vpop.f32.mrf.mxu0
    %v3977 = vadd.f32 %v3928, %v3976
    %v3978 = vpop.f32.mrf.mxu0
    %v3979 = vadd.f32 %v3930, %v3978
    %3980 = vmatmul.bf16.gmra.mxu0 %v602
    %v3981 = vpop.f32.mrf.mxu0
    %v3982 = vadd.f32 %v3933, %v3981
    %v3983 = vpop.f32.mrf.mxu0
    %v3984 = vadd.f32 %v3935, %v3983
    %3985 = vmatmul.bf16.gmra.mxu0 %v605
    %v3986 = vpop.f32.mrf.mxu0
    %v3987 = vadd.f32 %v3938, %v3986
    %v3988 = vpop.f32.mrf.mxu0
    %v3989 = vadd.f32 %v3940, %v3988
    %3990 = vmatmul.bf16.gmra.mxu0 %v608
    %v3991 = vpop.f32.mrf.mxu0
    %v3992 = vadd.f32 %v3943, %v3991
    %v3993 = vpop.f32.mrf.mxu0
    %v3994 = vadd.f32 %v3945, %v3993
    %3995 = vmatmul.bf16.gmra.mxu0 %v611
    %v3996 = vpop.f32.mrf.mxu0
    %v3997 = vadd.f32 %v3948, %v3996
    %v3998 = vpop.f32.mrf.mxu0
    %v3999 = vadd.f32 %v3950, %v3998
    %4000 = vmatmul.bf16.gmra.mxu0 %v614
    %v4001 = vpop.f32.mrf.mxu0
    %v4002 = vadd.f32 %v3953, %v4001
    %v4003 = vpop.f32.mrf.mxu0
    %v4004 = vadd.f32 %v3955, %v4003
    %4005 = vmatmul.bf16.gmra.mxu0 %v617
    %v4006 = vpop.f32.mrf.mxu0
    %v4007 = vadd.f32 %v3958, %v4006
    %v4008 = vpop.f32.mrf.mxu0
    %v4009 = vadd.f32 %v3960, %v4008
    %4010 = vdwg.mxu0
    %4011 = vmatpush.bf16.msra.mxu0 %v2487
    %4012 = vmatpush.bf16.msra.mxu0 %v2479
    %4013 = vmatpush.bf16.msra.mxu0 %v2471
    %4014 = vmatpush.bf16.msra.mxu0 %v2463
    %4015 = vmatpush.bf16.msra.mxu0 %v2455
    %4016 = vmatpush.bf16.msra.mxu0 %v2447
    %4017 = vmatpush.bf16.msra.mxu0 %v2439
    %4018 = vmatpush.bf16.msra.mxu0 %v2431
    %4019 = vmatmul.bf16.gmra.mxu0 %v489
    %v4020 = vpop.f32.mrf.mxu0
    %v4021 = vadd.f32 %v1071, %v4020
    %v4022 = vpop.f32.mrf.mxu0
    %v4023 = vadd.f32 %v1071, %v4022
    %4024 = vmatmul.bf16.gmra.mxu0 %v496
    %v4025 = vpop.f32.mrf.mxu0
    %v4026 = vadd.f32 %v1071, %v4025
    %v4027 = vpop.f32.mrf.mxu0
    %v4028 = vadd.f32 %v1071, %v4027
    %4029 = vmatmul.bf16.gmra.mxu0 %v503
    %v4030 = vpop.f32.mrf.mxu0
    %v4031 = vadd.f32 %v1071, %v4030
    %v4032 = vpop.f32.mrf.mxu0
    %v4033 = vadd.f32 %v1071, %v4032
    %4034 = vmatmul.bf16.gmra.mxu0 %v510
    %v4035 = vpop.f32.mrf.mxu0
    %v4036 = vadd.f32 %v1071, %v4035
    %v4037 = vpop.f32.mrf.mxu0
    %v4038 = vadd.f32 %v1071, %v4037
    %4039 = vmatmul.bf16.gmra.mxu0 %v517
    %v4040 = vpop.f32.mrf.mxu0
    %v4041 = vadd.f32 %v1071, %v4040
    %v4042 = vpop.f32.mrf.mxu0
    %v4043 = vadd.f32 %v1071, %v4042
    %4044 = vmatmul.bf16.gmra.mxu0 %v524
    %v4045 = vpop.f32.mrf.mxu0
    %v4046 = vadd.f32 %v1071, %v4045
    %v4047 = vpop.f32.mrf.mxu0
    %v4048 = vadd.f32 %v1071, %v4047
    %4049 = vmatmul.bf16.gmra.mxu0 %v531
    %v4050 = vpop.f32.mrf.mxu0
    %v4051 = vadd.f32 %v1071, %v4050
    %v4052 = vpop.f32.mrf.mxu0
    %v4053 = vadd.f32 %v1071, %v4052
    %4054 = vmatmul.bf16.gmra.mxu0 %v538
    %v4055 = vpop.f32.mrf.mxu0
    %v4056 = vadd.f32 %v1071, %v4055
    %v4057 = vpop.f32.mrf.mxu0
    %v4058 = vadd.f32 %v1071, %v4057
    %4059 = vdwg.mxu0
    %4060 = vmatpush.bf16.msra.mxu0 %v2551
    %4061 = vmatpush.bf16.msra.mxu0 %v2543
    %4062 = vmatpush.bf16.msra.mxu0 %v2535
    %4063 = vmatpush.bf16.msra.mxu0 %v2527
    %4064 = vmatpush.bf16.msra.mxu0 %v2519
    %4065 = vmatpush.bf16.msra.mxu0 %v2511
    %4066 = vmatpush.bf16.msra.mxu0 %v2503
    %4067 = vmatpush.bf16.msra.mxu0 %v2495
    %4068 = vmatmul.bf16.gmra.mxu0 %v490
    %v4069 = vpop.f32.mrf.mxu0
    %v4070 = vadd.f32 %v4021, %v4069
    %v4071 = vpop.f32.mrf.mxu0
    %v4072 = vadd.f32 %v4023, %v4071
    %4073 = vmatmul.bf16.gmra.mxu0 %v497
    %v4074 = vpop.f32.mrf.mxu0
    %v4075 = vadd.f32 %v4026, %v4074
    %v4076 = vpop.f32.mrf.mxu0
    %v4077 = vadd.f32 %v4028, %v4076
    %4078 = vmatmul.bf16.gmra.mxu0 %v504
    %v4079 = vpop.f32.mrf.mxu0
    %v4080 = vadd.f32 %v4031, %v4079
    %v4081 = vpop.f32.mrf.mxu0
    %v4082 = vadd.f32 %v4033, %v4081
    %4083 = vmatmul.bf16.gmra.mxu0 %v511
    %v4084 = vpop.f32.mrf.mxu0
    %v4085 = vadd.f32 %v4036, %v4084
    %v4086 = vpop.f32.mrf.mxu0
    %v4087 = vadd.f32 %v4038, %v4086
    %4088 = vmatmul.bf16.gmra.mxu0 %v518
    %v4089 = vpop.f32.mrf.mxu0
    %v4090 = vadd.f32 %v4041, %v4089
    %v4091 = vpop.f32.mrf.mxu0
    %v4092 = vadd.f32 %v4043, %v4091
    %4093 = vmatmul.bf16.gmra.mxu0 %v525
    %v4094 = vpop.f32.mrf.mxu0
    %v4095 = vadd.f32 %v4046, %v4094
    %v4096 = vpop.f32.mrf.mxu0
    %v4097 = vadd.f32 %v4048, %v4096
    %4098 = vmatmul.bf16.gmra.mxu0 %v532
    %v4099 = vpop.f32.mrf.mxu0
    %v4100 = vadd.f32 %v4051, %v4099
    %v4101 = vpop.f32.mrf.mxu0
    %v4102 = vadd.f32 %v4053, %v4101
    %4103 = vmatmul.bf16.gmra.mxu0 %v539
    %v4104 = vpop.f32.mrf.mxu0
    %v4105 = vadd.f32 %v4056, %v4104
    %v4106 = vpop.f32.mrf.mxu0
    %v4107 = vadd.f32 %v4058, %v4106
    %4108 = vdwg.mxu0
    %4109 = vmatpush.bf16.msra.mxu0 %v2615
    %4110 = vmatpush.bf16.msra.mxu0 %v2607
    %4111 = vmatpush.bf16.msra.mxu0 %v2599
    %4112 = vmatpush.bf16.msra.mxu0 %v2591
    %4113 = vmatpush.bf16.msra.mxu0 %v2583
    %4114 = vmatpush.bf16.msra.mxu0 %v2575
    %4115 = vmatpush.bf16.msra.mxu0 %v2567
    %4116 = vmatpush.bf16.msra.mxu0 %v2559
    %4117 = vmatmul.bf16.gmra.mxu0 %v491
    %v4118 = vpop.f32.mrf.mxu0
    %v4119 = vadd.f32 %v4070, %v4118
    %v4120 = vpop.f32.mrf.mxu0
    %v4121 = vadd.f32 %v4072, %v4120
    %4122 = vmatmul.bf16.gmra.mxu0 %v498
    %v4123 = vpop.f32.mrf.mxu0
    %v4124 = vadd.f32 %v4075, %v4123
    %v4125 = vpop.f32.mrf.mxu0
    %v4126 = vadd.f32 %v4077, %v4125
    %4127 = vmatmul.bf16.gmra.mxu0 %v505
    %v4128 = vpop.f32.mrf.mxu0
    %v4129 = vadd.f32 %v4080, %v4128
    %v4130 = vpop.f32.mrf.mxu0
    %v4131 = vadd.f32 %v4082, %v4130
    %4132 = vmatmul.bf16.gmra.mxu0 %v512
    %v4133 = vpop.f32.mrf.mxu0
    %v4134 = vadd.f32 %v4085, %v4133
    %v4135 = vpop.f32.mrf.mxu0
    %v4136 = vadd.f32 %v4087, %v4135
    %4137 = vmatmul.bf16.gmra.mxu0 %v519
    %v4138 = vpop.f32.mrf.mxu0
    %v4139 = vadd.f32 %v4090, %v4138
    %v4140 = vpop.f32.mrf.mxu0
    %v4141 = vadd.f32 %v4092, %v4140
    %4142 = vmatmul.bf16.gmra.mxu0 %v526
    %v4143 = vpop.f32.mrf.mxu0
    %v4144 = vadd.f32 %v4095, %v4143
    %v4145 = vpop.f32.mrf.mxu0
    %v4146 = vadd.f32 %v4097, %v4145
    %4147 = vmatmul.bf16.gmra.mxu0 %v533
    %v4148 = vpop.f32.mrf.mxu0
    %v4149 = vadd.f32 %v4100, %v4148
    %v4150 = vpop.f32.mrf.mxu0
    %v4151 = vadd.f32 %v4102, %v4150
    %4152 = vmatmul.bf16.gmra.mxu0 %v540
    %v4153 = vpop.f32.mrf.mxu0
    %v4154 = vadd.f32 %v4105, %v4153
    %v4155 = vpop.f32.mrf.mxu0
    %v4156 = vadd.f32 %v4107, %v4155
    %4157 = vdwg.mxu0
    %4158 = vmatpush.bf16.msra.mxu0 %v2679
    %4159 = vmatpush.bf16.msra.mxu0 %v2671
    %4160 = vmatpush.bf16.msra.mxu0 %v2663
    %4161 = vmatpush.bf16.msra.mxu0 %v2655
    %4162 = vmatpush.bf16.msra.mxu0 %v2647
    %4163 = vmatpush.bf16.msra.mxu0 %v2639
    %4164 = vmatpush.bf16.msra.mxu0 %v2631
    %4165 = vmatpush.bf16.msra.mxu0 %v2623
    %4166 = vmatmul.bf16.gmra.mxu0 %v492
    %v4167 = vpop.f32.mrf.mxu0
    %v4168 = vadd.f32 %v4119, %v4167
    %v4169 = vpop.f32.mrf.mxu0
    %v4170 = vadd.f32 %v4121, %v4169
    %4171 = vmatmul.bf16.gmra.mxu0 %v499
    %v4172 = vpop.f32.mrf.mxu0
    %v4173 = vadd.f32 %v4124, %v4172
    %v4174 = vpop.f32.mrf.mxu0
    %v4175 = vadd.f32 %v4126, %v4174
    %4176 = vmatmul.bf16.gmra.mxu0 %v506
    %v4177 = vpop.f32.mrf.mxu0
    %v4178 = vadd.f32 %v4129, %v4177
    %v4179 = vpop.f32.mrf.mxu0
    %v4180 = vadd.f32 %v4131, %v4179
    %4181 = vmatmul.bf16.gmra.mxu0 %v513
    %v4182 = vpop.f32.mrf.mxu0
    %v4183 = vadd.f32 %v4134, %v4182
    %v4184 = vpop.f32.mrf.mxu0
    %v4185 = vadd.f32 %v4136, %v4184
    %4186 = vmatmul.bf16.gmra.mxu0 %v520
    %v4187 = vpop.f32.mrf.mxu0
    %v4188 = vadd.f32 %v4139, %v4187
    %v4189 = vpop.f32.mrf.mxu0
    %v4190 = vadd.f32 %v4141, %v4189
    %4191 = vmatmul.bf16.gmra.mxu0 %v527
    %v4192 = vpop.f32.mrf.mxu0
    %v4193 = vadd.f32 %v4144, %v4192
    %v4194 = vpop.f32.mrf.mxu0
    %v4195 = vadd.f32 %v4146, %v4194
    %4196 = vmatmul.bf16.gmra.mxu0 %v534
    %v4197 = vpop.f32.mrf.mxu0
    %v4198 = vadd.f32 %v4149, %v4197
    %v4199 = vpop.f32.mrf.mxu0
    %v4200 = vadd.f32 %v4151, %v4199
    %4201 = vmatmul.bf16.gmra.mxu0 %v541
    %v4202 = vpop.f32.mrf.mxu0
    %v4203 = vadd.f32 %v4154, %v4202
    %v4204 = vpop.f32.mrf.mxu0
    %v4205 = vadd.f32 %v4156, %v4204
    %4206 = vdwg.mxu0
    %4207 = vmatpush.bf16.msra.mxu0 %v2743
    %4208 = vmatpush.bf16.msra.mxu0 %v2735
    %4209 = vmatpush.bf16.msra.mxu0 %v2727
    %4210 = vmatpush.bf16.msra.mxu0 %v2719
    %4211 = vmatpush.bf16.msra.mxu0 %v2711
    %4212 = vmatpush.bf16.msra.mxu0 %v2703
    %4213 = vmatpush.bf16.msra.mxu0 %v2695
    %4214 = vmatpush.bf16.msra.mxu0 %v2687
    %4215 = vmatmul.bf16.gmra.mxu0 %v493
    %v4216 = vpop.f32.mrf.mxu0
    %v4217 = vadd.f32 %v4168, %v4216
    %v4218 = vpop.f32.mrf.mxu0
    %v4219 = vadd.f32 %v4170, %v4218
    %4220 = vmatmul.bf16.gmra.mxu0 %v500
    %v4221 = vpop.f32.mrf.mxu0
    %v4222 = vadd.f32 %v4173, %v4221
    %v4223 = vpop.f32.mrf.mxu0
    %v4224 = vadd.f32 %v4175, %v4223
    %4225 = vmatmul.bf16.gmra.mxu0 %v507
    %v4226 = vpop.f32.mrf.mxu0
    %v4227 = vadd.f32 %v4178, %v4226
    %v4228 = vpop.f32.mrf.mxu0
    %v4229 = vadd.f32 %v4180, %v4228
    %4230 = vmatmul.bf16.gmra.mxu0 %v514
    %v4231 = vpop.f32.mrf.mxu0
    %v4232 = vadd.f32 %v4183, %v4231
    %v4233 = vpop.f32.mrf.mxu0
    %v4234 = vadd.f32 %v4185, %v4233
    %4235 = vmatmul.bf16.gmra.mxu0 %v521
    %v4236 = vpop.f32.mrf.mxu0
    %v4237 = vadd.f32 %v4188, %v4236
    %v4238 = vpop.f32.mrf.mxu0
    %v4239 = vadd.f32 %v4190, %v4238
    %4240 = vmatmul.bf16.gmra.mxu0 %v528
    %v4241 = vpop.f32.mrf.mxu0
    %v4242 = vadd.f32 %v4193, %v4241
    %v4243 = vpop.f32.mrf.mxu0
    %v4244 = vadd.f32 %v4195, %v4243
    %4245 = vmatmul.bf16.gmra.mxu0 %v535
    %v4246 = vpop.f32.mrf.mxu0
    %v4247 = vadd.f32 %v4198, %v4246
    %v4248 = vpop.f32.mrf.mxu0
    %v4249 = vadd.f32 %v4200, %v4248
    %4250 = vmatmul.bf16.gmra.mxu0 %v542
    %v4251 = vpop.f32.mrf.mxu0
    %v4252 = vadd.f32 %v4203, %v4251
    %v4253 = vpop.f32.mrf.mxu0
    %v4254 = vadd.f32 %v4205, %v4253
    %4255 = vdwg.mxu0
    %4256 = vmatpush.bf16.msra.mxu0 %v2807
    %4257 = vmatpush.bf16.msra.mxu0 %v2799
    %4258 = vmatpush.bf16.msra.mxu0 %v2791
    %4259 = vmatpush.bf16.msra.mxu0 %v2783
    %4260 = vmatpush.bf16.msra.mxu0 %v2775
    %4261 = vmatpush.bf16.msra.mxu0 %v2767
    %4262 = vmatpush.bf16.msra.mxu0 %v2759
    %4263 = vmatpush.bf16.msra.mxu0 %v2751
    %4264 = vmatmul.bf16.gmra.mxu0 %v494
    %v4265 = vpop.f32.mrf.mxu0
    %v4266 = vadd.f32 %v4217, %v4265
    %v4267 = vpop.f32.mrf.mxu0
    %v4268 = vadd.f32 %v4219, %v4267
    %4269 = vmatmul.bf16.gmra.mxu0 %v501
    %v4270 = vpop.f32.mrf.mxu0
    %v4271 = vadd.f32 %v4222, %v4270
    %v4272 = vpop.f32.mrf.mxu0
    %v4273 = vadd.f32 %v4224, %v4272
    %4274 = vmatmul.bf16.gmra.mxu0 %v508
    %v4275 = vpop.f32.mrf.mxu0
    %v4276 = vadd.f32 %v4227, %v4275
    %v4277 = vpop.f32.mrf.mxu0
    %v4278 = vadd.f32 %v4229, %v4277
    %4279 = vmatmul.bf16.gmra.mxu0 %v515
    %v4280 = vpop.f32.mrf.mxu0
    %v4281 = vadd.f32 %v4232, %v4280
    %v4282 = vpop.f32.mrf.mxu0
    %v4283 = vadd.f32 %v4234, %v4282
    %4284 = vmatmul.bf16.gmra.mxu0 %v522
    %v4285 = vpop.f32.mrf.mxu0
    %v4286 = vadd.f32 %v4237, %v4285
    %v4287 = vpop.f32.mrf.mxu0
    %v4288 = vadd.f32 %v4239, %v4287
    %4289 = vmatmul.bf16.gmra.mxu0 %v529
    %v4290 = vpop.f32.mrf.mxu0
    %v4291 = vadd.f32 %v4242, %v4290
    %v4292 = vpop.f32.mrf.mxu0
    %v4293 = vadd.f32 %v4244, %v4292
    %4294 = vmatmul.bf16.gmra.mxu0 %v536
    %v4295 = vpop.f32.mrf.mxu0
    %v4296 = vadd.f32 %v4247, %v4295
    %v4297 = vpop.f32.mrf.mxu0
    %v4298 = vadd.f32 %v4249, %v4297
    %4299 = vmatmul.bf16.gmra.mxu0 %v543
    %v4300 = vpop.f32.mrf.mxu0
    %v4301 = vadd.f32 %v4252, %v4300
    %v4302 = vpop.f32.mrf.mxu0
    %v4303 = vadd.f32 %v4254, %v4302
    %4304 = vdwg.mxu0
    %4305 = vmatpush.bf16.msra.mxu0 %v2871
    %4306 = vmatpush.bf16.msra.mxu0 %v2863
    %4307 = vmatpush.bf16.msra.mxu0 %v2855
    %4308 = vmatpush.bf16.msra.mxu0 %v2847
    %4309 = vmatpush.bf16.msra.mxu0 %v2839
    %4310 = vmatpush.bf16.msra.mxu0 %v2831
    %4311 = vmatpush.bf16.msra.mxu0 %v2823
    %4312 = vmatpush.bf16.msra.mxu0 %v2815
    %4313 = vmatmul.bf16.gmra.mxu0 %v596
    %v4314 = vpop.f32.mrf.mxu0
    %v4315 = vadd.f32 %v4266, %v4314
    %v4316 = vpop.f32.mrf.mxu0
    %v4317 = vadd.f32 %v4268, %v4316
    %4318 = vmatmul.bf16.gmra.mxu0 %v599
    %v4319 = vpop.f32.mrf.mxu0
    %v4320 = vadd.f32 %v4271, %v4319
    %v4321 = vpop.f32.mrf.mxu0
    %v4322 = vadd.f32 %v4273, %v4321
    %4323 = vmatmul.bf16.gmra.mxu0 %v602
    %v4324 = vpop.f32.mrf.mxu0
    %v4325 = vadd.f32 %v4276, %v4324
    %v4326 = vpop.f32.mrf.mxu0
    %v4327 = vadd.f32 %v4278, %v4326
    %4328 = vmatmul.bf16.gmra.mxu0 %v605
    %v4329 = vpop.f32.mrf.mxu0
    %v4330 = vadd.f32 %v4281, %v4329
    %v4331 = vpop.f32.mrf.mxu0
    %v4332 = vadd.f32 %v4283, %v4331
    %4333 = vmatmul.bf16.gmra.mxu0 %v608
    %v4334 = vpop.f32.mrf.mxu0
    %v4335 = vadd.f32 %v4286, %v4334
    %v4336 = vpop.f32.mrf.mxu0
    %v4337 = vadd.f32 %v4288, %v4336
    %4338 = vmatmul.bf16.gmra.mxu0 %v611
    %v4339 = vpop.f32.mrf.mxu0
    %v4340 = vadd.f32 %v4291, %v4339
    %v4341 = vpop.f32.mrf.mxu0
    %v4342 = vadd.f32 %v4293, %v4341
    %4343 = vmatmul.bf16.gmra.mxu0 %v614
    %v4344 = vpop.f32.mrf.mxu0
    %v4345 = vadd.f32 %v4296, %v4344
    %v4346 = vpop.f32.mrf.mxu0
    %v4347 = vadd.f32 %v4298, %v4346
    %4348 = vmatmul.bf16.gmra.mxu0 %v617
    %v4349 = vpop.f32.mrf.mxu0
    %v4350 = vadd.f32 %v4301, %v4349
    %v4351 = vpop.f32.mrf.mxu0
    %v4352 = vadd.f32 %v4303, %v4351
    %4353 = vdwg.mxu0
    %4354 = vmatpush.bf16.msra.mxu0 %v2488
    %4355 = vmatpush.bf16.msra.mxu0 %v2480
    %4356 = vmatpush.bf16.msra.mxu0 %v2472
    %4357 = vmatpush.bf16.msra.mxu0 %v2464
    %4358 = vmatpush.bf16.msra.mxu0 %v2456
    %4359 = vmatpush.bf16.msra.mxu0 %v2448
    %4360 = vmatpush.bf16.msra.mxu0 %v2440
    %4361 = vmatpush.bf16.msra.mxu0 %v2432
    %4362 = vmatmul.bf16.gmra.mxu0 %v489
    %v4363 = vpop.f32.mrf.mxu0
    %v4364 = vadd.f32 %v1072, %v4363
    %v4365 = vpop.f32.mrf.mxu0
    %v4366 = vadd.f32 %v1072, %v4365
    %4367 = vmatmul.bf16.gmra.mxu0 %v496
    %v4368 = vpop.f32.mrf.mxu0
    %v4369 = vadd.f32 %v1072, %v4368
    %v4370 = vpop.f32.mrf.mxu0
    %v4371 = vadd.f32 %v1072, %v4370
    %4372 = vmatmul.bf16.gmra.mxu0 %v503
    %v4373 = vpop.f32.mrf.mxu0
    %v4374 = vadd.f32 %v1072, %v4373
    %v4375 = vpop.f32.mrf.mxu0
    %v4376 = vadd.f32 %v1072, %v4375
    %4377 = vmatmul.bf16.gmra.mxu0 %v510
    %v4378 = vpop.f32.mrf.mxu0
    %v4379 = vadd.f32 %v1072, %v4378
    %v4380 = vpop.f32.mrf.mxu0
    %v4381 = vadd.f32 %v1072, %v4380
    %4382 = vmatmul.bf16.gmra.mxu0 %v517
    %v4383 = vpop.f32.mrf.mxu0
    %v4384 = vadd.f32 %v1072, %v4383
    %v4385 = vpop.f32.mrf.mxu0
    %v4386 = vadd.f32 %v1072, %v4385
    %4387 = vmatmul.bf16.gmra.mxu0 %v524
    %v4388 = vpop.f32.mrf.mxu0
    %v4389 = vadd.f32 %v1072, %v4388
    %v4390 = vpop.f32.mrf.mxu0
    %v4391 = vadd.f32 %v1072, %v4390
    %4392 = vmatmul.bf16.gmra.mxu0 %v531
    %v4393 = vpop.f32.mrf.mxu0
    %v4394 = vadd.f32 %v1072, %v4393
    %v4395 = vpop.f32.mrf.mxu0
    %v4396 = vadd.f32 %v1072, %v4395
    %4397 = vmatmul.bf16.gmra.mxu0 %v538
    %v4398 = vpop.f32.mrf.mxu0
    %v4399 = vadd.f32 %v1072, %v4398
    %v4400 = vpop.f32.mrf.mxu0
    %v4401 = vadd.f32 %v1072, %v4400
    %4402 = vdwg.mxu0
    %4403 = vmatpush.bf16.msra.mxu0 %v2552
    %4404 = vmatpush.bf16.msra.mxu0 %v2544
    %4405 = vmatpush.bf16.msra.mxu0 %v2536
    %4406 = vmatpush.bf16.msra.mxu0 %v2528
    %4407 = vmatpush.bf16.msra.mxu0 %v2520
    %4408 = vmatpush.bf16.msra.mxu0 %v2512
    %4409 = vmatpush.bf16.msra.mxu0 %v2504
    %4410 = vmatpush.bf16.msra.mxu0 %v2496
    %4411 = vmatmul.bf16.gmra.mxu0 %v490
    %v4412 = vpop.f32.mrf.mxu0
    %v4413 = vadd.f32 %v4364, %v4412
    %v4414 = vpop.f32.mrf.mxu0
    %v4415 = vadd.f32 %v4366, %v4414
    %4416 = vmatmul.bf16.gmra.mxu0 %v497
    %v4417 = vpop.f32.mrf.mxu0
    %v4418 = vadd.f32 %v4369, %v4417
    %v4419 = vpop.f32.mrf.mxu0
    %v4420 = vadd.f32 %v4371, %v4419
    %4421 = vmatmul.bf16.gmra.mxu0 %v504
    %v4422 = vpop.f32.mrf.mxu0
    %v4423 = vadd.f32 %v4374, %v4422
    %v4424 = vpop.f32.mrf.mxu0
    %v4425 = vadd.f32 %v4376, %v4424
    %4426 = vmatmul.bf16.gmra.mxu0 %v511
    %v4427 = vpop.f32.mrf.mxu0
    %v4428 = vadd.f32 %v4379, %v4427
    %v4429 = vpop.f32.mrf.mxu0
    %v4430 = vadd.f32 %v4381, %v4429
    %4431 = vmatmul.bf16.gmra.mxu0 %v518
    %v4432 = vpop.f32.mrf.mxu0
    %v4433 = vadd.f32 %v4384, %v4432
    %v4434 = vpop.f32.mrf.mxu0
    %v4435 = vadd.f32 %v4386, %v4434
    %4436 = vmatmul.bf16.gmra.mxu0 %v525
    %v4437 = vpop.f32.mrf.mxu0
    %v4438 = vadd.f32 %v4389, %v4437
    %v4439 = vpop.f32.mrf.mxu0
    %v4440 = vadd.f32 %v4391, %v4439
    %4441 = vmatmul.bf16.gmra.mxu0 %v532
    %v4442 = vpop.f32.mrf.mxu0
    %v4443 = vadd.f32 %v4394, %v4442
    %v4444 = vpop.f32.mrf.mxu0
    %v4445 = vadd.f32 %v4396, %v4444
    %4446 = vmatmul.bf16.gmra.mxu0 %v539
    %v4447 = vpop.f32.mrf.mxu0
    %v4448 = vadd.f32 %v4399, %v4447
    %v4449 = vpop.f32.mrf.mxu0
    %v4450 = vadd.f32 %v4401, %v4449
    %4451 = vdwg.mxu0
    %4452 = vmatpush.bf16.msra.mxu0 %v2616
    %4453 = vmatpush.bf16.msra.mxu0 %v2608
    %4454 = vmatpush.bf16.msra.mxu0 %v2600
    %4455 = vmatpush.bf16.msra.mxu0 %v2592
    %4456 = vmatpush.bf16.msra.mxu0 %v2584
    %4457 = vmatpush.bf16.msra.mxu0 %v2576
    %4458 = vmatpush.bf16.msra.mxu0 %v2568
    %4459 = vmatpush.bf16.msra.mxu0 %v2560
    %4460 = vmatmul.bf16.gmra.mxu0 %v491
    %v4461 = vpop.f32.mrf.mxu0
    %v4462 = vadd.f32 %v4413, %v4461
    %v4463 = vpop.f32.mrf.mxu0
    %v4464 = vadd.f32 %v4415, %v4463
    %4465 = vmatmul.bf16.gmra.mxu0 %v498
    %v4466 = vpop.f32.mrf.mxu0
    %v4467 = vadd.f32 %v4418, %v4466
    %v4468 = vpop.f32.mrf.mxu0
    %v4469 = vadd.f32 %v4420, %v4468
    %4470 = vmatmul.bf16.gmra.mxu0 %v505
    %v4471 = vpop.f32.mrf.mxu0
    %v4472 = vadd.f32 %v4423, %v4471
    %v4473 = vpop.f32.mrf.mxu0
    %v4474 = vadd.f32 %v4425, %v4473
    %4475 = vmatmul.bf16.gmra.mxu0 %v512
    %v4476 = vpop.f32.mrf.mxu0
    %v4477 = vadd.f32 %v4428, %v4476
    %v4478 = vpop.f32.mrf.mxu0
    %v4479 = vadd.f32 %v4430, %v4478
    %4480 = vmatmul.bf16.gmra.mxu0 %v519
    %v4481 = vpop.f32.mrf.mxu0
    %v4482 = vadd.f32 %v4433, %v4481
    %v4483 = vpop.f32.mrf.mxu0
    %v4484 = vadd.f32 %v4435, %v4483
    %4485 = vmatmul.bf16.gmra.mxu0 %v526
    %v4486 = vpop.f32.mrf.mxu0
    %v4487 = vadd.f32 %v4438, %v4486
    %v4488 = vpop.f32.mrf.mxu0
    %v4489 = vadd.f32 %v4440, %v4488
    %4490 = vmatmul.bf16.gmra.mxu0 %v533
    %v4491 = vpop.f32.mrf.mxu0
    %v4492 = vadd.f32 %v4443, %v4491
    %v4493 = vpop.f32.mrf.mxu0
    %v4494 = vadd.f32 %v4445, %v4493
    %4495 = vmatmul.bf16.gmra.mxu0 %v540
    %v4496 = vpop.f32.mrf.mxu0
    %v4497 = vadd.f32 %v4448, %v4496
    %v4498 = vpop.f32.mrf.mxu0
    %v4499 = vadd.f32 %v4450, %v4498
    %4500 = vdwg.mxu0
    %4501 = vmatpush.bf16.msra.mxu0 %v2680
    %4502 = vmatpush.bf16.msra.mxu0 %v2672
    %4503 = vmatpush.bf16.msra.mxu0 %v2664
    %4504 = vmatpush.bf16.msra.mxu0 %v2656
    %4505 = vmatpush.bf16.msra.mxu0 %v2648
    %4506 = vmatpush.bf16.msra.mxu0 %v2640
    %4507 = vmatpush.bf16.msra.mxu0 %v2632
    %4508 = vmatpush.bf16.msra.mxu0 %v2624
    %4509 = vmatmul.bf16.gmra.mxu0 %v492
    %v4510 = vpop.f32.mrf.mxu0
    %v4511 = vadd.f32 %v4462, %v4510
    %v4512 = vpop.f32.mrf.mxu0
    %v4513 = vadd.f32 %v4464, %v4512
    %4514 = vmatmul.bf16.gmra.mxu0 %v499
    %v4515 = vpop.f32.mrf.mxu0
    %v4516 = vadd.f32 %v4467, %v4515
    %v4517 = vpop.f32.mrf.mxu0
    %v4518 = vadd.f32 %v4469, %v4517
    %4519 = vmatmul.bf16.gmra.mxu0 %v506
    %v4520 = vpop.f32.mrf.mxu0
    %v4521 = vadd.f32 %v4472, %v4520
    %v4522 = vpop.f32.mrf.mxu0
    %v4523 = vadd.f32 %v4474, %v4522
    %4524 = vmatmul.bf16.gmra.mxu0 %v513
    %v4525 = vpop.f32.mrf.mxu0
    %v4526 = vadd.f32 %v4477, %v4525
    %v4527 = vpop.f32.mrf.mxu0
    %v4528 = vadd.f32 %v4479, %v4527
    %4529 = vmatmul.bf16.gmra.mxu0 %v520
    %v4530 = vpop.f32.mrf.mxu0
    %v4531 = vadd.f32 %v4482, %v4530
    %v4532 = vpop.f32.mrf.mxu0
    %v4533 = vadd.f32 %v4484, %v4532
    %4534 = vmatmul.bf16.gmra.mxu0 %v527
    %v4535 = vpop.f32.mrf.mxu0
    %v4536 = vadd.f32 %v4487, %v4535
    %v4537 = vpop.f32.mrf.mxu0
    %v4538 = vadd.f32 %v4489, %v4537
    %4539 = vmatmul.bf16.gmra.mxu0 %v534
    %v4540 = vpop.f32.mrf.mxu0
    %v4541 = vadd.f32 %v4492, %v4540
    %v4542 = vpop.f32.mrf.mxu0
    %v4543 = vadd.f32 %v4494, %v4542
    %4544 = vmatmul.bf16.gmra.mxu0 %v541
    %v4545 = vpop.f32.mrf.mxu0
    %v4546 = vadd.f32 %v4497, %v4545
    %v4547 = vpop.f32.mrf.mxu0
    %v4548 = vadd.f32 %v4499, %v4547
    %4549 = vdwg.mxu0
    %4550 = vmatpush.bf16.msra.mxu0 %v2744
    %4551 = vmatpush.bf16.msra.mxu0 %v2736
    %4552 = vmatpush.bf16.msra.mxu0 %v2728
    %4553 = vmatpush.bf16.msra.mxu0 %v2720
    %4554 = vmatpush.bf16.msra.mxu0 %v2712
    %4555 = vmatpush.bf16.msra.mxu0 %v2704
    %4556 = vmatpush.bf16.msra.mxu0 %v2696
    %4557 = vmatpush.bf16.msra.mxu0 %v2688
    %4558 = vmatmul.bf16.gmra.mxu0 %v493
    %v4559 = vpop.f32.mrf.mxu0
    %v4560 = vadd.f32 %v4511, %v4559
    %v4561 = vpop.f32.mrf.mxu0
    %v4562 = vadd.f32 %v4513, %v4561
    %4563 = vmatmul.bf16.gmra.mxu0 %v500
    %v4564 = vpop.f32.mrf.mxu0
    %v4565 = vadd.f32 %v4516, %v4564
    %v4566 = vpop.f32.mrf.mxu0
    %v4567 = vadd.f32 %v4518, %v4566
    %4568 = vmatmul.bf16.gmra.mxu0 %v507
    %v4569 = vpop.f32.mrf.mxu0
    %v4570 = vadd.f32 %v4521, %v4569
    %v4571 = vpop.f32.mrf.mxu0
    %v4572 = vadd.f32 %v4523, %v4571
    %4573 = vmatmul.bf16.gmra.mxu0 %v514
    %v4574 = vpop.f32.mrf.mxu0
    %v4575 = vadd.f32 %v4526, %v4574
    %v4576 = vpop.f32.mrf.mxu0
    %v4577 = vadd.f32 %v4528, %v4576
    %4578 = vmatmul.bf16.gmra.mxu0 %v521
    %v4579 = vpop.f32.mrf.mxu0
    %v4580 = vadd.f32 %v4531, %v4579
    %v4581 = vpop.f32.mrf.mxu0
    %v4582 = vadd.f32 %v4533, %v4581
    %4583 = vmatmul.bf16.gmra.mxu0 %v528
    %v4584 = vpop.f32.mrf.mxu0
    %v4585 = vadd.f32 %v4536, %v4584
    %v4586 = vpop.f32.mrf.mxu0
    %v4587 = vadd.f32 %v4538, %v4586
    %4588 = vmatmul.bf16.gmra.mxu0 %v535
    %v4589 = vpop.f32.mrf.mxu0
    %v4590 = vadd.f32 %v4541, %v4589
    %v4591 = vpop.f32.mrf.mxu0
    %v4592 = vadd.f32 %v4543, %v4591
    %4593 = vmatmul.bf16.gmra.mxu0 %v542
    %v4594 = vpop.f32.mrf.mxu0
    %v4595 = vadd.f32 %v4546, %v4594
    %v4596 = vpop.f32.mrf.mxu0
    %v4597 = vadd.f32 %v4548, %v4596
    %4598 = vdwg.mxu0
    %4599 = vmatpush.bf16.msra.mxu0 %v2808
    %4600 = vmatpush.bf16.msra.mxu0 %v2800
    %4601 = vmatpush.bf16.msra.mxu0 %v2792
    %4602 = vmatpush.bf16.msra.mxu0 %v2784
    %4603 = vmatpush.bf16.msra.mxu0 %v2776
    %4604 = vmatpush.bf16.msra.mxu0 %v2768
    %4605 = vmatpush.bf16.msra.mxu0 %v2760
    %4606 = vmatpush.bf16.msra.mxu0 %v2752
    %4607 = vmatmul.bf16.gmra.mxu0 %v494
    %v4608 = vpop.f32.mrf.mxu0
    %v4609 = vadd.f32 %v4560, %v4608
    %v4610 = vpop.f32.mrf.mxu0
    %v4611 = vadd.f32 %v4562, %v4610
    %4612 = vmatmul.bf16.gmra.mxu0 %v501
    %v4613 = vpop.f32.mrf.mxu0
    %v4614 = vadd.f32 %v4565, %v4613
    %v4615 = vpop.f32.mrf.mxu0
    %v4616 = vadd.f32 %v4567, %v4615
    %4617 = vmatmul.bf16.gmra.mxu0 %v508
    %v4618 = vpop.f32.mrf.mxu0
    %v4619 = vadd.f32 %v4570, %v4618
    %v4620 = vpop.f32.mrf.mxu0
    %v4621 = vadd.f32 %v4572, %v4620
    %4622 = vmatmul.bf16.gmra.mxu0 %v515
    %v4623 = vpop.f32.mrf.mxu0
    %v4624 = vadd.f32 %v4575, %v4623
    %v4625 = vpop.f32.mrf.mxu0
    %v4626 = vadd.f32 %v4577, %v4625
    %4627 = vmatmul.bf16.gmra.mxu0 %v522
    %v4628 = vpop.f32.mrf.mxu0
    %v4629 = vadd.f32 %v4580, %v4628
    %v4630 = vpop.f32.mrf.mxu0
    %v4631 = vadd.f32 %v4582, %v4630
    %4632 = vmatmul.bf16.gmra.mxu0 %v529
    %v4633 = vpop.f32.mrf.mxu0
    %v4634 = vadd.f32 %v4585, %v4633
    %v4635 = vpop.f32.mrf.mxu0
    %v4636 = vadd.f32 %v4587, %v4635
    %4637 = vmatmul.bf16.gmra.mxu0 %v536
    %v4638 = vpop.f32.mrf.mxu0
    %v4639 = vadd.f32 %v4590, %v4638
    %v4640 = vpop.f32.mrf.mxu0
    %v4641 = vadd.f32 %v4592, %v4640
    %4642 = vmatmul.bf16.gmra.mxu0 %v543
    %v4643 = vpop.f32.mrf.mxu0
    %v4644 = vadd.f32 %v4595, %v4643
    %v4645 = vpop.f32.mrf.mxu0
    %v4646 = vadd.f32 %v4597, %v4645
    %4647 = vdwg.mxu0
    %4648 = vmatpush.bf16.msra.mxu0 %v2872
    %4649 = vmatpush.bf16.msra.mxu0 %v2864
    %4650 = vmatpush.bf16.msra.mxu0 %v2856
    %4651 = vmatpush.bf16.msra.mxu0 %v2848
    %4652 = vmatpush.bf16.msra.mxu0 %v2840
    %4653 = vmatpush.bf16.msra.mxu0 %v2832
    %4654 = vmatpush.bf16.msra.mxu0 %v2824
    %4655 = vmatpush.bf16.msra.mxu0 %v2816
    %4656 = vmatmul.bf16.gmra.mxu0 %v596
    %v4657 = vpop.f32.mrf.mxu0
    %v4658 = vadd.f32 %v4609, %v4657
    %v4659 = vpop.f32.mrf.mxu0
    %v4660 = vadd.f32 %v4611, %v4659
    %4661 = vmatmul.bf16.gmra.mxu0 %v599
    %v4662 = vpop.f32.mrf.mxu0
    %v4663 = vadd.f32 %v4614, %v4662
    %v4664 = vpop.f32.mrf.mxu0
    %v4665 = vadd.f32 %v4616, %v4664
    %4666 = vmatmul.bf16.gmra.mxu0 %v602
    %v4667 = vpop.f32.mrf.mxu0
    %v4668 = vadd.f32 %v4619, %v4667
    %v4669 = vpop.f32.mrf.mxu0
    %v4670 = vadd.f32 %v4621, %v4669
    %4671 = vmatmul.bf16.gmra.mxu0 %v605
    %v4672 = vpop.f32.mrf.mxu0
    %v4673 = vadd.f32 %v4624, %v4672
    %v4674 = vpop.f32.mrf.mxu0
    %v4675 = vadd.f32 %v4626, %v4674
    %4676 = vmatmul.bf16.gmra.mxu0 %v608
    %v4677 = vpop.f32.mrf.mxu0
    %v4678 = vadd.f32 %v4629, %v4677
    %v4679 = vpop.f32.mrf.mxu0
    %v4680 = vadd.f32 %v4631, %v4679
    %4681 = vmatmul.bf16.gmra.mxu0 %v611
    %v4682 = vpop.f32.mrf.mxu0
    %v4683 = vadd.f32 %v4634, %v4682
    %v4684 = vpop.f32.mrf.mxu0
    %v4685 = vadd.f32 %v4636, %v4684
    %4686 = vmatmul.bf16.gmra.mxu0 %v614
    %v4687 = vpop.f32.mrf.mxu0
    %v4688 = vadd.f32 %v4639, %v4687
    %v4689 = vpop.f32.mrf.mxu0
    %v4690 = vadd.f32 %v4641, %v4689
    %4691 = vmatmul.bf16.gmra.mxu0 %v617
    %v4692 = vpop.f32.mrf.mxu0
    %v4693 = vadd.f32 %v4644, %v4692
    %v4694 = vpop.f32.mrf.mxu0
    %v4695 = vadd.f32 %v4646, %v4694
    %4696 = vdwg.mxu0
    %4697 = vmatpush.bf16.msra.mxu0 %v2489
    %4698 = vmatpush.bf16.msra.mxu0 %v2481
    %4699 = vmatpush.bf16.msra.mxu0 %v2473
    %4700 = vmatpush.bf16.msra.mxu0 %v2465
    %4701 = vmatpush.bf16.msra.mxu0 %v2457
    %4702 = vmatpush.bf16.msra.mxu0 %v2449
    %4703 = vmatpush.bf16.msra.mxu0 %v2441
    %4704 = vmatpush.bf16.msra.mxu0 %v2433
    %4705 = vmatmul.bf16.gmra.mxu0 %v489
    %v4706 = vpop.f32.mrf.mxu0
    %v4707 = vadd.f32 %v1073, %v4706
    %v4708 = vpop.f32.mrf.mxu0
    %v4709 = vadd.f32 %v1073, %v4708
    %4710 = vmatmul.bf16.gmra.mxu0 %v496
    %v4711 = vpop.f32.mrf.mxu0
    %v4712 = vadd.f32 %v1073, %v4711
    %v4713 = vpop.f32.mrf.mxu0
    %v4714 = vadd.f32 %v1073, %v4713
    %4715 = vmatmul.bf16.gmra.mxu0 %v503
    %v4716 = vpop.f32.mrf.mxu0
    %v4717 = vadd.f32 %v1073, %v4716
    %v4718 = vpop.f32.mrf.mxu0
    %v4719 = vadd.f32 %v1073, %v4718
    %4720 = vmatmul.bf16.gmra.mxu0 %v510
    %v4721 = vpop.f32.mrf.mxu0
    %v4722 = vadd.f32 %v1073, %v4721
    %v4723 = vpop.f32.mrf.mxu0
    %v4724 = vadd.f32 %v1073, %v4723
    %4725 = vmatmul.bf16.gmra.mxu0 %v517
    %v4726 = vpop.f32.mrf.mxu0
    %v4727 = vadd.f32 %v1073, %v4726
    %v4728 = vpop.f32.mrf.mxu0
    %v4729 = vadd.f32 %v1073, %v4728
    %4730 = vmatmul.bf16.gmra.mxu0 %v524
    %v4731 = vpop.f32.mrf.mxu0
    %v4732 = vadd.f32 %v1073, %v4731
    %v4733 = vpop.f32.mrf.mxu0
    %v4734 = vadd.f32 %v1073, %v4733
    %4735 = vmatmul.bf16.gmra.mxu0 %v531
    %v4736 = vpop.f32.mrf.mxu0
    %v4737 = vadd.f32 %v1073, %v4736
    %v4738 = vpop.f32.mrf.mxu0
    %v4739 = vadd.f32 %v1073, %v4738
    %4740 = vmatmul.bf16.gmra.mxu0 %v538
    %v4741 = vpop.f32.mrf.mxu0
    %v4742 = vadd.f32 %v1073, %v4741
    %v4743 = vpop.f32.mrf.mxu0
    %v4744 = vadd.f32 %v1073, %v4743
    %4745 = vdwg.mxu0
    %4746 = vmatpush.bf16.msra.mxu0 %v2553
    %4747 = vmatpush.bf16.msra.mxu0 %v2545
    %4748 = vmatpush.bf16.msra.mxu0 %v2537
    %4749 = vmatpush.bf16.msra.mxu0 %v2529
    %4750 = vmatpush.bf16.msra.mxu0 %v2521
    %4751 = vmatpush.bf16.msra.mxu0 %v2513
    %4752 = vmatpush.bf16.msra.mxu0 %v2505
    %4753 = vmatpush.bf16.msra.mxu0 %v2497
    %4754 = vmatmul.bf16.gmra.mxu0 %v490
    %v4755 = vpop.f32.mrf.mxu0
    %v4756 = vadd.f32 %v4707, %v4755
    %v4757 = vpop.f32.mrf.mxu0
    %v4758 = vadd.f32 %v4709, %v4757
    %4759 = vmatmul.bf16.gmra.mxu0 %v497
    %v4760 = vpop.f32.mrf.mxu0
    %v4761 = vadd.f32 %v4712, %v4760
    %v4762 = vpop.f32.mrf.mxu0
    %v4763 = vadd.f32 %v4714, %v4762
    %4764 = vmatmul.bf16.gmra.mxu0 %v504
    %v4765 = vpop.f32.mrf.mxu0
    %v4766 = vadd.f32 %v4717, %v4765
    %v4767 = vpop.f32.mrf.mxu0
    %v4768 = vadd.f32 %v4719, %v4767
    %4769 = vmatmul.bf16.gmra.mxu0 %v511
    %v4770 = vpop.f32.mrf.mxu0
    %v4771 = vadd.f32 %v4722, %v4770
    %v4772 = vpop.f32.mrf.mxu0
    %v4773 = vadd.f32 %v4724, %v4772
    %4774 = vmatmul.bf16.gmra.mxu0 %v518
    %v4775 = vpop.f32.mrf.mxu0
    %v4776 = vadd.f32 %v4727, %v4775
    %v4777 = vpop.f32.mrf.mxu0
    %v4778 = vadd.f32 %v4729, %v4777
    %4779 = vmatmul.bf16.gmra.mxu0 %v525
    %v4780 = vpop.f32.mrf.mxu0
    %v4781 = vadd.f32 %v4732, %v4780
    %v4782 = vpop.f32.mrf.mxu0
    %v4783 = vadd.f32 %v4734, %v4782
    %4784 = vmatmul.bf16.gmra.mxu0 %v532
    %v4785 = vpop.f32.mrf.mxu0
    %v4786 = vadd.f32 %v4737, %v4785
    %v4787 = vpop.f32.mrf.mxu0
    %v4788 = vadd.f32 %v4739, %v4787
    %4789 = vmatmul.bf16.gmra.mxu0 %v539
    %v4790 = vpop.f32.mrf.mxu0
    %v4791 = vadd.f32 %v4742, %v4790
    %v4792 = vpop.f32.mrf.mxu0
    %v4793 = vadd.f32 %v4744, %v4792
    %4794 = vdwg.mxu0
    %4795 = vmatpush.bf16.msra.mxu0 %v2617
    %4796 = vmatpush.bf16.msra.mxu0 %v2609
    %4797 = vmatpush.bf16.msra.mxu0 %v2601
    %4798 = vmatpush.bf16.msra.mxu0 %v2593
    %4799 = vmatpush.bf16.msra.mxu0 %v2585
    %4800 = vmatpush.bf16.msra.mxu0 %v2577
    %4801 = vmatpush.bf16.msra.mxu0 %v2569
    %4802 = vmatpush.bf16.msra.mxu0 %v2561
    %4803 = vmatmul.bf16.gmra.mxu0 %v491
    %v4804 = vpop.f32.mrf.mxu0
    %v4805 = vadd.f32 %v4756, %v4804
    %v4806 = vpop.f32.mrf.mxu0
    %v4807 = vadd.f32 %v4758, %v4806
    %4808 = vmatmul.bf16.gmra.mxu0 %v498
    %v4809 = vpop.f32.mrf.mxu0
    %v4810 = vadd.f32 %v4761, %v4809
    %v4811 = vpop.f32.mrf.mxu0
    %v4812 = vadd.f32 %v4763, %v4811
    %4813 = vmatmul.bf16.gmra.mxu0 %v505
    %v4814 = vpop.f32.mrf.mxu0
    %v4815 = vadd.f32 %v4766, %v4814
    %v4816 = vpop.f32.mrf.mxu0
    %v4817 = vadd.f32 %v4768, %v4816
    %4818 = vmatmul.bf16.gmra.mxu0 %v512
    %v4819 = vpop.f32.mrf.mxu0
    %v4820 = vadd.f32 %v4771, %v4819
    %v4821 = vpop.f32.mrf.mxu0
    %v4822 = vadd.f32 %v4773, %v4821
    %4823 = vmatmul.bf16.gmra.mxu0 %v519
    %v4824 = vpop.f32.mrf.mxu0
    %v4825 = vadd.f32 %v4776, %v4824
    %v4826 = vpop.f32.mrf.mxu0
    %v4827 = vadd.f32 %v4778, %v4826
    %4828 = vmatmul.bf16.gmra.mxu0 %v526
    %v4829 = vpop.f32.mrf.mxu0
    %v4830 = vadd.f32 %v4781, %v4829
    %v4831 = vpop.f32.mrf.mxu0
    %v4832 = vadd.f32 %v4783, %v4831
    %4833 = vmatmul.bf16.gmra.mxu0 %v533
    %v4834 = vpop.f32.mrf.mxu0
    %v4835 = vadd.f32 %v4786, %v4834
    %v4836 = vpop.f32.mrf.mxu0
    %v4837 = vadd.f32 %v4788, %v4836
    %4838 = vmatmul.bf16.gmra.mxu0 %v540
    %v4839 = vpop.f32.mrf.mxu0
    %v4840 = vadd.f32 %v4791, %v4839
    %v4841 = vpop.f32.mrf.mxu0
    %v4842 = vadd.f32 %v4793, %v4841
    %4843 = vdwg.mxu0
    %4844 = vmatpush.bf16.msra.mxu0 %v2681
    %4845 = vmatpush.bf16.msra.mxu0 %v2673
    %4846 = vmatpush.bf16.msra.mxu0 %v2665
    %4847 = vmatpush.bf16.msra.mxu0 %v2657
    %4848 = vmatpush.bf16.msra.mxu0 %v2649
    %4849 = vmatpush.bf16.msra.mxu0 %v2641
    %4850 = vmatpush.bf16.msra.mxu0 %v2633
    %4851 = vmatpush.bf16.msra.mxu0 %v2625
    %4852 = vmatmul.bf16.gmra.mxu0 %v492
    %v4853 = vpop.f32.mrf.mxu0
    %v4854 = vadd.f32 %v4805, %v4853
    %v4855 = vpop.f32.mrf.mxu0
    %v4856 = vadd.f32 %v4807, %v4855
    %4857 = vmatmul.bf16.gmra.mxu0 %v499
    %v4858 = vpop.f32.mrf.mxu0
    %v4859 = vadd.f32 %v4810, %v4858
    %v4860 = vpop.f32.mrf.mxu0
    %v4861 = vadd.f32 %v4812, %v4860
    %4862 = vmatmul.bf16.gmra.mxu0 %v506
    %v4863 = vpop.f32.mrf.mxu0
    %v4864 = vadd.f32 %v4815, %v4863
    %v4865 = vpop.f32.mrf.mxu0
    %v4866 = vadd.f32 %v4817, %v4865
    %4867 = vmatmul.bf16.gmra.mxu0 %v513
    %v4868 = vpop.f32.mrf.mxu0
    %v4869 = vadd.f32 %v4820, %v4868
    %v4870 = vpop.f32.mrf.mxu0
    %v4871 = vadd.f32 %v4822, %v4870
    %4872 = vmatmul.bf16.gmra.mxu0 %v520
    %v4873 = vpop.f32.mrf.mxu0
    %v4874 = vadd.f32 %v4825, %v4873
    %v4875 = vpop.f32.mrf.mxu0
    %v4876 = vadd.f32 %v4827, %v4875
    %4877 = vmatmul.bf16.gmra.mxu0 %v527
    %v4878 = vpop.f32.mrf.mxu0
    %v4879 = vadd.f32 %v4830, %v4878
    %v4880 = vpop.f32.mrf.mxu0
    %v4881 = vadd.f32 %v4832, %v4880
    %4882 = vmatmul.bf16.gmra.mxu0 %v534
    %v4883 = vpop.f32.mrf.mxu0
    %v4884 = vadd.f32 %v4835, %v4883
    %v4885 = vpop.f32.mrf.mxu0
    %v4886 = vadd.f32 %v4837, %v4885
    %4887 = vmatmul.bf16.gmra.mxu0 %v541
    %v4888 = vpop.f32.mrf.mxu0
    %v4889 = vadd.f32 %v4840, %v4888
    %v4890 = vpop.f32.mrf.mxu0
    %v4891 = vadd.f32 %v4842, %v4890
    %4892 = vdwg.mxu0
    %4893 = vmatpush.bf16.msra.mxu0 %v2745
    %4894 = vmatpush.bf16.msra.mxu0 %v2737
    %4895 = vmatpush.bf16.msra.mxu0 %v2729
    %4896 = vmatpush.bf16.msra.mxu0 %v2721
    %4897 = vmatpush.bf16.msra.mxu0 %v2713
    %4898 = vmatpush.bf16.msra.mxu0 %v2705
    %4899 = vmatpush.bf16.msra.mxu0 %v2697
    %4900 = vmatpush.bf16.msra.mxu0 %v2689
    %4901 = vmatmul.bf16.gmra.mxu0 %v493
    %v4902 = vpop.f32.mrf.mxu0
    %v4903 = vadd.f32 %v4854, %v4902
    %v4904 = vpop.f32.mrf.mxu0
    %v4905 = vadd.f32 %v4856, %v4904
    %4906 = vmatmul.bf16.gmra.mxu0 %v500
    %v4907 = vpop.f32.mrf.mxu0
    %v4908 = vadd.f32 %v4859, %v4907
    %v4909 = vpop.f32.mrf.mxu0
    %v4910 = vadd.f32 %v4861, %v4909
    %4911 = vmatmul.bf16.gmra.mxu0 %v507
    %v4912 = vpop.f32.mrf.mxu0
    %v4913 = vadd.f32 %v4864, %v4912
    %v4914 = vpop.f32.mrf.mxu0
    %v4915 = vadd.f32 %v4866, %v4914
    %4916 = vmatmul.bf16.gmra.mxu0 %v514
    %v4917 = vpop.f32.mrf.mxu0
    %v4918 = vadd.f32 %v4869, %v4917
    %v4919 = vpop.f32.mrf.mxu0
    %v4920 = vadd.f32 %v4871, %v4919
    %4921 = vmatmul.bf16.gmra.mxu0 %v521
    %v4922 = vpop.f32.mrf.mxu0
    %v4923 = vadd.f32 %v4874, %v4922
    %v4924 = vpop.f32.mrf.mxu0
    %v4925 = vadd.f32 %v4876, %v4924
    %4926 = vmatmul.bf16.gmra.mxu0 %v528
    %v4927 = vpop.f32.mrf.mxu0
    %v4928 = vadd.f32 %v4879, %v4927
    %v4929 = vpop.f32.mrf.mxu0
    %v4930 = vadd.f32 %v4881, %v4929
    %4931 = vmatmul.bf16.gmra.mxu0 %v535
    %v4932 = vpop.f32.mrf.mxu0
    %v4933 = vadd.f32 %v4884, %v4932
    %v4934 = vpop.f32.mrf.mxu0
    %v4935 = vadd.f32 %v4886, %v4934
    %4936 = vmatmul.bf16.gmra.mxu0 %v542
    %v4937 = vpop.f32.mrf.mxu0
    %v4938 = vadd.f32 %v4889, %v4937
    %v4939 = vpop.f32.mrf.mxu0
    %v4940 = vadd.f32 %v4891, %v4939
    %4941 = vdwg.mxu0
    %4942 = vmatpush.bf16.msra.mxu0 %v2809
    %4943 = vmatpush.bf16.msra.mxu0 %v2801
    %4944 = vmatpush.bf16.msra.mxu0 %v2793
    %4945 = vmatpush.bf16.msra.mxu0 %v2785
    %4946 = vmatpush.bf16.msra.mxu0 %v2777
    %4947 = vmatpush.bf16.msra.mxu0 %v2769
    %4948 = vmatpush.bf16.msra.mxu0 %v2761
    %4949 = vmatpush.bf16.msra.mxu0 %v2753
    %4950 = vmatmul.bf16.gmra.mxu0 %v494
    %v4951 = vpop.f32.mrf.mxu0
    %v4952 = vadd.f32 %v4903, %v4951
    %v4953 = vpop.f32.mrf.mxu0
    %v4954 = vadd.f32 %v4905, %v4953
    %4955 = vmatmul.bf16.gmra.mxu0 %v501
    %v4956 = vpop.f32.mrf.mxu0
    %v4957 = vadd.f32 %v4908, %v4956
    %v4958 = vpop.f32.mrf.mxu0
    %v4959 = vadd.f32 %v4910, %v4958
    %4960 = vmatmul.bf16.gmra.mxu0 %v508
    %v4961 = vpop.f32.mrf.mxu0
    %v4962 = vadd.f32 %v4913, %v4961
    %v4963 = vpop.f32.mrf.mxu0
    %v4964 = vadd.f32 %v4915, %v4963
    %4965 = vmatmul.bf16.gmra.mxu0 %v515
    %v4966 = vpop.f32.mrf.mxu0
    %v4967 = vadd.f32 %v4918, %v4966
    %v4968 = vpop.f32.mrf.mxu0
    %v4969 = vadd.f32 %v4920, %v4968
    %4970 = vmatmul.bf16.gmra.mxu0 %v522
    %v4971 = vpop.f32.mrf.mxu0
    %v4972 = vadd.f32 %v4923, %v4971
    %v4973 = vpop.f32.mrf.mxu0
    %v4974 = vadd.f32 %v4925, %v4973
    %4975 = vmatmul.bf16.gmra.mxu0 %v529
    %v4976 = vpop.f32.mrf.mxu0
    %v4977 = vadd.f32 %v4928, %v4976
    %v4978 = vpop.f32.mrf.mxu0
    %v4979 = vadd.f32 %v4930, %v4978
    %4980 = vmatmul.bf16.gmra.mxu0 %v536
    %v4981 = vpop.f32.mrf.mxu0
    %v4982 = vadd.f32 %v4933, %v4981
    %v4983 = vpop.f32.mrf.mxu0
    %v4984 = vadd.f32 %v4935, %v4983
    %4985 = vmatmul.bf16.gmra.mxu0 %v543
    %v4986 = vpop.f32.mrf.mxu0
    %v4987 = vadd.f32 %v4938, %v4986
    %v4988 = vpop.f32.mrf.mxu0
    %v4989 = vadd.f32 %v4940, %v4988
    %4990 = vdwg.mxu0
    %4991 = vmatpush.bf16.msra.mxu0 %v2873
    %4992 = vmatpush.bf16.msra.mxu0 %v2865
    %4993 = vmatpush.bf16.msra.mxu0 %v2857
    %4994 = vmatpush.bf16.msra.mxu0 %v2849
    %4995 = vmatpush.bf16.msra.mxu0 %v2841
    %4996 = vmatpush.bf16.msra.mxu0 %v2833
    %4997 = vmatpush.bf16.msra.mxu0 %v2825
    %4998 = vmatpush.bf16.msra.mxu0 %v2817
    %4999 = vmatmul.bf16.gmra.mxu0 %v596
    %v5000 = vpop.f32.mrf.mxu0
    %v5001 = vadd.f32 %v4952, %v5000
    %v5002 = vpop.f32.mrf.mxu0
    %v5003 = vadd.f32 %v4954, %v5002
    %5004 = vmatmul.bf16.gmra.mxu0 %v599
    %v5005 = vpop.f32.mrf.mxu0
    %v5006 = vadd.f32 %v4957, %v5005
    %v5007 = vpop.f32.mrf.mxu0
    %v5008 = vadd.f32 %v4959, %v5007
    %5009 = vmatmul.bf16.gmra.mxu0 %v602
    %v5010 = vpop.f32.mrf.mxu0
    %v5011 = vadd.f32 %v4962, %v5010
    %v5012 = vpop.f32.mrf.mxu0
    %v5013 = vadd.f32 %v4964, %v5012
    %5014 = vmatmul.bf16.gmra.mxu0 %v605
    %v5015 = vpop.f32.mrf.mxu0
    %v5016 = vadd.f32 %v4967, %v5015
    %v5017 = vpop.f32.mrf.mxu0
    %v5018 = vadd.f32 %v4969, %v5017
    %5019 = vmatmul.bf16.gmra.mxu0 %v608
    %v5020 = vpop.f32.mrf.mxu0
    %v5021 = vadd.f32 %v4972, %v5020
    %v5022 = vpop.f32.mrf.mxu0
    %v5023 = vadd.f32 %v4974, %v5022
    %5024 = vmatmul.bf16.gmra.mxu0 %v611
    %v5025 = vpop.f32.mrf.mxu0
    %v5026 = vadd.f32 %v4977, %v5025
    %v5027 = vpop.f32.mrf.mxu0
    %v5028 = vadd.f32 %v4979, %v5027
    %5029 = vmatmul.bf16.gmra.mxu0 %v614
    %v5030 = vpop.f32.mrf.mxu0
    %v5031 = vadd.f32 %v4982, %v5030
    %v5032 = vpop.f32.mrf.mxu0
    %v5033 = vadd.f32 %v4984, %v5032
    %5034 = vmatmul.bf16.gmra.mxu0 %v617
    %v5035 = vpop.f32.mrf.mxu0
    %v5036 = vadd.f32 %v4987, %v5035
    %v5037 = vpop.f32.mrf.mxu0
    %v5038 = vadd.f32 %v4989, %v5037
    %5039 = vdwg.mxu0
    %5040 = vmatpush.bf16.msra.mxu0 %v2490
    %5041 = vmatpush.bf16.msra.mxu0 %v2482
    %5042 = vmatpush.bf16.msra.mxu0 %v2474
    %5043 = vmatpush.bf16.msra.mxu0 %v2466
    %5044 = vmatpush.bf16.msra.mxu0 %v2458
    %5045 = vmatpush.bf16.msra.mxu0 %v2450
    %5046 = vmatpush.bf16.msra.mxu0 %v2442
    %5047 = vmatpush.bf16.msra.mxu0 %v2434
    %5048 = vmatmul.bf16.gmra.mxu0 %v489
    %v5049 = vpop.f32.mrf.mxu0
    %v5050 = vadd.f32 %v1074, %v5049
    %v5051 = vpop.f32.mrf.mxu0
    %v5052 = vadd.f32 %v1074, %v5051
    %5053 = vmatmul.bf16.gmra.mxu0 %v496
    %v5054 = vpop.f32.mrf.mxu0
    %v5055 = vadd.f32 %v1074, %v5054
    %v5056 = vpop.f32.mrf.mxu0
    %v5057 = vadd.f32 %v1074, %v5056
    %5058 = vmatmul.bf16.gmra.mxu0 %v503
    %v5059 = vpop.f32.mrf.mxu0
    %v5060 = vadd.f32 %v1074, %v5059
    %v5061 = vpop.f32.mrf.mxu0
    %v5062 = vadd.f32 %v1074, %v5061
    %5063 = vmatmul.bf16.gmra.mxu0 %v510
    %v5064 = vpop.f32.mrf.mxu0
    %v5065 = vadd.f32 %v1074, %v5064
    %v5066 = vpop.f32.mrf.mxu0
    %v5067 = vadd.f32 %v1074, %v5066
    %5068 = vmatmul.bf16.gmra.mxu0 %v517
    %v5069 = vpop.f32.mrf.mxu0
    %v5070 = vadd.f32 %v1074, %v5069
    %v5071 = vpop.f32.mrf.mxu0
    %v5072 = vadd.f32 %v1074, %v5071
    %5073 = vmatmul.bf16.gmra.mxu0 %v524
    %v5074 = vpop.f32.mrf.mxu0
    %v5075 = vadd.f32 %v1074, %v5074
    %v5076 = vpop.f32.mrf.mxu0
    %v5077 = vadd.f32 %v1074, %v5076
    %5078 = vmatmul.bf16.gmra.mxu0 %v531
    %v5079 = vpop.f32.mrf.mxu0
    %v5080 = vadd.f32 %v1074, %v5079
    %v5081 = vpop.f32.mrf.mxu0
    %v5082 = vadd.f32 %v1074, %v5081
    %5083 = vmatmul.bf16.gmra.mxu0 %v538
    %v5084 = vpop.f32.mrf.mxu0
    %v5085 = vadd.f32 %v1074, %v5084
    %v5086 = vpop.f32.mrf.mxu0
    %v5087 = vadd.f32 %v1074, %v5086
    %5088 = vdwg.mxu0
    %5089 = vmatpush.bf16.msra.mxu0 %v2554
    %5090 = vmatpush.bf16.msra.mxu0 %v2546
    %5091 = vmatpush.bf16.msra.mxu0 %v2538
    %5092 = vmatpush.bf16.msra.mxu0 %v2530
    %5093 = vmatpush.bf16.msra.mxu0 %v2522
    %5094 = vmatpush.bf16.msra.mxu0 %v2514
    %5095 = vmatpush.bf16.msra.mxu0 %v2506
    %5096 = vmatpush.bf16.msra.mxu0 %v2498
    %5097 = vmatmul.bf16.gmra.mxu0 %v490
    %v5098 = vpop.f32.mrf.mxu0
    %v5099 = vadd.f32 %v5050, %v5098
    %v5100 = vpop.f32.mrf.mxu0
    %v5101 = vadd.f32 %v5052, %v5100
    %5102 = vmatmul.bf16.gmra.mxu0 %v497
    %v5103 = vpop.f32.mrf.mxu0
    %v5104 = vadd.f32 %v5055, %v5103
    %v5105 = vpop.f32.mrf.mxu0
    %v5106 = vadd.f32 %v5057, %v5105
    %5107 = vmatmul.bf16.gmra.mxu0 %v504
    %v5108 = vpop.f32.mrf.mxu0
    %v5109 = vadd.f32 %v5060, %v5108
    %v5110 = vpop.f32.mrf.mxu0
    %v5111 = vadd.f32 %v5062, %v5110
    %5112 = vmatmul.bf16.gmra.mxu0 %v511
    %v5113 = vpop.f32.mrf.mxu0
    %v5114 = vadd.f32 %v5065, %v5113
    %v5115 = vpop.f32.mrf.mxu0
    %v5116 = vadd.f32 %v5067, %v5115
    %5117 = vmatmul.bf16.gmra.mxu0 %v518
    %v5118 = vpop.f32.mrf.mxu0
    %v5119 = vadd.f32 %v5070, %v5118
    %v5120 = vpop.f32.mrf.mxu0
    %v5121 = vadd.f32 %v5072, %v5120
    %5122 = vmatmul.bf16.gmra.mxu0 %v525
    %v5123 = vpop.f32.mrf.mxu0
    %v5124 = vadd.f32 %v5075, %v5123
    %v5125 = vpop.f32.mrf.mxu0
    %v5126 = vadd.f32 %v5077, %v5125
    %5127 = vmatmul.bf16.gmra.mxu0 %v532
    %v5128 = vpop.f32.mrf.mxu0
    %v5129 = vadd.f32 %v5080, %v5128
    %v5130 = vpop.f32.mrf.mxu0
    %v5131 = vadd.f32 %v5082, %v5130
    %5132 = vmatmul.bf16.gmra.mxu0 %v539
    %v5133 = vpop.f32.mrf.mxu0
    %v5134 = vadd.f32 %v5085, %v5133
    %v5135 = vpop.f32.mrf.mxu0
    %v5136 = vadd.f32 %v5087, %v5135
    %5137 = vdwg.mxu0
    %5138 = vmatpush.bf16.msra.mxu0 %v2618
    %5139 = vmatpush.bf16.msra.mxu0 %v2610
    %5140 = vmatpush.bf16.msra.mxu0 %v2602
    %5141 = vmatpush.bf16.msra.mxu0 %v2594
    %5142 = vmatpush.bf16.msra.mxu0 %v2586
    %5143 = vmatpush.bf16.msra.mxu0 %v2578
    %5144 = vmatpush.bf16.msra.mxu0 %v2570
    %5145 = vmatpush.bf16.msra.mxu0 %v2562
    %5146 = vmatmul.bf16.gmra.mxu0 %v491
    %v5147 = vpop.f32.mrf.mxu0
    %v5148 = vadd.f32 %v5099, %v5147
    %v5149 = vpop.f32.mrf.mxu0
    %v5150 = vadd.f32 %v5101, %v5149
    %5151 = vmatmul.bf16.gmra.mxu0 %v498
    %v5152 = vpop.f32.mrf.mxu0
    %v5153 = vadd.f32 %v5104, %v5152
    %v5154 = vpop.f32.mrf.mxu0
    %v5155 = vadd.f32 %v5106, %v5154
    %5156 = vmatmul.bf16.gmra.mxu0 %v505
    %v5157 = vpop.f32.mrf.mxu0
    %v5158 = vadd.f32 %v5109, %v5157
    %v5159 = vpop.f32.mrf.mxu0
    %v5160 = vadd.f32 %v5111, %v5159
    %5161 = vmatmul.bf16.gmra.mxu0 %v512
    %v5162 = vpop.f32.mrf.mxu0
    %v5163 = vadd.f32 %v5114, %v5162
    %v5164 = vpop.f32.mrf.mxu0
    %v5165 = vadd.f32 %v5116, %v5164
    %5166 = vmatmul.bf16.gmra.mxu0 %v519
    %v5167 = vpop.f32.mrf.mxu0
    %v5168 = vadd.f32 %v5119, %v5167
    %v5169 = vpop.f32.mrf.mxu0
    %v5170 = vadd.f32 %v5121, %v5169
    %5171 = vmatmul.bf16.gmra.mxu0 %v526
    %v5172 = vpop.f32.mrf.mxu0
    %v5173 = vadd.f32 %v5124, %v5172
    %v5174 = vpop.f32.mrf.mxu0
    %v5175 = vadd.f32 %v5126, %v5174
    %5176 = vmatmul.bf16.gmra.mxu0 %v533
    %v5177 = vpop.f32.mrf.mxu0
    %v5178 = vadd.f32 %v5129, %v5177
    %v5179 = vpop.f32.mrf.mxu0
    %v5180 = vadd.f32 %v5131, %v5179
    %5181 = vmatmul.bf16.gmra.mxu0 %v540
    %v5182 = vpop.f32.mrf.mxu0
    %v5183 = vadd.f32 %v5134, %v5182
    %v5184 = vpop.f32.mrf.mxu0
    %v5185 = vadd.f32 %v5136, %v5184
    %5186 = vdwg.mxu0
    %5187 = vmatpush.bf16.msra.mxu0 %v2682
    %5188 = vmatpush.bf16.msra.mxu0 %v2674
    %5189 = vmatpush.bf16.msra.mxu0 %v2666
    %5190 = vmatpush.bf16.msra.mxu0 %v2658
    %5191 = vmatpush.bf16.msra.mxu0 %v2650
    %5192 = vmatpush.bf16.msra.mxu0 %v2642
    %5193 = vmatpush.bf16.msra.mxu0 %v2634
    %5194 = vmatpush.bf16.msra.mxu0 %v2626
    %5195 = vmatmul.bf16.gmra.mxu0 %v492
    %v5196 = vpop.f32.mrf.mxu0
    %v5197 = vadd.f32 %v5148, %v5196
    %v5198 = vpop.f32.mrf.mxu0
    %v5199 = vadd.f32 %v5150, %v5198
    %5200 = vmatmul.bf16.gmra.mxu0 %v499
    %v5201 = vpop.f32.mrf.mxu0
    %v5202 = vadd.f32 %v5153, %v5201
    %v5203 = vpop.f32.mrf.mxu0
    %v5204 = vadd.f32 %v5155, %v5203
    %5205 = vmatmul.bf16.gmra.mxu0 %v506
    %v5206 = vpop.f32.mrf.mxu0
    %v5207 = vadd.f32 %v5158, %v5206
    %v5208 = vpop.f32.mrf.mxu0
    %v5209 = vadd.f32 %v5160, %v5208
    %5210 = vmatmul.bf16.gmra.mxu0 %v513
    %v5211 = vpop.f32.mrf.mxu0
    %v5212 = vadd.f32 %v5163, %v5211
    %v5213 = vpop.f32.mrf.mxu0
    %v5214 = vadd.f32 %v5165, %v5213
    %5215 = vmatmul.bf16.gmra.mxu0 %v520
    %v5216 = vpop.f32.mrf.mxu0
    %v5217 = vadd.f32 %v5168, %v5216
    %v5218 = vpop.f32.mrf.mxu0
    %v5219 = vadd.f32 %v5170, %v5218
    %5220 = vmatmul.bf16.gmra.mxu0 %v527
    %v5221 = vpop.f32.mrf.mxu0
    %v5222 = vadd.f32 %v5173, %v5221
    %v5223 = vpop.f32.mrf.mxu0
    %v5224 = vadd.f32 %v5175, %v5223
    %5225 = vmatmul.bf16.gmra.mxu0 %v534
    %v5226 = vpop.f32.mrf.mxu0
    %v5227 = vadd.f32 %v5178, %v5226
    %v5228 = vpop.f32.mrf.mxu0
    %v5229 = vadd.f32 %v5180, %v5228
    %5230 = vmatmul.bf16.gmra.mxu0 %v541
    %v5231 = vpop.f32.mrf.mxu0
    %v5232 = vadd.f32 %v5183, %v5231
    %v5233 = vpop.f32.mrf.mxu0
    %v5234 = vadd.f32 %v5185, %v5233
    %5235 = vdwg.mxu0
    %5236 = vmatpush.bf16.msra.mxu0 %v2746
    %5237 = vmatpush.bf16.msra.mxu0 %v2738
    %5238 = vmatpush.bf16.msra.mxu0 %v2730
    %5239 = vmatpush.bf16.msra.mxu0 %v2722
    %5240 = vmatpush.bf16.msra.mxu0 %v2714
    %5241 = vmatpush.bf16.msra.mxu0 %v2706
    %5242 = vmatpush.bf16.msra.mxu0 %v2698
    %5243 = vmatpush.bf16.msra.mxu0 %v2690
    %5244 = vmatmul.bf16.gmra.mxu0 %v493
    %v5245 = vpop.f32.mrf.mxu0
    %v5246 = vadd.f32 %v5197, %v5245
    %v5247 = vpop.f32.mrf.mxu0
    %v5248 = vadd.f32 %v5199, %v5247
    %5249 = vmatmul.bf16.gmra.mxu0 %v500
    %v5250 = vpop.f32.mrf.mxu0
    %v5251 = vadd.f32 %v5202, %v5250
    %v5252 = vpop.f32.mrf.mxu0
    %v5253 = vadd.f32 %v5204, %v5252
    %5254 = vmatmul.bf16.gmra.mxu0 %v507
    %v5255 = vpop.f32.mrf.mxu0
    %v5256 = vadd.f32 %v5207, %v5255
    %v5257 = vpop.f32.mrf.mxu0
    %v5258 = vadd.f32 %v5209, %v5257
    %5259 = vmatmul.bf16.gmra.mxu0 %v514
    %v5260 = vpop.f32.mrf.mxu0
    %v5261 = vadd.f32 %v5212, %v5260
    %v5262 = vpop.f32.mrf.mxu0
    %v5263 = vadd.f32 %v5214, %v5262
    %5264 = vmatmul.bf16.gmra.mxu0 %v521
    %v5265 = vpop.f32.mrf.mxu0
    %v5266 = vadd.f32 %v5217, %v5265
    %v5267 = vpop.f32.mrf.mxu0
    %v5268 = vadd.f32 %v5219, %v5267
    %5269 = vmatmul.bf16.gmra.mxu0 %v528
    %v5270 = vpop.f32.mrf.mxu0
    %v5271 = vadd.f32 %v5222, %v5270
    %v5272 = vpop.f32.mrf.mxu0
    %v5273 = vadd.f32 %v5224, %v5272
    %5274 = vmatmul.bf16.gmra.mxu0 %v535
    %v5275 = vpop.f32.mrf.mxu0
    %v5276 = vadd.f32 %v5227, %v5275
    %v5277 = vpop.f32.mrf.mxu0
    %v5278 = vadd.f32 %v5229, %v5277
    %5279 = vmatmul.bf16.gmra.mxu0 %v542
    %v5280 = vpop.f32.mrf.mxu0
    %v5281 = vadd.f32 %v5232, %v5280
    %v5282 = vpop.f32.mrf.mxu0
    %v5283 = vadd.f32 %v5234, %v5282
    %5284 = vdwg.mxu0
    %5285 = vmatpush.bf16.msra.mxu0 %v2810
    %5286 = vmatpush.bf16.msra.mxu0 %v2802
    %5287 = vmatpush.bf16.msra.mxu0 %v2794
    %5288 = vmatpush.bf16.msra.mxu0 %v2786
    %5289 = vmatpush.bf16.msra.mxu0 %v2778
    %5290 = vmatpush.bf16.msra.mxu0 %v2770
    %5291 = vmatpush.bf16.msra.mxu0 %v2762
    %5292 = vmatpush.bf16.msra.mxu0 %v2754
    %5293 = vmatmul.bf16.gmra.mxu0 %v494
    %v5294 = vpop.f32.mrf.mxu0
    %v5295 = vadd.f32 %v5246, %v5294
    %v5296 = vpop.f32.mrf.mxu0
    %v5297 = vadd.f32 %v5248, %v5296
    %5298 = vmatmul.bf16.gmra.mxu0 %v501
    %v5299 = vpop.f32.mrf.mxu0
    %v5300 = vadd.f32 %v5251, %v5299
    %v5301 = vpop.f32.mrf.mxu0
    %v5302 = vadd.f32 %v5253, %v5301
    %5303 = vmatmul.bf16.gmra.mxu0 %v508
    %v5304 = vpop.f32.mrf.mxu0
    %v5305 = vadd.f32 %v5256, %v5304
    %v5306 = vpop.f32.mrf.mxu0
    %v5307 = vadd.f32 %v5258, %v5306
    %5308 = vmatmul.bf16.gmra.mxu0 %v515
    %v5309 = vpop.f32.mrf.mxu0
    %v5310 = vadd.f32 %v5261, %v5309
    %v5311 = vpop.f32.mrf.mxu0
    %v5312 = vadd.f32 %v5263, %v5311
    %5313 = vmatmul.bf16.gmra.mxu0 %v522
    %v5314 = vpop.f32.mrf.mxu0
    %v5315 = vadd.f32 %v5266, %v5314
    %v5316 = vpop.f32.mrf.mxu0
    %v5317 = vadd.f32 %v5268, %v5316
    %5318 = vmatmul.bf16.gmra.mxu0 %v529
    %v5319 = vpop.f32.mrf.mxu0
    %v5320 = vadd.f32 %v5271, %v5319
    %v5321 = vpop.f32.mrf.mxu0
    %v5322 = vadd.f32 %v5273, %v5321
    %5323 = vmatmul.bf16.gmra.mxu0 %v536
    %v5324 = vpop.f32.mrf.mxu0
    %v5325 = vadd.f32 %v5276, %v5324
    %v5326 = vpop.f32.mrf.mxu0
    %v5327 = vadd.f32 %v5278, %v5326
    %5328 = vmatmul.bf16.gmra.mxu0 %v543
    %v5329 = vpop.f32.mrf.mxu0
    %v5330 = vadd.f32 %v5281, %v5329
    %v5331 = vpop.f32.mrf.mxu0
    %v5332 = vadd.f32 %v5283, %v5331
    %5333 = vdwg.mxu0
    %5334 = vmatpush.bf16.msra.mxu0 %v2874
    %5335 = vmatpush.bf16.msra.mxu0 %v2866
    %5336 = vmatpush.bf16.msra.mxu0 %v2858
    %5337 = vmatpush.bf16.msra.mxu0 %v2850
    %5338 = vmatpush.bf16.msra.mxu0 %v2842
    %5339 = vmatpush.bf16.msra.mxu0 %v2834
    %5340 = vmatpush.bf16.msra.mxu0 %v2826
    %5341 = vmatpush.bf16.msra.mxu0 %v2818
    %5342 = vmatmul.bf16.gmra.mxu0 %v596
    %v5343 = vpop.f32.mrf.mxu0
    %v5344 = vadd.f32 %v5295, %v5343
    %v5345 = vpop.f32.mrf.mxu0
    %v5346 = vadd.f32 %v5297, %v5345
    %5347 = vmatmul.bf16.gmra.mxu0 %v599
    %v5348 = vpop.f32.mrf.mxu0
    %v5349 = vadd.f32 %v5300, %v5348
    %v5350 = vpop.f32.mrf.mxu0
    %v5351 = vadd.f32 %v5302, %v5350
    %5352 = vmatmul.bf16.gmra.mxu0 %v602
    %v5353 = vpop.f32.mrf.mxu0
    %v5354 = vadd.f32 %v5305, %v5353
    %v5355 = vpop.f32.mrf.mxu0
    %v5356 = vadd.f32 %v5307, %v5355
    %5357 = vmatmul.bf16.gmra.mxu0 %v605
    %v5358 = vpop.f32.mrf.mxu0
    %v5359 = vadd.f32 %v5310, %v5358
    %v5360 = vpop.f32.mrf.mxu0
    %v5361 = vadd.f32 %v5312, %v5360
    %5362 = vmatmul.bf16.gmra.mxu0 %v608
    %v5363 = vpop.f32.mrf.mxu0
    %v5364 = vadd.f32 %v5315, %v5363
    %v5365 = vpop.f32.mrf.mxu0
    %v5366 = vadd.f32 %v5317, %v5365
    %5367 = vmatmul.bf16.gmra.mxu0 %v611
    %v5368 = vpop.f32.mrf.mxu0
    %v5369 = vadd.f32 %v5320, %v5368
    %v5370 = vpop.f32.mrf.mxu0
    %v5371 = vadd.f32 %v5322, %v5370
    %5372 = vmatmul.bf16.gmra.mxu0 %v614
    %v5373 = vpop.f32.mrf.mxu0
    %v5374 = vadd.f32 %v5325, %v5373
    %v5375 = vpop.f32.mrf.mxu0
    %v5376 = vadd.f32 %v5327, %v5375
    %5377 = vmatmul.bf16.gmra.mxu0 %v617
    %v5378 = vpop.f32.mrf.mxu0
    %v5379 = vadd.f32 %v5330, %v5378
    %v5380 = vpop.f32.mrf.mxu0
    %v5381 = vadd.f32 %v5332, %v5380
    %5382 = vdwg.mxu0
    %5383 = vmatpush.bf16.msra.mxu0 %v2491
    %5384 = vmatpush.bf16.msra.mxu0 %v2483
    %5385 = vmatpush.bf16.msra.mxu0 %v2475
    %5386 = vmatpush.bf16.msra.mxu0 %v2467
    %5387 = vmatpush.bf16.msra.mxu0 %v2459
    %5388 = vmatpush.bf16.msra.mxu0 %v2451
    %5389 = vmatpush.bf16.msra.mxu0 %v2443
    %5390 = vmatpush.bf16.msra.mxu0 %v2435
    %5391 = vmatmul.bf16.gmra.mxu0 %v489
    %v5392 = vpop.f32.mrf.mxu0
    %v5393 = vadd.f32 %v1075, %v5392
    %v5394 = vpop.f32.mrf.mxu0
    %v5395 = vadd.f32 %v1075, %v5394
    %5396 = vmatmul.bf16.gmra.mxu0 %v496
    %v5397 = vpop.f32.mrf.mxu0
    %v5398 = vadd.f32 %v1075, %v5397
    %v5399 = vpop.f32.mrf.mxu0
    %v5400 = vadd.f32 %v1075, %v5399
    %5401 = vmatmul.bf16.gmra.mxu0 %v503
    %v5402 = vpop.f32.mrf.mxu0
    %v5403 = vadd.f32 %v1075, %v5402
    %v5404 = vpop.f32.mrf.mxu0
    %v5405 = vadd.f32 %v1075, %v5404
    %5406 = vmatmul.bf16.gmra.mxu0 %v510
    %v5407 = vpop.f32.mrf.mxu0
    %v5408 = vadd.f32 %v1075, %v5407
    %v5409 = vpop.f32.mrf.mxu0
    %v5410 = vadd.f32 %v1075, %v5409
    %5411 = vmatmul.bf16.gmra.mxu0 %v517
    %v5412 = vpop.f32.mrf.mxu0
    %v5413 = vadd.f32 %v1075, %v5412
    %v5414 = vpop.f32.mrf.mxu0
    %v5415 = vadd.f32 %v1075, %v5414
    %5416 = vmatmul.bf16.gmra.mxu0 %v524
    %v5417 = vpop.f32.mrf.mxu0
    %v5418 = vadd.f32 %v1075, %v5417
    %v5419 = vpop.f32.mrf.mxu0
    %v5420 = vadd.f32 %v1075, %v5419
    %5421 = vmatmul.bf16.gmra.mxu0 %v531
    %v5422 = vpop.f32.mrf.mxu0
    %v5423 = vadd.f32 %v1075, %v5422
    %v5424 = vpop.f32.mrf.mxu0
    %v5425 = vadd.f32 %v1075, %v5424
    %5426 = vmatmul.bf16.gmra.mxu0 %v538
    %v5427 = vpop.f32.mrf.mxu0
    %v5428 = vadd.f32 %v1075, %v5427
    %v5429 = vpop.f32.mrf.mxu0
    %v5430 = vadd.f32 %v1075, %v5429
    %5431 = vdwg.mxu0
    %5432 = vmatpush.bf16.msra.mxu0 %v2555
    %5433 = vmatpush.bf16.msra.mxu0 %v2547
    %5434 = vmatpush.bf16.msra.mxu0 %v2539
    %5435 = vmatpush.bf16.msra.mxu0 %v2531
    %5436 = vmatpush.bf16.msra.mxu0 %v2523
    %5437 = vmatpush.bf16.msra.mxu0 %v2515
    %5438 = vmatpush.bf16.msra.mxu0 %v2507
    %5439 = vmatpush.bf16.msra.mxu0 %v2499
    %5440 = vmatmul.bf16.gmra.mxu0 %v490
    %v5441 = vpop.f32.mrf.mxu0
    %v5442 = vadd.f32 %v5393, %v5441
    %v5443 = vpop.f32.mrf.mxu0
    %v5444 = vadd.f32 %v5395, %v5443
    %5445 = vmatmul.bf16.gmra.mxu0 %v497
    %v5446 = vpop.f32.mrf.mxu0
    %v5447 = vadd.f32 %v5398, %v5446
    %v5448 = vpop.f32.mrf.mxu0
    %v5449 = vadd.f32 %v5400, %v5448
    %5450 = vmatmul.bf16.gmra.mxu0 %v504
    %v5451 = vpop.f32.mrf.mxu0
    %v5452 = vadd.f32 %v5403, %v5451
    %v5453 = vpop.f32.mrf.mxu0
    %v5454 = vadd.f32 %v5405, %v5453
    %5455 = vmatmul.bf16.gmra.mxu0 %v511
    %v5456 = vpop.f32.mrf.mxu0
    %v5457 = vadd.f32 %v5408, %v5456
    %v5458 = vpop.f32.mrf.mxu0
    %v5459 = vadd.f32 %v5410, %v5458
    %5460 = vmatmul.bf16.gmra.mxu0 %v518
    %v5461 = vpop.f32.mrf.mxu0
    %v5462 = vadd.f32 %v5413, %v5461
    %v5463 = vpop.f32.mrf.mxu0
    %v5464 = vadd.f32 %v5415, %v5463
    %5465 = vmatmul.bf16.gmra.mxu0 %v525
    %v5466 = vpop.f32.mrf.mxu0
    %v5467 = vadd.f32 %v5418, %v5466
    %v5468 = vpop.f32.mrf.mxu0
    %v5469 = vadd.f32 %v5420, %v5468
    %5470 = vmatmul.bf16.gmra.mxu0 %v532
    %v5471 = vpop.f32.mrf.mxu0
    %v5472 = vadd.f32 %v5423, %v5471
    %v5473 = vpop.f32.mrf.mxu0
    %v5474 = vadd.f32 %v5425, %v5473
    %5475 = vmatmul.bf16.gmra.mxu0 %v539
    %v5476 = vpop.f32.mrf.mxu0
    %v5477 = vadd.f32 %v5428, %v5476
    %v5478 = vpop.f32.mrf.mxu0
    %v5479 = vadd.f32 %v5430, %v5478
    %5480 = vdwg.mxu0
    %5481 = vmatpush.bf16.msra.mxu0 %v2619
    %5482 = vmatpush.bf16.msra.mxu0 %v2611
    %5483 = vmatpush.bf16.msra.mxu0 %v2603
    %5484 = vmatpush.bf16.msra.mxu0 %v2595
    %5485 = vmatpush.bf16.msra.mxu0 %v2587
    %5486 = vmatpush.bf16.msra.mxu0 %v2579
    %5487 = vmatpush.bf16.msra.mxu0 %v2571
    %5488 = vmatpush.bf16.msra.mxu0 %v2563
    %5489 = vmatmul.bf16.gmra.mxu0 %v491
    %v5490 = vpop.f32.mrf.mxu0
    %v5491 = vadd.f32 %v5442, %v5490
    %v5492 = vpop.f32.mrf.mxu0
    %v5493 = vadd.f32 %v5444, %v5492
    %5494 = vmatmul.bf16.gmra.mxu0 %v498
    %v5495 = vpop.f32.mrf.mxu0
    %v5496 = vadd.f32 %v5447, %v5495
    %v5497 = vpop.f32.mrf.mxu0
    %v5498 = vadd.f32 %v5449, %v5497
    %5499 = vmatmul.bf16.gmra.mxu0 %v505
    %v5500 = vpop.f32.mrf.mxu0
    %v5501 = vadd.f32 %v5452, %v5500
    %v5502 = vpop.f32.mrf.mxu0
    %v5503 = vadd.f32 %v5454, %v5502
    %5504 = vmatmul.bf16.gmra.mxu0 %v512
    %v5505 = vpop.f32.mrf.mxu0
    %v5506 = vadd.f32 %v5457, %v5505
    %v5507 = vpop.f32.mrf.mxu0
    %v5508 = vadd.f32 %v5459, %v5507
    %5509 = vmatmul.bf16.gmra.mxu0 %v519
    %v5510 = vpop.f32.mrf.mxu0
    %v5511 = vadd.f32 %v5462, %v5510
    %v5512 = vpop.f32.mrf.mxu0
    %v5513 = vadd.f32 %v5464, %v5512
    %5514 = vmatmul.bf16.gmra.mxu0 %v526
    %v5515 = vpop.f32.mrf.mxu0
    %v5516 = vadd.f32 %v5467, %v5515
    %v5517 = vpop.f32.mrf.mxu0
    %v5518 = vadd.f32 %v5469, %v5517
    %5519 = vmatmul.bf16.gmra.mxu0 %v533
    %v5520 = vpop.f32.mrf.mxu0
    %v5521 = vadd.f32 %v5472, %v5520
    %v5522 = vpop.f32.mrf.mxu0
    %v5523 = vadd.f32 %v5474, %v5522
    %5524 = vmatmul.bf16.gmra.mxu0 %v540
    %v5525 = vpop.f32.mrf.mxu0
    %v5526 = vadd.f32 %v5477, %v5525
    %v5527 = vpop.f32.mrf.mxu0
    %v5528 = vadd.f32 %v5479, %v5527
    %5529 = vdwg.mxu0
    %5530 = vmatpush.bf16.msra.mxu0 %v2683
    %5531 = vmatpush.bf16.msra.mxu0 %v2675
    %5532 = vmatpush.bf16.msra.mxu0 %v2667
    %5533 = vmatpush.bf16.msra.mxu0 %v2659
    %5534 = vmatpush.bf16.msra.mxu0 %v2651
    %5535 = vmatpush.bf16.msra.mxu0 %v2643
    %5536 = vmatpush.bf16.msra.mxu0 %v2635
    %5537 = vmatpush.bf16.msra.mxu0 %v2627
    %5538 = vmatmul.bf16.gmra.mxu0 %v492
    %v5539 = vpop.f32.mrf.mxu0
    %v5540 = vadd.f32 %v5491, %v5539
    %v5541 = vpop.f32.mrf.mxu0
    %v5542 = vadd.f32 %v5493, %v5541
    %5543 = vmatmul.bf16.gmra.mxu0 %v499
    %v5544 = vpop.f32.mrf.mxu0
    %v5545 = vadd.f32 %v5496, %v5544
    %v5546 = vpop.f32.mrf.mxu0
    %v5547 = vadd.f32 %v5498, %v5546
    %5548 = vmatmul.bf16.gmra.mxu0 %v506
    %v5549 = vpop.f32.mrf.mxu0
    %v5550 = vadd.f32 %v5501, %v5549
    %v5551 = vpop.f32.mrf.mxu0
    %v5552 = vadd.f32 %v5503, %v5551
    %5553 = vmatmul.bf16.gmra.mxu0 %v513
    %v5554 = vpop.f32.mrf.mxu0
    %v5555 = vadd.f32 %v5506, %v5554
    %v5556 = vpop.f32.mrf.mxu0
    %v5557 = vadd.f32 %v5508, %v5556
    %5558 = vmatmul.bf16.gmra.mxu0 %v520
    %v5559 = vpop.f32.mrf.mxu0
    %v5560 = vadd.f32 %v5511, %v5559
    %v5561 = vpop.f32.mrf.mxu0
    %v5562 = vadd.f32 %v5513, %v5561
    %5563 = vmatmul.bf16.gmra.mxu0 %v527
    %v5564 = vpop.f32.mrf.mxu0
    %v5565 = vadd.f32 %v5516, %v5564
    %v5566 = vpop.f32.mrf.mxu0
    %v5567 = vadd.f32 %v5518, %v5566
    %5568 = vmatmul.bf16.gmra.mxu0 %v534
    %v5569 = vpop.f32.mrf.mxu0
    %v5570 = vadd.f32 %v5521, %v5569
    %v5571 = vpop.f32.mrf.mxu0
    %v5572 = vadd.f32 %v5523, %v5571
    %5573 = vmatmul.bf16.gmra.mxu0 %v541
    %v5574 = vpop.f32.mrf.mxu0
    %v5575 = vadd.f32 %v5526, %v5574
    %v5576 = vpop.f32.mrf.mxu0
    %v5577 = vadd.f32 %v5528, %v5576
    %5578 = vdwg.mxu0
    %5579 = vmatpush.bf16.msra.mxu0 %v2747
    %5580 = vmatpush.bf16.msra.mxu0 %v2739
    %5581 = vmatpush.bf16.msra.mxu0 %v2731
    %5582 = vmatpush.bf16.msra.mxu0 %v2723
    %5583 = vmatpush.bf16.msra.mxu0 %v2715
    %5584 = vmatpush.bf16.msra.mxu0 %v2707
    %5585 = vmatpush.bf16.msra.mxu0 %v2699
    %5586 = vmatpush.bf16.msra.mxu0 %v2691
    %5587 = vmatmul.bf16.gmra.mxu0 %v493
    %v5588 = vpop.f32.mrf.mxu0
    %v5589 = vadd.f32 %v5540, %v5588
    %v5590 = vpop.f32.mrf.mxu0
    %v5591 = vadd.f32 %v5542, %v5590
    %5592 = vmatmul.bf16.gmra.mxu0 %v500
    %v5593 = vpop.f32.mrf.mxu0
    %v5594 = vadd.f32 %v5545, %v5593
    %v5595 = vpop.f32.mrf.mxu0
    %v5596 = vadd.f32 %v5547, %v5595
    %5597 = vmatmul.bf16.gmra.mxu0 %v507
    %v5598 = vpop.f32.mrf.mxu0
    %v5599 = vadd.f32 %v5550, %v5598
    %v5600 = vpop.f32.mrf.mxu0
    %v5601 = vadd.f32 %v5552, %v5600
    %5602 = vmatmul.bf16.gmra.mxu0 %v514
    %v5603 = vpop.f32.mrf.mxu0
    %v5604 = vadd.f32 %v5555, %v5603
    %v5605 = vpop.f32.mrf.mxu0
    %v5606 = vadd.f32 %v5557, %v5605
    %5607 = vmatmul.bf16.gmra.mxu0 %v521
    %v5608 = vpop.f32.mrf.mxu0
    %v5609 = vadd.f32 %v5560, %v5608
    %v5610 = vpop.f32.mrf.mxu0
    %v5611 = vadd.f32 %v5562, %v5610
    %5612 = vmatmul.bf16.gmra.mxu0 %v528
    %v5613 = vpop.f32.mrf.mxu0
    %v5614 = vadd.f32 %v5565, %v5613
    %v5615 = vpop.f32.mrf.mxu0
    %v5616 = vadd.f32 %v5567, %v5615
    %5617 = vmatmul.bf16.gmra.mxu0 %v535
    %v5618 = vpop.f32.mrf.mxu0
    %v5619 = vadd.f32 %v5570, %v5618
    %v5620 = vpop.f32.mrf.mxu0
    %v5621 = vadd.f32 %v5572, %v5620
    %5622 = vmatmul.bf16.gmra.mxu0 %v542
    %v5623 = vpop.f32.mrf.mxu0
    %v5624 = vadd.f32 %v5575, %v5623
    %v5625 = vpop.f32.mrf.mxu0
    %v5626 = vadd.f32 %v5577, %v5625
    %5627 = vdwg.mxu0
    %5628 = vmatpush.bf16.msra.mxu0 %v2811
    %5629 = vmatpush.bf16.msra.mxu0 %v2803
    %5630 = vmatpush.bf16.msra.mxu0 %v2795
    %5631 = vmatpush.bf16.msra.mxu0 %v2787
    %5632 = vmatpush.bf16.msra.mxu0 %v2779
    %5633 = vmatpush.bf16.msra.mxu0 %v2771
    %5634 = vmatpush.bf16.msra.mxu0 %v2763
    %5635 = vmatpush.bf16.msra.mxu0 %v2755
    %5636 = vmatmul.bf16.gmra.mxu0 %v494
    %v5637 = vpop.f32.mrf.mxu0
    %v5638 = vadd.f32 %v5589, %v5637
    %v5639 = vpop.f32.mrf.mxu0
    %v5640 = vadd.f32 %v5591, %v5639
    %5641 = vmatmul.bf16.gmra.mxu0 %v501
    %v5642 = vpop.f32.mrf.mxu0
    %v5643 = vadd.f32 %v5594, %v5642
    %v5644 = vpop.f32.mrf.mxu0
    %v5645 = vadd.f32 %v5596, %v5644
    %5646 = vmatmul.bf16.gmra.mxu0 %v508
    %v5647 = vpop.f32.mrf.mxu0
    %v5648 = vadd.f32 %v5599, %v5647
    %v5649 = vpop.f32.mrf.mxu0
    %v5650 = vadd.f32 %v5601, %v5649
    %5651 = vmatmul.bf16.gmra.mxu0 %v515
    %v5652 = vpop.f32.mrf.mxu0
    %v5653 = vadd.f32 %v5604, %v5652
    %v5654 = vpop.f32.mrf.mxu0
    %v5655 = vadd.f32 %v5606, %v5654
    %5656 = vmatmul.bf16.gmra.mxu0 %v522
    %v5657 = vpop.f32.mrf.mxu0
    %v5658 = vadd.f32 %v5609, %v5657
    %v5659 = vpop.f32.mrf.mxu0
    %v5660 = vadd.f32 %v5611, %v5659
    %5661 = vmatmul.bf16.gmra.mxu0 %v529
    %v5662 = vpop.f32.mrf.mxu0
    %v5663 = vadd.f32 %v5614, %v5662
    %v5664 = vpop.f32.mrf.mxu0
    %v5665 = vadd.f32 %v5616, %v5664
    %5666 = vmatmul.bf16.gmra.mxu0 %v536
    %v5667 = vpop.f32.mrf.mxu0
    %v5668 = vadd.f32 %v5619, %v5667
    %v5669 = vpop.f32.mrf.mxu0
    %v5670 = vadd.f32 %v5621, %v5669
    %5671 = vmatmul.bf16.gmra.mxu0 %v543
    %v5672 = vpop.f32.mrf.mxu0
    %v5673 = vadd.f32 %v5624, %v5672
    %v5674 = vpop.f32.mrf.mxu0
    %v5675 = vadd.f32 %v5626, %v5674
    %5676 = vdwg.mxu0
    %5677 = vmatpush.bf16.msra.mxu0 %v2875
    %5678 = vmatpush.bf16.msra.mxu0 %v2867
    %5679 = vmatpush.bf16.msra.mxu0 %v2859
    %5680 = vmatpush.bf16.msra.mxu0 %v2851
    %5681 = vmatpush.bf16.msra.mxu0 %v2843
    %5682 = vmatpush.bf16.msra.mxu0 %v2835
    %5683 = vmatpush.bf16.msra.mxu0 %v2827
    %5684 = vmatpush.bf16.msra.mxu0 %v2819
    %5685 = vmatmul.bf16.gmra.mxu0 %v596
    %v5686 = vpop.f32.mrf.mxu0
    %v5687 = vadd.f32 %v5638, %v5686
    %v5688 = vpop.f32.mrf.mxu0
    %v5689 = vadd.f32 %v5640, %v5688
    %5690 = vmatmul.bf16.gmra.mxu0 %v599
    %v5691 = vpop.f32.mrf.mxu0
    %v5692 = vadd.f32 %v5643, %v5691
    %v5693 = vpop.f32.mrf.mxu0
    %v5694 = vadd.f32 %v5645, %v5693
    %5695 = vmatmul.bf16.gmra.mxu0 %v602
    %v5696 = vpop.f32.mrf.mxu0
    %v5697 = vadd.f32 %v5648, %v5696
    %v5698 = vpop.f32.mrf.mxu0
    %v5699 = vadd.f32 %v5650, %v5698
    %5700 = vmatmul.bf16.gmra.mxu0 %v605
    %v5701 = vpop.f32.mrf.mxu0
    %v5702 = vadd.f32 %v5653, %v5701
    %v5703 = vpop.f32.mrf.mxu0
    %v5704 = vadd.f32 %v5655, %v5703
    %5705 = vmatmul.bf16.gmra.mxu0 %v608
    %v5706 = vpop.f32.mrf.mxu0
    %v5707 = vadd.f32 %v5658, %v5706
    %v5708 = vpop.f32.mrf.mxu0
    %v5709 = vadd.f32 %v5660, %v5708
    %5710 = vmatmul.bf16.gmra.mxu0 %v611
    %v5711 = vpop.f32.mrf.mxu0
    %v5712 = vadd.f32 %v5663, %v5711
    %v5713 = vpop.f32.mrf.mxu0
    %v5714 = vadd.f32 %v5665, %v5713
    %5715 = vmatmul.bf16.gmra.mxu0 %v614
    %v5716 = vpop.f32.mrf.mxu0
    %v5717 = vadd.f32 %v5668, %v5716
    %v5718 = vpop.f32.mrf.mxu0
    %v5719 = vadd.f32 %v5670, %v5718
    %5720 = vmatmul.bf16.gmra.mxu0 %v617
    %v5721 = vpop.f32.mrf.mxu0
    %v5722 = vadd.f32 %v5673, %v5721
    %v5723 = vpop.f32.mrf.mxu0
    %v5724 = vadd.f32 %v5675, %v5723
    %5725 = vdwg.mxu0
    %5726 = vmatpush.bf16.msra.mxu0 %v2492
    %5727 = vmatpush.bf16.msra.mxu0 %v2484
    %5728 = vmatpush.bf16.msra.mxu0 %v2476
    %5729 = vmatpush.bf16.msra.mxu0 %v2468
    %5730 = vmatpush.bf16.msra.mxu0 %v2460
    %5731 = vmatpush.bf16.msra.mxu0 %v2452
    %5732 = vmatpush.bf16.msra.mxu0 %v2444
    %5733 = vmatpush.bf16.msra.mxu0 %v2436
    %5734 = vmatmul.bf16.gmra.mxu0 %v489
    %v5735 = vpop.f32.mrf.mxu0
    %v5736 = vadd.f32 %v1076, %v5735
    %v5737 = vpop.f32.mrf.mxu0
    %v5738 = vadd.f32 %v1076, %v5737
    %5739 = vmatmul.bf16.gmra.mxu0 %v496
    %v5740 = vpop.f32.mrf.mxu0
    %v5741 = vadd.f32 %v1076, %v5740
    %v5742 = vpop.f32.mrf.mxu0
    %v5743 = vadd.f32 %v1076, %v5742
    %5744 = vmatmul.bf16.gmra.mxu0 %v503
    %v5745 = vpop.f32.mrf.mxu0
    %v5746 = vadd.f32 %v1076, %v5745
    %v5747 = vpop.f32.mrf.mxu0
    %v5748 = vadd.f32 %v1076, %v5747
    %5749 = vmatmul.bf16.gmra.mxu0 %v510
    %v5750 = vpop.f32.mrf.mxu0
    %v5751 = vadd.f32 %v1076, %v5750
    %v5752 = vpop.f32.mrf.mxu0
    %v5753 = vadd.f32 %v1076, %v5752
    %5754 = vmatmul.bf16.gmra.mxu0 %v517
    %v5755 = vpop.f32.mrf.mxu0
    %v5756 = vadd.f32 %v1076, %v5755
    %v5757 = vpop.f32.mrf.mxu0
    %v5758 = vadd.f32 %v1076, %v5757
    %5759 = vmatmul.bf16.gmra.mxu0 %v524
    %v5760 = vpop.f32.mrf.mxu0
    %v5761 = vadd.f32 %v1076, %v5760
    %v5762 = vpop.f32.mrf.mxu0
    %v5763 = vadd.f32 %v1076, %v5762
    %5764 = vmatmul.bf16.gmra.mxu0 %v531
    %v5765 = vpop.f32.mrf.mxu0
    %v5766 = vadd.f32 %v1076, %v5765
    %v5767 = vpop.f32.mrf.mxu0
    %v5768 = vadd.f32 %v1076, %v5767
    %5769 = vmatmul.bf16.gmra.mxu0 %v538
    %v5770 = vpop.f32.mrf.mxu0
    %v5771 = vadd.f32 %v1076, %v5770
    %v5772 = vpop.f32.mrf.mxu0
    %v5773 = vadd.f32 %v1076, %v5772
    %5774 = vdwg.mxu0
    %5775 = vmatpush.bf16.msra.mxu0 %v2556
    %5776 = vmatpush.bf16.msra.mxu0 %v2548
    %5777 = vmatpush.bf16.msra.mxu0 %v2540
    %5778 = vmatpush.bf16.msra.mxu0 %v2532
    %5779 = vmatpush.bf16.msra.mxu0 %v2524
    %5780 = vmatpush.bf16.msra.mxu0 %v2516
    %5781 = vmatpush.bf16.msra.mxu0 %v2508
    %5782 = vmatpush.bf16.msra.mxu0 %v2500
    %5783 = vmatmul.bf16.gmra.mxu0 %v490
    %v5784 = vpop.f32.mrf.mxu0
    %v5785 = vadd.f32 %v5736, %v5784
    %v5786 = vpop.f32.mrf.mxu0
    %v5787 = vadd.f32 %v5738, %v5786
    %5788 = vmatmul.bf16.gmra.mxu0 %v497
    %v5789 = vpop.f32.mrf.mxu0
    %v5790 = vadd.f32 %v5741, %v5789
    %v5791 = vpop.f32.mrf.mxu0
    %v5792 = vadd.f32 %v5743, %v5791
    %5793 = vmatmul.bf16.gmra.mxu0 %v504
    %v5794 = vpop.f32.mrf.mxu0
    %v5795 = vadd.f32 %v5746, %v5794
    %v5796 = vpop.f32.mrf.mxu0
    %v5797 = vadd.f32 %v5748, %v5796
    %5798 = vmatmul.bf16.gmra.mxu0 %v511
    %v5799 = vpop.f32.mrf.mxu0
    %v5800 = vadd.f32 %v5751, %v5799
    %v5801 = vpop.f32.mrf.mxu0
    %v5802 = vadd.f32 %v5753, %v5801
    %5803 = vmatmul.bf16.gmra.mxu0 %v518
    %v5804 = vpop.f32.mrf.mxu0
    %v5805 = vadd.f32 %v5756, %v5804
    %v5806 = vpop.f32.mrf.mxu0
    %v5807 = vadd.f32 %v5758, %v5806
    %5808 = vmatmul.bf16.gmra.mxu0 %v525
    %v5809 = vpop.f32.mrf.mxu0
    %v5810 = vadd.f32 %v5761, %v5809
    %v5811 = vpop.f32.mrf.mxu0
    %v5812 = vadd.f32 %v5763, %v5811
    %5813 = vmatmul.bf16.gmra.mxu0 %v532
    %v5814 = vpop.f32.mrf.mxu0
    %v5815 = vadd.f32 %v5766, %v5814
    %v5816 = vpop.f32.mrf.mxu0
    %v5817 = vadd.f32 %v5768, %v5816
    %5818 = vmatmul.bf16.gmra.mxu0 %v539
    %v5819 = vpop.f32.mrf.mxu0
    %v5820 = vadd.f32 %v5771, %v5819
    %v5821 = vpop.f32.mrf.mxu0
    %v5822 = vadd.f32 %v5773, %v5821
    %5823 = vdwg.mxu0
    %5824 = vmatpush.bf16.msra.mxu0 %v2620
    %5825 = vmatpush.bf16.msra.mxu0 %v2612
    %5826 = vmatpush.bf16.msra.mxu0 %v2604
    %5827 = vmatpush.bf16.msra.mxu0 %v2596
    %5828 = vmatpush.bf16.msra.mxu0 %v2588
    %5829 = vmatpush.bf16.msra.mxu0 %v2580
    %5830 = vmatpush.bf16.msra.mxu0 %v2572
    %5831 = vmatpush.bf16.msra.mxu0 %v2564
    %5832 = vmatmul.bf16.gmra.mxu0 %v491
    %v5833 = vpop.f32.mrf.mxu0
    %v5834 = vadd.f32 %v5785, %v5833
    %v5835 = vpop.f32.mrf.mxu0
    %v5836 = vadd.f32 %v5787, %v5835
    %5837 = vmatmul.bf16.gmra.mxu0 %v498
    %v5838 = vpop.f32.mrf.mxu0
    %v5839 = vadd.f32 %v5790, %v5838
    %v5840 = vpop.f32.mrf.mxu0
    %v5841 = vadd.f32 %v5792, %v5840
    %5842 = vmatmul.bf16.gmra.mxu0 %v505
    %v5843 = vpop.f32.mrf.mxu0
    %v5844 = vadd.f32 %v5795, %v5843
    %v5845 = vpop.f32.mrf.mxu0
    %v5846 = vadd.f32 %v5797, %v5845
    %5847 = vmatmul.bf16.gmra.mxu0 %v512
    %v5848 = vpop.f32.mrf.mxu0
    %v5849 = vadd.f32 %v5800, %v5848
    %v5850 = vpop.f32.mrf.mxu0
    %v5851 = vadd.f32 %v5802, %v5850
    %5852 = vmatmul.bf16.gmra.mxu0 %v519
    %v5853 = vpop.f32.mrf.mxu0
    %v5854 = vadd.f32 %v5805, %v5853
    %v5855 = vpop.f32.mrf.mxu0
    %v5856 = vadd.f32 %v5807, %v5855
    %5857 = vmatmul.bf16.gmra.mxu0 %v526
    %v5858 = vpop.f32.mrf.mxu0
    %v5859 = vadd.f32 %v5810, %v5858
    %v5860 = vpop.f32.mrf.mxu0
    %v5861 = vadd.f32 %v5812, %v5860
    %5862 = vmatmul.bf16.gmra.mxu0 %v533
    %v5863 = vpop.f32.mrf.mxu0
    %v5864 = vadd.f32 %v5815, %v5863
    %v5865 = vpop.f32.mrf.mxu0
    %v5866 = vadd.f32 %v5817, %v5865
    %5867 = vmatmul.bf16.gmra.mxu0 %v540
    %v5868 = vpop.f32.mrf.mxu0
    %v5869 = vadd.f32 %v5820, %v5868
    %v5870 = vpop.f32.mrf.mxu0
    %v5871 = vadd.f32 %v5822, %v5870
    %5872 = vdwg.mxu0
    %5873 = vmatpush.bf16.msra.mxu0 %v2684
    %5874 = vmatpush.bf16.msra.mxu0 %v2676
    %5875 = vmatpush.bf16.msra.mxu0 %v2668
    %5876 = vmatpush.bf16.msra.mxu0 %v2660
    %5877 = vmatpush.bf16.msra.mxu0 %v2652
    %5878 = vmatpush.bf16.msra.mxu0 %v2644
    %5879 = vmatpush.bf16.msra.mxu0 %v2636
    %5880 = vmatpush.bf16.msra.mxu0 %v2628
    %5881 = vmatmul.bf16.gmra.mxu0 %v492
    %v5882 = vpop.f32.mrf.mxu0
    %v5883 = vadd.f32 %v5834, %v5882
    %v5884 = vpop.f32.mrf.mxu0
    %v5885 = vadd.f32 %v5836, %v5884
    %5886 = vmatmul.bf16.gmra.mxu0 %v499
    %v5887 = vpop.f32.mrf.mxu0
    %v5888 = vadd.f32 %v5839, %v5887
    %v5889 = vpop.f32.mrf.mxu0
    %v5890 = vadd.f32 %v5841, %v5889
    %5891 = vmatmul.bf16.gmra.mxu0 %v506
    %v5892 = vpop.f32.mrf.mxu0
    %v5893 = vadd.f32 %v5844, %v5892
    %v5894 = vpop.f32.mrf.mxu0
    %v5895 = vadd.f32 %v5846, %v5894
    %5896 = vmatmul.bf16.gmra.mxu0 %v513
    %v5897 = vpop.f32.mrf.mxu0
    %v5898 = vadd.f32 %v5849, %v5897
    %v5899 = vpop.f32.mrf.mxu0
    %v5900 = vadd.f32 %v5851, %v5899
    %5901 = vmatmul.bf16.gmra.mxu0 %v520
    %v5902 = vpop.f32.mrf.mxu0
    %v5903 = vadd.f32 %v5854, %v5902
    %v5904 = vpop.f32.mrf.mxu0
    %v5905 = vadd.f32 %v5856, %v5904
    %5906 = vmatmul.bf16.gmra.mxu0 %v527
    %v5907 = vpop.f32.mrf.mxu0
    %v5908 = vadd.f32 %v5859, %v5907
    %v5909 = vpop.f32.mrf.mxu0
    %v5910 = vadd.f32 %v5861, %v5909
    %5911 = vmatmul.bf16.gmra.mxu0 %v534
    %v5912 = vpop.f32.mrf.mxu0
    %v5913 = vadd.f32 %v5864, %v5912
    %v5914 = vpop.f32.mrf.mxu0
    %v5915 = vadd.f32 %v5866, %v5914
    %5916 = vmatmul.bf16.gmra.mxu0 %v541
    %v5917 = vpop.f32.mrf.mxu0
    %v5918 = vadd.f32 %v5869, %v5917
    %v5919 = vpop.f32.mrf.mxu0
    %v5920 = vadd.f32 %v5871, %v5919
    %5921 = vdwg.mxu0
    %5922 = vmatpush.bf16.msra.mxu0 %v2748
    %5923 = vmatpush.bf16.msra.mxu0 %v2740
    %5924 = vmatpush.bf16.msra.mxu0 %v2732
    %5925 = vmatpush.bf16.msra.mxu0 %v2724
    %5926 = vmatpush.bf16.msra.mxu0 %v2716
    %5927 = vmatpush.bf16.msra.mxu0 %v2708
    %5928 = vmatpush.bf16.msra.mxu0 %v2700
    %5929 = vmatpush.bf16.msra.mxu0 %v2692
    %5930 = vmatmul.bf16.gmra.mxu0 %v493
    %v5931 = vpop.f32.mrf.mxu0
    %v5932 = vadd.f32 %v5883, %v5931
    %v5933 = vpop.f32.mrf.mxu0
    %v5934 = vadd.f32 %v5885, %v5933
    %5935 = vmatmul.bf16.gmra.mxu0 %v500
    %v5936 = vpop.f32.mrf.mxu0
    %v5937 = vadd.f32 %v5888, %v5936
    %v5938 = vpop.f32.mrf.mxu0
    %v5939 = vadd.f32 %v5890, %v5938
    %5940 = vmatmul.bf16.gmra.mxu0 %v507
    %v5941 = vpop.f32.mrf.mxu0
    %v5942 = vadd.f32 %v5893, %v5941
    %v5943 = vpop.f32.mrf.mxu0
    %v5944 = vadd.f32 %v5895, %v5943
    %5945 = vmatmul.bf16.gmra.mxu0 %v514
    %v5946 = vpop.f32.mrf.mxu0
    %v5947 = vadd.f32 %v5898, %v5946
    %v5948 = vpop.f32.mrf.mxu0
    %v5949 = vadd.f32 %v5900, %v5948
    %5950 = vmatmul.bf16.gmra.mxu0 %v521
    %v5951 = vpop.f32.mrf.mxu0
    %v5952 = vadd.f32 %v5903, %v5951
    %v5953 = vpop.f32.mrf.mxu0
    %v5954 = vadd.f32 %v5905, %v5953
    %5955 = vmatmul.bf16.gmra.mxu0 %v528
    %v5956 = vpop.f32.mrf.mxu0
    %v5957 = vadd.f32 %v5908, %v5956
    %v5958 = vpop.f32.mrf.mxu0
    %v5959 = vadd.f32 %v5910, %v5958
    %5960 = vmatmul.bf16.gmra.mxu0 %v535
    %v5961 = vpop.f32.mrf.mxu0
    %v5962 = vadd.f32 %v5913, %v5961
    %v5963 = vpop.f32.mrf.mxu0
    %v5964 = vadd.f32 %v5915, %v5963
    %5965 = vmatmul.bf16.gmra.mxu0 %v542
    %v5966 = vpop.f32.mrf.mxu0
    %v5967 = vadd.f32 %v5918, %v5966
    %v5968 = vpop.f32.mrf.mxu0
    %v5969 = vadd.f32 %v5920, %v5968
    %5970 = vdwg.mxu0
    %5971 = vmatpush.bf16.msra.mxu0 %v2812
    %5972 = vmatpush.bf16.msra.mxu0 %v2804
    %5973 = vmatpush.bf16.msra.mxu0 %v2796
    %5974 = vmatpush.bf16.msra.mxu0 %v2788
    %5975 = vmatpush.bf16.msra.mxu0 %v2780
    %5976 = vmatpush.bf16.msra.mxu0 %v2772
    %5977 = vmatpush.bf16.msra.mxu0 %v2764
    %5978 = vmatpush.bf16.msra.mxu0 %v2756
    %5979 = vmatmul.bf16.gmra.mxu0 %v494
    %v5980 = vpop.f32.mrf.mxu0
    %v5981 = vadd.f32 %v5932, %v5980
    %v5982 = vpop.f32.mrf.mxu0
    %v5983 = vadd.f32 %v5934, %v5982
    %5984 = vmatmul.bf16.gmra.mxu0 %v501
    %v5985 = vpop.f32.mrf.mxu0
    %v5986 = vadd.f32 %v5937, %v5985
    %v5987 = vpop.f32.mrf.mxu0
    %v5988 = vadd.f32 %v5939, %v5987
    %5989 = vmatmul.bf16.gmra.mxu0 %v508
    %v5990 = vpop.f32.mrf.mxu0
    %v5991 = vadd.f32 %v5942, %v5990
    %v5992 = vpop.f32.mrf.mxu0
    %v5993 = vadd.f32 %v5944, %v5992
    %5994 = vmatmul.bf16.gmra.mxu0 %v515
    %v5995 = vpop.f32.mrf.mxu0
    %v5996 = vadd.f32 %v5947, %v5995
    %v5997 = vpop.f32.mrf.mxu0
    %v5998 = vadd.f32 %v5949, %v5997
    %5999 = vmatmul.bf16.gmra.mxu0 %v522
    %v6000 = vpop.f32.mrf.mxu0
    %v6001 = vadd.f32 %v5952, %v6000
    %v6002 = vpop.f32.mrf.mxu0
    %v6003 = vadd.f32 %v5954, %v6002
    %6004 = vmatmul.bf16.gmra.mxu0 %v529
    %v6005 = vpop.f32.mrf.mxu0
    %v6006 = vadd.f32 %v5957, %v6005
    %v6007 = vpop.f32.mrf.mxu0
    %v6008 = vadd.f32 %v5959, %v6007
    %6009 = vmatmul.bf16.gmra.mxu0 %v536
    %v6010 = vpop.f32.mrf.mxu0
    %v6011 = vadd.f32 %v5962, %v6010
    %v6012 = vpop.f32.mrf.mxu0
    %v6013 = vadd.f32 %v5964, %v6012
    %6014 = vmatmul.bf16.gmra.mxu0 %v543
    %v6015 = vpop.f32.mrf.mxu0
    %v6016 = vadd.f32 %v5967, %v6015
    %v6017 = vpop.f32.mrf.mxu0
    %v6018 = vadd.f32 %v5969, %v6017
    %6019 = vdwg.mxu0
    %6020 = vmatpush.bf16.msra.mxu0 %v2876
    %6021 = vmatpush.bf16.msra.mxu0 %v2868
    %6022 = vmatpush.bf16.msra.mxu0 %v2860
    %6023 = vmatpush.bf16.msra.mxu0 %v2852
    %6024 = vmatpush.bf16.msra.mxu0 %v2844
    %6025 = vmatpush.bf16.msra.mxu0 %v2836
    %6026 = vmatpush.bf16.msra.mxu0 %v2828
    %6027 = vmatpush.bf16.msra.mxu0 %v2820
    %6028 = vmatmul.bf16.gmra.mxu0 %v596
    %v6029 = vpop.f32.mrf.mxu0
    %v6030 = vadd.f32 %v5981, %v6029
    %v6031 = vpop.f32.mrf.mxu0
    %v6032 = vadd.f32 %v5983, %v6031
    %6033 = vmatmul.bf16.gmra.mxu0 %v599
    %v6034 = vpop.f32.mrf.mxu0
    %v6035 = vadd.f32 %v5986, %v6034
    %v6036 = vpop.f32.mrf.mxu0
    %v6037 = vadd.f32 %v5988, %v6036
    %6038 = vmatmul.bf16.gmra.mxu0 %v602
    %v6039 = vpop.f32.mrf.mxu0
    %v6040 = vadd.f32 %v5991, %v6039
    %v6041 = vpop.f32.mrf.mxu0
    %v6042 = vadd.f32 %v5993, %v6041
    %6043 = vmatmul.bf16.gmra.mxu0 %v605
    %v6044 = vpop.f32.mrf.mxu0
    %v6045 = vadd.f32 %v5996, %v6044
    %v6046 = vpop.f32.mrf.mxu0
    %v6047 = vadd.f32 %v5998, %v6046
    %6048 = vmatmul.bf16.gmra.mxu0 %v608
    %v6049 = vpop.f32.mrf.mxu0
    %v6050 = vadd.f32 %v6001, %v6049
    %v6051 = vpop.f32.mrf.mxu0
    %v6052 = vadd.f32 %v6003, %v6051
    %6053 = vmatmul.bf16.gmra.mxu0 %v611
    %v6054 = vpop.f32.mrf.mxu0
    %v6055 = vadd.f32 %v6006, %v6054
    %v6056 = vpop.f32.mrf.mxu0
    %v6057 = vadd.f32 %v6008, %v6056
    %6058 = vmatmul.bf16.gmra.mxu0 %v614
    %v6059 = vpop.f32.mrf.mxu0
    %v6060 = vadd.f32 %v6011, %v6059
    %v6061 = vpop.f32.mrf.mxu0
    %v6062 = vadd.f32 %v6013, %v6061
    %6063 = vmatmul.bf16.gmra.mxu0 %v617
    %v6064 = vpop.f32.mrf.mxu0
    %v6065 = vadd.f32 %v6016, %v6064
    %v6066 = vpop.f32.mrf.mxu0
    %v6067 = vadd.f32 %v6018, %v6066
    %6068 = vdwg.mxu0
    %v6069 = vmul.f32 %v3629, 0.2
    %v6070 = vmul.f32 %v3972, 0.2
    %v6071 = vmul.f32 %v4315, 0.2
    %v6072 = vmul.f32 %v4658, 0.2
    %v6073 = vmul.f32 %v5001, 0.2
    %v6074 = vmul.f32 %v5344, 0.2
    %v6075 = vmul.f32 %v5687, 0.2
    %v6076 = vmul.f32 %v6030, 0.2
    %v6077 = vmul.f32 %v3631, 0.2
    %v6078 = vmul.f32 %v3974, 0.2
    %v6079 = vmul.f32 %v4317, 0.2
    %v6080 = vmul.f32 %v4660, 0.2
    %v6081 = vmul.f32 %v5003, 0.2
    %v6082 = vmul.f32 %v5346, 0.2
    %v6083 = vmul.f32 %v5689, 0.2
    %v6084 = vmul.f32 %v6032, 0.2
    %v6085 = vmul.f32 %v3634, 0.2
    %v6086 = vmul.f32 %v3977, 0.2
    %v6087 = vmul.f32 %v4320, 0.2
    %v6088 = vmul.f32 %v4663, 0.2
    %v6089 = vmul.f32 %v5006, 0.2
    %v6090 = vmul.f32 %v5349, 0.2
    %v6091 = vmul.f32 %v5692, 0.2
    %v6092 = vmul.f32 %v6035, 0.2
    %v6093 = vmul.f32 %v3636, 0.2
    %v6094 = vmul.f32 %v3979, 0.2
    %v6095 = vmul.f32 %v4322, 0.2
    %v6096 = vmul.f32 %v4665, 0.2
    %v6097 = vmul.f32 %v5008, 0.2
    %v6098 = vmul.f32 %v5351, 0.2
    %v6099 = vmul.f32 %v5694, 0.2
    %v6100 = vmul.f32 %v6037, 0.2
    %v6101 = vmul.f32 %v3639, 0.2
    %v6102 = vmul.f32 %v3982, 0.2
    %v6103 = vmul.f32 %v4325, 0.2
    %v6104 = vmul.f32 %v4668, 0.2
    %v6105 = vmul.f32 %v5011, 0.2
    %v6106 = vmul.f32 %v5354, 0.2
    %v6107 = vmul.f32 %v5697, 0.2
    %v6108 = vmul.f32 %v6040, 0.2
    %v6109 = vmul.f32 %v3641, 0.2
    %v6110 = vmul.f32 %v3984, 0.2
    %v6111 = vmul.f32 %v4327, 0.2
    %v6112 = vmul.f32 %v4670, 0.2
    %v6113 = vmul.f32 %v5013, 0.2
    %v6114 = vmul.f32 %v5356, 0.2
    %v6115 = vmul.f32 %v5699, 0.2
    %v6116 = vmul.f32 %v6042, 0.2
    %v6117 = vmul.f32 %v3644, 0.2
    %v6118 = vmul.f32 %v3987, 0.2
    %v6119 = vmul.f32 %v4330, 0.2
    %v6120 = vmul.f32 %v4673, 0.2
    %v6121 = vmul.f32 %v5016, 0.2
    %v6122 = vmul.f32 %v5359, 0.2
    %v6123 = vmul.f32 %v5702, 0.2
    %v6124 = vmul.f32 %v6045, 0.2
    %v6125 = vmul.f32 %v3646, 0.2
    %v6126 = vmul.f32 %v3989, 0.2
    %v6127 = vmul.f32 %v4332, 0.2
    %v6128 = vmul.f32 %v4675, 0.2
    %v6129 = vmul.f32 %v5018, 0.2
    %v6130 = vmul.f32 %v5361, 0.2
    %v6131 = vmul.f32 %v5704, 0.2
    %v6132 = vmul.f32 %v6047, 0.2
    %v6133 = vmul.f32 %v3649, 0.2
    %v6134 = vmul.f32 %v3992, 0.2
    %v6135 = vmul.f32 %v4335, 0.2
    %v6136 = vmul.f32 %v4678, 0.2
    %v6137 = vmul.f32 %v5021, 0.2
    %v6138 = vmul.f32 %v5364, 0.2
    %v6139 = vmul.f32 %v5707, 0.2
    %v6140 = vmul.f32 %v6050, 0.2
    %v6141 = vmul.f32 %v3651, 0.2
    %v6142 = vmul.f32 %v3994, 0.2
    %v6143 = vmul.f32 %v4337, 0.2
    %v6144 = vmul.f32 %v4680, 0.2
    %v6145 = vmul.f32 %v5023, 0.2
    %v6146 = vmul.f32 %v5366, 0.2
    %v6147 = vmul.f32 %v5709, 0.2
    %v6148 = vmul.f32 %v6052, 0.2
    %v6149 = vmul.f32 %v3654, 0.2
    %v6150 = vmul.f32 %v3997, 0.2
    %v6151 = vmul.f32 %v4340, 0.2
    %v6152 = vmul.f32 %v4683, 0.2
    %v6153 = vmul.f32 %v5026, 0.2
    %v6154 = vmul.f32 %v5369, 0.2
    %v6155 = vmul.f32 %v5712, 0.2
    %v6156 = vmul.f32 %v6055, 0.2
    %v6157 = vmul.f32 %v3656, 0.2
    %v6158 = vmul.f32 %v3999, 0.2
    %v6159 = vmul.f32 %v4342, 0.2
    %v6160 = vmul.f32 %v4685, 0.2
    %v6161 = vmul.f32 %v5028, 0.2
    %v6162 = vmul.f32 %v5371, 0.2
    %v6163 = vmul.f32 %v5714, 0.2
    %v6164 = vmul.f32 %v6057, 0.2
    %v6165 = vmul.f32 %v3659, 0.2
    %v6166 = vmul.f32 %v4002, 0.2
    %v6167 = vmul.f32 %v4345, 0.2
    %v6168 = vmul.f32 %v4688, 0.2
    %v6169 = vmul.f32 %v5031, 0.2
    %v6170 = vmul.f32 %v5374, 0.2
    %v6171 = vmul.f32 %v5717, 0.2
    %v6172 = vmul.f32 %v6060, 0.2
    %v6173 = vmul.f32 %v3661, 0.2
    %v6174 = vmul.f32 %v4004, 0.2
    %v6175 = vmul.f32 %v4347, 0.2
    %v6176 = vmul.f32 %v4690, 0.2
    %v6177 = vmul.f32 %v5033, 0.2
    %v6178 = vmul.f32 %v5376, 0.2
    %v6179 = vmul.f32 %v5719, 0.2
    %v6180 = vmul.f32 %v6062, 0.2
    %v6181 = vmul.f32 %v3664, 0.2
    %v6182 = vmul.f32 %v4007, 0.2
    %v6183 = vmul.f32 %v4350, 0.2
    %v6184 = vmul.f32 %v4693, 0.2
    %v6185 = vmul.f32 %v5036, 0.2
    %v6186 = vmul.f32 %v5379, 0.2
    %v6187 = vmul.f32 %v5722, 0.2
    %v6188 = vmul.f32 %v6065, 0.2
    %v6189 = vmul.f32 %v3666, 0.2
    %v6190 = vmul.f32 %v4009, 0.2
    %v6191 = vmul.f32 %v4352, 0.2
    %v6192 = vmul.f32 %v4695, 0.2
    %v6193 = vmul.f32 %v5038, 0.2
    %v6194 = vmul.f32 %v5381, 0.2
    %v6195 = vmul.f32 %v5724, 0.2
    %v6196 = vmul.f32 %v6067, 0.2
    %v6197 = vmax.f32 %v3629, %v6069
    %v6198 = vmax.f32 %v3972, %v6070
    %v6199 = vmax.f32 %v4315, %v6071
    %v6200 = vmax.f32 %v4658, %v6072
    %v6201 = vmax.f32 %v5001, %v6073
    %v6202 = vmax.f32 %v5344, %v6074
    %v6203 = vmax.f32 %v5687, %v6075
    %v6204 = vmax.f32 %v6030, %v6076
    %v6205 = vmax.f32 %v3631, %v6077
    %v6206 = vmax.f32 %v3974, %v6078
    %v6207 = vmax.f32 %v4317, %v6079
    %v6208 = vmax.f32 %v4660, %v6080
    %v6209 = vmax.f32 %v5003, %v6081
    %v6210 = vmax.f32 %v5346, %v6082
    %v6211 = vmax.f32 %v5689, %v6083
    %v6212 = vmax.f32 %v6032, %v6084
    %v6213 = vmax.f32 %v3634, %v6085
    %v6214 = vmax.f32 %v3977, %v6086
    %v6215 = vmax.f32 %v4320, %v6087
    %v6216 = vmax.f32 %v4663, %v6088
    %v6217 = vmax.f32 %v5006, %v6089
    %v6218 = vmax.f32 %v5349, %v6090
    %v6219 = vmax.f32 %v5692, %v6091
    %v6220 = vmax.f32 %v6035, %v6092
    %v6221 = vmax.f32 %v3636, %v6093
    %v6222 = vmax.f32 %v3979, %v6094
    %v6223 = vmax.f32 %v4322, %v6095
    %v6224 = vmax.f32 %v4665, %v6096
    %v6225 = vmax.f32 %v5008, %v6097
    %v6226 = vmax.f32 %v5351, %v6098
    %v6227 = vmax.f32 %v5694, %v6099
    %v6228 = vmax.f32 %v6037, %v6100
    %v6229 = vmax.f32 %v3639, %v6101
    %v6230 = vmax.f32 %v3982, %v6102
    %v6231 = vmax.f32 %v4325, %v6103
    %v6232 = vmax.f32 %v4668, %v6104
    %v6233 = vmax.f32 %v5011, %v6105
    %v6234 = vmax.f32 %v5354, %v6106
    %v6235 = vmax.f32 %v5697, %v6107
    %v6236 = vmax.f32 %v6040, %v6108
    %v6237 = vmax.f32 %v3641, %v6109
    %v6238 = vmax.f32 %v3984, %v6110
    %v6239 = vmax.f32 %v4327, %v6111
    %v6240 = vmax.f32 %v4670, %v6112
    %v6241 = vmax.f32 %v5013, %v6113
    %v6242 = vmax.f32 %v5356, %v6114
    %v6243 = vmax.f32 %v5699, %v6115
    %v6244 = vmax.f32 %v6042, %v6116
    %v6245 = vmax.f32 %v3644, %v6117
    %v6246 = vmax.f32 %v3987, %v6118
    %v6247 = vmax.f32 %v4330, %v6119
    %v6248 = vmax.f32 %v4673, %v6120
    %v6249 = vmax.f32 %v5016, %v6121
    %v6250 = vmax.f32 %v5359, %v6122
    %v6251 = vmax.f32 %v5702, %v6123
    %v6252 = vmax.f32 %v6045, %v6124
    %v6253 = vmax.f32 %v3646, %v6125
    %v6254 = vmax.f32 %v3989, %v6126
    %v6255 = vmax.f32 %v4332, %v6127
    %v6256 = vmax.f32 %v4675, %v6128
    %v6257 = vmax.f32 %v5018, %v6129
    %v6258 = vmax.f32 %v5361, %v6130
    %v6259 = vmax.f32 %v5704, %v6131
    %v6260 = vmax.f32 %v6047, %v6132
    %v6261 = vmax.f32 %v3649, %v6133
    %v6262 = vmax.f32 %v3992, %v6134
    %v6263 = vmax.f32 %v4335, %v6135
    %v6264 = vmax.f32 %v4678, %v6136
    %v6265 = vmax.f32 %v5021, %v6137
    %v6266 = vmax.f32 %v5364, %v6138
    %v6267 = vmax.f32 %v5707, %v6139
    %v6268 = vmax.f32 %v6050, %v6140
    %v6269 = vmax.f32 %v3651, %v6141
    %v6270 = vmax.f32 %v3994, %v6142
    %v6271 = vmax.f32 %v4337, %v6143
    %v6272 = vmax.f32 %v4680, %v6144
    %v6273 = vmax.f32 %v5023, %v6145
    %v6274 = vmax.f32 %v5366, %v6146
    %v6275 = vmax.f32 %v5709, %v6147
    %v6276 = vmax.f32 %v6052, %v6148
    %v6277 = vmax.f32 %v3654, %v6149
    %v6278 = vmax.f32 %v3997, %v6150
    %v6279 = vmax.f32 %v4340, %v6151
    %v6280 = vmax.f32 %v4683, %v6152
    %v6281 = vmax.f32 %v5026, %v6153
    %v6282 = vmax.f32 %v5369, %v6154
    %v6283 = vmax.f32 %v5712, %v6155
    %v6284 = vmax.f32 %v6055, %v6156
    %v6285 = vmax.f32 %v3656, %v6157
    %v6286 = vmax.f32 %v3999, %v6158
    %v6287 = vmax.f32 %v4342, %v6159
    %v6288 = vmax.f32 %v4685, %v6160
    %v6289 = vmax.f32 %v5028, %v6161
    %v6290 = vmax.f32 %v5371, %v6162
    %v6291 = vmax.f32 %v5714, %v6163
    %v6292 = vmax.f32 %v6057, %v6164
    %v6293 = vmax.f32 %v3659, %v6165
    %v6294 = vmax.f32 %v4002, %v6166
    %v6295 = vmax.f32 %v4345, %v6167
    %v6296 = vmax.f32 %v4688, %v6168
    %v6297 = vmax.f32 %v5031, %v6169
    %v6298 = vmax.f32 %v5374, %v6170
    %v6299 = vmax.f32 %v5717, %v6171
    %v6300 = vmax.f32 %v6060, %v6172
    %v6301 = vmax.f32 %v3661, %v6173
    %v6302 = vmax.f32 %v4004, %v6174
    %v6303 = vmax.f32 %v4347, %v6175
    %v6304 = vmax.f32 %v4690, %v6176
    %v6305 = vmax.f32 %v5033, %v6177
    %v6306 = vmax.f32 %v5376, %v6178
    %v6307 = vmax.f32 %v5719, %v6179
    %v6308 = vmax.f32 %v6062, %v6180
    %v6309 = vmax.f32 %v3664, %v6181
    %v6310 = vmax.f32 %v4007, %v6182
    %v6311 = vmax.f32 %v4350, %v6183
    %v6312 = vmax.f32 %v4693, %v6184
    %v6313 = vmax.f32 %v5036, %v6185
    %v6314 = vmax.f32 %v5379, %v6186
    %v6315 = vmax.f32 %v5722, %v6187
    %v6316 = vmax.f32 %v6065, %v6188
    %v6317 = vmax.f32 %v3666, %v6189
    %v6318 = vmax.f32 %v4009, %v6190
    %v6319 = vmax.f32 %v4352, %v6191
    %v6320 = vmax.f32 %v4695, %v6192
    %v6321 = vmax.f32 %v5038, %v6193
    %v6322 = vmax.f32 %v5381, %v6194
    %v6323 = vmax.f32 %v5724, %v6195
    %v6324 = vmax.f32 %v6067, %v6196
    %v6325 = vpack.c.bf16 %v6205, %v6197
    %v6326 = vpack.c.bf16 %v6206, %v6198
    %v6327 = vpack.c.bf16 %v6207, %v6199
    %v6328 = vpack.c.bf16 %v6208, %v6200
    %v6329 = vpack.c.bf16 %v6209, %v6201
    %v6330 = vpack.c.bf16 %v6210, %v6202
    %v6331 = vpack.c.bf16 %v6211, %v6203
    %v6332 = vpack.c.bf16 %v6212, %v6204
    %v6333 = vpack.c.bf16 %v6221, %v6213
    %v6334 = vpack.c.bf16 %v6222, %v6214
    %v6335 = vpack.c.bf16 %v6223, %v6215
    %v6336 = vpack.c.bf16 %v6224, %v6216
    %v6337 = vpack.c.bf16 %v6225, %v6217
    %v6338 = vpack.c.bf16 %v6226, %v6218
    %v6339 = vpack.c.bf16 %v6227, %v6219
    %v6340 = vpack.c.bf16 %v6228, %v6220
    %v6341 = vpack.c.bf16 %v6237, %v6229
    %v6342 = vpack.c.bf16 %v6238, %v6230
    %v6343 = vpack.c.bf16 %v6239, %v6231
    %v6344 = vpack.c.bf16 %v6240, %v6232
    %v6345 = vpack.c.bf16 %v6241, %v6233
    %v6346 = vpack.c.bf16 %v6242, %v6234
    %v6347 = vpack.c.bf16 %v6243, %v6235
    %v6348 = vpack.c.bf16 %v6244, %v6236
    %v6349 = vpack.c.bf16 %v6253, %v6245
    %v6350 = vpack.c.bf16 %v6254, %v6246
    %v6351 = vpack.c.bf16 %v6255, %v6247
    %v6352 = vpack.c.bf16 %v6256, %v6248
    %v6353 = vpack.c.bf16 %v6257, %v6249
    %v6354 = vpack.c.bf16 %v6258, %v6250
    %v6355 = vpack.c.bf16 %v6259, %v6251
    %v6356 = vpack.c.bf16 %v6260, %v6252
    %v6357 = vpack.c.bf16 %v6269, %v6261
    %v6358 = vpack.c.bf16 %v6270, %v6262
    %v6359 = vpack.c.bf16 %v6271, %v6263
    %v6360 = vpack.c.bf16 %v6272, %v6264
    %v6361 = vpack.c.bf16 %v6273, %v6265
    %v6362 = vpack.c.bf16 %v6274, %v6266
    %v6363 = vpack.c.bf16 %v6275, %v6267
    %v6364 = vpack.c.bf16 %v6276, %v6268
    %v6365 = vpack.c.bf16 %v6285, %v6277
    %v6366 = vpack.c.bf16 %v6286, %v6278
    %v6367 = vpack.c.bf16 %v6287, %v6279
    %v6368 = vpack.c.bf16 %v6288, %v6280
    %v6369 = vpack.c.bf16 %v6289, %v6281
    %v6370 = vpack.c.bf16 %v6290, %v6282
    %v6371 = vpack.c.bf16 %v6291, %v6283
    %v6372 = vpack.c.bf16 %v6292, %v6284
    %v6373 = vpack.c.bf16 %v6301, %v6293
    %v6374 = vpack.c.bf16 %v6302, %v6294
    %v6375 = vpack.c.bf16 %v6303, %v6295
    %v6376 = vpack.c.bf16 %v6304, %v6296
    %v6377 = vpack.c.bf16 %v6305, %v6297
    %v6378 = vpack.c.bf16 %v6306, %v6298
    %v6379 = vpack.c.bf16 %v6307, %v6299
    %v6380 = vpack.c.bf16 %v6308, %v6300
    %v6381 = vpack.c.bf16 %v6317, %v6309
    %v6382 = vpack.c.bf16 %v6318, %v6310
    %v6383 = vpack.c.bf16 %v6319, %v6311
    %v6384 = vpack.c.bf16 %v6320, %v6312
    %v6385 = vpack.c.bf16 %v6321, %v6313
    %v6386 = vpack.c.bf16 %v6322, %v6314
    %v6387 = vpack.c.bf16 %v6323, %v6315
    %v6388 = vpack.c.bf16 %v6324, %v6316
    %v6389 = vld [vmem:[#allocation8] sm:$0xff]
    %v6390 = vld [vmem:[#allocation8 + $0x8] sm:$0xff]
    %v6391 = vld [vmem:[#allocation8 + $0x10] sm:$0xff]
    %v6392 = vld [vmem:[#allocation8 + $0x18] sm:$0xff]
    %v6393 = vld [vmem:[#allocation8 + $0x20] sm:$0xff]
    %v6394 = vld [vmem:[#allocation8 + $0x28] sm:$0xff]
    %v6395 = vld [vmem:[#allocation8 + $0x30] sm:$0xff]
    %v6396 = vld [vmem:[#allocation8 + $0x38] sm:$0xff]
    %v6397 = vld [vmem:[#allocation8 + $0x40] sm:$0xff]
    %v6398 = vld [vmem:[#allocation8 + $0x48] sm:$0xff]
    %v6399 = vld [vmem:[#allocation8 + $0x50] sm:$0xff]
    %v6400 = vld [vmem:[#allocation8 + $0x58] sm:$0xff]
    %v6401 = vld [vmem:[#allocation8 + $0x60] sm:$0xff]
    %v6402 = vld [vmem:[#allocation8 + $0x68] sm:$0xff]
    %v6403 = vld [vmem:[#allocation8 + $0x70] sm:$0xff]
    %v6404 = vld [vmem:[#allocation8 + $0x78] sm:$0xff]
    %v6405 = vld [vmem:[#allocation8 + $0x80] sm:$0xff]
    %v6406 = vld [vmem:[#allocation8 + $0x88] sm:$0xff]
    %v6407 = vld [vmem:[#allocation8 + $0x90] sm:$0xff]
    %v6408 = vld [vmem:[#allocation8 + $0x98] sm:$0xff]
    %v6409 = vld [vmem:[#allocation8 + $0xa0] sm:$0xff]
    %v6410 = vld [vmem:[#allocation8 + $0xa8] sm:$0xff]
    %v6411 = vld [vmem:[#allocation8 + $0xb0] sm:$0xff]
    %v6412 = vld [vmem:[#allocation8 + $0xb8] sm:$0xff]
    %v6413 = vld [vmem:[#allocation8 + $0xc0] sm:$0xff]
    %v6414 = vld [vmem:[#allocation8 + $0xc8] sm:$0xff]
    %v6415 = vld [vmem:[#allocation8 + $0xd0] sm:$0xff]
    %v6416 = vld [vmem:[#allocation8 + $0xd8] sm:$0xff]
    %v6417 = vld [vmem:[#allocation8 + $0xe0] sm:$0xff]
    %v6418 = vld [vmem:[#allocation8 + $0xe8] sm:$0xff]
    %v6419 = vld [vmem:[#allocation8 + $0xf0] sm:$0xff]
    %v6420 = vld [vmem:[#allocation8 + $0xf8] sm:$0xff]
    %v6421 = vld [vmem:[#allocation8 + $0x100] sm:$0xff]
    %v6422 = vld [vmem:[#allocation8 + $0x108] sm:$0xff]
    %v6423 = vld [vmem:[#allocation8 + $0x110] sm:$0xff]
    %v6424 = vld [vmem:[#allocation8 + $0x118] sm:$0xff]
    %v6425 = vld [vmem:[#allocation8 + $0x120] sm:$0xff]
    %v6426 = vld [vmem:[#allocation8 + $0x128] sm:$0xff]
    %v6427 = vld [vmem:[#allocation8 + $0x130] sm:$0xff]
    %v6428 = vld [vmem:[#allocation8 + $0x138] sm:$0xff]
    %v6429 = vld [vmem:[#allocation8 + $0x140] sm:$0xff]
    %v6430 = vld [vmem:[#allocation8 + $0x148] sm:$0xff]
    %v6431 = vld [vmem:[#allocation8 + $0x150] sm:$0xff]
    %v6432 = vld [vmem:[#allocation8 + $0x158] sm:$0xff]
    %v6433 = vld [vmem:[#allocation8 + $0x160] sm:$0xff]
    %v6434 = vld [vmem:[#allocation8 + $0x168] sm:$0xff]
    %v6435 = vld [vmem:[#allocation8 + $0x170] sm:$0xff]
    %v6436 = vld [vmem:[#allocation8 + $0x178] sm:$0xff]
    %v6437 = vld [vmem:[#allocation8 + $0x180] sm:$0xff]
    %v6438 = vld [vmem:[#allocation8 + $0x188] sm:$0xff]
    %v6439 = vld [vmem:[#allocation8 + $0x190] sm:$0xff]
    %v6440 = vld [vmem:[#allocation8 + $0x198] sm:$0xff]
    %v6441 = vld [vmem:[#allocation8 + $0x1a0] sm:$0xff]
    %v6442 = vld [vmem:[#allocation8 + $0x1a8] sm:$0xff]
    %v6443 = vld [vmem:[#allocation8 + $0x1b0] sm:$0xff]
    %v6444 = vld [vmem:[#allocation8 + $0x1b8] sm:$0xff]
    %v6445 = vld [vmem:[#allocation8 + $0x1c0] sm:$0xff]
    %v6446 = vld [vmem:[#allocation8 + $0x1c8] sm:$0xff]
    %v6447 = vld [vmem:[#allocation8 + $0x1d0] sm:$0xff]
    %v6448 = vld [vmem:[#allocation8 + $0x1d8] sm:$0xff]
    %v6449 = vld [vmem:[#allocation8 + $0x1e0] sm:$0xff]
    %v6450 = vld [vmem:[#allocation8 + $0x1e8] sm:$0xff]
    %v6451 = vld [vmem:[#allocation8 + $0x1f0] sm:$0xff]
    %v6452 = vld [vmem:[#allocation8 + $0x1f8] sm:$0xff]
    %v6453 = vld [vmem:[#allocation8 + $0x200] sm:$0xff]
    %v6454 = vld [vmem:[#allocation8 + $0x208] sm:$0xff]
    %v6455 = vld [vmem:[#allocation8 + $0x210] sm:$0xff]
    %v6456 = vld [vmem:[#allocation8 + $0x218] sm:$0xff]
    %v6457 = vld [vmem:[#allocation8 + $0x220] sm:$0xff]
    %v6458 = vld [vmem:[#allocation8 + $0x228] sm:$0xff]
    %v6459 = vld [vmem:[#allocation8 + $0x230] sm:$0xff]
    %v6460 = vld [vmem:[#allocation8 + $0x238] sm:$0xff]
    %v6461 = vld [vmem:[#allocation8 + $0x240] sm:$0xff]
    %v6462 = vld [vmem:[#allocation8 + $0x248] sm:$0xff]
    %v6463 = vld [vmem:[#allocation8 + $0x250] sm:$0xff]
    %v6464 = vld [vmem:[#allocation8 + $0x258] sm:$0xff]
    %v6465 = vld [vmem:[#allocation8 + $0x260] sm:$0xff]
    %v6466 = vld [vmem:[#allocation8 + $0x268] sm:$0xff]
    %v6467 = vld [vmem:[#allocation8 + $0x270] sm:$0xff]
    %v6468 = vld [vmem:[#allocation8 + $0x278] sm:$0xff]
    %v6469 = vld [vmem:[#allocation8 + $0x280] sm:$0xff]
    %v6470 = vld [vmem:[#allocation8 + $0x288] sm:$0xff]
    %v6471 = vld [vmem:[#allocation8 + $0x290] sm:$0xff]
    %v6472 = vld [vmem:[#allocation8 + $0x298] sm:$0xff]
    %v6473 = vld [vmem:[#allocation8 + $0x2a0] sm:$0xff]
    %v6474 = vld [vmem:[#allocation8 + $0x2a8] sm:$0xff]
    %v6475 = vld [vmem:[#allocation8 + $0x2b0] sm:$0xff]
    %v6476 = vld [vmem:[#allocation8 + $0x2b8] sm:$0xff]
    %v6477 = vld [vmem:[#allocation8 + $0x2c0] sm:$0xff]
    %v6478 = vld [vmem:[#allocation8 + $0x2c8] sm:$0xff]
    %v6479 = vld [vmem:[#allocation8 + $0x2d0] sm:$0xff]
    %v6480 = vld [vmem:[#allocation8 + $0x2d8] sm:$0xff]
    %v6481 = vld [vmem:[#allocation8 + $0x2e0] sm:$0xff]
    %v6482 = vld [vmem:[#allocation8 + $0x2e8] sm:$0xff]
    %v6483 = vld [vmem:[#allocation8 + $0x2f0] sm:$0xff]
    %v6484 = vld [vmem:[#allocation8 + $0x2f8] sm:$0xff]
    %v6485 = vld [vmem:[#allocation8 + $0x300] sm:$0xff]
    %v6486 = vld [vmem:[#allocation8 + $0x308] sm:$0xff]
    %v6487 = vld [vmem:[#allocation8 + $0x310] sm:$0xff]
    %v6488 = vld [vmem:[#allocation8 + $0x318] sm:$0xff]
    %v6489 = vld [vmem:[#allocation8 + $0x320] sm:$0xff]
    %v6490 = vld [vmem:[#allocation8 + $0x328] sm:$0xff]
    %v6491 = vld [vmem:[#allocation8 + $0x330] sm:$0xff]
    %v6492 = vld [vmem:[#allocation8 + $0x338] sm:$0xff]
    %v6493 = vld [vmem:[#allocation8 + $0x340] sm:$0xff]
    %v6494 = vld [vmem:[#allocation8 + $0x348] sm:$0xff]
    %v6495 = vld [vmem:[#allocation8 + $0x350] sm:$0xff]
    %v6496 = vld [vmem:[#allocation8 + $0x358] sm:$0xff]
    %v6497 = vld [vmem:[#allocation8 + $0x360] sm:$0xff]
    %v6498 = vld [vmem:[#allocation8 + $0x368] sm:$0xff]
    %v6499 = vld [vmem:[#allocation8 + $0x370] sm:$0xff]
    %v6500 = vld [vmem:[#allocation8 + $0x378] sm:$0xff]
    %v6501 = vld [vmem:[#allocation8 + $0x380] sm:$0xff]
    %v6502 = vld [vmem:[#allocation8 + $0x388] sm:$0xff]
    %v6503 = vld [vmem:[#allocation8 + $0x390] sm:$0xff]
    %v6504 = vld [vmem:[#allocation8 + $0x398] sm:$0xff]
    %v6505 = vld [vmem:[#allocation8 + $0x3a0] sm:$0xff]
    %v6506 = vld [vmem:[#allocation8 + $0x3a8] sm:$0xff]
    %v6507 = vld [vmem:[#allocation8 + $0x3b0] sm:$0xff]
    %v6508 = vld [vmem:[#allocation8 + $0x3b8] sm:$0xff]
    %v6509 = vld [vmem:[#allocation8 + $0x3c0] sm:$0xff]
    %v6510 = vld [vmem:[#allocation8 + $0x3c8] sm:$0xff]
    %v6511 = vld [vmem:[#allocation8 + $0x3d0] sm:$0xff]
    %v6512 = vld [vmem:[#allocation8 + $0x3d8] sm:$0xff]
    %v6513 = vld [vmem:[#allocation8 + $0x3e0] sm:$0xff]
    %v6514 = vld [vmem:[#allocation8 + $0x3e8] sm:$0xff]
    %v6515 = vld [vmem:[#allocation8 + $0x3f0] sm:$0xff]
    %v6516 = vld [vmem:[#allocation8 + $0x3f8] sm:$0xff]
    %v6517 = vld [vmem:[#allocation8 + $0x400] sm:$0xff]
    %v6518 = vld [vmem:[#allocation8 + $0x408] sm:$0xff]
    %v6519 = vld [vmem:[#allocation8 + $0x410] sm:$0xff]
    %v6520 = vld [vmem:[#allocation8 + $0x418] sm:$0xff]
    %v6521 = vld [vmem:[#allocation8 + $0x420] sm:$0xff]
    %v6522 = vld [vmem:[#allocation8 + $0x428] sm:$0xff]
    %v6523 = vld [vmem:[#allocation8 + $0x430] sm:$0xff]
    %v6524 = vld [vmem:[#allocation8 + $0x438] sm:$0xff]
    %v6525 = vld [vmem:[#allocation8 + $0x440] sm:$0xff]
    %v6526 = vld [vmem:[#allocation8 + $0x448] sm:$0xff]
    %v6527 = vld [vmem:[#allocation8 + $0x450] sm:$0xff]
    %v6528 = vld [vmem:[#allocation8 + $0x458] sm:$0xff]
    %v6529 = vld [vmem:[#allocation8 + $0x460] sm:$0xff]
    %v6530 = vld [vmem:[#allocation8 + $0x468] sm:$0xff]
    %v6531 = vld [vmem:[#allocation8 + $0x470] sm:$0xff]
    %v6532 = vld [vmem:[#allocation8 + $0x478] sm:$0xff]
    %v6533 = vld [vmem:[#allocation8 + $0x480] sm:$0xff]
    %v6534 = vld [vmem:[#allocation8 + $0x488] sm:$0xff]
    %v6535 = vld [vmem:[#allocation8 + $0x490] sm:$0xff]
    %v6536 = vld [vmem:[#allocation8 + $0x498] sm:$0xff]
    %v6537 = vld [vmem:[#allocation8 + $0x4a0] sm:$0xff]
    %v6538 = vld [vmem:[#allocation8 + $0x4a8] sm:$0xff]
    %v6539 = vld [vmem:[#allocation8 + $0x4b0] sm:$0xff]
    %v6540 = vld [vmem:[#allocation8 + $0x4b8] sm:$0xff]
    %v6541 = vld [vmem:[#allocation8 + $0x4c0] sm:$0xff]
    %v6542 = vld [vmem:[#allocation8 + $0x4c8] sm:$0xff]
    %v6543 = vld [vmem:[#allocation8 + $0x4d0] sm:$0xff]
    %v6544 = vld [vmem:[#allocation8 + $0x4d8] sm:$0xff]
    %v6545 = vld [vmem:[#allocation8 + $0x4e0] sm:$0xff]
    %v6546 = vld [vmem:[#allocation8 + $0x4e8] sm:$0xff]
    %v6547 = vld [vmem:[#allocation8 + $0x4f0] sm:$0xff]
    %v6548 = vld [vmem:[#allocation8 + $0x4f8] sm:$0xff]
    %v6549 = vld [vmem:[#allocation8 + $0x500] sm:$0xff]
    %v6550 = vld [vmem:[#allocation8 + $0x508] sm:$0xff]
    %v6551 = vld [vmem:[#allocation8 + $0x510] sm:$0xff]
    %v6552 = vld [vmem:[#allocation8 + $0x518] sm:$0xff]
    %v6553 = vld [vmem:[#allocation8 + $0x520] sm:$0xff]
    %v6554 = vld [vmem:[#allocation8 + $0x528] sm:$0xff]
    %v6555 = vld [vmem:[#allocation8 + $0x530] sm:$0xff]
    %v6556 = vld [vmem:[#allocation8 + $0x538] sm:$0xff]
    %v6557 = vld [vmem:[#allocation8 + $0x540] sm:$0xff]
    %v6558 = vld [vmem:[#allocation8 + $0x548] sm:$0xff]
    %v6559 = vld [vmem:[#allocation8 + $0x550] sm:$0xff]
    %v6560 = vld [vmem:[#allocation8 + $0x558] sm:$0xff]
    %v6561 = vld [vmem:[#allocation8 + $0x560] sm:$0xff]
    %v6562 = vld [vmem:[#allocation8 + $0x568] sm:$0xff]
    %v6563 = vld [vmem:[#allocation8 + $0x570] sm:$0xff]
    %v6564 = vld [vmem:[#allocation8 + $0x578] sm:$0xff]
    %v6565 = vld [vmem:[#allocation8 + $0x580] sm:$0xff]
    %v6566 = vld [vmem:[#allocation8 + $0x588] sm:$0xff]
    %v6567 = vld [vmem:[#allocation8 + $0x590] sm:$0xff]
    %v6568 = vld [vmem:[#allocation8 + $0x598] sm:$0xff]
    %v6569 = vld [vmem:[#allocation8 + $0x5a0] sm:$0xff]
    %v6570 = vld [vmem:[#allocation8 + $0x5a8] sm:$0xff]
    %v6571 = vld [vmem:[#allocation8 + $0x5b0] sm:$0xff]
    %v6572 = vld [vmem:[#allocation8 + $0x5b8] sm:$0xff]
    %v6573 = vld [vmem:[#allocation8 + $0x5c0] sm:$0xff]
    %v6574 = vld [vmem:[#allocation8 + $0x5c8] sm:$0xff]
    %v6575 = vld [vmem:[#allocation8 + $0x5d0] sm:$0xff]
    %v6576 = vld [vmem:[#allocation8 + $0x5d8] sm:$0xff]
    %v6577 = vld [vmem:[#allocation8 + $0x5e0] sm:$0xff]
    %v6578 = vld [vmem:[#allocation8 + $0x5e8] sm:$0xff]
    %v6579 = vld [vmem:[#allocation8 + $0x5f0] sm:$0xff]
    %v6580 = vld [vmem:[#allocation8 + $0x5f8] sm:$0xff]
    %v6581 = vld [vmem:[#allocation8 + $0x600] sm:$0xff]
    %v6582 = vld [vmem:[#allocation8 + $0x608] sm:$0xff]
    %v6583 = vld [vmem:[#allocation8 + $0x610] sm:$0xff]
    %v6584 = vld [vmem:[#allocation8 + $0x618] sm:$0xff]
    %v6585 = vld [vmem:[#allocation8 + $0x620] sm:$0xff]
    %v6586 = vld [vmem:[#allocation8 + $0x628] sm:$0xff]
    %v6587 = vld [vmem:[#allocation8 + $0x630] sm:$0xff]
    %v6588 = vld [vmem:[#allocation8 + $0x638] sm:$0xff]
    %v6589 = vld [vmem:[#allocation8 + $0x640] sm:$0xff]
    %v6590 = vld [vmem:[#allocation8 + $0x648] sm:$0xff]
    %v6591 = vld [vmem:[#allocation8 + $0x650] sm:$0xff]
    %v6592 = vld [vmem:[#allocation8 + $0x658] sm:$0xff]
    %v6593 = vld [vmem:[#allocation8 + $0x660] sm:$0xff]
    %v6594 = vld [vmem:[#allocation8 + $0x668] sm:$0xff]
    %v6595 = vld [vmem:[#allocation8 + $0x670] sm:$0xff]
    %v6596 = vld [vmem:[#allocation8 + $0x678] sm:$0xff]
    %v6597 = vld [vmem:[#allocation8 + $0x680] sm:$0xff]
    %v6598 = vld [vmem:[#allocation8 + $0x688] sm:$0xff]
    %v6599 = vld [vmem:[#allocation8 + $0x690] sm:$0xff]
    %v6600 = vld [vmem:[#allocation8 + $0x698] sm:$0xff]
    %v6601 = vld [vmem:[#allocation8 + $0x6a0] sm:$0xff]
    %v6602 = vld [vmem:[#allocation8 + $0x6a8] sm:$0xff]
    %v6603 = vld [vmem:[#allocation8 + $0x6b0] sm:$0xff]
    %v6604 = vld [vmem:[#allocation8 + $0x6b8] sm:$0xff]
    %v6605 = vld [vmem:[#allocation8 + $0x6c0] sm:$0xff]
    %v6606 = vld [vmem:[#allocation8 + $0x6c8] sm:$0xff]
    %v6607 = vld [vmem:[#allocation8 + $0x6d0] sm:$0xff]
    %v6608 = vld [vmem:[#allocation8 + $0x6d8] sm:$0xff]
    %v6609 = vld [vmem:[#allocation8 + $0x6e0] sm:$0xff]
    %v6610 = vld [vmem:[#allocation8 + $0x6e8] sm:$0xff]
    %v6611 = vld [vmem:[#allocation8 + $0x6f0] sm:$0xff]
    %v6612 = vld [vmem:[#allocation8 + $0x6f8] sm:$0xff]
    %v6613 = vld [vmem:[#allocation8 + $0x700] sm:$0xff]
    %v6614 = vld [vmem:[#allocation8 + $0x708] sm:$0xff]
    %v6615 = vld [vmem:[#allocation8 + $0x710] sm:$0xff]
    %v6616 = vld [vmem:[#allocation8 + $0x718] sm:$0xff]
    %v6617 = vld [vmem:[#allocation8 + $0x720] sm:$0xff]
    %v6618 = vld [vmem:[#allocation8 + $0x728] sm:$0xff]
    %v6619 = vld [vmem:[#allocation8 + $0x730] sm:$0xff]
    %v6620 = vld [vmem:[#allocation8 + $0x738] sm:$0xff]
    %v6621 = vld [vmem:[#allocation8 + $0x740] sm:$0xff]
    %v6622 = vld [vmem:[#allocation8 + $0x748] sm:$0xff]
    %v6623 = vld [vmem:[#allocation8 + $0x750] sm:$0xff]
    %v6624 = vld [vmem:[#allocation8 + $0x758] sm:$0xff]
    %v6625 = vld [vmem:[#allocation8 + $0x760] sm:$0xff]
    %v6626 = vld [vmem:[#allocation8 + $0x768] sm:$0xff]
    %v6627 = vld [vmem:[#allocation8 + $0x770] sm:$0xff]
    %v6628 = vld [vmem:[#allocation8 + $0x778] sm:$0xff]
    %v6629 = vld [vmem:[#allocation8 + $0x780] sm:$0xff]
    %v6630 = vld [vmem:[#allocation8 + $0x788] sm:$0xff]
    %v6631 = vld [vmem:[#allocation8 + $0x790] sm:$0xff]
    %v6632 = vld [vmem:[#allocation8 + $0x798] sm:$0xff]
    %v6633 = vld [vmem:[#allocation8 + $0x7a0] sm:$0xff]
    %v6634 = vld [vmem:[#allocation8 + $0x7a8] sm:$0xff]
    %v6635 = vld [vmem:[#allocation8 + $0x7b0] sm:$0xff]
    %v6636 = vld [vmem:[#allocation8 + $0x7b8] sm:$0xff]
    %v6637 = vld [vmem:[#allocation8 + $0x7c0] sm:$0xff]
    %v6638 = vld [vmem:[#allocation8 + $0x7c8] sm:$0xff]
    %v6639 = vld [vmem:[#allocation8 + $0x7d0] sm:$0xff]
    %v6640 = vld [vmem:[#allocation8 + $0x7d8] sm:$0xff]
    %v6641 = vld [vmem:[#allocation8 + $0x7e0] sm:$0xff]
    %v6642 = vld [vmem:[#allocation8 + $0x7e8] sm:$0xff]
    %v6643 = vld [vmem:[#allocation8 + $0x7f0] sm:$0xff]
    %v6644 = vld [vmem:[#allocation8 + $0x7f8] sm:$0xff]
    %v6645 = vld [vmem:[#allocation9] sm:$0xf]
    %v6647 = vperm.slane %v6645, 0
    %v6648 = vperm.slane %v6645, 1
    %v6649 = vperm.slane %v6645, 2
    %v6650 = vperm.slane %v6645, 3
    %v6911 = vunpack.c.l.b16 %v6389
    %v6912 = vunpack.c.h.b16 %v6389
    %v6913 = vunpack.c.l.b16 %v6390
    %v6914 = vunpack.c.h.b16 %v6390
    %v6915 = vunpack.c.l.b16 %v6391
    %v6916 = vunpack.c.h.b16 %v6391
    %v6917 = vunpack.c.l.b16 %v6392
    %v6918 = vunpack.c.h.b16 %v6392
    %v6919 = vunpack.c.l.b16 %v6393
    %v6920 = vunpack.c.h.b16 %v6393
    %v6921 = vunpack.c.l.b16 %v6394
    %v6922 = vunpack.c.h.b16 %v6394
    %v6923 = vunpack.c.l.b16 %v6395
    %v6924 = vunpack.c.h.b16 %v6395
    %v6925 = vunpack.c.l.b16 %v6396
    %v6926 = vunpack.c.h.b16 %v6396
    %v6927 = vunpack.c.l.b16 %v6397
    %v6928 = vunpack.c.h.b16 %v6397
    %v6929 = vunpack.c.l.b16 %v6398
    %v6930 = vunpack.c.h.b16 %v6398
    %v6931 = vunpack.c.l.b16 %v6399
    %v6932 = vunpack.c.h.b16 %v6399
    %v6933 = vunpack.c.l.b16 %v6400
    %v6934 = vunpack.c.h.b16 %v6400
    %v6935 = vunpack.c.l.b16 %v6401
    %v6936 = vunpack.c.h.b16 %v6401
    %v6937 = vunpack.c.l.b16 %v6402
    %v6938 = vunpack.c.h.b16 %v6402
    %v6939 = vunpack.c.l.b16 %v6403
    %v6940 = vunpack.c.h.b16 %v6403
    %v6941 = vunpack.c.l.b16 %v6404
    %v6942 = vunpack.c.h.b16 %v6404
    %v6943 = vunpack.c.l.b16 %v6405
    %v6944 = vunpack.c.h.b16 %v6405
    %v6945 = vunpack.c.l.b16 %v6406
    %v6946 = vunpack.c.h.b16 %v6406
    %v6947 = vunpack.c.l.b16 %v6407
    %v6948 = vunpack.c.h.b16 %v6407
    %v6949 = vunpack.c.l.b16 %v6408
    %v6950 = vunpack.c.h.b16 %v6408
    %v6951 = vunpack.c.l.b16 %v6409
    %v6952 = vunpack.c.h.b16 %v6409
    %v6953 = vunpack.c.l.b16 %v6410
    %v6954 = vunpack.c.h.b16 %v6410
    %v6955 = vunpack.c.l.b16 %v6411
    %v6956 = vunpack.c.h.b16 %v6411
    %v6957 = vunpack.c.l.b16 %v6412
    %v6958 = vunpack.c.h.b16 %v6412
    %v6959 = vunpack.c.l.b16 %v6413
    %v6960 = vunpack.c.h.b16 %v6413
    %v6961 = vunpack.c.l.b16 %v6414
    %v6962 = vunpack.c.h.b16 %v6414
    %v6963 = vunpack.c.l.b16 %v6415
    %v6964 = vunpack.c.h.b16 %v6415
    %v6965 = vunpack.c.l.b16 %v6416
    %v6966 = vunpack.c.h.b16 %v6416
    %v6967 = vunpack.c.l.b16 %v6417
    %v6968 = vunpack.c.h.b16 %v6417
    %v6969 = vunpack.c.l.b16 %v6418
    %v6970 = vunpack.c.h.b16 %v6418
    %v6971 = vunpack.c.l.b16 %v6419
    %v6972 = vunpack.c.h.b16 %v6419
    %v6973 = vunpack.c.l.b16 %v6420
    %v6974 = vunpack.c.h.b16 %v6420
    %v6975 = vunpack.c.l.b16 %v6421
    %v6976 = vunpack.c.h.b16 %v6421
    %v6977 = vunpack.c.l.b16 %v6422
    %v6978 = vunpack.c.h.b16 %v6422
    %v6979 = vunpack.c.l.b16 %v6423
    %v6980 = vunpack.c.h.b16 %v6423
    %v6981 = vunpack.c.l.b16 %v6424
    %v6982 = vunpack.c.h.b16 %v6424
    %v6983 = vunpack.c.l.b16 %v6425
    %v6984 = vunpack.c.h.b16 %v6425
    %v6985 = vunpack.c.l.b16 %v6426
    %v6986 = vunpack.c.h.b16 %v6426
    %v6987 = vunpack.c.l.b16 %v6427
    %v6988 = vunpack.c.h.b16 %v6427
    %v6989 = vunpack.c.l.b16 %v6428
    %v6990 = vunpack.c.h.b16 %v6428
    %v6991 = vunpack.c.l.b16 %v6429
    %v6992 = vunpack.c.h.b16 %v6429
    %v6993 = vunpack.c.l.b16 %v6430
    %v6994 = vunpack.c.h.b16 %v6430
    %v6995 = vunpack.c.l.b16 %v6431
    %v6996 = vunpack.c.h.b16 %v6431
    %v6997 = vunpack.c.l.b16 %v6432
    %v6998 = vunpack.c.h.b16 %v6432
    %v6999 = vunpack.c.l.b16 %v6433
    %v7000 = vunpack.c.h.b16 %v6433
    %v7001 = vunpack.c.l.b16 %v6434
    %v7002 = vunpack.c.h.b16 %v6434
    %v7003 = vunpack.c.l.b16 %v6435
    %v7004 = vunpack.c.h.b16 %v6435
    %v7005 = vunpack.c.l.b16 %v6436
    %v7006 = vunpack.c.h.b16 %v6436
    %v7007 = vunpack.c.l.b16 %v6437
    %v7008 = vunpack.c.h.b16 %v6437
    %v7009 = vunpack.c.l.b16 %v6438
    %v7010 = vunpack.c.h.b16 %v6438
    %v7011 = vunpack.c.l.b16 %v6439
    %v7012 = vunpack.c.h.b16 %v6439
    %v7013 = vunpack.c.l.b16 %v6440
    %v7014 = vunpack.c.h.b16 %v6440
    %v7015 = vunpack.c.l.b16 %v6441
    %v7016 = vunpack.c.h.b16 %v6441
    %v7017 = vunpack.c.l.b16 %v6442
    %v7018 = vunpack.c.h.b16 %v6442
    %v7019 = vunpack.c.l.b16 %v6443
    %v7020 = vunpack.c.h.b16 %v6443
    %v7021 = vunpack.c.l.b16 %v6444
    %v7022 = vunpack.c.h.b16 %v6444
    %v7023 = vunpack.c.l.b16 %v6445
    %v7024 = vunpack.c.h.b16 %v6445
    %v7025 = vunpack.c.l.b16 %v6446
    %v7026 = vunpack.c.h.b16 %v6446
    %v7027 = vunpack.c.l.b16 %v6447
    %v7028 = vunpack.c.h.b16 %v6447
    %v7029 = vunpack.c.l.b16 %v6448
    %v7030 = vunpack.c.h.b16 %v6448
    %v7031 = vunpack.c.l.b16 %v6449
    %v7032 = vunpack.c.h.b16 %v6449
    %v7033 = vunpack.c.l.b16 %v6450
    %v7034 = vunpack.c.h.b16 %v6450
    %v7035 = vunpack.c.l.b16 %v6451
    %v7036 = vunpack.c.h.b16 %v6451
    %v7037 = vunpack.c.l.b16 %v6452
    %v7038 = vunpack.c.h.b16 %v6452
    %v7039 = vunpack.c.l.b16 %v6453
    %v7040 = vunpack.c.h.b16 %v6453
    %v7041 = vunpack.c.l.b16 %v6454
    %v7042 = vunpack.c.h.b16 %v6454
    %v7043 = vunpack.c.l.b16 %v6455
    %v7044 = vunpack.c.h.b16 %v6455
    %v7045 = vunpack.c.l.b16 %v6456
    %v7046 = vunpack.c.h.b16 %v6456
    %v7047 = vunpack.c.l.b16 %v6457
    %v7048 = vunpack.c.h.b16 %v6457
    %v7049 = vunpack.c.l.b16 %v6458
    %v7050 = vunpack.c.h.b16 %v6458
    %v7051 = vunpack.c.l.b16 %v6459
    %v7052 = vunpack.c.h.b16 %v6459
    %v7053 = vunpack.c.l.b16 %v6460
    %v7054 = vunpack.c.h.b16 %v6460
    %v7055 = vunpack.c.l.b16 %v6461
    %v7056 = vunpack.c.h.b16 %v6461
    %v7057 = vunpack.c.l.b16 %v6462
    %v7058 = vunpack.c.h.b16 %v6462
    %v7059 = vunpack.c.l.b16 %v6463
    %v7060 = vunpack.c.h.b16 %v6463
    %v7061 = vunpack.c.l.b16 %v6464
    %v7062 = vunpack.c.h.b16 %v6464
    %v7063 = vunpack.c.l.b16 %v6465
    %v7064 = vunpack.c.h.b16 %v6465
    %v7065 = vunpack.c.l.b16 %v6466
    %v7066 = vunpack.c.h.b16 %v6466
    %v7067 = vunpack.c.l.b16 %v6467
    %v7068 = vunpack.c.h.b16 %v6467
    %v7069 = vunpack.c.l.b16 %v6468
    %v7070 = vunpack.c.h.b16 %v6468
    %v7071 = vunpack.c.l.b16 %v6469
    %v7072 = vunpack.c.h.b16 %v6469
    %v7073 = vunpack.c.l.b16 %v6470
    %v7074 = vunpack.c.h.b16 %v6470
    %v7075 = vunpack.c.l.b16 %v6471
    %v7076 = vunpack.c.h.b16 %v6471
    %v7077 = vunpack.c.l.b16 %v6472
    %v7078 = vunpack.c.h.b16 %v6472
    %v7079 = vunpack.c.l.b16 %v6473
    %v7080 = vunpack.c.h.b16 %v6473
    %v7081 = vunpack.c.l.b16 %v6474
    %v7082 = vunpack.c.h.b16 %v6474
    %v7083 = vunpack.c.l.b16 %v6475
    %v7084 = vunpack.c.h.b16 %v6475
    %v7085 = vunpack.c.l.b16 %v6476
    %v7086 = vunpack.c.h.b16 %v6476
    %v7087 = vunpack.c.l.b16 %v6477
    %v7088 = vunpack.c.h.b16 %v6477
    %v7089 = vunpack.c.l.b16 %v6478
    %v7090 = vunpack.c.h.b16 %v6478
    %v7091 = vunpack.c.l.b16 %v6479
    %v7092 = vunpack.c.h.b16 %v6479
    %v7093 = vunpack.c.l.b16 %v6480
    %v7094 = vunpack.c.h.b16 %v6480
    %v7095 = vunpack.c.l.b16 %v6481
    %v7096 = vunpack.c.h.b16 %v6481
    %v7097 = vunpack.c.l.b16 %v6482
    %v7098 = vunpack.c.h.b16 %v6482
    %v7099 = vunpack.c.l.b16 %v6483
    %v7100 = vunpack.c.h.b16 %v6483
    %v7101 = vunpack.c.l.b16 %v6484
    %v7102 = vunpack.c.h.b16 %v6484
    %v7103 = vunpack.c.l.b16 %v6485
    %v7104 = vunpack.c.h.b16 %v6485
    %v7105 = vunpack.c.l.b16 %v6486
    %v7106 = vunpack.c.h.b16 %v6486
    %v7107 = vunpack.c.l.b16 %v6487
    %v7108 = vunpack.c.h.b16 %v6487
    %v7109 = vunpack.c.l.b16 %v6488
    %v7110 = vunpack.c.h.b16 %v6488
    %v7111 = vunpack.c.l.b16 %v6489
    %v7112 = vunpack.c.h.b16 %v6489
    %v7113 = vunpack.c.l.b16 %v6490
    %v7114 = vunpack.c.h.b16 %v6490
    %v7115 = vunpack.c.l.b16 %v6491
    %v7116 = vunpack.c.h.b16 %v6491
    %v7117 = vunpack.c.l.b16 %v6492
    %v7118 = vunpack.c.h.b16 %v6492
    %v7119 = vunpack.c.l.b16 %v6493
    %v7120 = vunpack.c.h.b16 %v6493
    %v7121 = vunpack.c.l.b16 %v6494
    %v7122 = vunpack.c.h.b16 %v6494
    %v7123 = vunpack.c.l.b16 %v6495
    %v7124 = vunpack.c.h.b16 %v6495
    %v7125 = vunpack.c.l.b16 %v6496
    %v7126 = vunpack.c.h.b16 %v6496
    %v7127 = vunpack.c.l.b16 %v6497
    %v7128 = vunpack.c.h.b16 %v6497
    %v7129 = vunpack.c.l.b16 %v6498
    %v7130 = vunpack.c.h.b16 %v6498
    %v7131 = vunpack.c.l.b16 %v6499
    %v7132 = vunpack.c.h.b16 %v6499
    %v7133 = vunpack.c.l.b16 %v6500
    %v7134 = vunpack.c.h.b16 %v6500
    %v7135 = vunpack.c.l.b16 %v6501
    %v7136 = vunpack.c.h.b16 %v6501
    %v7137 = vunpack.c.l.b16 %v6502
    %v7138 = vunpack.c.h.b16 %v6502
    %v7139 = vunpack.c.l.b16 %v6503
    %v7140 = vunpack.c.h.b16 %v6503
    %v7141 = vunpack.c.l.b16 %v6504
    %v7142 = vunpack.c.h.b16 %v6504
    %v7143 = vunpack.c.l.b16 %v6505
    %v7144 = vunpack.c.h.b16 %v6505
    %v7145 = vunpack.c.l.b16 %v6506
    %v7146 = vunpack.c.h.b16 %v6506
    %v7147 = vunpack.c.l.b16 %v6507
    %v7148 = vunpack.c.h.b16 %v6507
    %v7149 = vunpack.c.l.b16 %v6508
    %v7150 = vunpack.c.h.b16 %v6508
    %v7151 = vunpack.c.l.b16 %v6509
    %v7152 = vunpack.c.h.b16 %v6509
    %v7153 = vunpack.c.l.b16 %v6510
    %v7154 = vunpack.c.h.b16 %v6510
    %v7155 = vunpack.c.l.b16 %v6511
    %v7156 = vunpack.c.h.b16 %v6511
    %v7157 = vunpack.c.l.b16 %v6512
    %v7158 = vunpack.c.h.b16 %v6512
    %v7159 = vunpack.c.l.b16 %v6513
    %v7160 = vunpack.c.h.b16 %v6513
    %v7161 = vunpack.c.l.b16 %v6514
    %v7162 = vunpack.c.h.b16 %v6514
    %v7163 = vunpack.c.l.b16 %v6515
    %v7164 = vunpack.c.h.b16 %v6515
    %v7165 = vunpack.c.l.b16 %v6516
    %v7166 = vunpack.c.h.b16 %v6516
    %v7167 = vunpack.c.l.b16 %v6517
    %v7168 = vunpack.c.h.b16 %v6517
    %v7169 = vunpack.c.l.b16 %v6518
    %v7170 = vunpack.c.h.b16 %v6518
    %v7171 = vunpack.c.l.b16 %v6519
    %v7172 = vunpack.c.h.b16 %v6519
    %v7173 = vunpack.c.l.b16 %v6520
    %v7174 = vunpack.c.h.b16 %v6520
    %v7175 = vunpack.c.l.b16 %v6521
    %v7176 = vunpack.c.h.b16 %v6521
    %v7177 = vunpack.c.l.b16 %v6522
    %v7178 = vunpack.c.h.b16 %v6522
    %v7179 = vunpack.c.l.b16 %v6523
    %v7180 = vunpack.c.h.b16 %v6523
    %v7181 = vunpack.c.l.b16 %v6524
    %v7182 = vunpack.c.h.b16 %v6524
    %v7183 = vunpack.c.l.b16 %v6525
    %v7184 = vunpack.c.h.b16 %v6525
    %v7185 = vunpack.c.l.b16 %v6526
    %v7186 = vunpack.c.h.b16 %v6526
    %v7187 = vunpack.c.l.b16 %v6527
    %v7188 = vunpack.c.h.b16 %v6527
    %v7189 = vunpack.c.l.b16 %v6528
    %v7190 = vunpack.c.h.b16 %v6528
    %v7191 = vunpack.c.l.b16 %v6529
    %v7192 = vunpack.c.h.b16 %v6529
    %v7193 = vunpack.c.l.b16 %v6530
    %v7194 = vunpack.c.h.b16 %v6530
    %v7195 = vunpack.c.l.b16 %v6531
    %v7196 = vunpack.c.h.b16 %v6531
    %v7197 = vunpack.c.l.b16 %v6532
    %v7198 = vunpack.c.h.b16 %v6532
    %v7199 = vunpack.c.l.b16 %v6533
    %v7200 = vunpack.c.h.b16 %v6533
    %v7201 = vunpack.c.l.b16 %v6534
    %v7202 = vunpack.c.h.b16 %v6534
    %v7203 = vunpack.c.l.b16 %v6535
    %v7204 = vunpack.c.h.b16 %v6535
    %v7205 = vunpack.c.l.b16 %v6536
    %v7206 = vunpack.c.h.b16 %v6536
    %v7207 = vunpack.c.l.b16 %v6537
    %v7208 = vunpack.c.h.b16 %v6537
    %v7209 = vunpack.c.l.b16 %v6538
    %v7210 = vunpack.c.h.b16 %v6538
    %v7211 = vunpack.c.l.b16 %v6539
    %v7212 = vunpack.c.h.b16 %v6539
    %v7213 = vunpack.c.l.b16 %v6540
    %v7214 = vunpack.c.h.b16 %v6540
    %v7215 = vunpack.c.l.b16 %v6541
    %v7216 = vunpack.c.h.b16 %v6541
    %v7217 = vunpack.c.l.b16 %v6542
    %v7218 = vunpack.c.h.b16 %v6542
    %v7219 = vunpack.c.l.b16 %v6543
    %v7220 = vunpack.c.h.b16 %v6543
    %v7221 = vunpack.c.l.b16 %v6544
    %v7222 = vunpack.c.h.b16 %v6544
    %v7223 = vunpack.c.l.b16 %v6545
    %v7224 = vunpack.c.h.b16 %v6545
    %v7225 = vunpack.c.l.b16 %v6546
    %v7226 = vunpack.c.h.b16 %v6546
    %v7227 = vunpack.c.l.b16 %v6547
    %v7228 = vunpack.c.h.b16 %v6547
    %v7229 = vunpack.c.l.b16 %v6548
    %v7230 = vunpack.c.h.b16 %v6548
    %v7231 = vunpack.c.l.b16 %v6549
    %v7232 = vunpack.c.h.b16 %v6549
    %v7233 = vunpack.c.l.b16 %v6550
    %v7234 = vunpack.c.h.b16 %v6550
    %v7235 = vunpack.c.l.b16 %v6551
    %v7236 = vunpack.c.h.b16 %v6551
    %v7237 = vunpack.c.l.b16 %v6552
    %v7238 = vunpack.c.h.b16 %v6552
    %v7239 = vunpack.c.l.b16 %v6553
    %v7240 = vunpack.c.h.b16 %v6553
    %v7241 = vunpack.c.l.b16 %v6554
    %v7242 = vunpack.c.h.b16 %v6554
    %v7243 = vunpack.c.l.b16 %v6555
    %v7244 = vunpack.c.h.b16 %v6555
    %v7245 = vunpack.c.l.b16 %v6556
    %v7246 = vunpack.c.h.b16 %v6556
    %v7247 = vunpack.c.l.b16 %v6557
    %v7248 = vunpack.c.h.b16 %v6557
    %v7249 = vunpack.c.l.b16 %v6558
    %v7250 = vunpack.c.h.b16 %v6558
    %v7251 = vunpack.c.l.b16 %v6559
    %v7252 = vunpack.c.h.b16 %v6559
    %v7253 = vunpack.c.l.b16 %v6560
    %v7254 = vunpack.c.h.b16 %v6560
    %v7255 = vunpack.c.l.b16 %v6561
    %v7256 = vunpack.c.h.b16 %v6561
    %v7257 = vunpack.c.l.b16 %v6562
    %v7258 = vunpack.c.h.b16 %v6562
    %v7259 = vunpack.c.l.b16 %v6563
    %v7260 = vunpack.c.h.b16 %v6563
    %v7261 = vunpack.c.l.b16 %v6564
    %v7262 = vunpack.c.h.b16 %v6564
    %v7263 = vunpack.c.l.b16 %v6565
    %v7264 = vunpack.c.h.b16 %v6565
    %v7265 = vunpack.c.l.b16 %v6566
    %v7266 = vunpack.c.h.b16 %v6566
    %v7267 = vunpack.c.l.b16 %v6567
    %v7268 = vunpack.c.h.b16 %v6567
    %v7269 = vunpack.c.l.b16 %v6568
    %v7270 = vunpack.c.h.b16 %v6568
    %v7271 = vunpack.c.l.b16 %v6569
    %v7272 = vunpack.c.h.b16 %v6569
    %v7273 = vunpack.c.l.b16 %v6570
    %v7274 = vunpack.c.h.b16 %v6570
    %v7275 = vunpack.c.l.b16 %v6571
    %v7276 = vunpack.c.h.b16 %v6571
    %v7277 = vunpack.c.l.b16 %v6572
    %v7278 = vunpack.c.h.b16 %v6572
    %v7279 = vunpack.c.l.b16 %v6573
    %v7280 = vunpack.c.h.b16 %v6573
    %v7281 = vunpack.c.l.b16 %v6574
    %v7282 = vunpack.c.h.b16 %v6574
    %v7283 = vunpack.c.l.b16 %v6575
    %v7284 = vunpack.c.h.b16 %v6575
    %v7285 = vunpack.c.l.b16 %v6576
    %v7286 = vunpack.c.h.b16 %v6576
    %v7287 = vunpack.c.l.b16 %v6577
    %v7288 = vunpack.c.h.b16 %v6577
    %v7289 = vunpack.c.l.b16 %v6578
    %v7290 = vunpack.c.h.b16 %v6578
    %v7291 = vunpack.c.l.b16 %v6579
    %v7292 = vunpack.c.h.b16 %v6579
    %v7293 = vunpack.c.l.b16 %v6580
    %v7294 = vunpack.c.h.b16 %v6580
    %v7295 = vunpack.c.l.b16 %v6581
    %v7296 = vunpack.c.h.b16 %v6581
    %v7297 = vunpack.c.l.b16 %v6582
    %v7298 = vunpack.c.h.b16 %v6582
    %v7299 = vunpack.c.l.b16 %v6583
    %v7300 = vunpack.c.h.b16 %v6583
    %v7301 = vunpack.c.l.b16 %v6584
    %v7302 = vunpack.c.h.b16 %v6584
    %v7303 = vunpack.c.l.b16 %v6585
    %v7304 = vunpack.c.h.b16 %v6585
    %v7305 = vunpack.c.l.b16 %v6586
    %v7306 = vunpack.c.h.b16 %v6586
    %v7307 = vunpack.c.l.b16 %v6587
    %v7308 = vunpack.c.h.b16 %v6587
    %v7309 = vunpack.c.l.b16 %v6588
    %v7310 = vunpack.c.h.b16 %v6588
    %v7311 = vunpack.c.l.b16 %v6589
    %v7312 = vunpack.c.h.b16 %v6589
    %v7313 = vunpack.c.l.b16 %v6590
    %v7314 = vunpack.c.h.b16 %v6590
    %v7315 = vunpack.c.l.b16 %v6591
    %v7316 = vunpack.c.h.b16 %v6591
    %v7317 = vunpack.c.l.b16 %v6592
    %v7318 = vunpack.c.h.b16 %v6592
    %v7319 = vunpack.c.l.b16 %v6593
    %v7320 = vunpack.c.h.b16 %v6593
    %v7321 = vunpack.c.l.b16 %v6594
    %v7322 = vunpack.c.h.b16 %v6594
    %v7323 = vunpack.c.l.b16 %v6595
    %v7324 = vunpack.c.h.b16 %v6595
    %v7325 = vunpack.c.l.b16 %v6596
    %v7326 = vunpack.c.h.b16 %v6596
    %v7327 = vunpack.c.l.b16 %v6597
    %v7328 = vunpack.c.h.b16 %v6597
    %v7329 = vunpack.c.l.b16 %v6598
    %v7330 = vunpack.c.h.b16 %v6598
    %v7331 = vunpack.c.l.b16 %v6599
    %v7332 = vunpack.c.h.b16 %v6599
    %v7333 = vunpack.c.l.b16 %v6600
    %v7334 = vunpack.c.h.b16 %v6600
    %v7335 = vunpack.c.l.b16 %v6601
    %v7336 = vunpack.c.h.b16 %v6601
    %v7337 = vunpack.c.l.b16 %v6602
    %v7338 = vunpack.c.h.b16 %v6602
    %v7339 = vunpack.c.l.b16 %v6603
    %v7340 = vunpack.c.h.b16 %v6603
    %v7341 = vunpack.c.l.b16 %v6604
    %v7342 = vunpack.c.h.b16 %v6604
    %v7343 = vunpack.c.l.b16 %v6605
    %v7344 = vunpack.c.h.b16 %v6605
    %v7345 = vunpack.c.l.b16 %v6606
    %v7346 = vunpack.c.h.b16 %v6606
    %v7347 = vunpack.c.l.b16 %v6607
    %v7348 = vunpack.c.h.b16 %v6607
    %v7349 = vunpack.c.l.b16 %v6608
    %v7350 = vunpack.c.h.b16 %v6608
    %v7351 = vunpack.c.l.b16 %v6609
    %v7352 = vunpack.c.h.b16 %v6609
    %v7353 = vunpack.c.l.b16 %v6610
    %v7354 = vunpack.c.h.b16 %v6610
    %v7355 = vunpack.c.l.b16 %v6611
    %v7356 = vunpack.c.h.b16 %v6611
    %v7357 = vunpack.c.l.b16 %v6612
    %v7358 = vunpack.c.h.b16 %v6612
    %v7359 = vunpack.c.l.b16 %v6613
    %v7360 = vunpack.c.h.b16 %v6613
    %v7361 = vunpack.c.l.b16 %v6614
    %v7362 = vunpack.c.h.b16 %v6614
    %v7363 = vunpack.c.l.b16 %v6615
    %v7364 = vunpack.c.h.b16 %v6615
    %v7365 = vunpack.c.l.b16 %v6616
    %v7366 = vunpack.c.h.b16 %v6616
    %v7367 = vunpack.c.l.b16 %v6617
    %v7368 = vunpack.c.h.b16 %v6617
    %v7369 = vunpack.c.l.b16 %v6618
    %v7370 = vunpack.c.h.b16 %v6618
    %v7371 = vunpack.c.l.b16 %v6619
    %v7372 = vunpack.c.h.b16 %v6619
    %v7373 = vunpack.c.l.b16 %v6620
    %v7374 = vunpack.c.h.b16 %v6620
    %v7375 = vunpack.c.l.b16 %v6621
    %v7376 = vunpack.c.h.b16 %v6621
    %v7377 = vunpack.c.l.b16 %v6622
    %v7378 = vunpack.c.h.b16 %v6622
    %v7379 = vunpack.c.l.b16 %v6623
    %v7380 = vunpack.c.h.b16 %v6623
    %v7381 = vunpack.c.l.b16 %v6624
    %v7382 = vunpack.c.h.b16 %v6624
    %v7383 = vunpack.c.l.b16 %v6625
    %v7384 = vunpack.c.h.b16 %v6625
    %v7385 = vunpack.c.l.b16 %v6626
    %v7386 = vunpack.c.h.b16 %v6626
    %v7387 = vunpack.c.l.b16 %v6627
    %v7388 = vunpack.c.h.b16 %v6627
    %v7389 = vunpack.c.l.b16 %v6628
    %v7390 = vunpack.c.h.b16 %v6628
    %v7391 = vunpack.c.l.b16 %v6629
    %v7392 = vunpack.c.h.b16 %v6629
    %v7393 = vunpack.c.l.b16 %v6630
    %v7394 = vunpack.c.h.b16 %v6630
    %v7395 = vunpack.c.l.b16 %v6631
    %v7396 = vunpack.c.h.b16 %v6631
    %v7397 = vunpack.c.l.b16 %v6632
    %v7398 = vunpack.c.h.b16 %v6632
    %v7399 = vunpack.c.l.b16 %v6633
    %v7400 = vunpack.c.h.b16 %v6633
    %v7401 = vunpack.c.l.b16 %v6634
    %v7402 = vunpack.c.h.b16 %v6634
    %v7403 = vunpack.c.l.b16 %v6635
    %v7404 = vunpack.c.h.b16 %v6635
    %v7405 = vunpack.c.l.b16 %v6636
    %v7406 = vunpack.c.h.b16 %v6636
    %v7407 = vunpack.c.l.b16 %v6637
    %v7408 = vunpack.c.h.b16 %v6637
    %v7409 = vunpack.c.l.b16 %v6638
    %v7410 = vunpack.c.h.b16 %v6638
    %v7411 = vunpack.c.l.b16 %v6639
    %v7412 = vunpack.c.h.b16 %v6639
    %v7413 = vunpack.c.l.b16 %v6640
    %v7414 = vunpack.c.h.b16 %v6640
    %v7415 = vunpack.c.l.b16 %v6641
    %v7416 = vunpack.c.h.b16 %v6641
    %v7417 = vunpack.c.l.b16 %v6642
    %v7418 = vunpack.c.h.b16 %v6642
    %v7419 = vunpack.c.l.b16 %v6643
    %v7420 = vunpack.c.h.b16 %v6643
    %v7421 = vunpack.c.l.b16 %v6644
    %v7422 = vunpack.c.h.b16 %v6644
    %v7423 = vpack.c.b16 %v6915, %v6911
    %v7424 = vpack.c.b16 %v6916, %v6912
    %v7425 = vpack.c.b16 %v6917, %v6913
    %v7426 = vpack.c.b16 %v6918, %v6914
    %v7427 = vpack.c.b16 %v6923, %v6919
    %v7428 = vpack.c.b16 %v6924, %v6920
    %v7429 = vpack.c.b16 %v6925, %v6921
    %v7430 = vpack.c.b16 %v6926, %v6922
    %v7431 = vpack.c.b16 %v6931, %v6927
    %v7432 = vpack.c.b16 %v6932, %v6928
    %v7433 = vpack.c.b16 %v6933, %v6929
    %v7434 = vpack.c.b16 %v6934, %v6930
    %v7435 = vpack.c.b16 %v6939, %v6935
    %v7436 = vpack.c.b16 %v6940, %v6936
    %v7437 = vpack.c.b16 %v6941, %v6937
    %v7438 = vpack.c.b16 %v6942, %v6938
    %v7439 = vpack.c.b16 %v6947, %v6943
    %v7440 = vpack.c.b16 %v6948, %v6944
    %v7441 = vpack.c.b16 %v6949, %v6945
    %v7442 = vpack.c.b16 %v6950, %v6946
    %v7443 = vpack.c.b16 %v6955, %v6951
    %v7444 = vpack.c.b16 %v6956, %v6952
    %v7445 = vpack.c.b16 %v6957, %v6953
    %v7446 = vpack.c.b16 %v6958, %v6954
    %v7447 = vpack.c.b16 %v6963, %v6959
    %v7448 = vpack.c.b16 %v6964, %v6960
    %v7449 = vpack.c.b16 %v6965, %v6961
    %v7450 = vpack.c.b16 %v6966, %v6962
    %v7451 = vpack.c.b16 %v6971, %v6967
    %v7452 = vpack.c.b16 %v6972, %v6968
    %v7453 = vpack.c.b16 %v6973, %v6969
    %v7454 = vpack.c.b16 %v6974, %v6970
    %v7455 = vpack.c.b16 %v6979, %v6975
    %v7456 = vpack.c.b16 %v6980, %v6976
    %v7457 = vpack.c.b16 %v6981, %v6977
    %v7458 = vpack.c.b16 %v6982, %v6978
    %v7459 = vpack.c.b16 %v6987, %v6983
    %v7460 = vpack.c.b16 %v6988, %v6984
    %v7461 = vpack.c.b16 %v6989, %v6985
    %v7462 = vpack.c.b16 %v6990, %v6986
    %v7463 = vpack.c.b16 %v6995, %v6991
    %v7464 = vpack.c.b16 %v6996, %v6992
    %v7465 = vpack.c.b16 %v6997, %v6993
    %v7466 = vpack.c.b16 %v6998, %v6994
    %v7467 = vpack.c.b16 %v7003, %v6999
    %v7468 = vpack.c.b16 %v7004, %v7000
    %v7469 = vpack.c.b16 %v7005, %v7001
    %v7470 = vpack.c.b16 %v7006, %v7002
    %v7471 = vpack.c.b16 %v7011, %v7007
    %v7472 = vpack.c.b16 %v7012, %v7008
    %v7473 = vpack.c.b16 %v7013, %v7009
    %v7474 = vpack.c.b16 %v7014, %v7010
    %v7475 = vpack.c.b16 %v7019, %v7015
    %v7476 = vpack.c.b16 %v7020, %v7016
    %v7477 = vpack.c.b16 %v7021, %v7017
    %v7478 = vpack.c.b16 %v7022, %v7018
    %v7479 = vpack.c.b16 %v7027, %v7023
    %v7480 = vpack.c.b16 %v7028, %v7024
    %v7481 = vpack.c.b16 %v7029, %v7025
    %v7482 = vpack.c.b16 %v7030, %v7026
    %v7483 = vpack.c.b16 %v7035, %v7031
    %v7484 = vpack.c.b16 %v7036, %v7032
    %v7485 = vpack.c.b16 %v7037, %v7033
    %v7486 = vpack.c.b16 %v7038, %v7034
    %v7487 = vpack.c.b16 %v7043, %v7039
    %v7488 = vpack.c.b16 %v7044, %v7040
    %v7489 = vpack.c.b16 %v7045, %v7041
    %v7490 = vpack.c.b16 %v7046, %v7042
    %v7491 = vpack.c.b16 %v7051, %v7047
    %v7492 = vpack.c.b16 %v7052, %v7048
    %v7493 = vpack.c.b16 %v7053, %v7049
    %v7494 = vpack.c.b16 %v7054, %v7050
    %v7495 = vpack.c.b16 %v7059, %v7055
    %v7496 = vpack.c.b16 %v7060, %v7056
    %v7497 = vpack.c.b16 %v7061, %v7057
    %v7498 = vpack.c.b16 %v7062, %v7058
    %v7499 = vpack.c.b16 %v7067, %v7063
    %v7500 = vpack.c.b16 %v7068, %v7064
    %v7501 = vpack.c.b16 %v7069, %v7065
    %v7502 = vpack.c.b16 %v7070, %v7066
    %v7503 = vpack.c.b16 %v7075, %v7071
    %v7504 = vpack.c.b16 %v7076, %v7072
    %v7505 = vpack.c.b16 %v7077, %v7073
    %v7506 = vpack.c.b16 %v7078, %v7074
    %v7507 = vpack.c.b16 %v7083, %v7079
    %v7508 = vpack.c.b16 %v7084, %v7080
    %v7509 = vpack.c.b16 %v7085, %v7081
    %v7510 = vpack.c.b16 %v7086, %v7082
    %v7511 = vpack.c.b16 %v7091, %v7087
    %v7512 = vpack.c.b16 %v7092, %v7088
    %v7513 = vpack.c.b16 %v7093, %v7089
    %v7514 = vpack.c.b16 %v7094, %v7090
    %v7515 = vpack.c.b16 %v7099, %v7095
    %v7516 = vpack.c.b16 %v7100, %v7096
    %v7517 = vpack.c.b16 %v7101, %v7097
    %v7518 = vpack.c.b16 %v7102, %v7098
    %v7519 = vpack.c.b16 %v7107, %v7103
    %v7520 = vpack.c.b16 %v7108, %v7104
    %v7521 = vpack.c.b16 %v7109, %v7105
    %v7522 = vpack.c.b16 %v7110, %v7106
    %v7523 = vpack.c.b16 %v7115, %v7111
    %v7524 = vpack.c.b16 %v7116, %v7112
    %v7525 = vpack.c.b16 %v7117, %v7113
    %v7526 = vpack.c.b16 %v7118, %v7114
    %v7527 = vpack.c.b16 %v7123, %v7119
    %v7528 = vpack.c.b16 %v7124, %v7120
    %v7529 = vpack.c.b16 %v7125, %v7121
    %v7530 = vpack.c.b16 %v7126, %v7122
    %v7531 = vpack.c.b16 %v7131, %v7127
    %v7532 = vpack.c.b16 %v7132, %v7128
    %v7533 = vpack.c.b16 %v7133, %v7129
    %v7534 = vpack.c.b16 %v7134, %v7130
    %v7535 = vpack.c.b16 %v7139, %v7135
    %v7536 = vpack.c.b16 %v7140, %v7136
    %v7537 = vpack.c.b16 %v7141, %v7137
    %v7538 = vpack.c.b16 %v7142, %v7138
    %v7539 = vpack.c.b16 %v7147, %v7143
    %v7540 = vpack.c.b16 %v7148, %v7144
    %v7541 = vpack.c.b16 %v7149, %v7145
    %v7542 = vpack.c.b16 %v7150, %v7146
    %v7543 = vpack.c.b16 %v7155, %v7151
    %v7544 = vpack.c.b16 %v7156, %v7152
    %v7545 = vpack.c.b16 %v7157, %v7153
    %v7546 = vpack.c.b16 %v7158, %v7154
    %v7547 = vpack.c.b16 %v7163, %v7159
    %v7548 = vpack.c.b16 %v7164, %v7160
    %v7549 = vpack.c.b16 %v7165, %v7161
    %v7550 = vpack.c.b16 %v7166, %v7162
    %v7551 = vpack.c.b16 %v7171, %v7167
    %v7552 = vpack.c.b16 %v7172, %v7168
    %v7553 = vpack.c.b16 %v7173, %v7169
    %v7554 = vpack.c.b16 %v7174, %v7170
    %v7555 = vpack.c.b16 %v7179, %v7175
    %v7556 = vpack.c.b16 %v7180, %v7176
    %v7557 = vpack.c.b16 %v7181, %v7177
    %v7558 = vpack.c.b16 %v7182, %v7178
    %v7559 = vpack.c.b16 %v7187, %v7183
    %v7560 = vpack.c.b16 %v7188, %v7184
    %v7561 = vpack.c.b16 %v7189, %v7185
    %v7562 = vpack.c.b16 %v7190, %v7186
    %v7563 = vpack.c.b16 %v7195, %v7191
    %v7564 = vpack.c.b16 %v7196, %v7192
    %v7565 = vpack.c.b16 %v7197, %v7193
    %v7566 = vpack.c.b16 %v7198, %v7194
    %v7567 = vpack.c.b16 %v7203, %v7199
    %v7568 = vpack.c.b16 %v7204, %v7200
    %v7569 = vpack.c.b16 %v7205, %v7201
    %v7570 = vpack.c.b16 %v7206, %v7202
    %v7571 = vpack.c.b16 %v7211, %v7207
    %v7572 = vpack.c.b16 %v7212, %v7208
    %v7573 = vpack.c.b16 %v7213, %v7209
    %v7574 = vpack.c.b16 %v7214, %v7210
    %v7575 = vpack.c.b16 %v7219, %v7215
    %v7576 = vpack.c.b16 %v7220, %v7216
    %v7577 = vpack.c.b16 %v7221, %v7217
    %v7578 = vpack.c.b16 %v7222, %v7218
    %v7579 = vpack.c.b16 %v7227, %v7223
    %v7580 = vpack.c.b16 %v7228, %v7224
    %v7581 = vpack.c.b16 %v7229, %v7225
    %v7582 = vpack.c.b16 %v7230, %v7226
    %v7583 = vpack.c.b16 %v7235, %v7231
    %v7584 = vpack.c.b16 %v7236, %v7232
    %v7585 = vpack.c.b16 %v7237, %v7233
    %v7586 = vpack.c.b16 %v7238, %v7234
    %v7587 = vpack.c.b16 %v7243, %v7239
    %v7588 = vpack.c.b16 %v7244, %v7240
    %v7589 = vpack.c.b16 %v7245, %v7241
    %v7590 = vpack.c.b16 %v7246, %v7242
    %v7591 = vpack.c.b16 %v7251, %v7247
    %v7592 = vpack.c.b16 %v7252, %v7248
    %v7593 = vpack.c.b16 %v7253, %v7249
    %v7594 = vpack.c.b16 %v7254, %v7250
    %v7595 = vpack.c.b16 %v7259, %v7255
    %v7596 = vpack.c.b16 %v7260, %v7256
    %v7597 = vpack.c.b16 %v7261, %v7257
    %v7598 = vpack.c.b16 %v7262, %v7258
    %v7599 = vpack.c.b16 %v7267, %v7263
    %v7600 = vpack.c.b16 %v7268, %v7264
    %v7601 = vpack.c.b16 %v7269, %v7265
    %v7602 = vpack.c.b16 %v7270, %v7266
    %v7603 = vpack.c.b16 %v7275, %v7271
    %v7604 = vpack.c.b16 %v7276, %v7272
    %v7605 = vpack.c.b16 %v7277, %v7273
    %v7606 = vpack.c.b16 %v7278, %v7274
    %v7607 = vpack.c.b16 %v7283, %v7279
    %v7608 = vpack.c.b16 %v7284, %v7280
    %v7609 = vpack.c.b16 %v7285, %v7281
    %v7610 = vpack.c.b16 %v7286, %v7282
    %v7611 = vpack.c.b16 %v7291, %v7287
    %v7612 = vpack.c.b16 %v7292, %v7288
    %v7613 = vpack.c.b16 %v7293, %v7289
    %v7614 = vpack.c.b16 %v7294, %v7290
    %v7615 = vpack.c.b16 %v7299, %v7295
    %v7616 = vpack.c.b16 %v7300, %v7296
    %v7617 = vpack.c.b16 %v7301, %v7297
    %v7618 = vpack.c.b16 %v7302, %v7298
    %v7619 = vpack.c.b16 %v7307, %v7303
    %v7620 = vpack.c.b16 %v7308, %v7304
    %v7621 = vpack.c.b16 %v7309, %v7305
    %v7622 = vpack.c.b16 %v7310, %v7306
    %v7623 = vpack.c.b16 %v7315, %v7311
    %v7624 = vpack.c.b16 %v7316, %v7312
    %v7625 = vpack.c.b16 %v7317, %v7313
    %v7626 = vpack.c.b16 %v7318, %v7314
    %v7627 = vpack.c.b16 %v7323, %v7319
    %v7628 = vpack.c.b16 %v7324, %v7320
    %v7629 = vpack.c.b16 %v7325, %v7321
    %v7630 = vpack.c.b16 %v7326, %v7322
    %v7631 = vpack.c.b16 %v7331, %v7327
    %v7632 = vpack.c.b16 %v7332, %v7328
    %v7633 = vpack.c.b16 %v7333, %v7329
    %v7634 = vpack.c.b16 %v7334, %v7330
    %v7635 = vpack.c.b16 %v7339, %v7335
    %v7636 = vpack.c.b16 %v7340, %v7336
    %v7637 = vpack.c.b16 %v7341, %v7337
    %v7638 = vpack.c.b16 %v7342, %v7338
    %v7639 = vpack.c.b16 %v7347, %v7343
    %v7640 = vpack.c.b16 %v7348, %v7344
    %v7641 = vpack.c.b16 %v7349, %v7345
    %v7642 = vpack.c.b16 %v7350, %v7346
    %v7643 = vpack.c.b16 %v7355, %v7351
    %v7644 = vpack.c.b16 %v7356, %v7352
    %v7645 = vpack.c.b16 %v7357, %v7353
    %v7646 = vpack.c.b16 %v7358, %v7354
    %v7647 = vpack.c.b16 %v7363, %v7359
    %v7648 = vpack.c.b16 %v7364, %v7360
    %v7649 = vpack.c.b16 %v7365, %v7361
    %v7650 = vpack.c.b16 %v7366, %v7362
    %v7651 = vpack.c.b16 %v7371, %v7367
    %v7652 = vpack.c.b16 %v7372, %v7368
    %v7653 = vpack.c.b16 %v7373, %v7369
    %v7654 = vpack.c.b16 %v7374, %v7370
    %v7655 = vpack.c.b16 %v7379, %v7375
    %v7656 = vpack.c.b16 %v7380, %v7376
    %v7657 = vpack.c.b16 %v7381, %v7377
    %v7658 = vpack.c.b16 %v7382, %v7378
    %v7659 = vpack.c.b16 %v7387, %v7383
    %v7660 = vpack.c.b16 %v7388, %v7384
    %v7661 = vpack.c.b16 %v7389, %v7385
    %v7662 = vpack.c.b16 %v7390, %v7386
    %v7663 = vpack.c.b16 %v7395, %v7391
    %v7664 = vpack.c.b16 %v7396, %v7392
    %v7665 = vpack.c.b16 %v7397, %v7393
    %v7666 = vpack.c.b16 %v7398, %v7394
    %v7667 = vpack.c.b16 %v7403, %v7399
    %v7668 = vpack.c.b16 %v7404, %v7400
    %v7669 = vpack.c.b16 %v7405, %v7401
    %v7670 = vpack.c.b16 %v7406, %v7402
    %v7671 = vpack.c.b16 %v7411, %v7407
    %v7672 = vpack.c.b16 %v7412, %v7408
    %v7673 = vpack.c.b16 %v7413, %v7409
    %v7674 = vpack.c.b16 %v7414, %v7410
    %v7675 = vpack.c.b16 %v7419, %v7415
    %v7676 = vpack.c.b16 %v7420, %v7416
    %v7677 = vpack.c.b16 %v7421, %v7417
    %v7678 = vpack.c.b16 %v7422, %v7418
    %7935 = vmatpush.bf16.msra.mxu0 %v7451
    %7936 = vmatpush.bf16.msra.mxu0 %v7447
    %7937 = vmatpush.bf16.msra.mxu0 %v7443
    %7938 = vmatpush.bf16.msra.mxu0 %v7439
    %7939 = vmatpush.bf16.msra.mxu0 %v7435
    %7940 = vmatpush.bf16.msra.mxu0 %v7431
    %7941 = vmatpush.bf16.msra.mxu0 %v7427
    %7942 = vmatpush.bf16.msra.mxu0 %v7423
    %7943 = vmatmul.bf16.gmra.mxu0 %v6325
    %v7944 = vpop.f32.mrf.mxu0
    %v7945 = vadd.f32 %v6647, %v7944
    %v7946 = vpop.f32.mrf.mxu0
    %v7947 = vadd.f32 %v6647, %v7946
    %7948 = vmatmul.bf16.gmra.mxu0 %v6333
    %v7949 = vpop.f32.mrf.mxu0
    %v7950 = vadd.f32 %v6647, %v7949
    %v7951 = vpop.f32.mrf.mxu0
    %v7952 = vadd.f32 %v6647, %v7951
    %7953 = vmatmul.bf16.gmra.mxu0 %v6341
    %v7954 = vpop.f32.mrf.mxu0
    %v7955 = vadd.f32 %v6647, %v7954
    %v7956 = vpop.f32.mrf.mxu0
    %v7957 = vadd.f32 %v6647, %v7956
    %7958 = vmatmul.bf16.gmra.mxu0 %v6349
    %v7959 = vpop.f32.mrf.mxu0
    %v7960 = vadd.f32 %v6647, %v7959
    %v7961 = vpop.f32.mrf.mxu0
    %v7962 = vadd.f32 %v6647, %v7961
    %7963 = vmatmul.bf16.gmra.mxu0 %v6357
    %v7964 = vpop.f32.mrf.mxu0
    %v7965 = vadd.f32 %v6647, %v7964
    %v7966 = vpop.f32.mrf.mxu0
    %v7967 = vadd.f32 %v6647, %v7966
    %7968 = vmatmul.bf16.gmra.mxu0 %v6365
    %v7969 = vpop.f32.mrf.mxu0
    %v7970 = vadd.f32 %v6647, %v7969
    %v7971 = vpop.f32.mrf.mxu0
    %v7972 = vadd.f32 %v6647, %v7971
    %7973 = vmatmul.bf16.gmra.mxu0 %v6373
    %v7974 = vpop.f32.mrf.mxu0
    %v7975 = vadd.f32 %v6647, %v7974
    %v7976 = vpop.f32.mrf.mxu0
    %v7977 = vadd.f32 %v6647, %v7976
    %7978 = vmatmul.bf16.gmra.mxu0 %v6381
    %v7979 = vpop.f32.mrf.mxu0
    %v7980 = vadd.f32 %v6647, %v7979
    %v7981 = vpop.f32.mrf.mxu0
    %v7982 = vadd.f32 %v6647, %v7981
    %7983 = vdwg.mxu0
    %7984 = vmatpush.bf16.msra.mxu0 %v7483
    %7985 = vmatpush.bf16.msra.mxu0 %v7479
    %7986 = vmatpush.bf16.msra.mxu0 %v7475
    %7987 = vmatpush.bf16.msra.mxu0 %v7471
    %7988 = vmatpush.bf16.msra.mxu0 %v7467
    %7989 = vmatpush.bf16.msra.mxu0 %v7463
    %7990 = vmatpush.bf16.msra.mxu0 %v7459
    %7991 = vmatpush.bf16.msra.mxu0 %v7455
    %7992 = vmatmul.bf16.gmra.mxu0 %v6326
    %v7993 = vpop.f32.mrf.mxu0
    %v7994 = vadd.f32 %v7945, %v7993
    %v7995 = vpop.f32.mrf.mxu0
    %v7996 = vadd.f32 %v7947, %v7995
    %7997 = vmatmul.bf16.gmra.mxu0 %v6334
    %v7998 = vpop.f32.mrf.mxu0
    %v7999 = vadd.f32 %v7950, %v7998
    %v8000 = vpop.f32.mrf.mxu0
    %v8001 = vadd.f32 %v7952, %v8000
    %8002 = vmatmul.bf16.gmra.mxu0 %v6342
    %v8003 = vpop.f32.mrf.mxu0
    %v8004 = vadd.f32 %v7955, %v8003
    %v8005 = vpop.f32.mrf.mxu0
    %v8006 = vadd.f32 %v7957, %v8005
    %8007 = vmatmul.bf16.gmra.mxu0 %v6350
    %v8008 = vpop.f32.mrf.mxu0
    %v8009 = vadd.f32 %v7960, %v8008
    %v8010 = vpop.f32.mrf.mxu0
    %v8011 = vadd.f32 %v7962, %v8010
    %8012 = vmatmul.bf16.gmra.mxu0 %v6358
    %v8013 = vpop.f32.mrf.mxu0
    %v8014 = vadd.f32 %v7965, %v8013
    %v8015 = vpop.f32.mrf.mxu0
    %v8016 = vadd.f32 %v7967, %v8015
    %8017 = vmatmul.bf16.gmra.mxu0 %v6366
    %v8018 = vpop.f32.mrf.mxu0
    %v8019 = vadd.f32 %v7970, %v8018
    %v8020 = vpop.f32.mrf.mxu0
    %v8021 = vadd.f32 %v7972, %v8020
    %8022 = vmatmul.bf16.gmra.mxu0 %v6374
    %v8023 = vpop.f32.mrf.mxu0
    %v8024 = vadd.f32 %v7975, %v8023
    %v8025 = vpop.f32.mrf.mxu0
    %v8026 = vadd.f32 %v7977, %v8025
    %8027 = vmatmul.bf16.gmra.mxu0 %v6382
    %v8028 = vpop.f32.mrf.mxu0
    %v8029 = vadd.f32 %v7980, %v8028
    %v8030 = vpop.f32.mrf.mxu0
    %v8031 = vadd.f32 %v7982, %v8030
    %8032 = vdwg.mxu0
    %8033 = vmatpush.bf16.msra.mxu0 %v7515
    %8034 = vmatpush.bf16.msra.mxu0 %v7511
    %8035 = vmatpush.bf16.msra.mxu0 %v7507
    %8036 = vmatpush.bf16.msra.mxu0 %v7503
    %8037 = vmatpush.bf16.msra.mxu0 %v7499
    %8038 = vmatpush.bf16.msra.mxu0 %v7495
    %8039 = vmatpush.bf16.msra.mxu0 %v7491
    %8040 = vmatpush.bf16.msra.mxu0 %v7487
    %8041 = vmatmul.bf16.gmra.mxu0 %v6327
    %v8042 = vpop.f32.mrf.mxu0
    %v8043 = vadd.f32 %v7994, %v8042
    %v8044 = vpop.f32.mrf.mxu0
    %v8045 = vadd.f32 %v7996, %v8044
    %8046 = vmatmul.bf16.gmra.mxu0 %v6335
    %v8047 = vpop.f32.mrf.mxu0
    %v8048 = vadd.f32 %v7999, %v8047
    %v8049 = vpop.f32.mrf.mxu0
    %v8050 = vadd.f32 %v8001, %v8049
    %8051 = vmatmul.bf16.gmra.mxu0 %v6343
    %v8052 = vpop.f32.mrf.mxu0
    %v8053 = vadd.f32 %v8004, %v8052
    %v8054 = vpop.f32.mrf.mxu0
    %v8055 = vadd.f32 %v8006, %v8054
    %8056 = vmatmul.bf16.gmra.mxu0 %v6351
    %v8057 = vpop.f32.mrf.mxu0
    %v8058 = vadd.f32 %v8009, %v8057
    %v8059 = vpop.f32.mrf.mxu0
    %v8060 = vadd.f32 %v8011, %v8059
    %8061 = vmatmul.bf16.gmra.mxu0 %v6359
    %v8062 = vpop.f32.mrf.mxu0
    %v8063 = vadd.f32 %v8014, %v8062
    %v8064 = vpop.f32.mrf.mxu0
    %v8065 = vadd.f32 %v8016, %v8064
    %8066 = vmatmul.bf16.gmra.mxu0 %v6367
    %v8067 = vpop.f32.mrf.mxu0
    %v8068 = vadd.f32 %v8019, %v8067
    %v8069 = vpop.f32.mrf.mxu0
    %v8070 = vadd.f32 %v8021, %v8069
    %8071 = vmatmul.bf16.gmra.mxu0 %v6375
    %v8072 = vpop.f32.mrf.mxu0
    %v8073 = vadd.f32 %v8024, %v8072
    %v8074 = vpop.f32.mrf.mxu0
    %v8075 = vadd.f32 %v8026, %v8074
    %8076 = vmatmul.bf16.gmra.mxu0 %v6383
    %v8077 = vpop.f32.mrf.mxu0
    %v8078 = vadd.f32 %v8029, %v8077
    %v8079 = vpop.f32.mrf.mxu0
    %v8080 = vadd.f32 %v8031, %v8079
    %8081 = vdwg.mxu0
    %8082 = vmatpush.bf16.msra.mxu0 %v7547
    %8083 = vmatpush.bf16.msra.mxu0 %v7543
    %8084 = vmatpush.bf16.msra.mxu0 %v7539
    %8085 = vmatpush.bf16.msra.mxu0 %v7535
    %8086 = vmatpush.bf16.msra.mxu0 %v7531
    %8087 = vmatpush.bf16.msra.mxu0 %v7527
    %8088 = vmatpush.bf16.msra.mxu0 %v7523
    %8089 = vmatpush.bf16.msra.mxu0 %v7519
    %8090 = vmatmul.bf16.gmra.mxu0 %v6328
    %v8091 = vpop.f32.mrf.mxu0
    %v8092 = vadd.f32 %v8043, %v8091
    %v8093 = vpop.f32.mrf.mxu0
    %v8094 = vadd.f32 %v8045, %v8093
    %8095 = vmatmul.bf16.gmra.mxu0 %v6336
    %v8096 = vpop.f32.mrf.mxu0
    %v8097 = vadd.f32 %v8048, %v8096
    %v8098 = vpop.f32.mrf.mxu0
    %v8099 = vadd.f32 %v8050, %v8098
    %8100 = vmatmul.bf16.gmra.mxu0 %v6344
    %v8101 = vpop.f32.mrf.mxu0
    %v8102 = vadd.f32 %v8053, %v8101
    %v8103 = vpop.f32.mrf.mxu0
    %v8104 = vadd.f32 %v8055, %v8103
    %8105 = vmatmul.bf16.gmra.mxu0 %v6352
    %v8106 = vpop.f32.mrf.mxu0
    %v8107 = vadd.f32 %v8058, %v8106
    %v8108 = vpop.f32.mrf.mxu0
    %v8109 = vadd.f32 %v8060, %v8108
    %8110 = vmatmul.bf16.gmra.mxu0 %v6360
    %v8111 = vpop.f32.mrf.mxu0
    %v8112 = vadd.f32 %v8063, %v8111
    %v8113 = vpop.f32.mrf.mxu0
    %v8114 = vadd.f32 %v8065, %v8113
    %8115 = vmatmul.bf16.gmra.mxu0 %v6368
    %v8116 = vpop.f32.mrf.mxu0
    %v8117 = vadd.f32 %v8068, %v8116
    %v8118 = vpop.f32.mrf.mxu0
    %v8119 = vadd.f32 %v8070, %v8118
    %8120 = vmatmul.bf16.gmra.mxu0 %v6376
    %v8121 = vpop.f32.mrf.mxu0
    %v8122 = vadd.f32 %v8073, %v8121
    %v8123 = vpop.f32.mrf.mxu0
    %v8124 = vadd.f32 %v8075, %v8123
    %8125 = vmatmul.bf16.gmra.mxu0 %v6384
    %v8126 = vpop.f32.mrf.mxu0
    %v8127 = vadd.f32 %v8078, %v8126
    %v8128 = vpop.f32.mrf.mxu0
    %v8129 = vadd.f32 %v8080, %v8128
    %8130 = vdwg.mxu0
    %8131 = vmatpush.bf16.msra.mxu0 %v7579
    %8132 = vmatpush.bf16.msra.mxu0 %v7575
    %8133 = vmatpush.bf16.msra.mxu0 %v7571
    %8134 = vmatpush.bf16.msra.mxu0 %v7567
    %8135 = vmatpush.bf16.msra.mxu0 %v7563
    %8136 = vmatpush.bf16.msra.mxu0 %v7559
    %8137 = vmatpush.bf16.msra.mxu0 %v7555
    %8138 = vmatpush.bf16.msra.mxu0 %v7551
    %8139 = vmatmul.bf16.gmra.mxu0 %v6329
    %v8140 = vpop.f32.mrf.mxu0
    %v8141 = vadd.f32 %v8092, %v8140
    %v8142 = vpop.f32.mrf.mxu0
    %v8143 = vadd.f32 %v8094, %v8142
    %8144 = vmatmul.bf16.gmra.mxu0 %v6337
    %v8145 = vpop.f32.mrf.mxu0
    %v8146 = vadd.f32 %v8097, %v8145
    %v8147 = vpop.f32.mrf.mxu0
    %v8148 = vadd.f32 %v8099, %v8147
    %8149 = vmatmul.bf16.gmra.mxu0 %v6345
    %v8150 = vpop.f32.mrf.mxu0
    %v8151 = vadd.f32 %v8102, %v8150
    %v8152 = vpop.f32.mrf.mxu0
    %v8153 = vadd.f32 %v8104, %v8152
    %8154 = vmatmul.bf16.gmra.mxu0 %v6353
    %v8155 = vpop.f32.mrf.mxu0
    %v8156 = vadd.f32 %v8107, %v8155
    %v8157 = vpop.f32.mrf.mxu0
    %v8158 = vadd.f32 %v8109, %v8157
    %8159 = vmatmul.bf16.gmra.mxu0 %v6361
    %v8160 = vpop.f32.mrf.mxu0
    %v8161 = vadd.f32 %v8112, %v8160
    %v8162 = vpop.f32.mrf.mxu0
    %v8163 = vadd.f32 %v8114, %v8162
    %8164 = vmatmul.bf16.gmra.mxu0 %v6369
    %v8165 = vpop.f32.mrf.mxu0
    %v8166 = vadd.f32 %v8117, %v8165
    %v8167 = vpop.f32.mrf.mxu0
    %v8168 = vadd.f32 %v8119, %v8167
    %8169 = vmatmul.bf16.gmra.mxu0 %v6377
    %v8170 = vpop.f32.mrf.mxu0
    %v8171 = vadd.f32 %v8122, %v8170
    %v8172 = vpop.f32.mrf.mxu0
    %v8173 = vadd.f32 %v8124, %v8172
    %8174 = vmatmul.bf16.gmra.mxu0 %v6385
    %v8175 = vpop.f32.mrf.mxu0
    %v8176 = vadd.f32 %v8127, %v8175
    %v8177 = vpop.f32.mrf.mxu0
    %v8178 = vadd.f32 %v8129, %v8177
    %8179 = vdwg.mxu0
    %8180 = vmatpush.bf16.msra.mxu0 %v7611
    %8181 = vmatpush.bf16.msra.mxu0 %v7607
    %8182 = vmatpush.bf16.msra.mxu0 %v7603
    %8183 = vmatpush.bf16.msra.mxu0 %v7599
    %8184 = vmatpush.bf16.msra.mxu0 %v7595
    %8185 = vmatpush.bf16.msra.mxu0 %v7591
    %8186 = vmatpush.bf16.msra.mxu0 %v7587
    %8187 = vmatpush.bf16.msra.mxu0 %v7583
    %8188 = vmatmul.bf16.gmra.mxu0 %v6330
    %v8189 = vpop.f32.mrf.mxu0
    %v8190 = vadd.f32 %v8141, %v8189
    %v8191 = vpop.f32.mrf.mxu0
    %v8192 = vadd.f32 %v8143, %v8191
    %8193 = vmatmul.bf16.gmra.mxu0 %v6338
    %v8194 = vpop.f32.mrf.mxu0
    %v8195 = vadd.f32 %v8146, %v8194
    %v8196 = vpop.f32.mrf.mxu0
    %v8197 = vadd.f32 %v8148, %v8196
    %8198 = vmatmul.bf16.gmra.mxu0 %v6346
    %v8199 = vpop.f32.mrf.mxu0
    %v8200 = vadd.f32 %v8151, %v8199
    %v8201 = vpop.f32.mrf.mxu0
    %v8202 = vadd.f32 %v8153, %v8201
    %8203 = vmatmul.bf16.gmra.mxu0 %v6354
    %v8204 = vpop.f32.mrf.mxu0
    %v8205 = vadd.f32 %v8156, %v8204
    %v8206 = vpop.f32.mrf.mxu0
    %v8207 = vadd.f32 %v8158, %v8206
    %8208 = vmatmul.bf16.gmra.mxu0 %v6362
    %v8209 = vpop.f32.mrf.mxu0
    %v8210 = vadd.f32 %v8161, %v8209
    %v8211 = vpop.f32.mrf.mxu0
    %v8212 = vadd.f32 %v8163, %v8211
    %8213 = vmatmul.bf16.gmra.mxu0 %v6370
    %v8214 = vpop.f32.mrf.mxu0
    %v8215 = vadd.f32 %v8166, %v8214
    %v8216 = vpop.f32.mrf.mxu0
    %v8217 = vadd.f32 %v8168, %v8216
    %8218 = vmatmul.bf16.gmra.mxu0 %v6378
    %v8219 = vpop.f32.mrf.mxu0
    %v8220 = vadd.f32 %v8171, %v8219
    %v8221 = vpop.f32.mrf.mxu0
    %v8222 = vadd.f32 %v8173, %v8221
    %8223 = vmatmul.bf16.gmra.mxu0 %v6386
    %v8224 = vpop.f32.mrf.mxu0
    %v8225 = vadd.f32 %v8176, %v8224
    %v8226 = vpop.f32.mrf.mxu0
    %v8227 = vadd.f32 %v8178, %v8226
    %8228 = vdwg.mxu0
    %8229 = vmatpush.bf16.msra.mxu0 %v7643
    %8230 = vmatpush.bf16.msra.mxu0 %v7639
    %8231 = vmatpush.bf16.msra.mxu0 %v7635
    %8232 = vmatpush.bf16.msra.mxu0 %v7631
    %8233 = vmatpush.bf16.msra.mxu0 %v7627
    %8234 = vmatpush.bf16.msra.mxu0 %v7623
    %8235 = vmatpush.bf16.msra.mxu0 %v7619
    %8236 = vmatpush.bf16.msra.mxu0 %v7615
    %8237 = vmatmul.bf16.gmra.mxu0 %v6331
    %v8238 = vpop.f32.mrf.mxu0
    %v8239 = vadd.f32 %v8190, %v8238
    %v8240 = vpop.f32.mrf.mxu0
    %v8241 = vadd.f32 %v8192, %v8240
    %8242 = vmatmul.bf16.gmra.mxu0 %v6339
    %v8243 = vpop.f32.mrf.mxu0
    %v8244 = vadd.f32 %v8195, %v8243
    %v8245 = vpop.f32.mrf.mxu0
    %v8246 = vadd.f32 %v8197, %v8245
    %8247 = vmatmul.bf16.gmra.mxu0 %v6347
    %v8248 = vpop.f32.mrf.mxu0
    %v8249 = vadd.f32 %v8200, %v8248
    %v8250 = vpop.f32.mrf.mxu0
    %v8251 = vadd.f32 %v8202, %v8250
    %8252 = vmatmul.bf16.gmra.mxu0 %v6355
    %v8253 = vpop.f32.mrf.mxu0
    %v8254 = vadd.f32 %v8205, %v8253
    %v8255 = vpop.f32.mrf.mxu0
    %v8256 = vadd.f32 %v8207, %v8255
    %8257 = vmatmul.bf16.gmra.mxu0 %v6363
    %v8258 = vpop.f32.mrf.mxu0
    %v8259 = vadd.f32 %v8210, %v8258
    %v8260 = vpop.f32.mrf.mxu0
    %v8261 = vadd.f32 %v8212, %v8260
    %8262 = vmatmul.bf16.gmra.mxu0 %v6371
    %v8263 = vpop.f32.mrf.mxu0
    %v8264 = vadd.f32 %v8215, %v8263
    %v8265 = vpop.f32.mrf.mxu0
    %v8266 = vadd.f32 %v8217, %v8265
    %8267 = vmatmul.bf16.gmra.mxu0 %v6379
    %v8268 = vpop.f32.mrf.mxu0
    %v8269 = vadd.f32 %v8220, %v8268
    %v8270 = vpop.f32.mrf.mxu0
    %v8271 = vadd.f32 %v8222, %v8270
    %8272 = vmatmul.bf16.gmra.mxu0 %v6387
    %v8273 = vpop.f32.mrf.mxu0
    %v8274 = vadd.f32 %v8225, %v8273
    %v8275 = vpop.f32.mrf.mxu0
    %v8276 = vadd.f32 %v8227, %v8275
    %8277 = vdwg.mxu0
    %8278 = vmatpush.bf16.msra.mxu0 %v7675
    %8279 = vmatpush.bf16.msra.mxu0 %v7671
    %8280 = vmatpush.bf16.msra.mxu0 %v7667
    %8281 = vmatpush.bf16.msra.mxu0 %v7663
    %8282 = vmatpush.bf16.msra.mxu0 %v7659
    %8283 = vmatpush.bf16.msra.mxu0 %v7655
    %8284 = vmatpush.bf16.msra.mxu0 %v7651
    %8285 = vmatpush.bf16.msra.mxu0 %v7647
    %8286 = vmatmul.bf16.gmra.mxu0 %v6332
    %v8287 = vpop.f32.mrf.mxu0
    %v8288 = vadd.f32 %v8239, %v8287
    %v8289 = vpop.f32.mrf.mxu0
    %v8290 = vadd.f32 %v8241, %v8289
    %8291 = vmatmul.bf16.gmra.mxu0 %v6340
    %v8292 = vpop.f32.mrf.mxu0
    %v8293 = vadd.f32 %v8244, %v8292
    %v8294 = vpop.f32.mrf.mxu0
    %v8295 = vadd.f32 %v8246, %v8294
    %8296 = vmatmul.bf16.gmra.mxu0 %v6348
    %v8297 = vpop.f32.mrf.mxu0
    %v8298 = vadd.f32 %v8249, %v8297
    %v8299 = vpop.f32.mrf.mxu0
    %v8300 = vadd.f32 %v8251, %v8299
    %8301 = vmatmul.bf16.gmra.mxu0 %v6356
    %v8302 = vpop.f32.mrf.mxu0
    %v8303 = vadd.f32 %v8254, %v8302
    %v8304 = vpop.f32.mrf.mxu0
    %v8305 = vadd.f32 %v8256, %v8304
    %8306 = vmatmul.bf16.gmra.mxu0 %v6364
    %v8307 = vpop.f32.mrf.mxu0
    %v8308 = vadd.f32 %v8259, %v8307
    %v8309 = vpop.f32.mrf.mxu0
    %v8310 = vadd.f32 %v8261, %v8309
    %8311 = vmatmul.bf16.gmra.mxu0 %v6372
    %v8312 = vpop.f32.mrf.mxu0
    %v8313 = vadd.f32 %v8264, %v8312
    %v8314 = vpop.f32.mrf.mxu0
    %v8315 = vadd.f32 %v8266, %v8314
    %8316 = vmatmul.bf16.gmra.mxu0 %v6380
    %v8317 = vpop.f32.mrf.mxu0
    %v8318 = vadd.f32 %v8269, %v8317
    %v8319 = vpop.f32.mrf.mxu0
    %v8320 = vadd.f32 %v8271, %v8319
    %8321 = vmatmul.bf16.gmra.mxu0 %v6388
    %v8322 = vpop.f32.mrf.mxu0
    %v8323 = vadd.f32 %v8274, %v8322
    %v8324 = vpop.f32.mrf.mxu0
    %v8325 = vadd.f32 %v8276, %v8324
    %8326 = vdwg.mxu0
    %8327 = vmatpush.bf16.msra.mxu0 %v7452
    %8328 = vmatpush.bf16.msra.mxu0 %v7448
    %8329 = vmatpush.bf16.msra.mxu0 %v7444
    %8330 = vmatpush.bf16.msra.mxu0 %v7440
    %8331 = vmatpush.bf16.msra.mxu0 %v7436
    %8332 = vmatpush.bf16.msra.mxu0 %v7432
    %8333 = vmatpush.bf16.msra.mxu0 %v7428
    %8334 = vmatpush.bf16.msra.mxu0 %v7424
    %8335 = vmatmul.bf16.gmra.mxu0 %v6325
    %v8336 = vpop.f32.mrf.mxu0
    %v8337 = vadd.f32 %v6648, %v8336
    %v8338 = vpop.f32.mrf.mxu0
    %v8339 = vadd.f32 %v6648, %v8338
    %8340 = vmatmul.bf16.gmra.mxu0 %v6333
    %v8341 = vpop.f32.mrf.mxu0
    %v8342 = vadd.f32 %v6648, %v8341
    %v8343 = vpop.f32.mrf.mxu0
    %v8344 = vadd.f32 %v6648, %v8343
    %8345 = vmatmul.bf16.gmra.mxu0 %v6341
    %v8346 = vpop.f32.mrf.mxu0
    %v8347 = vadd.f32 %v6648, %v8346
    %v8348 = vpop.f32.mrf.mxu0
    %v8349 = vadd.f32 %v6648, %v8348
    %8350 = vmatmul.bf16.gmra.mxu0 %v6349
    %v8351 = vpop.f32.mrf.mxu0
    %v8352 = vadd.f32 %v6648, %v8351
    %v8353 = vpop.f32.mrf.mxu0
    %v8354 = vadd.f32 %v6648, %v8353
    %8355 = vmatmul.bf16.gmra.mxu0 %v6357
    %v8356 = vpop.f32.mrf.mxu0
    %v8357 = vadd.f32 %v6648, %v8356
    %v8358 = vpop.f32.mrf.mxu0
    %v8359 = vadd.f32 %v6648, %v8358
    %8360 = vmatmul.bf16.gmra.mxu0 %v6365
    %v8361 = vpop.f32.mrf.mxu0
    %v8362 = vadd.f32 %v6648, %v8361
    %v8363 = vpop.f32.mrf.mxu0
    %v8364 = vadd.f32 %v6648, %v8363
    %8365 = vmatmul.bf16.gmra.mxu0 %v6373
    %v8366 = vpop.f32.mrf.mxu0
    %v8367 = vadd.f32 %v6648, %v8366
    %v8368 = vpop.f32.mrf.mxu0
    %v8369 = vadd.f32 %v6648, %v8368
    %8370 = vmatmul.bf16.gmra.mxu0 %v6381
    %v8371 = vpop.f32.mrf.mxu0
    %v8372 = vadd.f32 %v6648, %v8371
    %v8373 = vpop.f32.mrf.mxu0
    %v8374 = vadd.f32 %v6648, %v8373
    %8375 = vdwg.mxu0
    %8376 = vmatpush.bf16.msra.mxu0 %v7484
    %8377 = vmatpush.bf16.msra.mxu0 %v7480
    %8378 = vmatpush.bf16.msra.mxu0 %v7476
    %8379 = vmatpush.bf16.msra.mxu0 %v7472
    %8380 = vmatpush.bf16.msra.mxu0 %v7468
    %8381 = vmatpush.bf16.msra.mxu0 %v7464
    %8382 = vmatpush.bf16.msra.mxu0 %v7460
    %8383 = vmatpush.bf16.msra.mxu0 %v7456
    %8384 = vmatmul.bf16.gmra.mxu0 %v6326
    %v8385 = vpop.f32.mrf.mxu0
    %v8386 = vadd.f32 %v8337, %v8385
    %v8387 = vpop.f32.mrf.mxu0
    %v8388 = vadd.f32 %v8339, %v8387
    %8389 = vmatmul.bf16.gmra.mxu0 %v6334
    %v8390 = vpop.f32.mrf.mxu0
    %v8391 = vadd.f32 %v8342, %v8390
    %v8392 = vpop.f32.mrf.mxu0
    %v8393 = vadd.f32 %v8344, %v8392
    %8394 = vmatmul.bf16.gmra.mxu0 %v6342
    %v8395 = vpop.f32.mrf.mxu0
    %v8396 = vadd.f32 %v8347, %v8395
    %v8397 = vpop.f32.mrf.mxu0
    %v8398 = vadd.f32 %v8349, %v8397
    %8399 = vmatmul.bf16.gmra.mxu0 %v6350
    %v8400 = vpop.f32.mrf.mxu0
    %v8401 = vadd.f32 %v8352, %v8400
    %v8402 = vpop.f32.mrf.mxu0
    %v8403 = vadd.f32 %v8354, %v8402
    %8404 = vmatmul.bf16.gmra.mxu0 %v6358
    %v8405 = vpop.f32.mrf.mxu0
    %v8406 = vadd.f32 %v8357, %v8405
    %v8407 = vpop.f32.mrf.mxu0
    %v8408 = vadd.f32 %v8359, %v8407
    %8409 = vmatmul.bf16.gmra.mxu0 %v6366
    %v8410 = vpop.f32.mrf.mxu0
    %v8411 = vadd.f32 %v8362, %v8410
    %v8412 = vpop.f32.mrf.mxu0
    %v8413 = vadd.f32 %v8364, %v8412
    %8414 = vmatmul.bf16.gmra.mxu0 %v6374
    %v8415 = vpop.f32.mrf.mxu0
    %v8416 = vadd.f32 %v8367, %v8415
    %v8417 = vpop.f32.mrf.mxu0
    %v8418 = vadd.f32 %v8369, %v8417
    %8419 = vmatmul.bf16.gmra.mxu0 %v6382
    %v8420 = vpop.f32.mrf.mxu0
    %v8421 = vadd.f32 %v8372, %v8420
    %v8422 = vpop.f32.mrf.mxu0
    %v8423 = vadd.f32 %v8374, %v8422
    %8424 = vdwg.mxu0
    %8425 = vmatpush.bf16.msra.mxu0 %v7516
    %8426 = vmatpush.bf16.msra.mxu0 %v7512
    %8427 = vmatpush.bf16.msra.mxu0 %v7508
    %8428 = vmatpush.bf16.msra.mxu0 %v7504
    %8429 = vmatpush.bf16.msra.mxu0 %v7500
    %8430 = vmatpush.bf16.msra.mxu0 %v7496
    %8431 = vmatpush.bf16.msra.mxu0 %v7492
    %8432 = vmatpush.bf16.msra.mxu0 %v7488
    %8433 = vmatmul.bf16.gmra.mxu0 %v6327
    %v8434 = vpop.f32.mrf.mxu0
    %v8435 = vadd.f32 %v8386, %v8434
    %v8436 = vpop.f32.mrf.mxu0
    %v8437 = vadd.f32 %v8388, %v8436
    %8438 = vmatmul.bf16.gmra.mxu0 %v6335
    %v8439 = vpop.f32.mrf.mxu0
    %v8440 = vadd.f32 %v8391, %v8439
    %v8441 = vpop.f32.mrf.mxu0
    %v8442 = vadd.f32 %v8393, %v8441
    %8443 = vmatmul.bf16.gmra.mxu0 %v6343
    %v8444 = vpop.f32.mrf.mxu0
    %v8445 = vadd.f32 %v8396, %v8444
    %v8446 = vpop.f32.mrf.mxu0
    %v8447 = vadd.f32 %v8398, %v8446
    %8448 = vmatmul.bf16.gmra.mxu0 %v6351
    %v8449 = vpop.f32.mrf.mxu0
    %v8450 = vadd.f32 %v8401, %v8449
    %v8451 = vpop.f32.mrf.mxu0
    %v8452 = vadd.f32 %v8403, %v8451
    %8453 = vmatmul.bf16.gmra.mxu0 %v6359
    %v8454 = vpop.f32.mrf.mxu0
    %v8455 = vadd.f32 %v8406, %v8454
    %v8456 = vpop.f32.mrf.mxu0
    %v8457 = vadd.f32 %v8408, %v8456
    %8458 = vmatmul.bf16.gmra.mxu0 %v6367
    %v8459 = vpop.f32.mrf.mxu0
    %v8460 = vadd.f32 %v8411, %v8459
    %v8461 = vpop.f32.mrf.mxu0
    %v8462 = vadd.f32 %v8413, %v8461
    %8463 = vmatmul.bf16.gmra.mxu0 %v6375
    %v8464 = vpop.f32.mrf.mxu0
    %v8465 = vadd.f32 %v8416, %v8464
    %v8466 = vpop.f32.mrf.mxu0
    %v8467 = vadd.f32 %v8418, %v8466
    %8468 = vmatmul.bf16.gmra.mxu0 %v6383
    %v8469 = vpop.f32.mrf.mxu0
    %v8470 = vadd.f32 %v8421, %v8469
    %v8471 = vpop.f32.mrf.mxu0
    %v8472 = vadd.f32 %v8423, %v8471
    %8473 = vdwg.mxu0
    %8474 = vmatpush.bf16.msra.mxu0 %v7548
    %8475 = vmatpush.bf16.msra.mxu0 %v7544
    %8476 = vmatpush.bf16.msra.mxu0 %v7540
    %8477 = vmatpush.bf16.msra.mxu0 %v7536
    %8478 = vmatpush.bf16.msra.mxu0 %v7532
    %8479 = vmatpush.bf16.msra.mxu0 %v7528
    %8480 = vmatpush.bf16.msra.mxu0 %v7524
    %8481 = vmatpush.bf16.msra.mxu0 %v7520
    %8482 = vmatmul.bf16.gmra.mxu0 %v6328
    %v8483 = vpop.f32.mrf.mxu0
    %v8484 = vadd.f32 %v8435, %v8483
    %v8485 = vpop.f32.mrf.mxu0
    %v8486 = vadd.f32 %v8437, %v8485
    %8487 = vmatmul.bf16.gmra.mxu0 %v6336
    %v8488 = vpop.f32.mrf.mxu0
    %v8489 = vadd.f32 %v8440, %v8488
    %v8490 = vpop.f32.mrf.mxu0
    %v8491 = vadd.f32 %v8442, %v8490
    %8492 = vmatmul.bf16.gmra.mxu0 %v6344
    %v8493 = vpop.f32.mrf.mxu0
    %v8494 = vadd.f32 %v8445, %v8493
    %v8495 = vpop.f32.mrf.mxu0
    %v8496 = vadd.f32 %v8447, %v8495
    %8497 = vmatmul.bf16.gmra.mxu0 %v6352
    %v8498 = vpop.f32.mrf.mxu0
    %v8499 = vadd.f32 %v8450, %v8498
    %v8500 = vpop.f32.mrf.mxu0
    %v8501 = vadd.f32 %v8452, %v8500
    %8502 = vmatmul.bf16.gmra.mxu0 %v6360
    %v8503 = vpop.f32.mrf.mxu0
    %v8504 = vadd.f32 %v8455, %v8503
    %v8505 = vpop.f32.mrf.mxu0
    %v8506 = vadd.f32 %v8457, %v8505
    %8507 = vmatmul.bf16.gmra.mxu0 %v6368
    %v8508 = vpop.f32.mrf.mxu0
    %v8509 = vadd.f32 %v8460, %v8508
    %v8510 = vpop.f32.mrf.mxu0
    %v8511 = vadd.f32 %v8462, %v8510
    %8512 = vmatmul.bf16.gmra.mxu0 %v6376
    %v8513 = vpop.f32.mrf.mxu0
    %v8514 = vadd.f32 %v8465, %v8513
    %v8515 = vpop.f32.mrf.mxu0
    %v8516 = vadd.f32 %v8467, %v8515
    %8517 = vmatmul.bf16.gmra.mxu0 %v6384
    %v8518 = vpop.f32.mrf.mxu0
    %v8519 = vadd.f32 %v8470, %v8518
    %v8520 = vpop.f32.mrf.mxu0
    %v8521 = vadd.f32 %v8472, %v8520
    %8522 = vdwg.mxu0
    %8523 = vmatpush.bf16.msra.mxu0 %v7580
    %8524 = vmatpush.bf16.msra.mxu0 %v7576
    %8525 = vmatpush.bf16.msra.mxu0 %v7572
    %8526 = vmatpush.bf16.msra.mxu0 %v7568
    %8527 = vmatpush.bf16.msra.mxu0 %v7564
    %8528 = vmatpush.bf16.msra.mxu0 %v7560
    %8529 = vmatpush.bf16.msra.mxu0 %v7556
    %8530 = vmatpush.bf16.msra.mxu0 %v7552
    %8531 = vmatmul.bf16.gmra.mxu0 %v6329
    %v8532 = vpop.f32.mrf.mxu0
    %v8533 = vadd.f32 %v8484, %v8532
    %v8534 = vpop.f32.mrf.mxu0
    %v8535 = vadd.f32 %v8486, %v8534
    %8536 = vmatmul.bf16.gmra.mxu0 %v6337
    %v8537 = vpop.f32.mrf.mxu0
    %v8538 = vadd.f32 %v8489, %v8537
    %v8539 = vpop.f32.mrf.mxu0
    %v8540 = vadd.f32 %v8491, %v8539
    %8541 = vmatmul.bf16.gmra.mxu0 %v6345
    %v8542 = vpop.f32.mrf.mxu0
    %v8543 = vadd.f32 %v8494, %v8542
    %v8544 = vpop.f32.mrf.mxu0
    %v8545 = vadd.f32 %v8496, %v8544
    %8546 = vmatmul.bf16.gmra.mxu0 %v6353
    %v8547 = vpop.f32.mrf.mxu0
    %v8548 = vadd.f32 %v8499, %v8547
    %v8549 = vpop.f32.mrf.mxu0
    %v8550 = vadd.f32 %v8501, %v8549
    %8551 = vmatmul.bf16.gmra.mxu0 %v6361
    %v8552 = vpop.f32.mrf.mxu0
    %v8553 = vadd.f32 %v8504, %v8552
    %v8554 = vpop.f32.mrf.mxu0
    %v8555 = vadd.f32 %v8506, %v8554
    %8556 = vmatmul.bf16.gmra.mxu0 %v6369
    %v8557 = vpop.f32.mrf.mxu0
    %v8558 = vadd.f32 %v8509, %v8557
    %v8559 = vpop.f32.mrf.mxu0
    %v8560 = vadd.f32 %v8511, %v8559
    %8561 = vmatmul.bf16.gmra.mxu0 %v6377
    %v8562 = vpop.f32.mrf.mxu0
    %v8563 = vadd.f32 %v8514, %v8562
    %v8564 = vpop.f32.mrf.mxu0
    %v8565 = vadd.f32 %v8516, %v8564
    %8566 = vmatmul.bf16.gmra.mxu0 %v6385
    %v8567 = vpop.f32.mrf.mxu0
    %v8568 = vadd.f32 %v8519, %v8567
    %v8569 = vpop.f32.mrf.mxu0
    %v8570 = vadd.f32 %v8521, %v8569
    %8571 = vdwg.mxu0
    %8572 = vmatpush.bf16.msra.mxu0 %v7612
    %8573 = vmatpush.bf16.msra.mxu0 %v7608
    %8574 = vmatpush.bf16.msra.mxu0 %v7604
    %8575 = vmatpush.bf16.msra.mxu0 %v7600
    %8576 = vmatpush.bf16.msra.mxu0 %v7596
    %8577 = vmatpush.bf16.msra.mxu0 %v7592
    %8578 = vmatpush.bf16.msra.mxu0 %v7588
    %8579 = vmatpush.bf16.msra.mxu0 %v7584
    %8580 = vmatmul.bf16.gmra.mxu0 %v6330
    %v8581 = vpop.f32.mrf.mxu0
    %v8582 = vadd.f32 %v8533, %v8581
    %v8583 = vpop.f32.mrf.mxu0
    %v8584 = vadd.f32 %v8535, %v8583
    %8585 = vmatmul.bf16.gmra.mxu0 %v6338
    %v8586 = vpop.f32.mrf.mxu0
    %v8587 = vadd.f32 %v8538, %v8586
    %v8588 = vpop.f32.mrf.mxu0
    %v8589 = vadd.f32 %v8540, %v8588
    %8590 = vmatmul.bf16.gmra.mxu0 %v6346
    %v8591 = vpop.f32.mrf.mxu0
    %v8592 = vadd.f32 %v8543, %v8591
    %v8593 = vpop.f32.mrf.mxu0
    %v8594 = vadd.f32 %v8545, %v8593
    %8595 = vmatmul.bf16.gmra.mxu0 %v6354
    %v8596 = vpop.f32.mrf.mxu0
    %v8597 = vadd.f32 %v8548, %v8596
    %v8598 = vpop.f32.mrf.mxu0
    %v8599 = vadd.f32 %v8550, %v8598
    %8600 = vmatmul.bf16.gmra.mxu0 %v6362
    %v8601 = vpop.f32.mrf.mxu0
    %v8602 = vadd.f32 %v8553, %v8601
    %v8603 = vpop.f32.mrf.mxu0
    %v8604 = vadd.f32 %v8555, %v8603
    %8605 = vmatmul.bf16.gmra.mxu0 %v6370
    %v8606 = vpop.f32.mrf.mxu0
    %v8607 = vadd.f32 %v8558, %v8606
    %v8608 = vpop.f32.mrf.mxu0
    %v8609 = vadd.f32 %v8560, %v8608
    %8610 = vmatmul.bf16.gmra.mxu0 %v6378
    %v8611 = vpop.f32.mrf.mxu0
    %v8612 = vadd.f32 %v8563, %v8611
    %v8613 = vpop.f32.mrf.mxu0
    %v8614 = vadd.f32 %v8565, %v8613
    %8615 = vmatmul.bf16.gmra.mxu0 %v6386
    %v8616 = vpop.f32.mrf.mxu0
    %v8617 = vadd.f32 %v8568, %v8616
    %v8618 = vpop.f32.mrf.mxu0
    %v8619 = vadd.f32 %v8570, %v8618
    %8620 = vdwg.mxu0
    %8621 = vmatpush.bf16.msra.mxu0 %v7644
    %8622 = vmatpush.bf16.msra.mxu0 %v7640
    %8623 = vmatpush.bf16.msra.mxu0 %v7636
    %8624 = vmatpush.bf16.msra.mxu0 %v7632
    %8625 = vmatpush.bf16.msra.mxu0 %v7628
    %8626 = vmatpush.bf16.msra.mxu0 %v7624
    %8627 = vmatpush.bf16.msra.mxu0 %v7620
    %8628 = vmatpush.bf16.msra.mxu0 %v7616
    %8629 = vmatmul.bf16.gmra.mxu0 %v6331
    %v8630 = vpop.f32.mrf.mxu0
    %v8631 = vadd.f32 %v8582, %v8630
    %v8632 = vpop.f32.mrf.mxu0
    %v8633 = vadd.f32 %v8584, %v8632
    %8634 = vmatmul.bf16.gmra.mxu0 %v6339
    %v8635 = vpop.f32.mrf.mxu0
    %v8636 = vadd.f32 %v8587, %v8635
    %v8637 = vpop.f32.mrf.mxu0
    %v8638 = vadd.f32 %v8589, %v8637
    %8639 = vmatmul.bf16.gmra.mxu0 %v6347
    %v8640 = vpop.f32.mrf.mxu0
    %v8641 = vadd.f32 %v8592, %v8640
    %v8642 = vpop.f32.mrf.mxu0
    %v8643 = vadd.f32 %v8594, %v8642
    %8644 = vmatmul.bf16.gmra.mxu0 %v6355
    %v8645 = vpop.f32.mrf.mxu0
    %v8646 = vadd.f32 %v8597, %v8645
    %v8647 = vpop.f32.mrf.mxu0
    %v8648 = vadd.f32 %v8599, %v8647
    %8649 = vmatmul.bf16.gmra.mxu0 %v6363
    %v8650 = vpop.f32.mrf.mxu0
    %v8651 = vadd.f32 %v8602, %v8650
    %v8652 = vpop.f32.mrf.mxu0
    %v8653 = vadd.f32 %v8604, %v8652
    %8654 = vmatmul.bf16.gmra.mxu0 %v6371
    %v8655 = vpop.f32.mrf.mxu0
    %v8656 = vadd.f32 %v8607, %v8655
    %v8657 = vpop.f32.mrf.mxu0
    %v8658 = vadd.f32 %v8609, %v8657
    %8659 = vmatmul.bf16.gmra.mxu0 %v6379
    %v8660 = vpop.f32.mrf.mxu0
    %v8661 = vadd.f32 %v8612, %v8660
    %v8662 = vpop.f32.mrf.mxu0
    %v8663 = vadd.f32 %v8614, %v8662
    %8664 = vmatmul.bf16.gmra.mxu0 %v6387
    %v8665 = vpop.f32.mrf.mxu0
    %v8666 = vadd.f32 %v8617, %v8665
    %v8667 = vpop.f32.mrf.mxu0
    %v8668 = vadd.f32 %v8619, %v8667
    %8669 = vdwg.mxu0
    %8670 = vmatpush.bf16.msra.mxu0 %v7676
    %8671 = vmatpush.bf16.msra.mxu0 %v7672
    %8672 = vmatpush.bf16.msra.mxu0 %v7668
    %8673 = vmatpush.bf16.msra.mxu0 %v7664
    %8674 = vmatpush.bf16.msra.mxu0 %v7660
    %8675 = vmatpush.bf16.msra.mxu0 %v7656
    %8676 = vmatpush.bf16.msra.mxu0 %v7652
    %8677 = vmatpush.bf16.msra.mxu0 %v7648
    %8678 = vmatmul.bf16.gmra.mxu0 %v6332
    %v8679 = vpop.f32.mrf.mxu0
    %v8680 = vadd.f32 %v8631, %v8679
    %v8681 = vpop.f32.mrf.mxu0
    %v8682 = vadd.f32 %v8633, %v8681
    %8683 = vmatmul.bf16.gmra.mxu0 %v6340
    %v8684 = vpop.f32.mrf.mxu0
    %v8685 = vadd.f32 %v8636, %v8684
    %v8686 = vpop.f32.mrf.mxu0
    %v8687 = vadd.f32 %v8638, %v8686
    %8688 = vmatmul.bf16.gmra.mxu0 %v6348
    %v8689 = vpop.f32.mrf.mxu0
    %v8690 = vadd.f32 %v8641, %v8689
    %v8691 = vpop.f32.mrf.mxu0
    %v8692 = vadd.f32 %v8643, %v8691
    %8693 = vmatmul.bf16.gmra.mxu0 %v6356
    %v8694 = vpop.f32.mrf.mxu0
    %v8695 = vadd.f32 %v8646, %v8694
    %v8696 = vpop.f32.mrf.mxu0
    %v8697 = vadd.f32 %v8648, %v8696
    %8698 = vmatmul.bf16.gmra.mxu0 %v6364
    %v8699 = vpop.f32.mrf.mxu0
    %v8700 = vadd.f32 %v8651, %v8699
    %v8701 = vpop.f32.mrf.mxu0
    %v8702 = vadd.f32 %v8653, %v8701
    %8703 = vmatmul.bf16.gmra.mxu0 %v6372
    %v8704 = vpop.f32.mrf.mxu0
    %v8705 = vadd.f32 %v8656, %v8704
    %v8706 = vpop.f32.mrf.mxu0
    %v8707 = vadd.f32 %v8658, %v8706
    %8708 = vmatmul.bf16.gmra.mxu0 %v6380
    %v8709 = vpop.f32.mrf.mxu0
    %v8710 = vadd.f32 %v8661, %v8709
    %v8711 = vpop.f32.mrf.mxu0
    %v8712 = vadd.f32 %v8663, %v8711
    %8713 = vmatmul.bf16.gmra.mxu0 %v6388
    %v8714 = vpop.f32.mrf.mxu0
    %v8715 = vadd.f32 %v8666, %v8714
    %v8716 = vpop.f32.mrf.mxu0
    %v8717 = vadd.f32 %v8668, %v8716
    %8718 = vdwg.mxu0
    %8719 = vmatpush.bf16.msra.mxu0 %v7453
    %8720 = vmatpush.bf16.msra.mxu0 %v7449
    %8721 = vmatpush.bf16.msra.mxu0 %v7445
    %8722 = vmatpush.bf16.msra.mxu0 %v7441
    %8723 = vmatpush.bf16.msra.mxu0 %v7437
    %8724 = vmatpush.bf16.msra.mxu0 %v7433
    %8725 = vmatpush.bf16.msra.mxu0 %v7429
    %8726 = vmatpush.bf16.msra.mxu0 %v7425
    %8727 = vmatmul.bf16.gmra.mxu0 %v6325
    %v8728 = vpop.f32.mrf.mxu0
    %v8729 = vadd.f32 %v6649, %v8728
    %v8730 = vpop.f32.mrf.mxu0
    %v8731 = vadd.f32 %v6649, %v8730
    %8732 = vmatmul.bf16.gmra.mxu0 %v6333
    %v8733 = vpop.f32.mrf.mxu0
    %v8734 = vadd.f32 %v6649, %v8733
    %v8735 = vpop.f32.mrf.mxu0
    %v8736 = vadd.f32 %v6649, %v8735
    %8737 = vmatmul.bf16.gmra.mxu0 %v6341
    %v8738 = vpop.f32.mrf.mxu0
    %v8739 = vadd.f32 %v6649, %v8738
    %v8740 = vpop.f32.mrf.mxu0
    %v8741 = vadd.f32 %v6649, %v8740
    %8742 = vmatmul.bf16.gmra.mxu0 %v6349
    %v8743 = vpop.f32.mrf.mxu0
    %v8744 = vadd.f32 %v6649, %v8743
    %v8745 = vpop.f32.mrf.mxu0
    %v8746 = vadd.f32 %v6649, %v8745
    %8747 = vmatmul.bf16.gmra.mxu0 %v6357
    %v8748 = vpop.f32.mrf.mxu0
    %v8749 = vadd.f32 %v6649, %v8748
    %v8750 = vpop.f32.mrf.mxu0
    %v8751 = vadd.f32 %v6649, %v8750
    %8752 = vmatmul.bf16.gmra.mxu0 %v6365
    %v8753 = vpop.f32.mrf.mxu0
    %v8754 = vadd.f32 %v6649, %v8753
    %v8755 = vpop.f32.mrf.mxu0
    %v8756 = vadd.f32 %v6649, %v8755
    %8757 = vmatmul.bf16.gmra.mxu0 %v6373
    %v8758 = vpop.f32.mrf.mxu0
    %v8759 = vadd.f32 %v6649, %v8758
    %v8760 = vpop.f32.mrf.mxu0
    %v8761 = vadd.f32 %v6649, %v8760
    %8762 = vmatmul.bf16.gmra.mxu0 %v6381
    %v8763 = vpop.f32.mrf.mxu0
    %v8764 = vadd.f32 %v6649, %v8763
    %v8765 = vpop.f32.mrf.mxu0
    %v8766 = vadd.f32 %v6649, %v8765
    %8767 = vdwg.mxu0
    %8768 = vmatpush.bf16.msra.mxu0 %v7485
    %8769 = vmatpush.bf16.msra.mxu0 %v7481
    %8770 = vmatpush.bf16.msra.mxu0 %v7477
    %8771 = vmatpush.bf16.msra.mxu0 %v7473
    %8772 = vmatpush.bf16.msra.mxu0 %v7469
    %8773 = vmatpush.bf16.msra.mxu0 %v7465
    %8774 = vmatpush.bf16.msra.mxu0 %v7461
    %8775 = vmatpush.bf16.msra.mxu0 %v7457
    %8776 = vmatmul.bf16.gmra.mxu0 %v6326
    %v8777 = vpop.f32.mrf.mxu0
    %v8778 = vadd.f32 %v8729, %v8777
    %v8779 = vpop.f32.mrf.mxu0
    %v8780 = vadd.f32 %v8731, %v8779
    %8781 = vmatmul.bf16.gmra.mxu0 %v6334
    %v8782 = vpop.f32.mrf.mxu0
    %v8783 = vadd.f32 %v8734, %v8782
    %v8784 = vpop.f32.mrf.mxu0
    %v8785 = vadd.f32 %v8736, %v8784
    %8786 = vmatmul.bf16.gmra.mxu0 %v6342
    %v8787 = vpop.f32.mrf.mxu0
    %v8788 = vadd.f32 %v8739, %v8787
    %v8789 = vpop.f32.mrf.mxu0
    %v8790 = vadd.f32 %v8741, %v8789
    %8791 = vmatmul.bf16.gmra.mxu0 %v6350
    %v8792 = vpop.f32.mrf.mxu0
    %v8793 = vadd.f32 %v8744, %v8792
    %v8794 = vpop.f32.mrf.mxu0
    %v8795 = vadd.f32 %v8746, %v8794
    %8796 = vmatmul.bf16.gmra.mxu0 %v6358
    %v8797 = vpop.f32.mrf.mxu0
    %v8798 = vadd.f32 %v8749, %v8797
    %v8799 = vpop.f32.mrf.mxu0
    %v8800 = vadd.f32 %v8751, %v8799
    %8801 = vmatmul.bf16.gmra.mxu0 %v6366
    %v8802 = vpop.f32.mrf.mxu0
    %v8803 = vadd.f32 %v8754, %v8802
    %v8804 = vpop.f32.mrf.mxu0
    %v8805 = vadd.f32 %v8756, %v8804
    %8806 = vmatmul.bf16.gmra.mxu0 %v6374
    %v8807 = vpop.f32.mrf.mxu0
    %v8808 = vadd.f32 %v8759, %v8807
    %v8809 = vpop.f32.mrf.mxu0
    %v8810 = vadd.f32 %v8761, %v8809
    %8811 = vmatmul.bf16.gmra.mxu0 %v6382
    %v8812 = vpop.f32.mrf.mxu0
    %v8813 = vadd.f32 %v8764, %v8812
    %v8814 = vpop.f32.mrf.mxu0
    %v8815 = vadd.f32 %v8766, %v8814
    %8816 = vdwg.mxu0
    %8817 = vmatpush.bf16.msra.mxu0 %v7517
    %8818 = vmatpush.bf16.msra.mxu0 %v7513
    %8819 = vmatpush.bf16.msra.mxu0 %v7509
    %8820 = vmatpush.bf16.msra.mxu0 %v7505
    %8821 = vmatpush.bf16.msra.mxu0 %v7501
    %8822 = vmatpush.bf16.msra.mxu0 %v7497
    %8823 = vmatpush.bf16.msra.mxu0 %v7493
    %8824 = vmatpush.bf16.msra.mxu0 %v7489
    %8825 = vmatmul.bf16.gmra.mxu0 %v6327
    %v8826 = vpop.f32.mrf.mxu0
    %v8827 = vadd.f32 %v8778, %v8826
    %v8828 = vpop.f32.mrf.mxu0
    %v8829 = vadd.f32 %v8780, %v8828
    %8830 = vmatmul.bf16.gmra.mxu0 %v6335
    %v8831 = vpop.f32.mrf.mxu0
    %v8832 = vadd.f32 %v8783, %v8831
    %v8833 = vpop.f32.mrf.mxu0
    %v8834 = vadd.f32 %v8785, %v8833
    %8835 = vmatmul.bf16.gmra.mxu0 %v6343
    %v8836 = vpop.f32.mrf.mxu0
    %v8837 = vadd.f32 %v8788, %v8836
    %v8838 = vpop.f32.mrf.mxu0
    %v8839 = vadd.f32 %v8790, %v8838
    %8840 = vmatmul.bf16.gmra.mxu0 %v6351
    %v8841 = vpop.f32.mrf.mxu0
    %v8842 = vadd.f32 %v8793, %v8841
    %v8843 = vpop.f32.mrf.mxu0
    %v8844 = vadd.f32 %v8795, %v8843
    %8845 = vmatmul.bf16.gmra.mxu0 %v6359
    %v8846 = vpop.f32.mrf.mxu0
    %v8847 = vadd.f32 %v8798, %v8846
    %v8848 = vpop.f32.mrf.mxu0
    %v8849 = vadd.f32 %v8800, %v8848
    %8850 = vmatmul.bf16.gmra.mxu0 %v6367
    %v8851 = vpop.f32.mrf.mxu0
    %v8852 = vadd.f32 %v8803, %v8851
    %v8853 = vpop.f32.mrf.mxu0
    %v8854 = vadd.f32 %v8805, %v8853
    %8855 = vmatmul.bf16.gmra.mxu0 %v6375
    %v8856 = vpop.f32.mrf.mxu0
    %v8857 = vadd.f32 %v8808, %v8856
    %v8858 = vpop.f32.mrf.mxu0
    %v8859 = vadd.f32 %v8810, %v8858
    %8860 = vmatmul.bf16.gmra.mxu0 %v6383
    %v8861 = vpop.f32.mrf.mxu0
    %v8862 = vadd.f32 %v8813, %v8861
    %v8863 = vpop.f32.mrf.mxu0
    %v8864 = vadd.f32 %v8815, %v8863
    %8865 = vdwg.mxu0
    %8866 = vmatpush.bf16.msra.mxu0 %v7549
    %8867 = vmatpush.bf16.msra.mxu0 %v7545
    %8868 = vmatpush.bf16.msra.mxu0 %v7541
    %8869 = vmatpush.bf16.msra.mxu0 %v7537
    %8870 = vmatpush.bf16.msra.mxu0 %v7533
    %8871 = vmatpush.bf16.msra.mxu0 %v7529
    %8872 = vmatpush.bf16.msra.mxu0 %v7525
    %8873 = vmatpush.bf16.msra.mxu0 %v7521
    %8874 = vmatmul.bf16.gmra.mxu0 %v6328
    %v8875 = vpop.f32.mrf.mxu0
    %v8876 = vadd.f32 %v8827, %v8875
    %v8877 = vpop.f32.mrf.mxu0
    %v8878 = vadd.f32 %v8829, %v8877
    %8879 = vmatmul.bf16.gmra.mxu0 %v6336
    %v8880 = vpop.f32.mrf.mxu0
    %v8881 = vadd.f32 %v8832, %v8880
    %v8882 = vpop.f32.mrf.mxu0
    %v8883 = vadd.f32 %v8834, %v8882
    %8884 = vmatmul.bf16.gmra.mxu0 %v6344
    %v8885 = vpop.f32.mrf.mxu0
    %v8886 = vadd.f32 %v8837, %v8885
    %v8887 = vpop.f32.mrf.mxu0
    %v8888 = vadd.f32 %v8839, %v8887
    %8889 = vmatmul.bf16.gmra.mxu0 %v6352
    %v8890 = vpop.f32.mrf.mxu0
    %v8891 = vadd.f32 %v8842, %v8890
    %v8892 = vpop.f32.mrf.mxu0
    %v8893 = vadd.f32 %v8844, %v8892
    %8894 = vmatmul.bf16.gmra.mxu0 %v6360
    %v8895 = vpop.f32.mrf.mxu0
    %v8896 = vadd.f32 %v8847, %v8895
    %v8897 = vpop.f32.mrf.mxu0
    %v8898 = vadd.f32 %v8849, %v8897
    %8899 = vmatmul.bf16.gmra.mxu0 %v6368
    %v8900 = vpop.f32.mrf.mxu0
    %v8901 = vadd.f32 %v8852, %v8900
    %v8902 = vpop.f32.mrf.mxu0
    %v8903 = vadd.f32 %v8854, %v8902
    %8904 = vmatmul.bf16.gmra.mxu0 %v6376
    %v8905 = vpop.f32.mrf.mxu0
    %v8906 = vadd.f32 %v8857, %v8905
    %v8907 = vpop.f32.mrf.mxu0
    %v8908 = vadd.f32 %v8859, %v8907
    %8909 = vmatmul.bf16.gmra.mxu0 %v6384
    %v8910 = vpop.f32.mrf.mxu0
    %v8911 = vadd.f32 %v8862, %v8910
    %v8912 = vpop.f32.mrf.mxu0
    %v8913 = vadd.f32 %v8864, %v8912
    %8914 = vdwg.mxu0
    %8915 = vmatpush.bf16.msra.mxu0 %v7581
    %8916 = vmatpush.bf16.msra.mxu0 %v7577
    %8917 = vmatpush.bf16.msra.mxu0 %v7573
    %8918 = vmatpush.bf16.msra.mxu0 %v7569
    %8919 = vmatpush.bf16.msra.mxu0 %v7565
    %8920 = vmatpush.bf16.msra.mxu0 %v7561
    %8921 = vmatpush.bf16.msra.mxu0 %v7557
    %8922 = vmatpush.bf16.msra.mxu0 %v7553
    %8923 = vmatmul.bf16.gmra.mxu0 %v6329
    %v8924 = vpop.f32.mrf.mxu0
    %v8925 = vadd.f32 %v8876, %v8924
    %v8926 = vpop.f32.mrf.mxu0
    %v8927 = vadd.f32 %v8878, %v8926
    %8928 = vmatmul.bf16.gmra.mxu0 %v6337
    %v8929 = vpop.f32.mrf.mxu0
    %v8930 = vadd.f32 %v8881, %v8929
    %v8931 = vpop.f32.mrf.mxu0
    %v8932 = vadd.f32 %v8883, %v8931
    %8933 = vmatmul.bf16.gmra.mxu0 %v6345
    %v8934 = vpop.f32.mrf.mxu0
    %v8935 = vadd.f32 %v8886, %v8934
    %v8936 = vpop.f32.mrf.mxu0
    %v8937 = vadd.f32 %v8888, %v8936
    %8938 = vmatmul.bf16.gmra.mxu0 %v6353
    %v8939 = vpop.f32.mrf.mxu0
    %v8940 = vadd.f32 %v8891, %v8939
    %v8941 = vpop.f32.mrf.mxu0
    %v8942 = vadd.f32 %v8893, %v8941
    %8943 = vmatmul.bf16.gmra.mxu0 %v6361
    %v8944 = vpop.f32.mrf.mxu0
    %v8945 = vadd.f32 %v8896, %v8944
    %v8946 = vpop.f32.mrf.mxu0
    %v8947 = vadd.f32 %v8898, %v8946
    %8948 = vmatmul.bf16.gmra.mxu0 %v6369
    %v8949 = vpop.f32.mrf.mxu0
    %v8950 = vadd.f32 %v8901, %v8949
    %v8951 = vpop.f32.mrf.mxu0
    %v8952 = vadd.f32 %v8903, %v8951
    %8953 = vmatmul.bf16.gmra.mxu0 %v6377
    %v8954 = vpop.f32.mrf.mxu0
    %v8955 = vadd.f32 %v8906, %v8954
    %v8956 = vpop.f32.mrf.mxu0
    %v8957 = vadd.f32 %v8908, %v8956
    %8958 = vmatmul.bf16.gmra.mxu0 %v6385
    %v8959 = vpop.f32.mrf.mxu0
    %v8960 = vadd.f32 %v8911, %v8959
    %v8961 = vpop.f32.mrf.mxu0
    %v8962 = vadd.f32 %v8913, %v8961
    %8963 = vdwg.mxu0
    %8964 = vmatpush.bf16.msra.mxu0 %v7613
    %8965 = vmatpush.bf16.msra.mxu0 %v7609
    %8966 = vmatpush.bf16.msra.mxu0 %v7605
    %8967 = vmatpush.bf16.msra.mxu0 %v7601
    %8968 = vmatpush.bf16.msra.mxu0 %v7597
    %8969 = vmatpush.bf16.msra.mxu0 %v7593
    %8970 = vmatpush.bf16.msra.mxu0 %v7589
    %8971 = vmatpush.bf16.msra.mxu0 %v7585
    %8972 = vmatmul.bf16.gmra.mxu0 %v6330
    %v8973 = vpop.f32.mrf.mxu0
    %v8974 = vadd.f32 %v8925, %v8973
    %v8975 = vpop.f32.mrf.mxu0
    %v8976 = vadd.f32 %v8927, %v8975
    %8977 = vmatmul.bf16.gmra.mxu0 %v6338
    %v8978 = vpop.f32.mrf.mxu0
    %v8979 = vadd.f32 %v8930, %v8978
    %v8980 = vpop.f32.mrf.mxu0
    %v8981 = vadd.f32 %v8932, %v8980
    %8982 = vmatmul.bf16.gmra.mxu0 %v6346
    %v8983 = vpop.f32.mrf.mxu0
    %v8984 = vadd.f32 %v8935, %v8983
    %v8985 = vpop.f32.mrf.mxu0
    %v8986 = vadd.f32 %v8937, %v8985
    %8987 = vmatmul.bf16.gmra.mxu0 %v6354
    %v8988 = vpop.f32.mrf.mxu0
    %v8989 = vadd.f32 %v8940, %v8988
    %v8990 = vpop.f32.mrf.mxu0
    %v8991 = vadd.f32 %v8942, %v8990
    %8992 = vmatmul.bf16.gmra.mxu0 %v6362
    %v8993 = vpop.f32.mrf.mxu0
    %v8994 = vadd.f32 %v8945, %v8993
    %v8995 = vpop.f32.mrf.mxu0
    %v8996 = vadd.f32 %v8947, %v8995
    %8997 = vmatmul.bf16.gmra.mxu0 %v6370
    %v8998 = vpop.f32.mrf.mxu0
    %v8999 = vadd.f32 %v8950, %v8998
    %v9000 = vpop.f32.mrf.mxu0
    %v9001 = vadd.f32 %v8952, %v9000
    %9002 = vmatmul.bf16.gmra.mxu0 %v6378
    %v9003 = vpop.f32.mrf.mxu0
    %v9004 = vadd.f32 %v8955, %v9003
    %v9005 = vpop.f32.mrf.mxu0
    %v9006 = vadd.f32 %v8957, %v9005
    %9007 = vmatmul.bf16.gmra.mxu0 %v6386
    %v9008 = vpop.f32.mrf.mxu0
    %v9009 = vadd.f32 %v8960, %v9008
    %v9010 = vpop.f32.mrf.mxu0
    %v9011 = vadd.f32 %v8962, %v9010
    %9012 = vdwg.mxu0
    %9013 = vmatpush.bf16.msra.mxu0 %v7645
    %9014 = vmatpush.bf16.msra.mxu0 %v7641
    %9015 = vmatpush.bf16.msra.mxu0 %v7637
    %9016 = vmatpush.bf16.msra.mxu0 %v7633
    %9017 = vmatpush.bf16.msra.mxu0 %v7629
    %9018 = vmatpush.bf16.msra.mxu0 %v7625
    %9019 = vmatpush.bf16.msra.mxu0 %v7621
    %9020 = vmatpush.bf16.msra.mxu0 %v7617
    %9021 = vmatmul.bf16.gmra.mxu0 %v6331
    %v9022 = vpop.f32.mrf.mxu0
    %v9023 = vadd.f32 %v8974, %v9022
    %v9024 = vpop.f32.mrf.mxu0
    %v9025 = vadd.f32 %v8976, %v9024
    %9026 = vmatmul.bf16.gmra.mxu0 %v6339
    %v9027 = vpop.f32.mrf.mxu0
    %v9028 = vadd.f32 %v8979, %v9027
    %v9029 = vpop.f32.mrf.mxu0
    %v9030 = vadd.f32 %v8981, %v9029
    %9031 = vmatmul.bf16.gmra.mxu0 %v6347
    %v9032 = vpop.f32.mrf.mxu0
    %v9033 = vadd.f32 %v8984, %v9032
    %v9034 = vpop.f32.mrf.mxu0
    %v9035 = vadd.f32 %v8986, %v9034
    %9036 = vmatmul.bf16.gmra.mxu0 %v6355
    %v9037 = vpop.f32.mrf.mxu0
    %v9038 = vadd.f32 %v8989, %v9037
    %v9039 = vpop.f32.mrf.mxu0
    %v9040 = vadd.f32 %v8991, %v9039
    %9041 = vmatmul.bf16.gmra.mxu0 %v6363
    %v9042 = vpop.f32.mrf.mxu0
    %v9043 = vadd.f32 %v8994, %v9042
    %v9044 = vpop.f32.mrf.mxu0
    %v9045 = vadd.f32 %v8996, %v9044
    %9046 = vmatmul.bf16.gmra.mxu0 %v6371
    %v9047 = vpop.f32.mrf.mxu0
    %v9048 = vadd.f32 %v8999, %v9047
    %v9049 = vpop.f32.mrf.mxu0
    %v9050 = vadd.f32 %v9001, %v9049
    %9051 = vmatmul.bf16.gmra.mxu0 %v6379
    %v9052 = vpop.f32.mrf.mxu0
    %v9053 = vadd.f32 %v9004, %v9052
    %v9054 = vpop.f32.mrf.mxu0
    %v9055 = vadd.f32 %v9006, %v9054
    %9056 = vmatmul.bf16.gmra.mxu0 %v6387
    %v9057 = vpop.f32.mrf.mxu0
    %v9058 = vadd.f32 %v9009, %v9057
    %v9059 = vpop.f32.mrf.mxu0
    %v9060 = vadd.f32 %v9011, %v9059
    %9061 = vdwg.mxu0
    %9062 = vmatpush.bf16.msra.mxu0 %v7677
    %9063 = vmatpush.bf16.msra.mxu0 %v7673
    %9064 = vmatpush.bf16.msra.mxu0 %v7669
    %9065 = vmatpush.bf16.msra.mxu0 %v7665
    %9066 = vmatpush.bf16.msra.mxu0 %v7661
    %9067 = vmatpush.bf16.msra.mxu0 %v7657
    %9068 = vmatpush.bf16.msra.mxu0 %v7653
    %9069 = vmatpush.bf16.msra.mxu0 %v7649
    %9070 = vmatmul.bf16.gmra.mxu0 %v6332
    %v9071 = vpop.f32.mrf.mxu0
    %v9072 = vadd.f32 %v9023, %v9071
    %v9073 = vpop.f32.mrf.mxu0
    %v9074 = vadd.f32 %v9025, %v9073
    %9075 = vmatmul.bf16.gmra.mxu0 %v6340
    %v9076 = vpop.f32.mrf.mxu0
    %v9077 = vadd.f32 %v9028, %v9076
    %v9078 = vpop.f32.mrf.mxu0
    %v9079 = vadd.f32 %v9030, %v9078
    %9080 = vmatmul.bf16.gmra.mxu0 %v6348
    %v9081 = vpop.f32.mrf.mxu0
    %v9082 = vadd.f32 %v9033, %v9081
    %v9083 = vpop.f32.mrf.mxu0
    %v9084 = vadd.f32 %v9035, %v9083
    %9085 = vmatmul.bf16.gmra.mxu0 %v6356
    %v9086 = vpop.f32.mrf.mxu0
    %v9087 = vadd.f32 %v9038, %v9086
    %v9088 = vpop.f32.mrf.mxu0
    %v9089 = vadd.f32 %v9040, %v9088
    %9090 = vmatmul.bf16.gmra.mxu0 %v6364
    %v9091 = vpop.f32.mrf.mxu0
    %v9092 = vadd.f32 %v9043, %v9091
    %v9093 = vpop.f32.mrf.mxu0
    %v9094 = vadd.f32 %v9045, %v9093
    %9095 = vmatmul.bf16.gmra.mxu0 %v6372
    %v9096 = vpop.f32.mrf.mxu0
    %v9097 = vadd.f32 %v9048, %v9096
    %v9098 = vpop.f32.mrf.mxu0
    %v9099 = vadd.f32 %v9050, %v9098
    %9100 = vmatmul.bf16.gmra.mxu0 %v6380
    %v9101 = vpop.f32.mrf.mxu0
    %v9102 = vadd.f32 %v9053, %v9101
    %v9103 = vpop.f32.mrf.mxu0
    %v9104 = vadd.f32 %v9055, %v9103
    %9105 = vmatmul.bf16.gmra.mxu0 %v6388
    %v9106 = vpop.f32.mrf.mxu0
    %v9107 = vadd.f32 %v9058, %v9106
    %v9108 = vpop.f32.mrf.mxu0
    %v9109 = vadd.f32 %v9060, %v9108
    %9110 = vdwg.mxu0
    %9111 = vmatpush.bf16.msra.mxu0 %v7454
    %9112 = vmatpush.bf16.msra.mxu0 %v7450
    %9113 = vmatpush.bf16.msra.mxu0 %v7446
    %9114 = vmatpush.bf16.msra.mxu0 %v7442
    %9115 = vmatpush.bf16.msra.mxu0 %v7438
    %9116 = vmatpush.bf16.msra.mxu0 %v7434
    %9117 = vmatpush.bf16.msra.mxu0 %v7430
    %9118 = vmatpush.bf16.msra.mxu0 %v7426
    %9119 = vmatmul.bf16.gmra.mxu0 %v6325
    %v9120 = vpop.f32.mrf.mxu0
    %v9121 = vadd.f32 %v6650, %v9120
    %v9122 = vpop.f32.mrf.mxu0
    %v9123 = vadd.f32 %v6650, %v9122
    %9124 = vmatmul.bf16.gmra.mxu0 %v6333
    %v9125 = vpop.f32.mrf.mxu0
    %v9126 = vadd.f32 %v6650, %v9125
    %v9127 = vpop.f32.mrf.mxu0
    %v9128 = vadd.f32 %v6650, %v9127
    %9129 = vmatmul.bf16.gmra.mxu0 %v6341
    %v9130 = vpop.f32.mrf.mxu0
    %v9131 = vadd.f32 %v6650, %v9130
    %v9132 = vpop.f32.mrf.mxu0
    %v9133 = vadd.f32 %v6650, %v9132
    %9134 = vmatmul.bf16.gmra.mxu0 %v6349
    %v9135 = vpop.f32.mrf.mxu0
    %v9136 = vadd.f32 %v6650, %v9135
    %v9137 = vpop.f32.mrf.mxu0
    %v9138 = vadd.f32 %v6650, %v9137
    %9139 = vmatmul.bf16.gmra.mxu0 %v6357
    %v9140 = vpop.f32.mrf.mxu0
    %v9141 = vadd.f32 %v6650, %v9140
    %v9142 = vpop.f32.mrf.mxu0
    %v9143 = vadd.f32 %v6650, %v9142
    %9144 = vmatmul.bf16.gmra.mxu0 %v6365
    %v9145 = vpop.f32.mrf.mxu0
    %v9146 = vadd.f32 %v6650, %v9145
    %v9147 = vpop.f32.mrf.mxu0
    %v9148 = vadd.f32 %v6650, %v9147
    %9149 = vmatmul.bf16.gmra.mxu0 %v6373
    %v9150 = vpop.f32.mrf.mxu0
    %v9151 = vadd.f32 %v6650, %v9150
    %v9152 = vpop.f32.mrf.mxu0
    %v9153 = vadd.f32 %v6650, %v9152
    %9154 = vmatmul.bf16.gmra.mxu0 %v6381
    %v9155 = vpop.f32.mrf.mxu0
    %v9156 = vadd.f32 %v6650, %v9155
    %v9157 = vpop.f32.mrf.mxu0
    %v9158 = vadd.f32 %v6650, %v9157
    %9159 = vdwg.mxu0
    %9160 = vmatpush.bf16.msra.mxu0 %v7486
    %9161 = vmatpush.bf16.msra.mxu0 %v7482
    %9162 = vmatpush.bf16.msra.mxu0 %v7478
    %9163 = vmatpush.bf16.msra.mxu0 %v7474
    %9164 = vmatpush.bf16.msra.mxu0 %v7470
    %9165 = vmatpush.bf16.msra.mxu0 %v7466
    %9166 = vmatpush.bf16.msra.mxu0 %v7462
    %9167 = vmatpush.bf16.msra.mxu0 %v7458
    %9168 = vmatmul.bf16.gmra.mxu0 %v6326
    %v9169 = vpop.f32.mrf.mxu0
    %v9170 = vadd.f32 %v9121, %v9169
    %v9171 = vpop.f32.mrf.mxu0
    %v9172 = vadd.f32 %v9123, %v9171
    %9173 = vmatmul.bf16.gmra.mxu0 %v6334
    %v9174 = vpop.f32.mrf.mxu0
    %v9175 = vadd.f32 %v9126, %v9174
    %v9176 = vpop.f32.mrf.mxu0
    %v9177 = vadd.f32 %v9128, %v9176
    %9178 = vmatmul.bf16.gmra.mxu0 %v6342
    %v9179 = vpop.f32.mrf.mxu0
    %v9180 = vadd.f32 %v9131, %v9179
    %v9181 = vpop.f32.mrf.mxu0
    %v9182 = vadd.f32 %v9133, %v9181
    %9183 = vmatmul.bf16.gmra.mxu0 %v6350
    %v9184 = vpop.f32.mrf.mxu0
    %v9185 = vadd.f32 %v9136, %v9184
    %v9186 = vpop.f32.mrf.mxu0
    %v9187 = vadd.f32 %v9138, %v9186
    %9188 = vmatmul.bf16.gmra.mxu0 %v6358
    %v9189 = vpop.f32.mrf.mxu0
    %v9190 = vadd.f32 %v9141, %v9189
    %v9191 = vpop.f32.mrf.mxu0
    %v9192 = vadd.f32 %v9143, %v9191
    %9193 = vmatmul.bf16.gmra.mxu0 %v6366
    %v9194 = vpop.f32.mrf.mxu0
    %v9195 = vadd.f32 %v9146, %v9194
    %v9196 = vpop.f32.mrf.mxu0
    %v9197 = vadd.f32 %v9148, %v9196
    %9198 = vmatmul.bf16.gmra.mxu0 %v6374
    %v9199 = vpop.f32.mrf.mxu0
    %v9200 = vadd.f32 %v9151, %v9199
    %v9201 = vpop.f32.mrf.mxu0
    %v9202 = vadd.f32 %v9153, %v9201
    %9203 = vmatmul.bf16.gmra.mxu0 %v6382
    %v9204 = vpop.f32.mrf.mxu0
    %v9205 = vadd.f32 %v9156, %v9204
    %v9206 = vpop.f32.mrf.mxu0
    %v9207 = vadd.f32 %v9158, %v9206
    %9208 = vdwg.mxu0
    %9209 = vmatpush.bf16.msra.mxu0 %v7518
    %9210 = vmatpush.bf16.msra.mxu0 %v7514
    %9211 = vmatpush.bf16.msra.mxu0 %v7510
    %9212 = vmatpush.bf16.msra.mxu0 %v7506
    %9213 = vmatpush.bf16.msra.mxu0 %v7502
    %9214 = vmatpush.bf16.msra.mxu0 %v7498
    %9215 = vmatpush.bf16.msra.mxu0 %v7494
    %9216 = vmatpush.bf16.msra.mxu0 %v7490
    %9217 = vmatmul.bf16.gmra.mxu0 %v6327
    %v9218 = vpop.f32.mrf.mxu0
    %v9219 = vadd.f32 %v9170, %v9218
    %v9220 = vpop.f32.mrf.mxu0
    %v9221 = vadd.f32 %v9172, %v9220
    %9222 = vmatmul.bf16.gmra.mxu0 %v6335
    %v9223 = vpop.f32.mrf.mxu0
    %v9224 = vadd.f32 %v9175, %v9223
    %v9225 = vpop.f32.mrf.mxu0
    %v9226 = vadd.f32 %v9177, %v9225
    %9227 = vmatmul.bf16.gmra.mxu0 %v6343
    %v9228 = vpop.f32.mrf.mxu0
    %v9229 = vadd.f32 %v9180, %v9228
    %v9230 = vpop.f32.mrf.mxu0
    %v9231 = vadd.f32 %v9182, %v9230
    %9232 = vmatmul.bf16.gmra.mxu0 %v6351
    %v9233 = vpop.f32.mrf.mxu0
    %v9234 = vadd.f32 %v9185, %v9233
    %v9235 = vpop.f32.mrf.mxu0
    %v9236 = vadd.f32 %v9187, %v9235
    %9237 = vmatmul.bf16.gmra.mxu0 %v6359
    %v9238 = vpop.f32.mrf.mxu0
    %v9239 = vadd.f32 %v9190, %v9238
    %v9240 = vpop.f32.mrf.mxu0
    %v9241 = vadd.f32 %v9192, %v9240
    %9242 = vmatmul.bf16.gmra.mxu0 %v6367
    %v9243 = vpop.f32.mrf.mxu0
    %v9244 = vadd.f32 %v9195, %v9243
    %v9245 = vpop.f32.mrf.mxu0
    %v9246 = vadd.f32 %v9197, %v9245
    %9247 = vmatmul.bf16.gmra.mxu0 %v6375
    %v9248 = vpop.f32.mrf.mxu0
    %v9249 = vadd.f32 %v9200, %v9248
    %v9250 = vpop.f32.mrf.mxu0
    %v9251 = vadd.f32 %v9202, %v9250
    %9252 = vmatmul.bf16.gmra.mxu0 %v6383
    %v9253 = vpop.f32.mrf.mxu0
    %v9254 = vadd.f32 %v9205, %v9253
    %v9255 = vpop.f32.mrf.mxu0
    %v9256 = vadd.f32 %v9207, %v9255
    %9257 = vdwg.mxu0
    %9258 = vmatpush.bf16.msra.mxu0 %v7550
    %9259 = vmatpush.bf16.msra.mxu0 %v7546
    %9260 = vmatpush.bf16.msra.mxu0 %v7542
    %9261 = vmatpush.bf16.msra.mxu0 %v7538
    %9262 = vmatpush.bf16.msra.mxu0 %v7534
    %9263 = vmatpush.bf16.msra.mxu0 %v7530
    %9264 = vmatpush.bf16.msra.mxu0 %v7526
    %9265 = vmatpush.bf16.msra.mxu0 %v7522
    %9266 = vmatmul.bf16.gmra.mxu0 %v6328
    %v9267 = vpop.f32.mrf.mxu0
    %v9268 = vadd.f32 %v9219, %v9267
    %v9269 = vpop.f32.mrf.mxu0
    %v9270 = vadd.f32 %v9221, %v9269
    %9271 = vmatmul.bf16.gmra.mxu0 %v6336
    %v9272 = vpop.f32.mrf.mxu0
    %v9273 = vadd.f32 %v9224, %v9272
    %v9274 = vpop.f32.mrf.mxu0
    %v9275 = vadd.f32 %v9226, %v9274
    %9276 = vmatmul.bf16.gmra.mxu0 %v6344
    %v9277 = vpop.f32.mrf.mxu0
    %v9278 = vadd.f32 %v9229, %v9277
    %v9279 = vpop.f32.mrf.mxu0
    %v9280 = vadd.f32 %v9231, %v9279
    %9281 = vmatmul.bf16.gmra.mxu0 %v6352
    %v9282 = vpop.f32.mrf.mxu0
    %v9283 = vadd.f32 %v9234, %v9282
    %v9284 = vpop.f32.mrf.mxu0
    %v9285 = vadd.f32 %v9236, %v9284
    %9286 = vmatmul.bf16.gmra.mxu0 %v6360
    %v9287 = vpop.f32.mrf.mxu0
    %v9288 = vadd.f32 %v9239, %v9287
    %v9289 = vpop.f32.mrf.mxu0
    %v9290 = vadd.f32 %v9241, %v9289
    %9291 = vmatmul.bf16.gmra.mxu0 %v6368
    %v9292 = vpop.f32.mrf.mxu0
    %v9293 = vadd.f32 %v9244, %v9292
    %v9294 = vpop.f32.mrf.mxu0
    %v9295 = vadd.f32 %v9246, %v9294
    %9296 = vmatmul.bf16.gmra.mxu0 %v6376
    %v9297 = vpop.f32.mrf.mxu0
    %v9298 = vadd.f32 %v9249, %v9297
    %v9299 = vpop.f32.mrf.mxu0
    %v9300 = vadd.f32 %v9251, %v9299
    %9301 = vmatmul.bf16.gmra.mxu0 %v6384
    %v9302 = vpop.f32.mrf.mxu0
    %v9303 = vadd.f32 %v9254, %v9302
    %v9304 = vpop.f32.mrf.mxu0
    %v9305 = vadd.f32 %v9256, %v9304
    %9306 = vdwg.mxu0
    %9307 = vmatpush.bf16.msra.mxu0 %v7582
    %9308 = vmatpush.bf16.msra.mxu0 %v7578
    %9309 = vmatpush.bf16.msra.mxu0 %v7574
    %9310 = vmatpush.bf16.msra.mxu0 %v7570
    %9311 = vmatpush.bf16.msra.mxu0 %v7566
    %9312 = vmatpush.bf16.msra.mxu0 %v7562
    %9313 = vmatpush.bf16.msra.mxu0 %v7558
    %9314 = vmatpush.bf16.msra.mxu0 %v7554
    %9315 = vmatmul.bf16.gmra.mxu0 %v6329
    %v9316 = vpop.f32.mrf.mxu0
    %v9317 = vadd.f32 %v9268, %v9316
    %v9318 = vpop.f32.mrf.mxu0
    %v9319 = vadd.f32 %v9270, %v9318
    %9320 = vmatmul.bf16.gmra.mxu0 %v6337
    %v9321 = vpop.f32.mrf.mxu0
    %v9322 = vadd.f32 %v9273, %v9321
    %v9323 = vpop.f32.mrf.mxu0
    %v9324 = vadd.f32 %v9275, %v9323
    %9325 = vmatmul.bf16.gmra.mxu0 %v6345
    %v9326 = vpop.f32.mrf.mxu0
    %v9327 = vadd.f32 %v9278, %v9326
    %v9328 = vpop.f32.mrf.mxu0
    %v9329 = vadd.f32 %v9280, %v9328
    %9330 = vmatmul.bf16.gmra.mxu0 %v6353
    %v9331 = vpop.f32.mrf.mxu0
    %v9332 = vadd.f32 %v9283, %v9331
    %v9333 = vpop.f32.mrf.mxu0
    %v9334 = vadd.f32 %v9285, %v9333
    %9335 = vmatmul.bf16.gmra.mxu0 %v6361
    %v9336 = vpop.f32.mrf.mxu0
    %v9337 = vadd.f32 %v9288, %v9336
    %v9338 = vpop.f32.mrf.mxu0
    %v9339 = vadd.f32 %v9290, %v9338
    %9340 = vmatmul.bf16.gmra.mxu0 %v6369
    %v9341 = vpop.f32.mrf.mxu0
    %v9342 = vadd.f32 %v9293, %v9341
    %v9343 = vpop.f32.mrf.mxu0
    %v9344 = vadd.f32 %v9295, %v9343
    %9345 = vmatmul.bf16.gmra.mxu0 %v6377
    %v9346 = vpop.f32.mrf.mxu0
    %v9347 = vadd.f32 %v9298, %v9346
    %v9348 = vpop.f32.mrf.mxu0
    %v9349 = vadd.f32 %v9300, %v9348
    %9350 = vmatmul.bf16.gmra.mxu0 %v6385
    %v9351 = vpop.f32.mrf.mxu0
    %v9352 = vadd.f32 %v9303, %v9351
    %v9353 = vpop.f32.mrf.mxu0
    %v9354 = vadd.f32 %v9305, %v9353
    %9355 = vdwg.mxu0
    %9356 = vmatpush.bf16.msra.mxu0 %v7614
    %9357 = vmatpush.bf16.msra.mxu0 %v7610
    %9358 = vmatpush.bf16.msra.mxu0 %v7606
    %9359 = vmatpush.bf16.msra.mxu0 %v7602
    %9360 = vmatpush.bf16.msra.mxu0 %v7598
    %9361 = vmatpush.bf16.msra.mxu0 %v7594
    %9362 = vmatpush.bf16.msra.mxu0 %v7590
    %9363 = vmatpush.bf16.msra.mxu0 %v7586
    %9364 = vmatmul.bf16.gmra.mxu0 %v6330
    %v9365 = vpop.f32.mrf.mxu0
    %v9366 = vadd.f32 %v9317, %v9365
    %v9367 = vpop.f32.mrf.mxu0
    %v9368 = vadd.f32 %v9319, %v9367
    %9369 = vmatmul.bf16.gmra.mxu0 %v6338
    %v9370 = vpop.f32.mrf.mxu0
    %v9371 = vadd.f32 %v9322, %v9370
    %v9372 = vpop.f32.mrf.mxu0
    %v9373 = vadd.f32 %v9324, %v9372
    %9374 = vmatmul.bf16.gmra.mxu0 %v6346
    %v9375 = vpop.f32.mrf.mxu0
    %v9376 = vadd.f32 %v9327, %v9375
    %v9377 = vpop.f32.mrf.mxu0
    %v9378 = vadd.f32 %v9329, %v9377
    %9379 = vmatmul.bf16.gmra.mxu0 %v6354
    %v9380 = vpop.f32.mrf.mxu0
    %v9381 = vadd.f32 %v9332, %v9380
    %v9382 = vpop.f32.mrf.mxu0
    %v9383 = vadd.f32 %v9334, %v9382
    %9384 = vmatmul.bf16.gmra.mxu0 %v6362
    %v9385 = vpop.f32.mrf.mxu0
    %v9386 = vadd.f32 %v9337, %v9385
    %v9387 = vpop.f32.mrf.mxu0
    %v9388 = vadd.f32 %v9339, %v9387
    %9389 = vmatmul.bf16.gmra.mxu0 %v6370
    %v9390 = vpop.f32.mrf.mxu0
    %v9391 = vadd.f32 %v9342, %v9390
    %v9392 = vpop.f32.mrf.mxu0
    %v9393 = vadd.f32 %v9344, %v9392
    %9394 = vmatmul.bf16.gmra.mxu0 %v6378
    %v9395 = vpop.f32.mrf.mxu0
    %v9396 = vadd.f32 %v9347, %v9395
    %v9397 = vpop.f32.mrf.mxu0
    %v9398 = vadd.f32 %v9349, %v9397
    %9399 = vmatmul.bf16.gmra.mxu0 %v6386
    %v9400 = vpop.f32.mrf.mxu0
    %v9401 = vadd.f32 %v9352, %v9400
    %v9402 = vpop.f32.mrf.mxu0
    %v9403 = vadd.f32 %v9354, %v9402
    %9404 = vdwg.mxu0
    %9405 = vmatpush.bf16.msra.mxu0 %v7646
    %9406 = vmatpush.bf16.msra.mxu0 %v7642
    %9407 = vmatpush.bf16.msra.mxu0 %v7638
    %9408 = vmatpush.bf16.msra.mxu0 %v7634
    %9409 = vmatpush.bf16.msra.mxu0 %v7630
    %9410 = vmatpush.bf16.msra.mxu0 %v7626
    %9411 = vmatpush.bf16.msra.mxu0 %v7622
    %9412 = vmatpush.bf16.msra.mxu0 %v7618
    %9413 = vmatmul.bf16.gmra.mxu0 %v6331
    %v9414 = vpop.f32.mrf.mxu0
    %v9415 = vadd.f32 %v9366, %v9414
    %v9416 = vpop.f32.mrf.mxu0
    %v9417 = vadd.f32 %v9368, %v9416
    %9418 = vmatmul.bf16.gmra.mxu0 %v6339
    %v9419 = vpop.f32.mrf.mxu0
    %v9420 = vadd.f32 %v9371, %v9419
    %v9421 = vpop.f32.mrf.mxu0
    %v9422 = vadd.f32 %v9373, %v9421
    %9423 = vmatmul.bf16.gmra.mxu0 %v6347
    %v9424 = vpop.f32.mrf.mxu0
    %v9425 = vadd.f32 %v9376, %v9424
    %v9426 = vpop.f32.mrf.mxu0
    %v9427 = vadd.f32 %v9378, %v9426
    %9428 = vmatmul.bf16.gmra.mxu0 %v6355
    %v9429 = vpop.f32.mrf.mxu0
    %v9430 = vadd.f32 %v9381, %v9429
    %v9431 = vpop.f32.mrf.mxu0
    %v9432 = vadd.f32 %v9383, %v9431
    %9433 = vmatmul.bf16.gmra.mxu0 %v6363
    %v9434 = vpop.f32.mrf.mxu0
    %v9435 = vadd.f32 %v9386, %v9434
    %v9436 = vpop.f32.mrf.mxu0
    %v9437 = vadd.f32 %v9388, %v9436
    %9438 = vmatmul.bf16.gmra.mxu0 %v6371
    %v9439 = vpop.f32.mrf.mxu0
    %v9440 = vadd.f32 %v9391, %v9439
    %v9441 = vpop.f32.mrf.mxu0
    %v9442 = vadd.f32 %v9393, %v9441
    %9443 = vmatmul.bf16.gmra.mxu0 %v6379
    %v9444 = vpop.f32.mrf.mxu0
    %v9445 = vadd.f32 %v9396, %v9444
    %v9446 = vpop.f32.mrf.mxu0
    %v9447 = vadd.f32 %v9398, %v9446
    %9448 = vmatmul.bf16.gmra.mxu0 %v6387
    %v9449 = vpop.f32.mrf.mxu0
    %v9450 = vadd.f32 %v9401, %v9449
    %v9451 = vpop.f32.mrf.mxu0
    %v9452 = vadd.f32 %v9403, %v9451
    %9453 = vdwg.mxu0
    %9454 = vmatpush.bf16.msra.mxu0 %v7678
    %9455 = vmatpush.bf16.msra.mxu0 %v7674
    %9456 = vmatpush.bf16.msra.mxu0 %v7670
    %9457 = vmatpush.bf16.msra.mxu0 %v7666
    %9458 = vmatpush.bf16.msra.mxu0 %v7662
    %9459 = vmatpush.bf16.msra.mxu0 %v7658
    %9460 = vmatpush.bf16.msra.mxu0 %v7654
    %9461 = vmatpush.bf16.msra.mxu0 %v7650
    %9462 = vmatmul.bf16.gmra.mxu0 %v6332
    %v9463 = vpop.f32.mrf.mxu0
    %v9464 = vadd.f32 %v9415, %v9463
    %v9465 = vpop.f32.mrf.mxu0
    %v9466 = vadd.f32 %v9417, %v9465
    %9467 = vmatmul.bf16.gmra.mxu0 %v6340
    %v9468 = vpop.f32.mrf.mxu0
    %v9469 = vadd.f32 %v9420, %v9468
    %v9470 = vpop.f32.mrf.mxu0
    %v9471 = vadd.f32 %v9422, %v9470
    %9472 = vmatmul.bf16.gmra.mxu0 %v6348
    %v9473 = vpop.f32.mrf.mxu0
    %v9474 = vadd.f32 %v9425, %v9473
    %v9475 = vpop.f32.mrf.mxu0
    %v9476 = vadd.f32 %v9427, %v9475
    %9477 = vmatmul.bf16.gmra.mxu0 %v6356
    %v9478 = vpop.f32.mrf.mxu0
    %v9479 = vadd.f32 %v9430, %v9478
    %v9480 = vpop.f32.mrf.mxu0
    %v9481 = vadd.f32 %v9432, %v9480
    %9482 = vmatmul.bf16.gmra.mxu0 %v6364
    %v9483 = vpop.f32.mrf.mxu0
    %v9484 = vadd.f32 %v9435, %v9483
    %v9485 = vpop.f32.mrf.mxu0
    %v9486 = vadd.f32 %v9437, %v9485
    %9487 = vmatmul.bf16.gmra.mxu0 %v6372
    %v9488 = vpop.f32.mrf.mxu0
    %v9489 = vadd.f32 %v9440, %v9488
    %v9490 = vpop.f32.mrf.mxu0
    %v9491 = vadd.f32 %v9442, %v9490
    %9492 = vmatmul.bf16.gmra.mxu0 %v6380
    %v9493 = vpop.f32.mrf.mxu0
    %v9494 = vadd.f32 %v9445, %v9493
    %v9495 = vpop.f32.mrf.mxu0
    %v9496 = vadd.f32 %v9447, %v9495
    %9497 = vmatmul.bf16.gmra.mxu0 %v6388
    %v9498 = vpop.f32.mrf.mxu0
    %v9499 = vadd.f32 %v9450, %v9498
    %v9500 = vpop.f32.mrf.mxu0
    %v9501 = vadd.f32 %v9452, %v9500
    %9502 = vdwg.mxu0
    %v9503 = vmul.f32 %v8288, 0.2
    %v9504 = vmul.f32 %v8680, 0.2
    %v9505 = vmul.f32 %v9072, 0.2
    %v9506 = vmul.f32 %v9464, 0.2
    %v9507 = vmul.f32 %v8290, 0.2
    %v9508 = vmul.f32 %v8682, 0.2
    %v9509 = vmul.f32 %v9074, 0.2
    %v9510 = vmul.f32 %v9466, 0.2
    %v9511 = vmul.f32 %v8293, 0.2
    %v9512 = vmul.f32 %v8685, 0.2
    %v9513 = vmul.f32 %v9077, 0.2
    %v9514 = vmul.f32 %v9469, 0.2
    %v9515 = vmul.f32 %v8295, 0.2
    %v9516 = vmul.f32 %v8687, 0.2
    %v9517 = vmul.f32 %v9079, 0.2
    %v9518 = vmul.f32 %v9471, 0.2
    %v9519 = vmul.f32 %v8298, 0.2
    %v9520 = vmul.f32 %v8690, 0.2
    %v9521 = vmul.f32 %v9082, 0.2
    %v9522 = vmul.f32 %v9474, 0.2
    %v9523 = vmul.f32 %v8300, 0.2
    %v9524 = vmul.f32 %v8692, 0.2
    %v9525 = vmul.f32 %v9084, 0.2
    %v9526 = vmul.f32 %v9476, 0.2
    %v9527 = vmul.f32 %v8303, 0.2
    %v9528 = vmul.f32 %v8695, 0.2
    %v9529 = vmul.f32 %v9087, 0.2
    %v9530 = vmul.f32 %v9479, 0.2
    %v9531 = vmul.f32 %v8305, 0.2
    %v9532 = vmul.f32 %v8697, 0.2
    %v9533 = vmul.f32 %v9089, 0.2
    %v9534 = vmul.f32 %v9481, 0.2
    %v9535 = vmul.f32 %v8308, 0.2
    %v9536 = vmul.f32 %v8700, 0.2
    %v9537 = vmul.f32 %v9092, 0.2
    %v9538 = vmul.f32 %v9484, 0.2
    %v9539 = vmul.f32 %v8310, 0.2
    %v9540 = vmul.f32 %v8702, 0.2
    %v9541 = vmul.f32 %v9094, 0.2
    %v9542 = vmul.f32 %v9486, 0.2
    %v9543 = vmul.f32 %v8313, 0.2
    %v9544 = vmul.f32 %v8705, 0.2
    %v9545 = vmul.f32 %v9097, 0.2
    %v9546 = vmul.f32 %v9489, 0.2
    %v9547 = vmul.f32 %v8315, 0.2
    %v9548 = vmul.f32 %v8707, 0.2
    %v9549 = vmul.f32 %v9099, 0.2
    %v9550 = vmul.f32 %v9491, 0.2
    %v9551 = vmul.f32 %v8318, 0.2
    %v9552 = vmul.f32 %v8710, 0.2
    %v9553 = vmul.f32 %v9102, 0.2
    %v9554 = vmul.f32 %v9494, 0.2
    %v9555 = vmul.f32 %v8320, 0.2
    %v9556 = vmul.f32 %v8712, 0.2
    %v9557 = vmul.f32 %v9104, 0.2
    %v9558 = vmul.f32 %v9496, 0.2
    %v9559 = vmul.f32 %v8323, 0.2
    %v9560 = vmul.f32 %v8715, 0.2
    %v9561 = vmul.f32 %v9107, 0.2
    %v9562 = vmul.f32 %v9499, 0.2
    %v9563 = vmul.f32 %v8325, 0.2
    %v9564 = vmul.f32 %v8717, 0.2
    %v9565 = vmul.f32 %v9109, 0.2
    %v9566 = vmul.f32 %v9501, 0.2
    %v9567 = vmax.f32 %v8288, %v9503
    %v9568 = vmax.f32 %v8680, %v9504
    %v9569 = vmax.f32 %v9072, %v9505
    %v9570 = vmax.f32 %v9464, %v9506
    %v9571 = vmax.f32 %v8290, %v9507
    %v9572 = vmax.f32 %v8682, %v9508
    %v9573 = vmax.f32 %v9074, %v9509
    %v9574 = vmax.f32 %v9466, %v9510
    %v9575 = vmax.f32 %v8293, %v9511
    %v9576 = vmax.f32 %v8685, %v9512
    %v9577 = vmax.f32 %v9077, %v9513
    %v9578 = vmax.f32 %v9469, %v9514
    %v9579 = vmax.f32 %v8295, %v9515
    %v9580 = vmax.f32 %v8687, %v9516
    %v9581 = vmax.f32 %v9079, %v9517
    %v9582 = vmax.f32 %v9471, %v9518
    %v9583 = vmax.f32 %v8298, %v9519
    %v9584 = vmax.f32 %v8690, %v9520
    %v9585 = vmax.f32 %v9082, %v9521
    %v9586 = vmax.f32 %v9474, %v9522
    %v9587 = vmax.f32 %v8300, %v9523
    %v9588 = vmax.f32 %v8692, %v9524
    %v9589 = vmax.f32 %v9084, %v9525
    %v9590 = vmax.f32 %v9476, %v9526
    %v9591 = vmax.f32 %v8303, %v9527
    %v9592 = vmax.f32 %v8695, %v9528
    %v9593 = vmax.f32 %v9087, %v9529
    %v9594 = vmax.f32 %v9479, %v9530
    %v9595 = vmax.f32 %v8305, %v9531
    %v9596 = vmax.f32 %v8697, %v9532
    %v9597 = vmax.f32 %v9089, %v9533
    %v9598 = vmax.f32 %v9481, %v9534
    %v9599 = vmax.f32 %v8308, %v9535
    %v9600 = vmax.f32 %v8700, %v9536
    %v9601 = vmax.f32 %v9092, %v9537
    %v9602 = vmax.f32 %v9484, %v9538
    %v9603 = vmax.f32 %v8310, %v9539
    %v9604 = vmax.f32 %v8702, %v9540
    %v9605 = vmax.f32 %v9094, %v9541
    %v9606 = vmax.f32 %v9486, %v9542
    %v9607 = vmax.f32 %v8313, %v9543
    %v9608 = vmax.f32 %v8705, %v9544
    %v9609 = vmax.f32 %v9097, %v9545
    %v9610 = vmax.f32 %v9489, %v9546
    %v9611 = vmax.f32 %v8315, %v9547
    %v9612 = vmax.f32 %v8707, %v9548
    %v9613 = vmax.f32 %v9099, %v9549
    %v9614 = vmax.f32 %v9491, %v9550
    %v9615 = vmax.f32 %v8318, %v9551
    %v9616 = vmax.f32 %v8710, %v9552
    %v9617 = vmax.f32 %v9102, %v9553
    %v9618 = vmax.f32 %v9494, %v9554
    %v9619 = vmax.f32 %v8320, %v9555
    %v9620 = vmax.f32 %v8712, %v9556
    %v9621 = vmax.f32 %v9104, %v9557
    %v9622 = vmax.f32 %v9496, %v9558
    %v9623 = vmax.f32 %v8323, %v9559
    %v9624 = vmax.f32 %v8715, %v9560
    %v9625 = vmax.f32 %v9107, %v9561
    %v9626 = vmax.f32 %v9499, %v9562
    %v9627 = vmax.f32 %v8325, %v9563
    %v9628 = vmax.f32 %v8717, %v9564
    %v9629 = vmax.f32 %v9109, %v9565
    %v9630 = vmax.f32 %v9501, %v9566
    %v9631 = vpack.c.bf16 %v9571, %v9567
    %v9632 = vpack.c.bf16 %v9572, %v9568
    %v9633 = vpack.c.bf16 %v9573, %v9569
    %v9634 = vpack.c.bf16 %v9574, %v9570
    %v9635 = vpack.c.bf16 %v9579, %v9575
    %v9636 = vpack.c.bf16 %v9580, %v9576
    %v9637 = vpack.c.bf16 %v9581, %v9577
    %v9638 = vpack.c.bf16 %v9582, %v9578
    %v9639 = vpack.c.bf16 %v9587, %v9583
    %v9640 = vpack.c.bf16 %v9588, %v9584
    %v9641 = vpack.c.bf16 %v9589, %v9585
    %v9642 = vpack.c.bf16 %v9590, %v9586
    %v9643 = vpack.c.bf16 %v9595, %v9591
    %v9644 = vpack.c.bf16 %v9596, %v9592
    %v9645 = vpack.c.bf16 %v9597, %v9593
    %v9646 = vpack.c.bf16 %v9598, %v9594
    %v9647 = vpack.c.bf16 %v9603, %v9599
    %v9648 = vpack.c.bf16 %v9604, %v9600
    %v9649 = vpack.c.bf16 %v9605, %v9601
    %v9650 = vpack.c.bf16 %v9606, %v9602
    %v9651 = vpack.c.bf16 %v9611, %v9607
    %v9652 = vpack.c.bf16 %v9612, %v9608
    %v9653 = vpack.c.bf16 %v9613, %v9609
    %v9654 = vpack.c.bf16 %v9614, %v9610
    %v9655 = vpack.c.bf16 %v9619, %v9615
    %v9656 = vpack.c.bf16 %v9620, %v9616
    %v9657 = vpack.c.bf16 %v9621, %v9617
    %v9658 = vpack.c.bf16 %v9622, %v9618
    %v9659 = vpack.c.bf16 %v9627, %v9623
    %v9660 = vpack.c.bf16 %v9628, %v9624
    %v9661 = vpack.c.bf16 %v9629, %v9625
    %v9662 = vpack.c.bf16 %v9630, %v9626
    %v9663 = vld [vmem:[#allocation11] sm:$0xff]
    %v9664 = vld [vmem:[#allocation11 + $0x8] sm:$0xff]
    %v9665 = vld [vmem:[#allocation11 + $0x10] sm:$0xff]
    %v9666 = vld [vmem:[#allocation11 + $0x18] sm:$0xff]
    %v9667 = vld [vmem:[#allocation11 + $0x20] sm:$0xff]
    %v9668 = vld [vmem:[#allocation11 + $0x28] sm:$0xff]
    %v9669 = vld [vmem:[#allocation11 + $0x30] sm:$0xff]
    %v9670 = vld [vmem:[#allocation11 + $0x38] sm:$0xff]
    %v9671 = vld [vmem:[#allocation11 + $0x40] sm:$0xff]
    %v9672 = vld [vmem:[#allocation11 + $0x48] sm:$0xff]
    %v9673 = vld [vmem:[#allocation11 + $0x50] sm:$0xff]
    %v9674 = vld [vmem:[#allocation11 + $0x58] sm:$0xff]
    %v9675 = vld [vmem:[#allocation11 + $0x60] sm:$0xff]
    %v9676 = vld [vmem:[#allocation11 + $0x68] sm:$0xff]
    %v9677 = vld [vmem:[#allocation11 + $0x70] sm:$0xff]
    %v9678 = vld [vmem:[#allocation11 + $0x78] sm:$0xff]
    %v9679 = vld [vmem:[#allocation11 + $0x80] sm:$0xff]
    %v9680 = vld [vmem:[#allocation11 + $0x88] sm:$0xff]
    %v9681 = vld [vmem:[#allocation11 + $0x90] sm:$0xff]
    %v9682 = vld [vmem:[#allocation11 + $0x98] sm:$0xff]
    %v9683 = vld [vmem:[#allocation11 + $0xa0] sm:$0xff]
    %v9684 = vld [vmem:[#allocation11 + $0xa8] sm:$0xff]
    %v9685 = vld [vmem:[#allocation11 + $0xb0] sm:$0xff]
    %v9686 = vld [vmem:[#allocation11 + $0xb8] sm:$0xff]
    %v9687 = vld [vmem:[#allocation11 + $0xc0] sm:$0xff]
    %v9688 = vld [vmem:[#allocation11 + $0xc8] sm:$0xff]
    %v9689 = vld [vmem:[#allocation11 + $0xd0] sm:$0xff]
    %v9690 = vld [vmem:[#allocation11 + $0xd8] sm:$0xff]
    %v9691 = vld [vmem:[#allocation11 + $0xe0] sm:$0xff]
    %v9692 = vld [vmem:[#allocation11 + $0xe8] sm:$0xff]
    %v9693 = vld [vmem:[#allocation11 + $0xf0] sm:$0xff]
    %v9694 = vld [vmem:[#allocation11 + $0xf8] sm:$0xff]
    %v9695 = vld [vmem:[#allocation11 + $0x100] sm:$0xff]
    %v9696 = vld [vmem:[#allocation11 + $0x108] sm:$0xff]
    %v9697 = vld [vmem:[#allocation11 + $0x110] sm:$0xff]
    %v9698 = vld [vmem:[#allocation11 + $0x118] sm:$0xff]
    %v9699 = vld [vmem:[#allocation11 + $0x120] sm:$0xff]
    %v9700 = vld [vmem:[#allocation11 + $0x128] sm:$0xff]
    %v9701 = vld [vmem:[#allocation11 + $0x130] sm:$0xff]
    %v9702 = vld [vmem:[#allocation11 + $0x138] sm:$0xff]
    %v9703 = vld [vmem:[#allocation11 + $0x140] sm:$0xff]
    %v9704 = vld [vmem:[#allocation11 + $0x148] sm:$0xff]
    %v9705 = vld [vmem:[#allocation11 + $0x150] sm:$0xff]
    %v9706 = vld [vmem:[#allocation11 + $0x158] sm:$0xff]
    %v9707 = vld [vmem:[#allocation11 + $0x160] sm:$0xff]
    %v9708 = vld [vmem:[#allocation11 + $0x168] sm:$0xff]
    %v9709 = vld [vmem:[#allocation11 + $0x170] sm:$0xff]
    %v9710 = vld [vmem:[#allocation11 + $0x178] sm:$0xff]
    %v9711 = vld [vmem:[#allocation11 + $0x180] sm:$0xff]
    %v9712 = vld [vmem:[#allocation11 + $0x188] sm:$0xff]
    %v9713 = vld [vmem:[#allocation11 + $0x190] sm:$0xff]
    %v9714 = vld [vmem:[#allocation11 + $0x198] sm:$0xff]
    %v9715 = vld [vmem:[#allocation11 + $0x1a0] sm:$0xff]
    %v9716 = vld [vmem:[#allocation11 + $0x1a8] sm:$0xff]
    %v9717 = vld [vmem:[#allocation11 + $0x1b0] sm:$0xff]
    %v9718 = vld [vmem:[#allocation11 + $0x1b8] sm:$0xff]
    %v9719 = vld [vmem:[#allocation11 + $0x1c0] sm:$0xff]
    %v9720 = vld [vmem:[#allocation11 + $0x1c8] sm:$0xff]
    %v9721 = vld [vmem:[#allocation11 + $0x1d0] sm:$0xff]
    %v9722 = vld [vmem:[#allocation11 + $0x1d8] sm:$0xff]
    %v9723 = vld [vmem:[#allocation11 + $0x1e0] sm:$0xff]
    %v9724 = vld [vmem:[#allocation11 + $0x1e8] sm:$0xff]
    %v9725 = vld [vmem:[#allocation11 + $0x1f0] sm:$0xff]
    %v9726 = vld [vmem:[#allocation11 + $0x1f8] sm:$0xff]
    %v9727 = vld [vmem:[#allocation12] sm:$0x3]
    %v9729 = vperm.slane %v9727, 0
    %v9730 = vperm.slane %v9727, 1
    %v9797 = vunpack.c.l.b16 %v9663
    %v9798 = vunpack.c.h.b16 %v9663
    %v9799 = vunpack.c.l.b16 %v9664
    %v9800 = vunpack.c.h.b16 %v9664
    %v9801 = vunpack.c.l.b16 %v9665
    %v9802 = vunpack.c.h.b16 %v9665
    %v9803 = vunpack.c.l.b16 %v9666
    %v9804 = vunpack.c.h.b16 %v9666
    %v9805 = vunpack.c.l.b16 %v9667
    %v9806 = vunpack.c.h.b16 %v9667
    %v9807 = vunpack.c.l.b16 %v9668
    %v9808 = vunpack.c.h.b16 %v9668
    %v9809 = vunpack.c.l.b16 %v9669
    %v9810 = vunpack.c.h.b16 %v9669
    %v9811 = vunpack.c.l.b16 %v9670
    %v9812 = vunpack.c.h.b16 %v9670
    %v9813 = vunpack.c.l.b16 %v9671
    %v9814 = vunpack.c.h.b16 %v9671
    %v9815 = vunpack.c.l.b16 %v9672
    %v9816 = vunpack.c.h.b16 %v9672
    %v9817 = vunpack.c.l.b16 %v9673
    %v9818 = vunpack.c.h.b16 %v9673
    %v9819 = vunpack.c.l.b16 %v9674
    %v9820 = vunpack.c.h.b16 %v9674
    %v9821 = vunpack.c.l.b16 %v9675
    %v9822 = vunpack.c.h.b16 %v9675
    %v9823 = vunpack.c.l.b16 %v9676
    %v9824 = vunpack.c.h.b16 %v9676
    %v9825 = vunpack.c.l.b16 %v9677
    %v9826 = vunpack.c.h.b16 %v9677
    %v9827 = vunpack.c.l.b16 %v9678
    %v9828 = vunpack.c.h.b16 %v9678
    %v9829 = vunpack.c.l.b16 %v9679
    %v9830 = vunpack.c.h.b16 %v9679
    %v9831 = vunpack.c.l.b16 %v9680
    %v9832 = vunpack.c.h.b16 %v9680
    %v9833 = vunpack.c.l.b16 %v9681
    %v9834 = vunpack.c.h.b16 %v9681
    %v9835 = vunpack.c.l.b16 %v9682
    %v9836 = vunpack.c.h.b16 %v9682
    %v9837 = vunpack.c.l.b16 %v9683
    %v9838 = vunpack.c.h.b16 %v9683
    %v9839 = vunpack.c.l.b16 %v9684
    %v9840 = vunpack.c.h.b16 %v9684
    %v9841 = vunpack.c.l.b16 %v9685
    %v9842 = vunpack.c.h.b16 %v9685
    %v9843 = vunpack.c.l.b16 %v9686
    %v9844 = vunpack.c.h.b16 %v9686
    %v9845 = vunpack.c.l.b16 %v9687
    %v9846 = vunpack.c.h.b16 %v9687
    %v9847 = vunpack.c.l.b16 %v9688
    %v9848 = vunpack.c.h.b16 %v9688
    %v9849 = vunpack.c.l.b16 %v9689
    %v9850 = vunpack.c.h.b16 %v9689
    %v9851 = vunpack.c.l.b16 %v9690
    %v9852 = vunpack.c.h.b16 %v9690
    %v9853 = vunpack.c.l.b16 %v9691
    %v9854 = vunpack.c.h.b16 %v9691
    %v9855 = vunpack.c.l.b16 %v9692
    %v9856 = vunpack.c.h.b16 %v9692
    %v9857 = vunpack.c.l.b16 %v9693
    %v9858 = vunpack.c.h.b16 %v9693
    %v9859 = vunpack.c.l.b16 %v9694
    %v9860 = vunpack.c.h.b16 %v9694
    %v9861 = vunpack.c.l.b16 %v9695
    %v9862 = vunpack.c.h.b16 %v9695
    %v9863 = vunpack.c.l.b16 %v9696
    %v9864 = vunpack.c.h.b16 %v9696
    %v9865 = vunpack.c.l.b16 %v9697
    %v9866 = vunpack.c.h.b16 %v9697
    %v9867 = vunpack.c.l.b16 %v9698
    %v9868 = vunpack.c.h.b16 %v9698
    %v9869 = vunpack.c.l.b16 %v9699
    %v9870 = vunpack.c.h.b16 %v9699
    %v9871 = vunpack.c.l.b16 %v9700
    %v9872 = vunpack.c.h.b16 %v9700
    %v9873 = vunpack.c.l.b16 %v9701
    %v9874 = vunpack.c.h.b16 %v9701
    %v9875 = vunpack.c.l.b16 %v9702
    %v9876 = vunpack.c.h.b16 %v9702
    %v9877 = vunpack.c.l.b16 %v9703
    %v9878 = vunpack.c.h.b16 %v9703
    %v9879 = vunpack.c.l.b16 %v9704
    %v9880 = vunpack.c.h.b16 %v9704
    %v9881 = vunpack.c.l.b16 %v9705
    %v9882 = vunpack.c.h.b16 %v9705
    %v9883 = vunpack.c.l.b16 %v9706
    %v9884 = vunpack.c.h.b16 %v9706
    %v9885 = vunpack.c.l.b16 %v9707
    %v9886 = vunpack.c.h.b16 %v9707
    %v9887 = vunpack.c.l.b16 %v9708
    %v9888 = vunpack.c.h.b16 %v9708
    %v9889 = vunpack.c.l.b16 %v9709
    %v9890 = vunpack.c.h.b16 %v9709
    %v9891 = vunpack.c.l.b16 %v9710
    %v9892 = vunpack.c.h.b16 %v9710
    %v9893 = vunpack.c.l.b16 %v9711
    %v9894 = vunpack.c.h.b16 %v9711
    %v9895 = vunpack.c.l.b16 %v9712
    %v9896 = vunpack.c.h.b16 %v9712
    %v9897 = vunpack.c.l.b16 %v9713
    %v9898 = vunpack.c.h.b16 %v9713
    %v9899 = vunpack.c.l.b16 %v9714
    %v9900 = vunpack.c.h.b16 %v9714
    %v9901 = vunpack.c.l.b16 %v9715
    %v9902 = vunpack.c.h.b16 %v9715
    %v9903 = vunpack.c.l.b16 %v9716
    %v9904 = vunpack.c.h.b16 %v9716
    %v9905 = vunpack.c.l.b16 %v9717
    %v9906 = vunpack.c.h.b16 %v9717
    %v9907 = vunpack.c.l.b16 %v9718
    %v9908 = vunpack.c.h.b16 %v9718
    %v9909 = vunpack.c.l.b16 %v9719
    %v9910 = vunpack.c.h.b16 %v9719
    %v9911 = vunpack.c.l.b16 %v9720
    %v9912 = vunpack.c.h.b16 %v9720
    %v9913 = vunpack.c.l.b16 %v9721
    %v9914 = vunpack.c.h.b16 %v9721
    %v9915 = vunpack.c.l.b16 %v9722
    %v9916 = vunpack.c.h.b16 %v9722
    %v9917 = vunpack.c.l.b16 %v9723
    %v9918 = vunpack.c.h.b16 %v9723
    %v9919 = vunpack.c.l.b16 %v9724
    %v9920 = vunpack.c.h.b16 %v9724
    %v9921 = vunpack.c.l.b16 %v9725
    %v9922 = vunpack.c.h.b16 %v9725
    %v9923 = vunpack.c.l.b16 %v9726
    %v9924 = vunpack.c.h.b16 %v9726
    %v9925 = vpack.c.b16 %v9799, %v9797
    %v9926 = vpack.c.b16 %v9800, %v9798
    %v9927 = vpack.c.b16 %v9803, %v9801
    %v9928 = vpack.c.b16 %v9804, %v9802
    %v9929 = vpack.c.b16 %v9807, %v9805
    %v9930 = vpack.c.b16 %v9808, %v9806
    %v9931 = vpack.c.b16 %v9811, %v9809
    %v9932 = vpack.c.b16 %v9812, %v9810
    %v9933 = vpack.c.b16 %v9815, %v9813
    %v9934 = vpack.c.b16 %v9816, %v9814
    %v9935 = vpack.c.b16 %v9819, %v9817
    %v9936 = vpack.c.b16 %v9820, %v9818
    %v9937 = vpack.c.b16 %v9823, %v9821
    %v9938 = vpack.c.b16 %v9824, %v9822
    %v9939 = vpack.c.b16 %v9827, %v9825
    %v9940 = vpack.c.b16 %v9828, %v9826
    %v9941 = vpack.c.b16 %v9831, %v9829
    %v9942 = vpack.c.b16 %v9832, %v9830
    %v9943 = vpack.c.b16 %v9835, %v9833
    %v9944 = vpack.c.b16 %v9836, %v9834
    %v9945 = vpack.c.b16 %v9839, %v9837
    %v9946 = vpack.c.b16 %v9840, %v9838
    %v9947 = vpack.c.b16 %v9843, %v9841
    %v9948 = vpack.c.b16 %v9844, %v9842
    %v9949 = vpack.c.b16 %v9847, %v9845
    %v9950 = vpack.c.b16 %v9848, %v9846
    %v9951 = vpack.c.b16 %v9851, %v9849
    %v9952 = vpack.c.b16 %v9852, %v9850
    %v9953 = vpack.c.b16 %v9855, %v9853
    %v9954 = vpack.c.b16 %v9856, %v9854
    %v9955 = vpack.c.b16 %v9859, %v9857
    %v9956 = vpack.c.b16 %v9860, %v9858
    %v9957 = vpack.c.b16 %v9863, %v9861
    %v9958 = vpack.c.b16 %v9864, %v9862
    %v9959 = vpack.c.b16 %v9867, %v9865
    %v9960 = vpack.c.b16 %v9868, %v9866
    %v9961 = vpack.c.b16 %v9871, %v9869
    %v9962 = vpack.c.b16 %v9872, %v9870
    %v9963 = vpack.c.b16 %v9875, %v9873
    %v9964 = vpack.c.b16 %v9876, %v9874
    %v9965 = vpack.c.b16 %v9879, %v9877
    %v9966 = vpack.c.b16 %v9880, %v9878
    %v9967 = vpack.c.b16 %v9883, %v9881
    %v9968 = vpack.c.b16 %v9884, %v9882
    %v9969 = vpack.c.b16 %v9887, %v9885
    %v9970 = vpack.c.b16 %v9888, %v9886
    %v9971 = vpack.c.b16 %v9891, %v9889
    %v9972 = vpack.c.b16 %v9892, %v9890
    %v9973 = vpack.c.b16 %v9895, %v9893
    %v9974 = vpack.c.b16 %v9896, %v9894
    %v9975 = vpack.c.b16 %v9899, %v9897
    %v9976 = vpack.c.b16 %v9900, %v9898
    %v9977 = vpack.c.b16 %v9903, %v9901
    %v9978 = vpack.c.b16 %v9904, %v9902
    %v9979 = vpack.c.b16 %v9907, %v9905
    %v9980 = vpack.c.b16 %v9908, %v9906
    %v9981 = vpack.c.b16 %v9911, %v9909
    %v9982 = vpack.c.b16 %v9912, %v9910
    %v9983 = vpack.c.b16 %v9915, %v9913
    %v9984 = vpack.c.b16 %v9916, %v9914
    %v9985 = vpack.c.b16 %v9919, %v9917
    %v9986 = vpack.c.b16 %v9920, %v9918
    %v9987 = vpack.c.b16 %v9923, %v9921
    %v9988 = vpack.c.b16 %v9924, %v9922
    %10053 = vmatpush.bf16.msra.mxu0 %v9939
    %10054 = vmatpush.bf16.msra.mxu0 %v9937
    %10055 = vmatpush.bf16.msra.mxu0 %v9935
    %10056 = vmatpush.bf16.msra.mxu0 %v9933
    %10057 = vmatpush.bf16.msra.mxu0 %v9931
    %10058 = vmatpush.bf16.msra.mxu0 %v9929
    %10059 = vmatpush.bf16.msra.mxu0 %v9927
    %10060 = vmatpush.bf16.msra.mxu0 %v9925
    %10061 = vmatmul.bf16.gmra.mxu0 %v9631
    %v10062 = vpop.f32.mrf.mxu0
    %v10063 = vadd.f32 %v9729, %v10062
    %v10064 = vpop.f32.mrf.mxu0
    %v10065 = vadd.f32 %v9729, %v10064
    %10066 = vmatmul.bf16.gmra.mxu0 %v9635
    %v10067 = vpop.f32.mrf.mxu0
    %v10068 = vadd.f32 %v9729, %v10067
    %v10069 = vpop.f32.mrf.mxu0
    %v10070 = vadd.f32 %v9729, %v10069
    %10071 = vmatmul.bf16.gmra.mxu0 %v9639
    %v10072 = vpop.f32.mrf.mxu0
    %v10073 = vadd.f32 %v9729, %v10072
    %v10074 = vpop.f32.mrf.mxu0
    %v10075 = vadd.f32 %v9729, %v10074
    %10076 = vmatmul.bf16.gmra.mxu0 %v9643
    %v10077 = vpop.f32.mrf.mxu0
    %v10078 = vadd.f32 %v9729, %v10077
    %v10079 = vpop.f32.mrf.mxu0
    %v10080 = vadd.f32 %v9729, %v10079
    %10081 = vmatmul.bf16.gmra.mxu0 %v9647
    %v10082 = vpop.f32.mrf.mxu0
    %v10083 = vadd.f32 %v9729, %v10082
    %v10084 = vpop.f32.mrf.mxu0
    %v10085 = vadd.f32 %v9729, %v10084
    %10086 = vmatmul.bf16.gmra.mxu0 %v9651
    %v10087 = vpop.f32.mrf.mxu0
    %v10088 = vadd.f32 %v9729, %v10087
    %v10089 = vpop.f32.mrf.mxu0
    %v10090 = vadd.f32 %v9729, %v10089
    %10091 = vmatmul.bf16.gmra.mxu0 %v9655
    %v10092 = vpop.f32.mrf.mxu0
    %v10093 = vadd.f32 %v9729, %v10092
    %v10094 = vpop.f32.mrf.mxu0
    %v10095 = vadd.f32 %v9729, %v10094
    %10096 = vmatmul.bf16.gmra.mxu0 %v9659
    %v10097 = vpop.f32.mrf.mxu0
    %v10098 = vadd.f32 %v9729, %v10097
    %v10099 = vpop.f32.mrf.mxu0
    %v10100 = vadd.f32 %v9729, %v10099
    %10101 = vdwg.mxu0
    %10102 = vmatpush.bf16.msra.mxu0 %v9955
    %10103 = vmatpush.bf16.msra.mxu0 %v9953
    %10104 = vmatpush.bf16.msra.mxu0 %v9951
    %10105 = vmatpush.bf16.msra.mxu0 %v9949
    %10106 = vmatpush.bf16.msra.mxu0 %v9947
    %10107 = vmatpush.bf16.msra.mxu0 %v9945
    %10108 = vmatpush.bf16.msra.mxu0 %v9943
    %10109 = vmatpush.bf16.msra.mxu0 %v9941
    %10110 = vmatmul.bf16.gmra.mxu0 %v9632
    %v10111 = vpop.f32.mrf.mxu0
    %v10112 = vadd.f32 %v10063, %v10111
    %v10113 = vpop.f32.mrf.mxu0
    %v10114 = vadd.f32 %v10065, %v10113
    %10115 = vmatmul.bf16.gmra.mxu0 %v9636
    %v10116 = vpop.f32.mrf.mxu0
    %v10117 = vadd.f32 %v10068, %v10116
    %v10118 = vpop.f32.mrf.mxu0
    %v10119 = vadd.f32 %v10070, %v10118
    %10120 = vmatmul.bf16.gmra.mxu0 %v9640
    %v10121 = vpop.f32.mrf.mxu0
    %v10122 = vadd.f32 %v10073, %v10121
    %v10123 = vpop.f32.mrf.mxu0
    %v10124 = vadd.f32 %v10075, %v10123
    %10125 = vmatmul.bf16.gmra.mxu0 %v9644
    %v10126 = vpop.f32.mrf.mxu0
    %v10127 = vadd.f32 %v10078, %v10126
    %v10128 = vpop.f32.mrf.mxu0
    %v10129 = vadd.f32 %v10080, %v10128
    %10130 = vmatmul.bf16.gmra.mxu0 %v9648
    %v10131 = vpop.f32.mrf.mxu0
    %v10132 = vadd.f32 %v10083, %v10131
    %v10133 = vpop.f32.mrf.mxu0
    %v10134 = vadd.f32 %v10085, %v10133
    %10135 = vmatmul.bf16.gmra.mxu0 %v9652
    %v10136 = vpop.f32.mrf.mxu0
    %v10137 = vadd.f32 %v10088, %v10136
    %v10138 = vpop.f32.mrf.mxu0
    %v10139 = vadd.f32 %v10090, %v10138
    %10140 = vmatmul.bf16.gmra.mxu0 %v9656
    %v10141 = vpop.f32.mrf.mxu0
    %v10142 = vadd.f32 %v10093, %v10141
    %v10143 = vpop.f32.mrf.mxu0
    %v10144 = vadd.f32 %v10095, %v10143
    %10145 = vmatmul.bf16.gmra.mxu0 %v9660
    %v10146 = vpop.f32.mrf.mxu0
    %v10147 = vadd.f32 %v10098, %v10146
    %v10148 = vpop.f32.mrf.mxu0
    %v10149 = vadd.f32 %v10100, %v10148
    %10150 = vdwg.mxu0
    %10151 = vmatpush.bf16.msra.mxu0 %v9971
    %10152 = vmatpush.bf16.msra.mxu0 %v9969
    %10153 = vmatpush.bf16.msra.mxu0 %v9967
    %10154 = vmatpush.bf16.msra.mxu0 %v9965
    %10155 = vmatpush.bf16.msra.mxu0 %v9963
    %10156 = vmatpush.bf16.msra.mxu0 %v9961
    %10157 = vmatpush.bf16.msra.mxu0 %v9959
    %10158 = vmatpush.bf16.msra.mxu0 %v9957
    %10159 = vmatmul.bf16.gmra.mxu0 %v9633
    %v10160 = vpop.f32.mrf.mxu0
    %v10161 = vadd.f32 %v10112, %v10160
    %v10162 = vpop.f32.mrf.mxu0
    %v10163 = vadd.f32 %v10114, %v10162
    %10164 = vmatmul.bf16.gmra.mxu0 %v9637
    %v10165 = vpop.f32.mrf.mxu0
    %v10166 = vadd.f32 %v10117, %v10165
    %v10167 = vpop.f32.mrf.mxu0
    %v10168 = vadd.f32 %v10119, %v10167
    %10169 = vmatmul.bf16.gmra.mxu0 %v9641
    %v10170 = vpop.f32.mrf.mxu0
    %v10171 = vadd.f32 %v10122, %v10170
    %v10172 = vpop.f32.mrf.mxu0
    %v10173 = vadd.f32 %v10124, %v10172
    %10174 = vmatmul.bf16.gmra.mxu0 %v9645
    %v10175 = vpop.f32.mrf.mxu0
    %v10176 = vadd.f32 %v10127, %v10175
    %v10177 = vpop.f32.mrf.mxu0
    %v10178 = vadd.f32 %v10129, %v10177
    %10179 = vmatmul.bf16.gmra.mxu0 %v9649
    %v10180 = vpop.f32.mrf.mxu0
    %v10181 = vadd.f32 %v10132, %v10180
    %v10182 = vpop.f32.mrf.mxu0
    %v10183 = vadd.f32 %v10134, %v10182
    %10184 = vmatmul.bf16.gmra.mxu0 %v9653
    %v10185 = vpop.f32.mrf.mxu0
    %v10186 = vadd.f32 %v10137, %v10185
    %v10187 = vpop.f32.mrf.mxu0
    %v10188 = vadd.f32 %v10139, %v10187
    %10189 = vmatmul.bf16.gmra.mxu0 %v9657
    %v10190 = vpop.f32.mrf.mxu0
    %v10191 = vadd.f32 %v10142, %v10190
    %v10192 = vpop.f32.mrf.mxu0
    %v10193 = vadd.f32 %v10144, %v10192
    %10194 = vmatmul.bf16.gmra.mxu0 %v9661
    %v10195 = vpop.f32.mrf.mxu0
    %v10196 = vadd.f32 %v10147, %v10195
    %v10197 = vpop.f32.mrf.mxu0
    %v10198 = vadd.f32 %v10149, %v10197
    %10199 = vdwg.mxu0
    %10200 = vmatpush.bf16.msra.mxu0 %v9987
    %10201 = vmatpush.bf16.msra.mxu0 %v9985
    %10202 = vmatpush.bf16.msra.mxu0 %v9983
    %10203 = vmatpush.bf16.msra.mxu0 %v9981
    %10204 = vmatpush.bf16.msra.mxu0 %v9979
    %10205 = vmatpush.bf16.msra.mxu0 %v9977
    %10206 = vmatpush.bf16.msra.mxu0 %v9975
    %10207 = vmatpush.bf16.msra.mxu0 %v9973
    %10208 = vmatmul.bf16.gmra.mxu0 %v9634
    %v10209 = vpop.f32.mrf.mxu0
    %v10210 = vadd.f32 %v10161, %v10209
    %v10211 = vpop.f32.mrf.mxu0
    %v10212 = vadd.f32 %v10163, %v10211
    %10213 = vmatmul.bf16.gmra.mxu0 %v9638
    %v10214 = vpop.f32.mrf.mxu0
    %v10215 = vadd.f32 %v10166, %v10214
    %v10216 = vpop.f32.mrf.mxu0
    %v10217 = vadd.f32 %v10168, %v10216
    %10218 = vmatmul.bf16.gmra.mxu0 %v9642
    %v10219 = vpop.f32.mrf.mxu0
    %v10220 = vadd.f32 %v10171, %v10219
    %v10221 = vpop.f32.mrf.mxu0
    %v10222 = vadd.f32 %v10173, %v10221
    %10223 = vmatmul.bf16.gmra.mxu0 %v9646
    %v10224 = vpop.f32.mrf.mxu0
    %v10225 = vadd.f32 %v10176, %v10224
    %v10226 = vpop.f32.mrf.mxu0
    %v10227 = vadd.f32 %v10178, %v10226
    %10228 = vmatmul.bf16.gmra.mxu0 %v9650
    %v10229 = vpop.f32.mrf.mxu0
    %v10230 = vadd.f32 %v10181, %v10229
    %v10231 = vpop.f32.mrf.mxu0
    %v10232 = vadd.f32 %v10183, %v10231
    %10233 = vmatmul.bf16.gmra.mxu0 %v9654
    %v10234 = vpop.f32.mrf.mxu0
    %v10235 = vadd.f32 %v10186, %v10234
    %v10236 = vpop.f32.mrf.mxu0
    %v10237 = vadd.f32 %v10188, %v10236
    %10238 = vmatmul.bf16.gmra.mxu0 %v9658
    %v10239 = vpop.f32.mrf.mxu0
    %v10240 = vadd.f32 %v10191, %v10239
    %v10241 = vpop.f32.mrf.mxu0
    %v10242 = vadd.f32 %v10193, %v10241
    %10243 = vmatmul.bf16.gmra.mxu0 %v9662
    %v10244 = vpop.f32.mrf.mxu0
    %v10245 = vadd.f32 %v10196, %v10244
    %v10246 = vpop.f32.mrf.mxu0
    %v10247 = vadd.f32 %v10198, %v10246
    %10248 = vdwg.mxu0
    %10249 = vmatpush.bf16.msra.mxu0 %v9940
    %10250 = vmatpush.bf16.msra.mxu0 %v9938
    %10251 = vmatpush.bf16.msra.mxu0 %v9936
    %10252 = vmatpush.bf16.msra.mxu0 %v9934
    %10253 = vmatpush.bf16.msra.mxu0 %v9932
    %10254 = vmatpush.bf16.msra.mxu0 %v9930
    %10255 = vmatpush.bf16.msra.mxu0 %v9928
    %10256 = vmatpush.bf16.msra.mxu0 %v9926
    %10257 = vmatmul.bf16.gmra.mxu0 %v9631
    %v10258 = vpop.f32.mrf.mxu0
    %v10259 = vadd.f32 %v9730, %v10258
    %v10260 = vpop.f32.mrf.mxu0
    %v10261 = vadd.f32 %v9730, %v10260
    %10262 = vmatmul.bf16.gmra.mxu0 %v9635
    %v10263 = vpop.f32.mrf.mxu0
    %v10264 = vadd.f32 %v9730, %v10263
    %v10265 = vpop.f32.mrf.mxu0
    %v10266 = vadd.f32 %v9730, %v10265
    %10267 = vmatmul.bf16.gmra.mxu0 %v9639
    %v10268 = vpop.f32.mrf.mxu0
    %v10269 = vadd.f32 %v9730, %v10268
    %v10270 = vpop.f32.mrf.mxu0
    %v10271 = vadd.f32 %v9730, %v10270
    %10272 = vmatmul.bf16.gmra.mxu0 %v9643
    %v10273 = vpop.f32.mrf.mxu0
    %v10274 = vadd.f32 %v9730, %v10273
    %v10275 = vpop.f32.mrf.mxu0
    %v10276 = vadd.f32 %v9730, %v10275
    %10277 = vmatmul.bf16.gmra.mxu0 %v9647
    %v10278 = vpop.f32.mrf.mxu0
    %v10279 = vadd.f32 %v9730, %v10278
    %v10280 = vpop.f32.mrf.mxu0
    %v10281 = vadd.f32 %v9730, %v10280
    %10282 = vmatmul.bf16.gmra.mxu0 %v9651
    %v10283 = vpop.f32.mrf.mxu0
    %v10284 = vadd.f32 %v9730, %v10283
    %v10285 = vpop.f32.mrf.mxu0
    %v10286 = vadd.f32 %v9730, %v10285
    %10287 = vmatmul.bf16.gmra.mxu0 %v9655
    %v10288 = vpop.f32.mrf.mxu0
    %v10289 = vadd.f32 %v9730, %v10288
    %v10290 = vpop.f32.mrf.mxu0
    %v10291 = vadd.f32 %v9730, %v10290
    %10292 = vmatmul.bf16.gmra.mxu0 %v9659
    %v10293 = vpop.f32.mrf.mxu0
    %v10294 = vadd.f32 %v9730, %v10293
    %v10295 = vpop.f32.mrf.mxu0
    %v10296 = vadd.f32 %v9730, %v10295
    %10297 = vdwg.mxu0
    %10298 = vmatpush.bf16.msra.mxu0 %v9956
    %10299 = vmatpush.bf16.msra.mxu0 %v9954
    %10300 = vmatpush.bf16.msra.mxu0 %v9952
    %10301 = vmatpush.bf16.msra.mxu0 %v9950
    %10302 = vmatpush.bf16.msra.mxu0 %v9948
    %10303 = vmatpush.bf16.msra.mxu0 %v9946
    %10304 = vmatpush.bf16.msra.mxu0 %v9944
    %10305 = vmatpush.bf16.msra.mxu0 %v9942
    %10306 = vmatmul.bf16.gmra.mxu0 %v9632
    %v10307 = vpop.f32.mrf.mxu0
    %v10308 = vadd.f32 %v10259, %v10307
    %v10309 = vpop.f32.mrf.mxu0
    %v10310 = vadd.f32 %v10261, %v10309
    %10311 = vmatmul.bf16.gmra.mxu0 %v9636
    %v10312 = vpop.f32.mrf.mxu0
    %v10313 = vadd.f32 %v10264, %v10312
    %v10314 = vpop.f32.mrf.mxu0
    %v10315 = vadd.f32 %v10266, %v10314
    %10316 = vmatmul.bf16.gmra.mxu0 %v9640
    %v10317 = vpop.f32.mrf.mxu0
    %v10318 = vadd.f32 %v10269, %v10317
    %v10319 = vpop.f32.mrf.mxu0
    %v10320 = vadd.f32 %v10271, %v10319
    %10321 = vmatmul.bf16.gmra.mxu0 %v9644
    %v10322 = vpop.f32.mrf.mxu0
    %v10323 = vadd.f32 %v10274, %v10322
    %v10324 = vpop.f32.mrf.mxu0
    %v10325 = vadd.f32 %v10276, %v10324
    %10326 = vmatmul.bf16.gmra.mxu0 %v9648
    %v10327 = vpop.f32.mrf.mxu0
    %v10328 = vadd.f32 %v10279, %v10327
    %v10329 = vpop.f32.mrf.mxu0
    %v10330 = vadd.f32 %v10281, %v10329
    %10331 = vmatmul.bf16.gmra.mxu0 %v9652
    %v10332 = vpop.f32.mrf.mxu0
    %v10333 = vadd.f32 %v10284, %v10332
    %v10334 = vpop.f32.mrf.mxu0
    %v10335 = vadd.f32 %v10286, %v10334
    %10336 = vmatmul.bf16.gmra.mxu0 %v9656
    %v10337 = vpop.f32.mrf.mxu0
    %v10338 = vadd.f32 %v10289, %v10337
    %v10339 = vpop.f32.mrf.mxu0
    %v10340 = vadd.f32 %v10291, %v10339
    %10341 = vmatmul.bf16.gmra.mxu0 %v9660
    %v10342 = vpop.f32.mrf.mxu0
    %v10343 = vadd.f32 %v10294, %v10342
    %v10344 = vpop.f32.mrf.mxu0
    %v10345 = vadd.f32 %v10296, %v10344
    %10346 = vdwg.mxu0
    %10347 = vmatpush.bf16.msra.mxu0 %v9972
    %10348 = vmatpush.bf16.msra.mxu0 %v9970
    %10349 = vmatpush.bf16.msra.mxu0 %v9968
    %10350 = vmatpush.bf16.msra.mxu0 %v9966
    %10351 = vmatpush.bf16.msra.mxu0 %v9964
    %10352 = vmatpush.bf16.msra.mxu0 %v9962
    %10353 = vmatpush.bf16.msra.mxu0 %v9960
    %10354 = vmatpush.bf16.msra.mxu0 %v9958
    %10355 = vmatmul.bf16.gmra.mxu0 %v9633
    %v10356 = vpop.f32.mrf.mxu0
    %v10357 = vadd.f32 %v10308, %v10356
    %v10358 = vpop.f32.mrf.mxu0
    %v10359 = vadd.f32 %v10310, %v10358
    %10360 = vmatmul.bf16.gmra.mxu0 %v9637
    %v10361 = vpop.f32.mrf.mxu0
    %v10362 = vadd.f32 %v10313, %v10361
    %v10363 = vpop.f32.mrf.mxu0
    %v10364 = vadd.f32 %v10315, %v10363
    %10365 = vmatmul.bf16.gmra.mxu0 %v9641
    %v10366 = vpop.f32.mrf.mxu0
    %v10367 = vadd.f32 %v10318, %v10366
    %v10368 = vpop.f32.mrf.mxu0
    %v10369 = vadd.f32 %v10320, %v10368
    %10370 = vmatmul.bf16.gmra.mxu0 %v9645
    %v10371 = vpop.f32.mrf.mxu0
    %v10372 = vadd.f32 %v10323, %v10371
    %v10373 = vpop.f32.mrf.mxu0
    %v10374 = vadd.f32 %v10325, %v10373
    %10375 = vmatmul.bf16.gmra.mxu0 %v9649
    %v10376 = vpop.f32.mrf.mxu0
    %v10377 = vadd.f32 %v10328, %v10376
    %v10378 = vpop.f32.mrf.mxu0
    %v10379 = vadd.f32 %v10330, %v10378
    %10380 = vmatmul.bf16.gmra.mxu0 %v9653
    %v10381 = vpop.f32.mrf.mxu0
    %v10382 = vadd.f32 %v10333, %v10381
    %v10383 = vpop.f32.mrf.mxu0
    %v10384 = vadd.f32 %v10335, %v10383
    %10385 = vmatmul.bf16.gmra.mxu0 %v9657
    %v10386 = vpop.f32.mrf.mxu0
    %v10387 = vadd.f32 %v10338, %v10386
    %v10388 = vpop.f32.mrf.mxu0
    %v10389 = vadd.f32 %v10340, %v10388
    %10390 = vmatmul.bf16.gmra.mxu0 %v9661
    %v10391 = vpop.f32.mrf.mxu0
    %v10392 = vadd.f32 %v10343, %v10391
    %v10393 = vpop.f32.mrf.mxu0
    %v10394 = vadd.f32 %v10345, %v10393
    %10395 = vdwg.mxu0
    %10396 = vmatpush.bf16.msra.mxu0 %v9988
    %10397 = vmatpush.bf16.msra.mxu0 %v9986
    %10398 = vmatpush.bf16.msra.mxu0 %v9984
    %10399 = vmatpush.bf16.msra.mxu0 %v9982
    %10400 = vmatpush.bf16.msra.mxu0 %v9980
    %10401 = vmatpush.bf16.msra.mxu0 %v9978
    %10402 = vmatpush.bf16.msra.mxu0 %v9976
    %10403 = vmatpush.bf16.msra.mxu0 %v9974
    %10404 = vmatmul.bf16.gmra.mxu0 %v9634
    %v10405 = vpop.f32.mrf.mxu0
    %v10406 = vadd.f32 %v10357, %v10405
    %v10407 = vpop.f32.mrf.mxu0
    %v10408 = vadd.f32 %v10359, %v10407
    %10409 = vmatmul.bf16.gmra.mxu0 %v9638
    %v10410 = vpop.f32.mrf.mxu0
    %v10411 = vadd.f32 %v10362, %v10410
    %v10412 = vpop.f32.mrf.mxu0
    %v10413 = vadd.f32 %v10364, %v10412
    %10414 = vmatmul.bf16.gmra.mxu0 %v9642
    %v10415 = vpop.f32.mrf.mxu0
    %v10416 = vadd.f32 %v10367, %v10415
    %v10417 = vpop.f32.mrf.mxu0
    %v10418 = vadd.f32 %v10369, %v10417
    %10419 = vmatmul.bf16.gmra.mxu0 %v9646
    %v10420 = vpop.f32.mrf.mxu0
    %v10421 = vadd.f32 %v10372, %v10420
    %v10422 = vpop.f32.mrf.mxu0
    %v10423 = vadd.f32 %v10374, %v10422
    %10424 = vmatmul.bf16.gmra.mxu0 %v9650
    %v10425 = vpop.f32.mrf.mxu0
    %v10426 = vadd.f32 %v10377, %v10425
    %v10427 = vpop.f32.mrf.mxu0
    %v10428 = vadd.f32 %v10379, %v10427
    %10429 = vmatmul.bf16.gmra.mxu0 %v9654
    %v10430 = vpop.f32.mrf.mxu0
    %v10431 = vadd.f32 %v10382, %v10430
    %v10432 = vpop.f32.mrf.mxu0
    %v10433 = vadd.f32 %v10384, %v10432
    %10434 = vmatmul.bf16.gmra.mxu0 %v9658
    %v10435 = vpop.f32.mrf.mxu0
    %v10436 = vadd.f32 %v10387, %v10435
    %v10437 = vpop.f32.mrf.mxu0
    %v10438 = vadd.f32 %v10389, %v10437
    %10439 = vmatmul.bf16.gmra.mxu0 %v9662
    %v10440 = vpop.f32.mrf.mxu0
    %v10441 = vadd.f32 %v10392, %v10440
    %v10442 = vpop.f32.mrf.mxu0
    %v10443 = vadd.f32 %v10394, %v10442
    %10444 = vdwg.mxu0
    %v10445 = vmul.f32 %v10210, 0.2
    %v10446 = vmul.f32 %v10406, 0.2
    %v10447 = vmul.f32 %v10212, 0.2
    %v10448 = vmul.f32 %v10408, 0.2
    %v10449 = vmul.f32 %v10215, 0.2
    %v10450 = vmul.f32 %v10411, 0.2
    %v10451 = vmul.f32 %v10217, 0.2
    %v10452 = vmul.f32 %v10413, 0.2
    %v10453 = vmul.f32 %v10220, 0.2
    %v10454 = vmul.f32 %v10416, 0.2
    %v10455 = vmul.f32 %v10222, 0.2
    %v10456 = vmul.f32 %v10418, 0.2
    %v10457 = vmul.f32 %v10225, 0.2
    %v10458 = vmul.f32 %v10421, 0.2
    %v10459 = vmul.f32 %v10227, 0.2
    %v10460 = vmul.f32 %v10423, 0.2
    %v10461 = vmul.f32 %v10230, 0.2
    %v10462 = vmul.f32 %v10426, 0.2
    %v10463 = vmul.f32 %v10232, 0.2
    %v10464 = vmul.f32 %v10428, 0.2
    %v10465 = vmul.f32 %v10235, 0.2
    %v10466 = vmul.f32 %v10431, 0.2
    %v10467 = vmul.f32 %v10237, 0.2
    %v10468 = vmul.f32 %v10433, 0.2
    %v10469 = vmul.f32 %v10240, 0.2
    %v10470 = vmul.f32 %v10436, 0.2
    %v10471 = vmul.f32 %v10242, 0.2
    %v10472 = vmul.f32 %v10438, 0.2
    %v10473 = vmul.f32 %v10245, 0.2
    %v10474 = vmul.f32 %v10441, 0.2
    %v10475 = vmul.f32 %v10247, 0.2
    %v10476 = vmul.f32 %v10443, 0.2
    %v10477 = vmax.f32 %v10210, %v10445
    %v10478 = vmax.f32 %v10406, %v10446
    %v10479 = vmax.f32 %v10212, %v10447
    %v10480 = vmax.f32 %v10408, %v10448
    %v10481 = vmax.f32 %v10215, %v10449
    %v10482 = vmax.f32 %v10411, %v10450
    %v10483 = vmax.f32 %v10217, %v10451
    %v10484 = vmax.f32 %v10413, %v10452
    %v10485 = vmax.f32 %v10220, %v10453
    %v10486 = vmax.f32 %v10416, %v10454
    %v10487 = vmax.f32 %v10222, %v10455
    %v10488 = vmax.f32 %v10418, %v10456
    %v10489 = vmax.f32 %v10225, %v10457
    %v10490 = vmax.f32 %v10421, %v10458
    %v10491 = vmax.f32 %v10227, %v10459
    %v10492 = vmax.f32 %v10423, %v10460
    %v10493 = vmax.f32 %v10230, %v10461
    %v10494 = vmax.f32 %v10426, %v10462
    %v10495 = vmax.f32 %v10232, %v10463
    %v10496 = vmax.f32 %v10428, %v10464
    %v10497 = vmax.f32 %v10235, %v10465
    %v10498 = vmax.f32 %v10431, %v10466
    %v10499 = vmax.f32 %v10237, %v10467
    %v10500 = vmax.f32 %v10433, %v10468
    %v10501 = vmax.f32 %v10240, %v10469
    %v10502 = vmax.f32 %v10436, %v10470
    %v10503 = vmax.f32 %v10242, %v10471
    %v10504 = vmax.f32 %v10438, %v10472
    %v10505 = vmax.f32 %v10245, %v10473
    %v10506 = vmax.f32 %v10441, %v10474
    %v10507 = vmax.f32 %v10247, %v10475
    %v10508 = vmax.f32 %v10443, %v10476
    %v10509 = vld [vmem:[#allocation14] sm:$0x3]
    %v10510 = vpack.c.bf16 %v10479, %v10477
    %v10511 = vpack.c.bf16 %v10480, %v10478
    %v10512 = vpack.c.bf16 %v10483, %v10481
    %v10513 = vpack.c.bf16 %v10484, %v10482
    %v10514 = vpack.c.bf16 %v10487, %v10485
    %v10515 = vpack.c.bf16 %v10488, %v10486
    %v10516 = vpack.c.bf16 %v10491, %v10489
    %v10517 = vpack.c.bf16 %v10492, %v10490
    %v10518 = vpack.c.bf16 %v10495, %v10493
    %v10519 = vpack.c.bf16 %v10496, %v10494
    %v10520 = vpack.c.bf16 %v10499, %v10497
    %v10521 = vpack.c.bf16 %v10500, %v10498
    %v10522 = vpack.c.bf16 %v10503, %v10501
    %v10523 = vpack.c.bf16 %v10504, %v10502
    %v10524 = vpack.c.bf16 %v10507, %v10505
    %v10525 = vpack.c.bf16 %v10508, %v10506
    %v10526 = vld [vmem:[#allocation2] sm:$0x1]
    %10528 = vset.pattern.permute.xlu0 0
    %10529 = vperm.xlu0 %10528, %v10526
    %v10530 = vpop.permute.xlu0 %10529
    %v10532 = vperm.slane %v10530, 0
    %10534 = vst [vmem:[#allocation1] ss:$9 sm:$0xff] %v10509
    %v10535 = vld [vmem:[#allocation1] sm:$0xff]
    %v10536 = vld [vmem:[#allocation1 + $0x9] sm:$0xff]
    %10539 = vmatpush.bf16.xpose.msra.mxu0 %v10524
    %10540 = vmatpush.bf16.xpose.msra.mxu0 %v10522
    %10541 = vmatpush.bf16.xpose.msra.mxu0 %v10520
    %10542 = vmatpush.bf16.xpose.msra.mxu0 %v10518
    %10543 = vmatpush.bf16.xpose.msra.mxu0 %v10516
    %10544 = vmatpush.bf16.xpose.msra.mxu0 %v10514
    %10545 = vmatpush.bf16.xpose.msra.mxu0 %v10512
    %10546 = vmatpush.bf16.xpose.msra.mxu0 %v10510
    %10547 = vmatmul.bf16.gmra.mxu0 %v10535
    %v10548 = vpop.f32.mrf.mxu0
    %v10549 = vadd.f32 %v10532, %v10548
    %v10550 = vpop.f32.mrf.mxu0
    %10551 = vdwg.mxu0
    %10552 = vmatpush.bf16.xpose.msra.mxu0 %v10525
    %10553 = vmatpush.bf16.xpose.msra.mxu0 %v10523
    %10554 = vmatpush.bf16.xpose.msra.mxu0 %v10521
    %10555 = vmatpush.bf16.xpose.msra.mxu0 %v10519
    %10556 = vmatpush.bf16.xpose.msra.mxu0 %v10517
    %10557 = vmatpush.bf16.xpose.msra.mxu0 %v10515
    %10558 = vmatpush.bf16.xpose.msra.mxu0 %v10513
    %10559 = vmatpush.bf16.xpose.msra.mxu0 %v10511
    %10560 = vmatmul.bf16.gmra.mxu0 %v10536
    %v10561 = vpop.f32.mrf.mxu0
    %v10562 = vadd.f32 %v10549, %v10561
    %v10563 = vpop.f32.mrf.mxu0
    %10564 = vdwg.mxu0
    %v10565 = vsub.f32 0.0, %v10562
    %v10566 = vmul.f32 %v10565, 1.442695
    %v10567 = vpow.pop %v10566
    %v10568 = vadd.f32 %v10567, 1.0
    %v10569 = vrcp.pop %v10568
    %10570 = vst [vmem:[#allocation15] sm:$0x1] %v10569
    // Predicated region
    $region66: #{tpu_custom_call.1} parent=1 // pred_check
      _
    $region67: #{tpu_custom_call.1} parent=1 // pred_check_branch
      %10572 = sbr.rel (0) target = $region69
    $region68: #{tpu_custom_call.1} parent=1 // pred_region
      %10574 = vsyncadd [#allocation5], 0
      %s10576 = sshll.u32 [#allocation15], 4
      %s10577 = int_to_ptr.vmem [resolvable:$true] %s10576
      %s10578 = sshll.u32 %s9, 4
      %s10579 = int_to_ptr.hbm [resolvable:$true] %s10578
      %10581 = dma.vmem_to_hbm [thread:$0]  %s10577, 16, %s10579, [#allocation5]
    $region69: #{tpu_custom_call.1} parent=1 // pred_fallthru
      _
    // Predicated region
    $region70: #{tpu_custom_call.1} parent=1 // pred_check
      _
    $region71: #{tpu_custom_call.1} parent=1 // pred_check_branch
      %10583 = sbr.rel (0) target = $region73
    $region72: #{tpu_custom_call.1} parent=1 // pred_region
      %10585 = dma.done [#allocation5], 16
    $region73: #{tpu_custom_call.1} parent=1 // pred_fallthru
      _
    %10586 = vsyncpa [#allocation4], 1
    %10587 = vsyncpa [#allocation7], 1
    %10588 = vsyncpa [#allocation10], 1
    %10589 = vsyncpa [#allocation13], 1
    %10590 = vsyncpa [#allocation5], 1

</llo_original>
